<compile_context>
chip_gen: v5e
topology: v5e:2x2
jax: 0.10.0
libtpu: 0.0.40
codegen_flags: <defaults>
</compile_context>

<pallas_src>
import math

import numpy as np

import jax
import jax.numpy as jnp
from jax.experimental import pallas as pl
from jax.experimental.pallas import tpu as pltpu


# ----------------------------- in-kernel helpers -----------------------------

def _gelu(x):
    # TODO(synk): tanh-approx GELU; nn.GELU() defaults to the exact erf form
    # (max deviation ~1e-3, below the bf16 matmul noise floor).
    c0 = math.sqrt(2.0 / math.pi)
    return 0.5 * x * (1.0 + jnp.tanh(c0 * (x + 0.044715 * x * x * x)))


# ------------------------------- Pallas kernels ------------------------------

def _make_conv_kernel(N, H, W, cin, cout, kh, pad, stride):
    """Conv2d(kh x kh, padding=pad, stride in {1,2}) on (N, H, W*cin) slabs.

    kw taps + W padding are folded into kh row-Toeplitz weights (W*cin, Wo*cout);
    the H halo lives in a VMEM scratch.
    """
    Ho, Wo = H // stride, W // stride

    def kernel(x_ref, w_ref, b_ref, o_ref, xpad):
        xpad[...] = jnp.zeros(xpad.shape, xpad.dtype)
        xpad[:, pad:pad + H, :] = x_ref[...]
        acc = jnp.zeros((N * H, Wo * cout), jnp.float32)
        for di in range(kh):
            lhs = xpad[:, di:di + H, :].reshape(N * H, W * cin).astype(jnp.bfloat16)
            acc = acc + jnp.dot(lhs, w_ref[di], preferred_element_type=jnp.float32)
        y = (acc + b_ref[...]).reshape(N, H, Wo * cout)
        if stride == 1:
            o_ref[...] = y
        else:
            # TODO(synk): rows computed at stride 1 then decimated in-register;
            # a polyphase row split would halve this (tiny) conv's MXU work.
            for oi in range(Ho):
                o_ref[:, oi:oi + 1, :] = y[:, stride * oi:stride * oi + 1, :]

    return kernel


def _make_block_kernel(N, H, W, cins, cout, has_skip):
    """Fused UnetBlock: conv1+GELU + (t,c)-add + conv2+GELU + skip/residual.

    Decoder channel-concat inputs stay separate; their conv/skip weights are
    split per part so no lane-level concatenation is needed.
    """
    nin = len(cins)

    def kernel(*refs):
        it = iter(refs)
        x_refs = [next(it) for _ in range(nin)]          # (N, H, W*ci) f32
        w1_refs = [next(it) for _ in range(nin)]         # (3, W*ci, W*cout) bf16
        b1 = next(it)                                    # (1, W*cout) f32
        tc = next(it)                                    # (N, W*cout) f32 (pre-tiled)
        w2 = next(it)                                    # (3, W*cout, W*cout) bf16
        b2 = next(it)                                    # (1, W*cout) f32
        ws_refs = [next(it) for _ in range(nin)] if has_skip else []
        bs = next(it) if has_skip else None              # (1, W*cout) f32
        o_ref = next(it)                                 # (N, H, W*cout) f32
        pads = [next(it) for _ in range(nin)]            # VMEM (N, H+2, W*ci) f32
        hpad = next(it)                                  # VMEM (N, H+2, W*cout) f32

        # conv1 (3x3, pad 1) + bias + GELU + per-batch (t + c) projection add
        for xr, pr in zip(x_refs, pads):
            pr[...] = jnp.zeros(pr.shape, pr.dtype)
            pr[:, 1:1 + H, :] = xr[...]
        acc = jnp.zeros((N * H, W * cout), jnp.float32)
        for wr, pr, ci in zip(w1_refs, pads, cins):
            for di in range(3):
                lhs = pr[:, di:di + H, :].reshape(N * H, W * ci).astype(jnp.bfloat16)
                acc = acc + jnp.dot(lhs, wr[di], preferred_element_type=jnp.float32)
        h = _gelu(acc + b1[...]).reshape(N, H, W * cout) + tc[...][:, None, :]

        # conv2 (3x3, pad 1) + bias + GELU  (h never leaves VMEM)
        hpad[...] = jnp.zeros(hpad.shape, hpad.dtype)
        hpad[:, 1:1 + H, :] = h
        acc2 = jnp.zeros((N * H, W * cout), jnp.float32)
        for di in range(3):
            lhs = hpad[:, di:di + H, :].reshape(N * H, W * cout).astype(jnp.bfloat16)
            acc2 = acc2 + jnp.dot(lhs, w2[di], preferred_element_type=jnp.float32)
        y = _gelu(acc2 + b2[...])

        # fused 1x1 skip conv or identity residual
        if has_skip:
            s = bs[...]
            for wr, xr, ci in zip(ws_refs, x_refs, cins):
                s = s + jnp.dot(xr[...].reshape(N * H, W * ci).astype(jnp.bfloat16),
                                wr[...], preferred_element_type=jnp.float32)
            y = y + s
        else:
            y = y + x_refs[0][...].reshape(N * H, W * cins[0])

        o_ref[...] = y.reshape(N, H, W * cout)

    return kernel


def _make_convT_kernel(N, H, W, cin, cout):
    """ConvTranspose2d(k=4, s=2, p=1): 4 polyphase dots, interleaved output."""

    def kernel(x_ref, w_ref, b_ref, o_ref, xpad):
        # w_ref: (4, W*cin, 2W*cout) indexed by (a*2 + di); the output-column
        # parity interleave is folded into the weight.  o_ref: (N, 2H, 2W*cout).
        xpad[...] = jnp.zeros(xpad.shape, xpad.dtype)
        xpad[:, 1:1 + H, :] = x_ref[...]
        for a in range(2):
            acc = jnp.zeros((N * H, 2 * W * cout), jnp.float32)
            for di in range(2):
                lhs = xpad[:, a + di:a + di + H, :].reshape(N * H, W * cin)
                acc = acc + jnp.dot(lhs.astype(jnp.bfloat16), w_ref[a * 2 + di],
                                    preferred_element_type=jnp.float32)
            ya = (acc + b_ref[...]).reshape(N, H, 2 * W * cout)
            for m in range(H):                        # row (y-parity) interleave
                r = 2 * m + a
                o_ref[:, r:r + 1, :] = ya[:, m:m + 1, :]

    return kernel


def _make_attn_kernel(N, H, W, C):
    """Squeeze-excite channel attention: x * sigmoid(Linear(mean_{H,W}(x)))."""

    def kernel(x_ref, p_ref, q_ref, w_ref, b_ref, o_ref):
        x = x_ref[...]                                                # (N, H, W*C)
        pooled = jnp.dot(x.reshape(N * H, W * C), p_ref[...],
                         preferred_element_type=jnp.float32)         # mean over W
        pooled = jnp.mean(pooled.reshape(N, H, C), axis=1)           # mean over H
        logits = jnp.dot(pooled.astype(jnp.bfloat16), w_ref[...],
                         preferred_element_type=jnp.float32) + b_ref[...]
        scale = 1.0 / (1.0 + jnp.exp(-logits))                       # (N, C)
        scale_t = jnp.dot(scale, q_ref[...],
                          preferred_element_type=jnp.float32)        # (N, W*C)
        o_ref[...] = x * scale_t[:, None, :]

    return kernel


def _tc_kernel(t_ref, c_ref, w1, b1, w2, b2, tw, cw, tcb, o_ref):
    """t-embedding MLP + ALL per-block (t, c) projections in one kernel."""
    temb = jnp.dot(t_ref[...].astype(jnp.bfloat16), w1[...],
                   preferred_element_type=jnp.float32) + b1[...]
    temb = _gelu(temb)
    temb = jnp.dot(temb.astype(jnp.bfloat16), w2[...],
                   preferred_element_type=jnp.float32) + b2[...]
    out = jnp.dot(temb.astype(jnp.bfloat16), tw[...],
                  preferred_element_type=jnp.float32)
    out = out + jnp.dot(c_ref[...].astype(jnp.bfloat16), cw[...],
                        preferred_element_type=jnp.float32)
    o_ref[...] = out + tcb[...]


# --------------------------- weight preparation (init) -----------------------

def _toeplitz(w, W, Wo, stride, pad):
    """torch conv weight (Cout, Cin, kh, kw) -> (kh, W*Cin, Wo*Cout) bf16,
    with the kw taps and W zero-padding folded into a banded matrix."""
    cout, cin, kh, kw = w.shape
    out = np.zeros((kh, W * cin, Wo * cout), np.float32)
    for di in range(kh):
        for oj in range(Wo):
            for dj in range(kw):
                jin = stride * oj + dj - pad
                if 0 <= jin < W:
                    out[di, jin * cin:(jin + 1) * cin,
                        oj * cout:(oj + 1) * cout] = w[:, :, di, dj].T
    return jnp.asarray(out, jnp.bfloat16)


def _toeplitz_convT(w, W):
    """torch ConvTranspose2d(k=4,s=2,p=1) weight (Cin, Cout, 4, 4) ->
    (4, W*Cin, 2W*Cout) polyphase matrices indexed by (a*2 + di); output-column
    parity is interleaved inside the matrix."""
    cin, cout = w.shape[0], w.shape[1]
    out = np.zeros((2, 2, W * cin, 2 * W * cout), np.float32)
    for a in range(2):
        for di in range(2):
            ky = (3 - a) - 2 * di
            for b in range(2):
                for dj in range(2):
                    kx = (3 - b) - 2 * dj
                    for jout in range(W):
                        jin = jout + dj + b - 1
                        if 0 <= jin < W:
                            out[a, di, jin * cin:(jin + 1) * cin,
                                (2 * jout + b) * cout:(2 * jout + b + 1) * cout] = \
                                w[:, :, ky, kx]
    return jnp.asarray(out.reshape(4, W * cin, 2 * W * cout), jnp.bfloat16)


def _tile_bias(b, Wo):
    return jnp.asarray(np.tile(np.asarray(b), Wo)[None, :], jnp.float32)


# ---------------------------------- init --------------------------------------

def unet_init(key, in_dim, out_dim, emb_dim, ch_mult, t_dim, c_dim, num_blocks, hw):
    H, W = hw
    kit = iter(jax.random.split(key, 256))

    def conv_init(cin, cout, k):
        k1, k2 = jax.random.split(next(kit))
        s = 1.0 / math.sqrt(cin * k * k)
        return (np.asarray(jax.random.uniform(k1, (cout, cin, k, k), jnp.float32, -s, s)),
                np.asarray(jax.random.uniform(k2, (cout,), jnp.float32, -s, s)))

    def convT_init(cin, cout, k):
        k1, k2 = jax.random.split(next(kit))
        s = 1.0 / math.sqrt(cout * k * k)
        return (np.asarray(jax.random.uniform(k1, (cin, cout, k, k), jnp.float32, -s, s)),
                np.asarray(jax.random.uniform(k2, (cout,), jnp.float32, -s, s)))

    def linear_init(din, dout):
        k1, k2 = jax.random.split(next(kit))
        s = 1.0 / math.sqrt(din)
        return (np.asarray(jax.random.uniform(k1, (dout, din), jnp.float32, -s, s)),
                np.asarray(jax.random.uniform(k2, (dout,), jnp.float32, -s, s)))

    params = {"out_dim": out_dim}

    lw1, lb1 = linear_init(t_dim, t_dim)
    lw2, lb2 = linear_init(t_dim, t_dim)
    params["t_mlp"] = (jnp.asarray(lw1.T, jnp.bfloat16),
                       jnp.asarray(lb1[None, :], jnp.float32),
                       jnp.asarray(lw2.T, jnp.bfloat16),
                       jnp.asarray(lb2[None, :], jnp.float32))

    w, b = conv_init(in_dim, emb_dim, 7)
    params["in_conv"] = dict(w=_toeplitz(w, W, W, 1, 3), b=_tile_bias(b, W),
                             cin=in_dim, cout=emb_dim, k=7, pad=3, stride=1, H=H, W=W)

    tc_wt, tc_wc, tc_b, tc_off = [], [], [], [0]

    def make_block(cin_parts, cout, Hc, Wc):
        cin_parts = tuple(int(v) for v in cin_parts)
        cout = int(cout)
        p = dict(cins=cin_parts, cout=cout, H=Hc, W=Wc, tc_off=tc_off[0])
        w1, b1 = conv_init(sum(cin_parts), cout, 3)
        off, w1s = 0, []
        for cp in cin_parts:
            w1s.append(_toeplitz(w1[:, off:off + cp], Wc, Wc, 1, 1))
            off += cp
        p["w1"], p["b1"] = w1s, _tile_bias(b1, Wc)
        w2, b2 = conv_init(cout, cout, 3)
        p["w2"], p["b2"] = _toeplitz(w2, Wc, Wc, 1, 1), _tile_bias(b2, Wc)
        if sum(cin_parts) != cout:
            sw, sb = conv_init(sum(cin_parts), cout, 1)
            off, wss = 0, []
            for cp in cin_parts:
                wss.append(_toeplitz(sw[:, off:off + cp], Wc, Wc, 1, 0)[0])
                off += cp
            p["ws"], p["bs"] = wss, _tile_bias(sb, Wc)
        tw, tb = linear_init(t_dim, cout)
        cw, cb = linear_init(c_dim, cout)
        tc_wt.append(tw.T)
        tc_wc.append(cw.T)
        tc_b.append(tb + cb)
        tc_off[0] += cout
        return p

    Hc, Wc, cur = H, W, emb_dim
    down = []
    for i in range(1, num_blocks + 1):
        nxt = emb_dim * 2 ** (ch_mult * i)
        down.append(("block", make_block((cur,), nxt, Hc, Wc)))
        if i != num_blocks + 1:          # as in the PyTorch reference (always true)
            w, b = conv_init(nxt, nxt, 3)
            down.append(("down", dict(w=_toeplitz(w, Wc, Wc // 2, 2, 1),
                                      b=_tile_bias(b, Wc // 2), cin=nxt, cout=nxt,
                                      k=3, pad=1, stride=2, H=Hc, W=Wc)))
            Hc, Wc = Hc // 2, Wc // 2
        cur = nxt
    params["down"] = down

    inter = cur
    aw, ab = linear_init(inter, inter)
    eye = np.eye(inter, dtype=np.float32)
    params["intermediate"] = [
        ("block", make_block((inter,), inter, Hc, Wc)),
        ("attn", dict(w=jnp.asarray(aw.T, jnp.bfloat16),
                      b=jnp.asarray(ab[None, :], jnp.float32),
                      p=jnp.asarray(np.tile(eye, (Wc, 1)) / Wc, jnp.float32),
                      q=jnp.asarray(np.tile(eye, (1, Wc)), jnp.float32),
                      C=inter, H=Hc, W=Wc)),
        ("block", make_block((inter,), inter, Hc, Wc)),
    ]

    up = []
    for i in range(num_blocks, -1, -1):
        cdim = emb_dim * 2 ** (ch_mult * i)
        ndim = emb_dim * 2 ** (ch_mult * (i - 1))
        if i > 0:
            w, b = convT_init(cdim, cdim, 4)
            up.append(("convT", dict(w=_toeplitz_convT(w, Wc), b=_tile_bias(b, 2 * Wc),
                                     cin=cdim, cout=cdim, H=Hc, W=Wc)))
            Hc, Wc = Hc * 2, Wc * 2
            up.append(("block", make_block((cdim, cdim), int(ndim), Hc, Wc)))
        else:
            up.append(("block", make_block((cdim,), cdim, Hc, Wc)))
            up.append(("block", make_block((cdim,), out_dim, Hc, Wc)))
    params["up"] = up

    w, b = conv_init(out_dim, out_dim, 7)
    params["out_conv"] = dict(w=_toeplitz(w, Wc, Wc, 1, 3), b=_tile_bias(b, Wc),
                              cin=out_dim, cout=out_dim, k=7, pad=3, stride=1, H=Hc, W=Wc)

    params["tc_wt"] = jnp.asarray(np.concatenate(tc_wt, axis=1), jnp.bfloat16)
    params["tc_wc"] = jnp.asarray(np.concatenate(tc_wc, axis=1), jnp.bfloat16)
    params["tc_b"] = jnp.asarray(np.concatenate(tc_b)[None, :], jnp.float32)
    return params


# --------------------------------- forward ------------------------------------

def unet_apply(params, x_nchw, t, c):
    N = x_nchw.shape[0]
    out_dim = params["out_dim"]

    x = jnp.transpose(x_nchw, (0, 2, 3, 1))
    x = x.reshape(N, x.shape[1], x.shape[2] * x.shape[3])       # (N, H, W*C)

    w1, b1, w2, b2 = params["t_mlp"]
    total = params["tc_wt"].shape[1]
    tc_all = pl.pallas_call(
        _tc_kernel,
        out_shape=jax.ShapeDtypeStruct((N, total), jnp.float32),
    )(t, c, w1, b1, w2, b2, params["tc_wt"], params["tc_wc"], params["tc_b"])

    def run_conv(xin, p):
        Hc, Wc, s = p["H"], p["W"], p["stride"]
        Ho, Wo = Hc // s, Wc // s
        return pl.pallas_call(
            _make_conv_kernel(N, Hc, Wc, p["cin"], p["cout"], p["k"], p["pad"], s),
            out_shape=jax.ShapeDtypeStruct((N, Ho, Wo * p["cout"]), jnp.float32),
            scratch_shapes=[pltpu.VMEM((N, Hc + 2 * p["pad"], Wc * p["cin"]),
                                       jnp.float32)],
        )(xin, p["w"], p["b"])

    def run_block(p, xs):
        Hc, Wc, cins, cout = p["H"], p["W"], p["cins"], p["cout"]
        has_skip = "ws" in p
        tc_row = tc_all[:, p["tc_off"]:p["tc_off"] + cout]
        tc_tiled = jnp.tile(tc_row, (1, Wc))                     # (N, Wc*cout)
        args = list(xs) + list(p["w1"]) + [p["b1"], tc_tiled, p["w2"], p["b2"]]
        if has_skip:
            args += list(p["ws"]) + [p["bs"]]
        scratch = [pltpu.VMEM((N, Hc + 2, Wc * ci), jnp.float32) for ci in cins]
        scratch.append(pltpu.VMEM((N, Hc + 2, Wc * cout), jnp.float32))
        return pl.pallas_call(
            _make_block_kernel(N, Hc, Wc, cins, cout, has_skip),
            out_shape=jax.ShapeDtypeStruct((N, Hc, Wc * cout), jnp.float32),
            scratch_shapes=scratch,
        )(*args)

    x = run_conv(x, params["in_conv"])

    residuals = []
    for kind, p in params["down"]:
        if kind == "block":
            x = run_block(p, [x])
            residuals.append(x)
        else:
            x = run_conv(x, p)

    for kind, p in params["intermediate"]:
        if kind == "block":
            x = run_block(p, [x])
        else:
            x = pl.pallas_call(
                _make_attn_kernel(N, p["H"], p["W"], p["C"]),
                out_shape=jax.ShapeDtypeStruct((N, p["H"], p["W"] * p["C"]),
                                               jnp.float32),
            )(x, p["p"], p["q"], p["w"], p["b"])

    for kind, p in params["up"]:
        if kind == "convT":
            Hc, Wc, cin, cout = p["H"], p["W"], p["cin"], p["cout"]
            x = pl.pallas_call(
                _make_convT_kernel(N, Hc, Wc, cin, cout),
                out_shape=jax.ShapeDtypeStruct((N, 2 * Hc, 2 * Wc * cout), jnp.float32),
                scratch_shapes=[pltpu.VMEM((N, Hc + 2, Wc * cin), jnp.float32)],
            )(x, p["w"], p["b"])
        else:
            if residuals:
                x = run_block(p, [x, residuals.pop()])
            else:
                x = run_block(p, [x])

    x = run_conv(x, params["out_conv"])
    Hc, Wc = params["out_conv"]["H"], params["out_conv"]["W"]
    return jnp.transpose(x.reshape(N, Hc, Wc, out_dim), (0, 3, 1, 2))


# ----------------------------------- main --------------------------------------

if __name__ == "__main__":
    in_dim, out_dim, emb_dim, ch_mult = 4, 4, 8, 1
    t_dim, c_dim, num_blocks = 16, 16, 1
    N, H, W = 2, 16, 16

    key = jax.random.PRNGKey(0)
    kp, kx, kt, kc = jax.random.split(key, 4)
    params = unet_init(kp, in_dim, out_dim, emb_dim, ch_mult,
                       t_dim, c_dim, num_blocks, (H, W))

    x = jax.random.normal(kx, (N, in_dim, H, W), jnp.float32)   # NCHW like PyTorch
    t = jax.random.normal(kt, (N, t_dim), jnp.float32)
    c = jax.random.normal(kc, (N, c_dim), jnp.float32)

    fwd = jax.jit(lambda x, t, c: unet_apply(params, x, t, c))
    y = fwd(x, t, c)
    jax.block_until_ready(y)
    assert y.shape == (N, out_dim, H, W) and y.dtype == jnp.float32
    print("KERNEL_OK")
</pallas_src>

<mosaic_0001>
module attributes {stable_mosaic.version = 11 : i64} {
  func.func @_tc_kernel(%arg0: memref<2x16xf32, #tpu.memory_space<vmem>>, %arg1: memref<2x16xf32, #tpu.memory_space<vmem>>, %arg2: memref<16x16xbf16, #tpu.memory_space<vmem>>, %arg3: memref<1x16xf32, #tpu.memory_space<vmem>>, %arg4: memref<16x16xbf16, #tpu.memory_space<vmem>>, %arg5: memref<1x16xf32, #tpu.memory_space<vmem>>, %arg6: memref<16x68xbf16, #tpu.memory_space<vmem>>, %arg7: memref<16x68xbf16, #tpu.memory_space<vmem>>, %arg8: memref<1x68xf32, #tpu.memory_space<vmem>>, %arg9: memref<2x68xf32, #tpu.memory_space<vmem>>) attributes {dimension_semantics = [], scalar_prefetch = 0 : i64, scratch_operands = 0 : i64, tpu.core_type = #tpu.core_type<tc>} {
    %c0 = arith.constant 0 : index
    %c0_0 = arith.constant 0 : index
    %0 = vector.load %arg0[%c0, %c0_0] : memref<2x16xf32, #tpu.memory_space<vmem>>, vector<2x16xf32>
    %1 = arith.truncf %0 : vector<2x16xf32> to vector<2x16xbf16>
    %c0_1 = arith.constant 0 : index
    %c0_2 = arith.constant 0 : index
    %2 = vector.load %arg2[%c0_1, %c0_2] : memref<16x16xbf16, #tpu.memory_space<vmem>>, vector<16x16xbf16>
    %cst = arith.constant dense<0.000000e+00> : vector<2x16xf32>
    %3 = tpu.matmul %1, %2, %cst {dimension_numbers = #tpu.dot_dimension_numbers<[1], [0], [0], [1], [0, 0, 1, 1], [], []>} : vector<2x16xbf16>, vector<16x16xbf16>, vector<2x16xf32> -> vector<2x16xf32>
    %c0_3 = arith.constant 0 : index
    %c0_4 = arith.constant 0 : index
    %4 = vector.load %arg3[%c0_3, %c0_4] : memref<1x16xf32, #tpu.memory_space<vmem>>, vector<1x16xf32>
    %5 = vector.broadcast %4 : vector<1x16xf32> to vector<2x16xf32>
    %6 = arith.addf %3, %5 : vector<2x16xf32>
    %cst_5 = arith.constant 5.000000e-01 : f32
    %7 = vector.broadcast %cst_5 : f32 to vector<2x16xf32>
    %8 = arith.mulf %7, %6 : vector<2x16xf32>
    %cst_6 = arith.constant 4.471500e-02 : f32
    %9 = vector.broadcast %cst_6 : f32 to vector<2x16xf32>
    %10 = arith.mulf %9, %6 : vector<2x16xf32>
    %11 = arith.mulf %10, %6 : vector<2x16xf32>
    %12 = arith.mulf %11, %6 : vector<2x16xf32>
    %13 = arith.addf %6, %12 : vector<2x16xf32>
    %cst_7 = arith.constant 0.797884583 : f32
    %14 = vector.broadcast %cst_7 : f32 to vector<2x16xf32>
    %15 = arith.mulf %14, %13 : vector<2x16xf32>
    %16 = math.tanh %15 : vector<2x16xf32>
    %cst_8 = arith.constant 1.000000e+00 : f32
    %17 = vector.broadcast %cst_8 : f32 to vector<2x16xf32>
    %18 = arith.addf %17, %16 : vector<2x16xf32>
    %19 = arith.mulf %8, %18 : vector<2x16xf32>
    %20 = arith.truncf %19 : vector<2x16xf32> to vector<2x16xbf16>
    %c0_9 = arith.constant 0 : index
    %c0_10 = arith.constant 0 : index
    %21 = vector.load %arg4[%c0_9, %c0_10] : memref<16x16xbf16, #tpu.memory_space<vmem>>, vector<16x16xbf16>
    %cst_11 = arith.constant dense<0.000000e+00> : vector<2x16xf32>
    %22 = tpu.matmul %20, %21, %cst_11 {dimension_numbers = #tpu.dot_dimension_numbers<[1], [0], [0], [1], [0, 0, 1, 1], [], []>} : vector<2x16xbf16>, vector<16x16xbf16>, vector<2x16xf32> -> vector<2x16xf32>
    %c0_12 = arith.constant 0 : index
    %c0_13 = arith.constant 0 : index
    %23 = vector.load %arg5[%c0_12, %c0_13] : memref<1x16xf32, #tpu.memory_space<vmem>>, vector<1x16xf32>
    %24 = vector.broadcast %23 : vector<1x16xf32> to vector<2x16xf32>
    %25 = arith.addf %22, %24 : vector<2x16xf32>
    %26 = arith.truncf %25 : vector<2x16xf32> to vector<2x16xbf16>
    %c0_14 = arith.constant 0 : index
    %c0_15 = arith.constant 0 : index
    %27 = vector.load %arg6[%c0_14, %c0_15] : memref<16x68xbf16, #tpu.memory_space<vmem>>, vector<16x68xbf16>
    %cst_16 = arith.constant dense<0.000000e+00> : vector<2x68xf32>
    %28 = tpu.matmul %26, %27, %cst_16 {dimension_numbers = #tpu.dot_dimension_numbers<[1], [0], [0], [1], [0, 0, 1, 1], [], []>} : vector<2x16xbf16>, vector<16x68xbf16>, vector<2x68xf32> -> vector<2x68xf32>
    %c0_17 = arith.constant 0 : index
    %c0_18 = arith.constant 0 : index
    %29 = vector.load %arg1[%c0_17, %c0_18] : memref<2x16xf32, #tpu.memory_space<vmem>>, vector<2x16xf32>
    %30 = arith.truncf %29 : vector<2x16xf32> to vector<2x16xbf16>
    %c0_19 = arith.constant 0 : index
    %c0_20 = arith.constant 0 : index
    %31 = vector.load %arg7[%c0_19, %c0_20] : memref<16x68xbf16, #tpu.memory_space<vmem>>, vector<16x68xbf16>
    %cst_21 = arith.constant dense<0.000000e+00> : vector<2x68xf32>
    %32 = tpu.matmul %30, %31, %cst_21 {dimension_numbers = #tpu.dot_dimension_numbers<[1], [0], [0], [1], [0, 0, 1, 1], [], []>} : vector<2x16xbf16>, vector<16x68xbf16>, vector<2x68xf32> -> vector<2x68xf32>
    %33 = arith.addf %28, %32 : vector<2x68xf32>
    %c0_22 = arith.constant 0 : index
    %c0_23 = arith.constant 0 : index
    %34 = vector.load %arg8[%c0_22, %c0_23] : memref<1x68xf32, #tpu.memory_space<vmem>>, vector<1x68xf32>
    %35 = vector.broadcast %34 : vector<1x68xf32> to vector<2x68xf32>
    %36 = arith.addf %33, %35 : vector<2x68xf32>
    %c0_24 = arith.constant 0 : index
    %c0_25 = arith.constant 0 : index
    %37 = vector.load %arg9[%c0_24, %c0_25] : memref<2x68xf32, #tpu.memory_space<vmem>>, vector<2x68xf32>
    tpu.vector_store %arg9[%c0_24, %c0_25], %36 {strides = array<i32>} : memref<2x68xf32, #tpu.memory_space<vmem>>, vector<2x68xf32>,
    return
  }
}

module attributes {stable_mosaic.version = 11 : i64} {
  func.func @kernel(%arg0: memref<2x16x64xf32, #tpu.memory_space<vmem>>, %arg1: memref<7x64x128xbf16, #tpu.memory_space<vmem>>, %arg2: memref<1x128xf32, #tpu.memory_space<vmem>>, %arg3: memref<2x16x128xf32, #tpu.memory_space<vmem>>, %arg4: memref<2x22x64xf32, #tpu.memory_space<vmem>>) attributes {dimension_semantics = [], scalar_prefetch = 0 : i64, scratch_operands = 1 : i64, tpu.core_type = #tpu.core_type<tc>} {
    %cst = arith.constant 0.000000e+00 : f32
    %0 = vector.broadcast %cst : f32 to vector<2x22x64xf32>
    %c0 = arith.constant 0 : index
    %c0_0 = arith.constant 0 : index
    %c0_1 = arith.constant 0 : index
    %1 = vector.load %arg4[%c0, %c0_0, %c0_1] : memref<2x22x64xf32, #tpu.memory_space<vmem>>, vector<2x22x64xf32>
    tpu.vector_store %arg4[%c0, %c0_0, %c0_1], %0 {strides = array<i32>} : memref<2x22x64xf32, #tpu.memory_space<vmem>>, vector<2x22x64xf32>,
    %c0_2 = arith.constant 0 : index
    %c0_3 = arith.constant 0 : index
    %c0_4 = arith.constant 0 : index
    %2 = vector.load %arg0[%c0_2, %c0_3, %c0_4] : memref<2x16x64xf32, #tpu.memory_space<vmem>>, vector<2x16x64xf32>
    %c0_5 = arith.constant 0 : index
    %c3 = arith.constant 3 : index
    %c0_6 = arith.constant 0 : index
    %3 = vector.load %arg4[%c0_5, %c3, %c0_6] : memref<2x22x64xf32, #tpu.memory_space<vmem>>, vector<2x16x64xf32>
    tpu.vector_store %arg4[%c0_5, %c3, %c0_6], %2 {strides = array<i32>} : memref<2x22x64xf32, #tpu.memory_space<vmem>>, vector<2x16x64xf32>,
    %cst_7 = arith.constant 0.000000e+00 : f32
    %4 = vector.broadcast %cst_7 : f32 to vector<32x128xf32>
    %c0_8 = arith.constant 0 : index
    %c0_9 = arith.constant 0 : index
    %c0_10 = arith.constant 0 : index
    %5 = vector.load %arg4[%c0_8, %c0_9, %c0_10] : memref<2x22x64xf32, #tpu.memory_space<vmem>>, vector<2x16x64xf32>
    %6 = vector.shape_cast %5 : vector<2x16x64xf32> to vector<32x64xf32>
    %7 = arith.truncf %6 : vector<32x64xf32> to vector<32x64xbf16>
    %c0_11 = arith.constant 0 : index
    %c0_12 = arith.constant 0 : index
    %c0_13 = arith.constant 0 : index
    %8 = vector.load %arg1[%c0_11, %c0_12, %c0_13] : memref<7x64x128xbf16, #tpu.memory_space<vmem>>, vector<1x64x128xbf16>
    %9 = vector.shape_cast %8 : vector<1x64x128xbf16> to vector<64x128xbf16>
    %cst_14 = arith.constant dense<0.000000e+00> : vector<32x128xf32>
    %10 = tpu.matmul %7, %9, %cst_14 {dimension_numbers = #tpu.dot_dimension_numbers<[1], [0], [0], [1], [0, 0, 1, 1], [], []>} : vector<32x64xbf16>, vector<64x128xbf16>, vector<32x128xf32> -> vector<32x128xf32>
    %11 = arith.addf %4, %10 : vector<32x128xf32>
    %c0_15 = arith.constant 0 : index
    %c1 = arith.constant 1 : index
    %c0_16 = arith.constant 0 : index
    %12 = vector.load %arg4[%c0_15, %c1, %c0_16] : memref<2x22x64xf32, #tpu.memory_space<vmem>>, vector<2x16x64xf32>
    %13 = vector.shape_cast %12 : vector<2x16x64xf32> to vector<32x64xf32>
    %14 = arith.truncf %13 : vector<32x64xf32> to vector<32x64xbf16>
    %c1_17 = arith.constant 1 : index
    %c0_18 = arith.constant 0 : index
    %c0_19 = arith.constant 0 : index
    %15 = vector.load %arg1[%c1_17, %c0_18, %c0_19] : memref<7x64x128xbf16, #tpu.memory_space<vmem>>, vector<1x64x128xbf16>
    %16 = vector.shape_cast %15 : vector<1x64x128xbf16> to vector<64x128xbf16>
    %cst_20 = arith.constant dense<0.000000e+00> : vector<32x128xf32>
    %17 = tpu.matmul %14, %16, %cst_20 {dimension_numbers = #tpu.dot_dimension_numbers<[1], [0], [0], [1], [0, 0, 1, 1], [], []>} : vector<32x64xbf16>, vector<64x128xbf16>, vector<32x128xf32> -> vector<32x128xf32>
    %18 = arith.addf %11, %17 : vector<32x128xf32>
    %c0_21 = arith.constant 0 : index
    %c2 = arith.constant 2 : index
    %c0_22 = arith.constant 0 : index
    %19 = vector.load %arg4[%c0_21, %c2, %c0_22] : memref<2x22x64xf32, #tpu.memory_space<vmem>>, vector<2x16x64xf32>
    %20 = vector.shape_cast %19 : vector<2x16x64xf32> to vector<32x64xf32>
    %21 = arith.truncf %20 : vector<32x64xf32> to vector<32x64xbf16>
    %c2_23 = arith.constant 2 : index
    %c0_24 = arith.constant 0 : index
    %c0_25 = arith.constant 0 : index
    %22 = vector.load %arg1[%c2_23, %c0_24, %c0_25] : memref<7x64x128xbf16, #tpu.memory_space<vmem>>, vector<1x64x128xbf16>
    %23 = vector.shape_cast %22 : vector<1x64x128xbf16> to vector<64x128xbf16>
    %cst_26 = arith.constant dense<0.000000e+00> : vector<32x128xf32>
    %24 = tpu.matmul %21, %23, %cst_26 {dimension_numbers = #tpu.dot_dimension_numbers<[1], [0], [0], [1], [0, 0, 1, 1], [], []>} : vector<32x64xbf16>, vector<64x128xbf16>, vector<32x128xf32> -> vector<32x128xf32>
    %25 = arith.addf %18, %24 : vector<32x128xf32>
    %c0_27 = arith.constant 0 : index
    %c3_28 = arith.constant 3 : index
    %c0_29 = arith.constant 0 : index
    %26 = vector.load %arg4[%c0_27, %c3_28, %c0_29] : memref<2x22x64xf32, #tpu.memory_space<vmem>>, vector<2x16x64xf32>
    %27 = vector.shape_cast %26 : vector<2x16x64xf32> to vector<32x64xf32>
    %28 = arith.truncf %27 : vector<32x64xf32> to vector<32x64xbf16>
    %c3_30 = arith.constant 3 : index
    %c0_31 = arith.constant 0 : index
    %c0_32 = arith.constant 0 : index
    %29 = vector.load %arg1[%c3_30, %c0_31, %c0_32] : memref<7x64x128xbf16, #tpu.memory_space<vmem>>, vector<1x64x128xbf16>
    %30 = vector.shape_cast %29 : vector<1x64x128xbf16> to vector<64x128xbf16>
    %cst_33 = arith.constant dense<0.000000e+00> : vector<32x128xf32>
    %31 = tpu.matmul %28, %30, %cst_33 {dimension_numbers = #tpu.dot_dimension_numbers<[1], [0], [0], [1], [0, 0, 1, 1], [], []>} : vector<32x64xbf16>, vector<64x128xbf16>, vector<32x128xf32> -> vector<32x128xf32>
    %32 = arith.addf %25, %31 : vector<32x128xf32>
    %c0_34 = arith.constant 0 : index
    %c4 = arith.constant 4 : index
    %c0_35 = arith.constant 0 : index
    %33 = vector.load %arg4[%c0_34, %c4, %c0_35] : memref<2x22x64xf32, #tpu.memory_space<vmem>>, vector<2x16x64xf32>
    %34 = vector.shape_cast %33 : vector<2x16x64xf32> to vector<32x64xf32>
    %35 = arith.truncf %34 : vector<32x64xf32> to vector<32x64xbf16>
    %c4_36 = arith.constant 4 : index
    %c0_37 = arith.constant 0 : index
    %c0_38 = arith.constant 0 : index
    %36 = vector.load %arg1[%c4_36, %c0_37, %c0_38] : memref<7x64x128xbf16, #tpu.memory_space<vmem>>, vector<1x64x128xbf16>
    %37 = vector.shape_cast %36 : vector<1x64x128xbf16> to vector<64x128xbf16>
    %cst_39 = arith.constant dense<0.000000e+00> : vector<32x128xf32>
    %38 = tpu.matmul %35, %37, %cst_39 {dimension_numbers = #tpu.dot_dimension_numbers<[1], [0], [0], [1], [0, 0, 1, 1], [], []>} : vector<32x64xbf16>, vector<64x128xbf16>, vector<32x128xf32> -> vector<32x128xf32>
    %39 = arith.addf %32, %38 : vector<32x128xf32>
    %c0_40 = arith.constant 0 : index
    %c5 = arith.constant 5 : index
    %c0_41 = arith.constant 0 : index
    %40 = vector.load %arg4[%c0_40, %c5, %c0_41] : memref<2x22x64xf32, #tpu.memory_space<vmem>>, vector<2x16x64xf32>
    %41 = vector.shape_cast %40 : vector<2x16x64xf32> to vector<32x64xf32>
    %42 = arith.truncf %41 : vector<32x64xf32> to vector<32x64xbf16>
    %c5_42 = arith.constant 5 : index
    %c0_43 = arith.constant 0 : index
    %c0_44 = arith.constant 0 : index
    %43 = vector.load %arg1[%c5_42, %c0_43, %c0_44] : memref<7x64x128xbf16, #tpu.memory_space<vmem>>, vector<1x64x128xbf16>
    %44 = vector.shape_cast %43 : vector<1x64x128xbf16> to vector<64x128xbf16>
    %cst_45 = arith.constant dense<0.000000e+00> : vector<32x128xf32>
    %45 = tpu.matmul %42, %44, %cst_45 {dimension_numbers = #tpu.dot_dimension_numbers<[1], [0], [0], [1], [0, 0, 1, 1], [], []>} : vector<32x64xbf16>, vector<64x128xbf16>, vector<32x128xf32> -> vector<32x128xf32>
    %46 = arith.addf %39, %45 : vector<32x128xf32>
    %c0_46 = arith.constant 0 : index
    %c6 = arith.constant 6 : index
    %c0_47 = arith.constant 0 : index
    %47 = vector.load %arg4[%c0_46, %c6, %c0_47] : memref<2x22x64xf32, #tpu.memory_space<vmem>>, vector<2x16x64xf32>
    %48 = vector.shape_cast %47 : vector<2x16x64xf32> to vector<32x64xf32>
    %49 = arith.truncf %48 : vector<32x64xf32> to vector<32x64xbf16>
    %c6_48 = arith.constant 6 : index
    %c0_49 = arith.constant 0 : index
    %c0_50 = arith.constant 0 : index
    %50 = vector.load %arg1[%c6_48, %c0_49, %c0_50] : memref<7x64x128xbf16, #tpu.memory_space<vmem>>, vector<1x64x128xbf16>
    %51 = vector.shape_cast %50 : vector<1x64x128xbf16> to vector<64x128xbf16>
    %cst_51 = arith.constant dense<0.000000e+00> : vector<32x128xf32>
    %52 = tpu.matmul %49, %51, %cst_51 {dimension_numbers = #tpu.dot_dimension_numbers<[1], [0], [0], [1], [0, 0, 1, 1], [], []>} : vector<32x64xbf16>, vector<64x128xbf16>, vector<32x128xf32> -> vector<32x128xf32>
    %53 = arith.addf %46, %52 : vector<32x128xf32>
    %c0_52 = arith.constant 0 : index
    %c0_53 = arith.constant 0 : index
    %54 = vector.load %arg2[%c0_52, %c0_53] : memref<1x128xf32, #tpu.memory_space<vmem>>, vector<1x128xf32>
    %55 = vector.broadcast %54 : vector<1x128xf32> to vector<32x128xf32>
    %56 = arith.addf %53, %55 : vector<32x128xf32>
    %57 = vector.shape_cast %56 : vector<32x128xf32> to vector<2x16x128xf32>
    %c0_54 = arith.constant 0 : index
    %c0_55 = arith.constant 0 : index
    %c0_56 = arith.constant 0 : index
    %58 = vector.load %arg3[%c0_54, %c0_55, %c0_56] : memref<2x16x128xf32, #tpu.memory_space<vmem>>, vector<2x16x128xf32>
    tpu.vector_store %arg3[%c0_54, %c0_55, %c0_56], %57 {strides = array<i32>} : memref<2x16x128xf32, #tpu.memory_space<vmem>>, vector<2x16x128xf32>,
    return
  }
}

module attributes {stable_mosaic.version = 11 : i64} {
  func.func @kernel(%arg0: memref<2x16x128xf32, #tpu.memory_space<vmem>>, %arg1: memref<3x128x256xbf16, #tpu.memory_space<vmem>>, %arg2: memref<1x256xf32, #tpu.memory_space<vmem>>, %arg3: memref<2x256xf32, #tpu.memory_space<vmem>>, %arg4: memref<3x256x256xbf16, #tpu.memory_space<vmem>>, %arg5: memref<1x256xf32, #tpu.memory_space<vmem>>, %arg6: memref<128x256xbf16, #tpu.memory_space<vmem>>, %arg7: memref<1x256xf32, #tpu.memory_space<vmem>>, %arg8: memref<2x16x256xf32, #tpu.memory_space<vmem>>, %arg9: memref<2x18x128xf32, #tpu.memory_space<vmem>>, %arg10: memref<2x18x256xf32, #tpu.memory_space<vmem>>) attributes {dimension_semantics = [], scalar_prefetch = 0 : i64, scratch_operands = 2 : i64, tpu.core_type = #tpu.core_type<tc>} {
    %cst = arith.constant 0.000000e+00 : f32
    %0 = vector.broadcast %cst : f32 to vector<2x18x128xf32>
    %c0 = arith.constant 0 : index
    %c0_0 = arith.constant 0 : index
    %c0_1 = arith.constant 0 : index
    %1 = vector.load %arg9[%c0, %c0_0, %c0_1] : memref<2x18x128xf32, #tpu.memory_space<vmem>>, vector<2x18x128xf32>
    tpu.vector_store %arg9[%c0, %c0_0, %c0_1], %0 {strides = array<i32>} : memref<2x18x128xf32, #tpu.memory_space<vmem>>, vector<2x18x128xf32>,
    %c0_2 = arith.constant 0 : index
    %c0_3 = arith.constant 0 : index
    %c0_4 = arith.constant 0 : index
    %2 = vector.load %arg0[%c0_2, %c0_3, %c0_4] : memref<2x16x128xf32, #tpu.memory_space<vmem>>, vector<2x16x128xf32>
    %c0_5 = arith.constant 0 : index
    %c1 = arith.constant 1 : index
    %c0_6 = arith.constant 0 : index
    %3 = vector.load %arg9[%c0_5, %c1, %c0_6] : memref<2x18x128xf32, #tpu.memory_space<vmem>>, vector<2x16x128xf32>
    tpu.vector_store %arg9[%c0_5, %c1, %c0_6], %2 {strides = array<i32>} : memref<2x18x128xf32, #tpu.memory_space<vmem>>, vector<2x16x128xf32>,
    %cst_7 = arith.constant 0.000000e+00 : f32
    %4 = vector.broadcast %cst_7 : f32 to vector<32x256xf32>
    %c0_8 = arith.constant 0 : index
    %c0_9 = arith.constant 0 : index
    %c0_10 = arith.constant 0 : index
    %5 = vector.load %arg9[%c0_8, %c0_9, %c0_10] : memref<2x18x128xf32, #tpu.memory_space<vmem>>, vector<2x16x128xf32>
    %6 = vector.shape_cast %5 : vector<2x16x128xf32> to vector<32x128xf32>
    %7 = arith.truncf %6 : vector<32x128xf32> to vector<32x128xbf16>
    %c0_11 = arith.constant 0 : index
    %c0_12 = arith.constant 0 : index
    %c0_13 = arith.constant 0 : index
    %8 = vector.load %arg1[%c0_11, %c0_12, %c0_13] : memref<3x128x256xbf16, #tpu.memory_space<vmem>>, vector<1x128x256xbf16>
    %9 = vector.shape_cast %8 : vector<1x128x256xbf16> to vector<128x256xbf16>
    %cst_14 = arith.constant dense<0.000000e+00> : vector<32x256xf32>
    %10 = tpu.matmul %7, %9, %cst_14 {dimension_numbers = #tpu.dot_dimension_numbers<[1], [0], [0], [1], [0, 0, 1, 1], [], []>} : vector<32x128xbf16>, vector<128x256xbf16>, vector<32x256xf32> -> vector<32x256xf32>
    %11 = arith.addf %4, %10 : vector<32x256xf32>
    %c0_15 = arith.constant 0 : index
    %c1_16 = arith.constant 1 : index
    %c0_17 = arith.constant 0 : index
    %12 = vector.load %arg9[%c0_15, %c1_16, %c0_17] : memref<2x18x128xf32, #tpu.memory_space<vmem>>, vector<2x16x128xf32>
    %13 = vector.shape_cast %12 : vector<2x16x128xf32> to vector<32x128xf32>
    %14 = arith.truncf %13 : vector<32x128xf32> to vector<32x128xbf16>
    %c1_18 = arith.constant 1 : index
    %c0_19 = arith.constant 0 : index
    %c0_20 = arith.constant 0 : index
    %15 = vector.load %arg1[%c1_18, %c0_19, %c0_20] : memref<3x128x256xbf16, #tpu.memory_space<vmem>>, vector<1x128x256xbf16>
    %16 = vector.shape_cast %15 : vector<1x128x256xbf16> to vector<128x256xbf16>
    %cst_21 = arith.constant dense<0.000000e+00> : vector<32x256xf32>
    %17 = tpu.matmul %14, %16, %cst_21 {dimension_numbers = #tpu.dot_dimension_numbers<[1], [0], [0], [1], [0, 0, 1, 1], [], []>} : vector<32x128xbf16>, vector<128x256xbf16>, vector<32x256xf32> -> vector<32x256xf32>
    %18 = arith.addf %11, %17 : vector<32x256xf32>
    %c0_22 = arith.constant 0 : index
    %c2 = arith.constant 2 : index
    %c0_23 = arith.constant 0 : index
    %19 = vector.load %arg9[%c0_22, %c2, %c0_23] : memref<2x18x128xf32, #tpu.memory_space<vmem>>, vector<2x16x128xf32>
    %20 = vector.shape_cast %19 : vector<2x16x128xf32> to vector<32x128xf32>
    %21 = arith.truncf %20 : vector<32x128xf32> to vector<32x128xbf16>
    %c2_24 = arith.constant 2 : index
    %c0_25 = arith.constant 0 : index
    %c0_26 = arith.constant 0 : index
    %22 = vector.load %arg1[%c2_24, %c0_25, %c0_26] : memref<3x128x256xbf16, #tpu.memory_space<vmem>>, vector<1x128x256xbf16>
    %23 = vector.shape_cast %22 : vector<1x128x256xbf16> to vector<128x256xbf16>
    %cst_27 = arith.constant dense<0.000000e+00> : vector<32x256xf32>
    %24 = tpu.matmul %21, %23, %cst_27 {dimension_numbers = #tpu.dot_dimension_numbers<[1], [0], [0], [1], [0, 0, 1, 1], [], []>} : vector<32x128xbf16>, vector<128x256xbf16>, vector<32x256xf32> -> vector<32x256xf32>
    %25 = arith.addf %18, %24 : vector<32x256xf32>
    %c0_28 = arith.constant 0 : index
    %c0_29 = arith.constant 0 : index
    %26 = vector.load %arg2[%c0_28, %c0_29] : memref<1x256xf32, #tpu.memory_space<vmem>>, vector<1x256xf32>
    %27 = vector.broadcast %26 : vector<1x256xf32> to vector<32x256xf32>
    %28 = arith.addf %25, %27 : vector<32x256xf32>
    %cst_30 = arith.constant 5.000000e-01 : f32
    %29 = vector.broadcast %cst_30 : f32 to vector<32x256xf32>
    %30 = arith.mulf %29, %28 : vector<32x256xf32>
    %cst_31 = arith.constant 4.471500e-02 : f32
    %31 = vector.broadcast %cst_31 : f32 to vector<32x256xf32>
    %32 = arith.mulf %31, %28 : vector<32x256xf32>
    %33 = arith.mulf %32, %28 : vector<32x256xf32>
    %34 = arith.mulf %33, %28 : vector<32x256xf32>
    %35 = arith.addf %28, %34 : vector<32x256xf32>
    %cst_32 = arith.constant 0.797884583 : f32
    %36 = vector.broadcast %cst_32 : f32 to vector<32x256xf32>
    %37 = arith.mulf %36, %35 : vector<32x256xf32>
    %38 = math.tanh %37 : vector<32x256xf32>
    %cst_33 = arith.constant 1.000000e+00 : f32
    %39 = vector.broadcast %cst_33 : f32 to vector<32x256xf32>
    %40 = arith.addf %39, %38 : vector<32x256xf32>
    %41 = arith.mulf %30, %40 : vector<32x256xf32>
    %42 = vector.shape_cast %41 : vector<32x256xf32> to vector<2x16x256xf32>
    %c0_34 = arith.constant 0 : index
    %c0_35 = arith.constant 0 : index
    %43 = vector.load %arg3[%c0_34, %c0_35] : memref<2x256xf32, #tpu.memory_space<vmem>>, vector<2x256xf32>
    %44 = vector.shape_cast %43 : vector<2x256xf32> to vector<2x1x256xf32>
    %45 = vector.broadcast %44 : vector<2x1x256xf32> to vector<2x16x256xf32>
    %46 = arith.addf %42, %45 : vector<2x16x256xf32>
    %cst_36 = arith.constant 0.000000e+00 : f32
    %47 = vector.broadcast %cst_36 : f32 to vector<2x18x256xf32>
    %c0_37 = arith.constant 0 : index
    %c0_38 = arith.constant 0 : index
    %c0_39 = arith.constant 0 : index
    %48 = vector.load %arg10[%c0_37, %c0_38, %c0_39] : memref<2x18x256xf32, #tpu.memory_space<vmem>>, vector<2x18x256xf32>
    tpu.vector_store %arg10[%c0_37, %c0_38, %c0_39], %47 {strides = array<i32>} : memref<2x18x256xf32, #tpu.memory_space<vmem>>, vector<2x18x256xf32>,
    %c0_40 = arith.constant 0 : index
    %c1_41 = arith.constant 1 : index
    %c0_42 = arith.constant 0 : index
    %49 = vector.load %arg10[%c0_40, %c1_41, %c0_42] : memref<2x18x256xf32, #tpu.memory_space<vmem>>, vector<2x16x256xf32>
    tpu.vector_store %arg10[%c0_40, %c1_41, %c0_42], %46 {strides = array<i32>} : memref<2x18x256xf32, #tpu.memory_space<vmem>>, vector<2x16x256xf32>,
    %cst_43 = arith.constant 0.000000e+00 : f32
    %50 = vector.broadcast %cst_43 : f32 to vector<32x256xf32>
    %c0_44 = arith.constant 0 : index
    %c0_45 = arith.constant 0 : index
    %c0_46 = arith.constant 0 : index
    %51 = vector.load %arg10[%c0_44, %c0_45, %c0_46] : memref<2x18x256xf32, #tpu.memory_space<vmem>>, vector<2x16x256xf32>
    %52 = vector.shape_cast %51 : vector<2x16x256xf32> to vector<32x256xf32>
    %53 = arith.truncf %52 : vector<32x256xf32> to vector<32x256xbf16>
    %c0_47 = arith.constant 0 : index
    %c0_48 = arith.constant 0 : index
    %c0_49 = arith.constant 0 : index
    %54 = vector.load %arg4[%c0_47, %c0_48, %c0_49] : memref<3x256x256xbf16, #tpu.memory_space<vmem>>, vector<1x256x256xbf16>
    %55 = vector.shape_cast %54 : vector<1x256x256xbf16> to vector<256x256xbf16>
    %cst_50 = arith.constant dense<0.000000e+00> : vector<32x256xf32>
    %56 = tpu.matmul %53, %55, %cst_50 {dimension_numbers = #tpu.dot_dimension_numbers<[1], [0], [0], [1], [0, 0, 1, 1], [], []>} : vector<32x256xbf16>, vector<256x256xbf16>, vector<32x256xf32> -> vector<32x256xf32>
    %57 = arith.addf %50, %56 : vector<32x256xf32>
    %c0_51 = arith.constant 0 : index
    %c1_52 = arith.constant 1 : index
    %c0_53 = arith.constant 0 : index
    %58 = vector.load %arg10[%c0_51, %c1_52, %c0_53] : memref<2x18x256xf32, #tpu.memory_space<vmem>>, vector<2x16x256xf32>
    %59 = vector.shape_cast %58 : vector<2x16x256xf32> to vector<32x256xf32>
    %60 = arith.truncf %59 : vector<32x256xf32> to vector<32x256xbf16>
    %c1_54 = arith.constant 1 : index
    %c0_55 = arith.constant 0 : index
    %c0_56 = arith.constant 0 : index
    %61 = vector.load %arg4[%c1_54, %c0_55, %c0_56] : memref<3x256x256xbf16, #tpu.memory_space<vmem>>, vector<1x256x256xbf16>
    %62 = vector.shape_cast %61 : vector<1x256x256xbf16> to vector<256x256xbf16>
    %cst_57 = arith.constant dense<0.000000e+00> : vector<32x256xf32>
    %63 = tpu.matmul %60, %62, %cst_57 {dimension_numbers = #tpu.dot_dimension_numbers<[1], [0], [0], [1], [0, 0, 1, 1], [], []>} : vector<32x256xbf16>, vector<256x256xbf16>, vector<32x256xf32> -> vector<32x256xf32>
    %64 = arith.addf %57, %63 : vector<32x256xf32>
    %c0_58 = arith.constant 0 : index
    %c2_59 = arith.constant 2 : index
    %c0_60 = arith.constant 0 : index
    %65 = vector.load %arg10[%c0_58, %c2_59, %c0_60] : memref<2x18x256xf32, #tpu.memory_space<vmem>>, vector<2x16x256xf32>
    %66 = vector.shape_cast %65 : vector<2x16x256xf32> to vector<32x256xf32>
    %67 = arith.truncf %66 : vector<32x256xf32> to vector<32x256xbf16>
    %c2_61 = arith.constant 2 : index
    %c0_62 = arith.constant 0 : index
    %c0_63 = arith.constant 0 : index
    %68 = vector.load %arg4[%c2_61, %c0_62, %c0_63] : memref<3x256x256xbf16, #tpu.memory_space<vmem>>, vector<1x256x256xbf16>
    %69 = vector.shape_cast %68 : vector<1x256x256xbf16> to vector<256x256xbf16>
    %cst_64 = arith.constant dense<0.000000e+00> : vector<32x256xf32>
    %70 = tpu.matmul %67, %69, %cst_64 {dimension_numbers = #tpu.dot_dimension_numbers<[1], [0], [0], [1], [0, 0, 1, 1], [], []>} : vector<32x256xbf16>, vector<256x256xbf16>, vector<32x256xf32> -> vector<32x256xf32>
    %71 = arith.addf %64, %70 : vector<32x256xf32>
    %c0_65 = arith.constant 0 : index
    %c0_66 = arith.constant 0 : index
    %72 = vector.load %arg5[%c0_65, %c0_66] : memref<1x256xf32, #tpu.memory_space<vmem>>, vector<1x256xf32>
    %73 = vector.broadcast %72 : vector<1x256xf32> to vector<32x256xf32>
    %74 = arith.addf %71, %73 : vector<32x256xf32>
    %cst_67 = arith.constant 5.000000e-01 : f32
    %75 = vector.broadcast %cst_67 : f32 to vector<32x256xf32>
    %76 = arith.mulf %75, %74 : vector<32x256xf32>
    %cst_68 = arith.constant 4.471500e-02 : f32
    %77 = vector.broadcast %cst_68 : f32 to vector<32x256xf32>
    %78 = arith.mulf %77, %74 : vector<32x256xf32>
    %79 = arith.mulf %78, %74 : vector<32x256xf32>
    %80 = arith.mulf %79, %74 : vector<32x256xf32>
    %81 = arith.addf %74, %80 : vector<32x256xf32>
    %cst_69 = arith.constant 0.797884583 : f32
    %82 = vector.broadcast %cst_69 : f32 to vector<32x256xf32>
    %83 = arith.mulf %82, %81 : vector<32x256xf32>
    %84 = math.tanh %83 : vector<32x256xf32>
    %cst_70 = arith.constant 1.000000e+00 : f32
    %85 = vector.broadcast %cst_70 : f32 to vector<32x256xf32>
    %86 = arith.addf %85, %84 : vector<32x256xf32>
    %87 = arith.mulf %76, %86 : vector<32x256xf32>
    %c0_71 = arith.constant 0 : index
    %c0_72 = arith.constant 0 : index
    %88 = vector.load %arg7[%c0_71, %c0_72] : memref<1x256xf32, #tpu.memory_space<vmem>>, vector<1x256xf32>
    %c0_73 = arith.constant 0 : index
    %c0_74 = arith.constant 0 : index
    %c0_75 = arith.constant 0 : index
    %89 = vector.load %arg0[%c0_73, %c0_74, %c0_75] : memref<2x16x128xf32, #tpu.memory_space<vmem>>, vector<2x16x128xf32>
    %90 = vector.shape_cast %89 : vector<2x16x128xf32> to vector<32x128xf32>
    %91 = arith.truncf %90 : vector<32x128xf32> to vector<32x128xbf16>
    %c0_76 = arith.constant 0 : index
    %c0_77 = arith.constant 0 : index
    %92 = vector.load %arg6[%c0_76, %c0_77] : memref<128x256xbf16, #tpu.memory_space<vmem>>, vector<128x256xbf16>
    %cst_78 = arith.constant dense<0.000000e+00> : vector<32x256xf32>
    %93 = tpu.matmul %91, %92, %cst_78 {dimension_numbers = #tpu.dot_dimension_numbers<[1], [0], [0], [1], [0, 0, 1, 1], [], []>} : vector<32x128xbf16>, vector<128x256xbf16>, vector<32x256xf32> -> vector<32x256xf32>
    %94 = vector.broadcast %88 : vector<1x256xf32> to vector<32x256xf32>
    %95 = arith.addf %94, %93 : vector<32x256xf32>
    %96 = arith.addf %87, %95 : vector<32x256xf32>
    %97 = vector.shape_cast %96 : vector<32x256xf32> to vector<2x16x256xf32>
    %c0_79 = arith.constant 0 : index
    %c0_80 = arith.constant 0 : index
    %c0_81 = arith.constant 0 : index
    %98 = vector.load %arg8[%c0_79, %c0_80, %c0_81] : memref<2x16x256xf32, #tpu.memory_space<vmem>>, vector<2x16x256xf32>
    tpu.vector_store %arg8[%c0_79, %c0_80, %c0_81], %97 {strides = array<i32>} : memref<2x16x256xf32, #tpu.memory_space<vmem>>, vector<2x16x256xf32>,
    return
  }
}

module attributes {stable_mosaic.version = 11 : i64} {
  func.func @kernel(%arg0: memref<2x16x256xf32, #tpu.memory_space<vmem>>, %arg1: memref<3x256x128xbf16, #tpu.memory_space<vmem>>, %arg2: memref<1x128xf32, #tpu.memory_space<vmem>>, %arg3: memref<2x8x128xf32, #tpu.memory_space<vmem>>, %arg4: memref<2x18x256xf32, #tpu.memory_space<vmem>>) attributes {dimension_semantics = [], scalar_prefetch = 0 : i64, scratch_operands = 1 : i64, tpu.core_type = #tpu.core_type<tc>} {
    %cst = arith.constant 0.000000e+00 : f32
    %0 = vector.broadcast %cst : f32 to vector<2x18x256xf32>
    %c0 = arith.constant 0 : index
    %c0_0 = arith.constant 0 : index
    %c0_1 = arith.constant 0 : index
    %1 = vector.load %arg4[%c0, %c0_0, %c0_1] : memref<2x18x256xf32, #tpu.memory_space<vmem>>, vector<2x18x256xf32>
    tpu.vector_store %arg4[%c0, %c0_0, %c0_1], %0 {strides = array<i32>} : memref<2x18x256xf32, #tpu.memory_space<vmem>>, vector<2x18x256xf32>,
    %c0_2 = arith.constant 0 : index
    %c0_3 = arith.constant 0 : index
    %c0_4 = arith.constant 0 : index
    %2 = vector.load %arg0[%c0_2, %c0_3, %c0_4] : memref<2x16x256xf32, #tpu.memory_space<vmem>>, vector<2x16x256xf32>
    %c0_5 = arith.constant 0 : index
    %c1 = arith.constant 1 : index
    %c0_6 = arith.constant 0 : index
    %3 = vector.load %arg4[%c0_5, %c1, %c0_6] : memref<2x18x256xf32, #tpu.memory_space<vmem>>, vector<2x16x256xf32>
    tpu.vector_store %arg4[%c0_5, %c1, %c0_6], %2 {strides = array<i32>} : memref<2x18x256xf32, #tpu.memory_space<vmem>>, vector<2x16x256xf32>,
    %cst_7 = arith.constant 0.000000e+00 : f32
    %4 = vector.broadcast %cst_7 : f32 to vector<32x128xf32>
    %c0_8 = arith.constant 0 : index
    %c0_9 = arith.constant 0 : index
    %c0_10 = arith.constant 0 : index
    %5 = vector.load %arg4[%c0_8, %c0_9, %c0_10] : memref<2x18x256xf32, #tpu.memory_space<vmem>>, vector<2x16x256xf32>
    %6 = vector.shape_cast %5 : vector<2x16x256xf32> to vector<32x256xf32>
    %7 = arith.truncf %6 : vector<32x256xf32> to vector<32x256xbf16>
    %c0_11 = arith.constant 0 : index
    %c0_12 = arith.constant 0 : index
    %c0_13 = arith.constant 0 : index
    %8 = vector.load %arg1[%c0_11, %c0_12, %c0_13] : memref<3x256x128xbf16, #tpu.memory_space<vmem>>, vector<1x256x128xbf16>
    %9 = vector.shape_cast %8 : vector<1x256x128xbf16> to vector<256x128xbf16>
    %cst_14 = arith.constant dense<0.000000e+00> : vector<32x128xf32>
    %10 = tpu.matmul %7, %9, %cst_14 {dimension_numbers = #tpu.dot_dimension_numbers<[1], [0], [0], [1], [0, 0, 1, 1], [], []>} : vector<32x256xbf16>, vector<256x128xbf16>, vector<32x128xf32> -> vector<32x128xf32>
    %11 = arith.addf %4, %10 : vector<32x128xf32>
    %c0_15 = arith.constant 0 : index
    %c1_16 = arith.constant 1 : index
    %c0_17 = arith.constant 0 : index
    %12 = vector.load %arg4[%c0_15, %c1_16, %c0_17] : memref<2x18x256xf32, #tpu.memory_space<vmem>>, vector<2x16x256xf32>
    %13 = vector.shape_cast %12 : vector<2x16x256xf32> to vector<32x256xf32>
    %14 = arith.truncf %13 : vector<32x256xf32> to vector<32x256xbf16>
    %c1_18 = arith.constant 1 : index
    %c0_19 = arith.constant 0 : index
    %c0_20 = arith.constant 0 : index
    %15 = vector.load %arg1[%c1_18, %c0_19, %c0_20] : memref<3x256x128xbf16, #tpu.memory_space<vmem>>, vector<1x256x128xbf16>
    %16 = vector.shape_cast %15 : vector<1x256x128xbf16> to vector<256x128xbf16>
    %cst_21 = arith.constant dense<0.000000e+00> : vector<32x128xf32>
    %17 = tpu.matmul %14, %16, %cst_21 {dimension_numbers = #tpu.dot_dimension_numbers<[1], [0], [0], [1], [0, 0, 1, 1], [], []>} : vector<32x256xbf16>, vector<256x128xbf16>, vector<32x128xf32> -> vector<32x128xf32>
    %18 = arith.addf %11, %17 : vector<32x128xf32>
    %c0_22 = arith.constant 0 : index
    %c2 = arith.constant 2 : index
    %c0_23 = arith.constant 0 : index
    %19 = vector.load %arg4[%c0_22, %c2, %c0_23] : memref<2x18x256xf32, #tpu.memory_space<vmem>>, vector<2x16x256xf32>
    %20 = vector.shape_cast %19 : vector<2x16x256xf32> to vector<32x256xf32>
    %21 = arith.truncf %20 : vector<32x256xf32> to vector<32x256xbf16>
    %c2_24 = arith.constant 2 : index
    %c0_25 = arith.constant 0 : index
    %c0_26 = arith.constant 0 : index
    %22 = vector.load %arg1[%c2_24, %c0_25, %c0_26] : memref<3x256x128xbf16, #tpu.memory_space<vmem>>, vector<1x256x128xbf16>
    %23 = vector.shape_cast %22 : vector<1x256x128xbf16> to vector<256x128xbf16>
    %cst_27 = arith.constant dense<0.000000e+00> : vector<32x128xf32>
    %24 = tpu.matmul %21, %23, %cst_27 {dimension_numbers = #tpu.dot_dimension_numbers<[1], [0], [0], [1], [0, 0, 1, 1], [], []>} : vector<32x256xbf16>, vector<256x128xbf16>, vector<32x128xf32> -> vector<32x128xf32>
    %25 = arith.addf %18, %24 : vector<32x128xf32>
    %c0_28 = arith.constant 0 : index
    %c0_29 = arith.constant 0 : index
    %26 = vector.load %arg2[%c0_28, %c0_29] : memref<1x128xf32, #tpu.memory_space<vmem>>, vector<1x128xf32>
    %27 = vector.broadcast %26 : vector<1x128xf32> to vector<32x128xf32>
    %28 = arith.addf %25, %27 : vector<32x128xf32>
    %29 = vector.shape_cast %28 : vector<32x128xf32> to vector<2x16x128xf32>
    %30 = vector.extract_strided_slice %29 {offsets = [0, 0, 0], sizes = [2, 1, 128], strides = [1, 1, 1]} : vector<2x16x128xf32> to vector<2x1x128xf32>
    %c0_30 = arith.constant 0 : index
    %c0_31 = arith.constant 0 : index
    %c0_32 = arith.constant 0 : index
    %31 = vector.load %arg3[%c0_30, %c0_31, %c0_32] : memref<2x8x128xf32, #tpu.memory_space<vmem>>, vector<2x1x128xf32>
    tpu.vector_store %arg3[%c0_30, %c0_31, %c0_32], %30 {strides = array<i32>} : memref<2x8x128xf32, #tpu.memory_space<vmem>>, vector<2x1x128xf32>,
    %32 = vector.extract_strided_slice %29 {offsets = [0, 2, 0], sizes = [2, 1, 128], strides = [1, 1, 1]} : vector<2x16x128xf32> to vector<2x1x128xf32>
    %c0_33 = arith.constant 0 : index
    %c1_34 = arith.constant 1 : index
    %c0_35 = arith.constant 0 : index
    %33 = vector.load %arg3[%c0_33, %c1_34, %c0_35] : memref<2x8x128xf32, #tpu.memory_space<vmem>>, vector<2x1x128xf32>
    tpu.vector_store %arg3[%c0_33, %c1_34, %c0_35], %32 {strides = array<i32>} : memref<2x8x128xf32, #tpu.memory_space<vmem>>, vector<2x1x128xf32>,
    %34 = vector.extract_strided_slice %29 {offsets = [0, 4, 0], sizes = [2, 1, 128], strides = [1, 1, 1]} : vector<2x16x128xf32> to vector<2x1x128xf32>
    %c0_36 = arith.constant 0 : index
    %c2_37 = arith.constant 2 : index
    %c0_38 = arith.constant 0 : index
    %35 = vector.load %arg3[%c0_36, %c2_37, %c0_38] : memref<2x8x128xf32, #tpu.memory_space<vmem>>, vector<2x1x128xf32>
    tpu.vector_store %arg3[%c0_36, %c2_37, %c0_38], %34 {strides = array<i32>} : memref<2x8x128xf32, #tpu.memory_space<vmem>>, vector<2x1x128xf32>,
    %36 = vector.extract_strided_slice %29 {offsets = [0, 6, 0], sizes = [2, 1, 128], strides = [1, 1, 1]} : vector<2x16x128xf32> to vector<2x1x128xf32>
    %c0_39 = arith.constant 0 : index
    %c3 = arith.constant 3 : index
    %c0_40 = arith.constant 0 : index
    %37 = vector.load %arg3[%c0_39, %c3, %c0_40] : memref<2x8x128xf32, #tpu.memory_space<vmem>>, vector<2x1x128xf32>
    tpu.vector_store %arg3[%c0_39, %c3, %c0_40], %36 {strides = array<i32>} : memref<2x8x128xf32, #tpu.memory_space<vmem>>, vector<2x1x128xf32>,
    %38 = vector.extract_strided_slice %29 {offsets = [0, 8, 0], sizes = [2, 1, 128], strides = [1, 1, 1]} : vector<2x16x128xf32> to vector<2x1x128xf32>
    %c0_41 = arith.constant 0 : index
    %c4 = arith.constant 4 : index
    %c0_42 = arith.constant 0 : index
    %39 = vector.load %arg3[%c0_41, %c4, %c0_42] : memref<2x8x128xf32, #tpu.memory_space<vmem>>, vector<2x1x128xf32>
    tpu.vector_store %arg3[%c0_41, %c4, %c0_42], %38 {strides = array<i32>} : memref<2x8x128xf32, #tpu.memory_space<vmem>>, vector<2x1x128xf32>,
    %40 = vector.extract_strided_slice %29 {offsets = [0, 10, 0], sizes = [2, 1, 128], strides = [1, 1, 1]} : vector<2x16x128xf32> to vector<2x1x128xf32>
    %c0_43 = arith.constant 0 : index
    %c5 = arith.constant 5 : index
    %c0_44 = arith.constant 0 : index
    %41 = vector.load %arg3[%c0_43, %c5, %c0_44] : memref<2x8x128xf32, #tpu.memory_space<vmem>>, vector<2x1x128xf32>
    tpu.vector_store %arg3[%c0_43, %c5, %c0_44], %40 {strides = array<i32>} : memref<2x8x128xf32, #tpu.memory_space<vmem>>, vector<2x1x128xf32>,
    %42 = vector.extract_strided_slice %29 {offsets = [0, 12, 0], sizes = [2, 1, 128], strides = [1, 1, 1]} : vector<2x16x128xf32> to vector<2x1x128xf32>
    %c0_45 = arith.constant 0 : index
    %c6 = arith.constant 6 : index
    %c0_46 = arith.constant 0 : index
    %43 = vector.load %arg3[%c0_45, %c6, %c0_46] : memref<2x8x128xf32, #tpu.memory_space<vmem>>, vector<2x1x128xf32>
    tpu.vector_store %arg3[%c0_45, %c6, %c0_46], %42 {strides = array<i32>} : memref<2x8x128xf32, #tpu.memory_space<vmem>>, vector<2x1x128xf32>,
    %44 = vector.extract_strided_slice %29 {offsets = [0, 14, 0], sizes = [2, 1, 128], strides = [1, 1, 1]} : vector<2x16x128xf32> to vector<2x1x128xf32>
    %c0_47 = arith.constant 0 : index
    %c7 = arith.constant 7 : index
    %c0_48 = arith.constant 0 : index
    %45 = vector.load %arg3[%c0_47, %c7, %c0_48] : memref<2x8x128xf32, #tpu.memory_space<vmem>>, vector<2x1x128xf32>
    tpu.vector_store %arg3[%c0_47, %c7, %c0_48], %44 {strides = array<i32>} : memref<2x8x128xf32, #tpu.memory_space<vmem>>, vector<2x1x128xf32>,
    return
  }
}

module attributes {stable_mosaic.version = 11 : i64} {
  func.func @kernel(%arg0: memref<2x8x128xf32, #tpu.memory_space<vmem>>, %arg1: memref<128x16xf32, #tpu.memory_space<vmem>>, %arg2: memref<16x128xf32, #tpu.memory_space<vmem>>, %arg3: memref<16x16xbf16, #tpu.memory_space<vmem>>, %arg4: memref<1x16xf32, #tpu.memory_space<vmem>>, %arg5: memref<2x8x128xf32, #tpu.memory_space<vmem>>) attributes {dimension_semantics = [], scalar_prefetch = 0 : i64, scratch_operands = 0 : i64, tpu.core_type = #tpu.core_type<tc>} {
    %c0 = arith.constant 0 : index
    %c0_0 = arith.constant 0 : index
    %c0_1 = arith.constant 0 : index
    %0 = vector.load %arg0[%c0, %c0_0, %c0_1] : memref<2x8x128xf32, #tpu.memory_space<vmem>>, vector<2x8x128xf32>
    %1 = vector.shape_cast %0 : vector<2x8x128xf32> to vector<16x128xf32>
    %c0_2 = arith.constant 0 : index
    %c0_3 = arith.constant 0 : index
    %2 = vector.load %arg1[%c0_2, %c0_3] : memref<128x16xf32, #tpu.memory_space<vmem>>, vector<128x16xf32>
    %cst = arith.constant dense<0.000000e+00> : vector<16x16xf32>
    %3 = tpu.matmul %1, %2, %cst {dimension_numbers = #tpu.dot_dimension_numbers<[1], [0], [0], [1], [0, 0, 1, 1], [], []>} : vector<16x128xf32>, vector<128x16xf32>, vector<16x16xf32> -> vector<16x16xf32>
    %4 = vector.shape_cast %3 : vector<16x16xf32> to vector<2x8x16xf32>
    %cst_4 = arith.constant dense<0.000000e+00> : vector<2x16xf32>
    %5 = vector.multi_reduction <add>, %4, %cst_4 [1] : vector<2x8x16xf32> to vector<2x16xf32>
    %cst_5 = arith.constant 8.000000e+00 : f32
    %6 = vector.broadcast %cst_5 : f32 to vector<2x16xf32>
    %7 = arith.divf %5, %6 : vector<2x16xf32>
    %8 = arith.truncf %7 : vector<2x16xf32> to vector<2x16xbf16>
    %c0_6 = arith.constant 0 : index
    %c0_7 = arith.constant 0 : index
    %9 = vector.load %arg3[%c0_6, %c0_7] : memref<16x16xbf16, #tpu.memory_space<vmem>>, vector<16x16xbf16>
    %cst_8 = arith.constant dense<0.000000e+00> : vector<2x16xf32>
    %10 = tpu.matmul %8, %9, %cst_8 {dimension_numbers = #tpu.dot_dimension_numbers<[1], [0], [0], [1], [0, 0, 1, 1], [], []>} : vector<2x16xbf16>, vector<16x16xbf16>, vector<2x16xf32> -> vector<2x16xf32>
    %c0_9 = arith.constant 0 : index
    %c0_10 = arith.constant 0 : index
    %11 = vector.load %arg4[%c0_9, %c0_10] : memref<1x16xf32, #tpu.memory_space<vmem>>, vector<1x16xf32>
    %12 = vector.broadcast %11 : vector<1x16xf32> to vector<2x16xf32>
    %13 = arith.addf %10, %12 : vector<2x16xf32>
    %cst_11 = arith.constant 0.000000e+00 : f32
    %14 = vector.broadcast %cst_11 : f32 to vector<2x16xf32>
    %15 = arith.subf %14, %13 : vector<2x16xf32>
    %16 = math.exp %15 : vector<2x16xf32>
    %cst_12 = arith.constant 1.000000e+00 : f32
    %17 = vector.broadcast %cst_12 : f32 to vector<2x16xf32>
    %18 = arith.addf %17, %16 : vector<2x16xf32>
    %cst_13 = arith.constant 1.000000e+00 : f32
    %19 = vector.broadcast %cst_13 : f32 to vector<2x16xf32>
    %20 = arith.divf %19, %18 : vector<2x16xf32>
    %c0_14 = arith.constant 0 : index
    %c0_15 = arith.constant 0 : index
    %21 = vector.load %arg2[%c0_14, %c0_15] : memref<16x128xf32, #tpu.memory_space<vmem>>, vector<16x128xf32>
    %cst_16 = arith.constant dense<0.000000e+00> : vector<2x128xf32>
    %22 = tpu.matmul %20, %21, %cst_16 {dimension_numbers = #tpu.dot_dimension_numbers<[1], [0], [0], [1], [0, 0, 1, 1], [], []>} : vector<2x16xf32>, vector<16x128xf32>, vector<2x128xf32> -> vector<2x128xf32>
    %23 = vector.shape_cast %22 : vector<2x128xf32> to vector<2x1x128xf32>
    %24 = vector.broadcast %23 : vector<2x1x128xf32> to vector<2x8x128xf32>
    %25 = arith.mulf %0, %24 : vector<2x8x128xf32>
    %c0_17 = arith.constant 0 : index
    %c0_18 = arith.constant 0 : index
    %c0_19 = arith.constant 0 : index
    %26 = vector.load %arg5[%c0_17, %c0_18, %c0_19] : memref<2x8x128xf32, #tpu.memory_space<vmem>>, vector<2x8x128xf32>
    tpu.vector_store %arg5[%c0_17, %c0_18, %c0_19], %25 {strides = array<i32>} : memref<2x8x128xf32, #tpu.memory_space<vmem>>, vector<2x8x128xf32>,
    return
  }
}

module attributes {stable_mosaic.version = 11 : i64} {
  func.func @kernel(%arg0: memref<2x8x128xf32, #tpu.memory_space<vmem>>, %arg1: memref<3x128x128xbf16, #tpu.memory_space<vmem>>, %arg2: memref<1x128xf32, #tpu.memory_space<vmem>>, %arg3: memref<2x128xf32, #tpu.memory_space<vmem>>, %arg4: memref<3x128x128xbf16, #tpu.memory_space<vmem>>, %arg5: memref<1x128xf32, #tpu.memory_space<vmem>>, %arg6: memref<2x8x128xf32, #tpu.memory_space<vmem>>, %arg7: memref<2x10x128xf32, #tpu.memory_space<vmem>>, %arg8: memref<2x10x128xf32, #tpu.memory_space<vmem>>) attributes {dimension_semantics = [], scalar_prefetch = 0 : i64, scratch_operands = 2 : i64, tpu.core_type = #tpu.core_type<tc>} {
    %cst = arith.constant 0.000000e+00 : f32
    %0 = vector.broadcast %cst : f32 to vector<2x10x128xf32>
    %c0 = arith.constant 0 : index
    %c0_0 = arith.constant 0 : index
    %c0_1 = arith.constant 0 : index
    %1 = vector.load %arg7[%c0, %c0_0, %c0_1] : memref<2x10x128xf32, #tpu.memory_space<vmem>>, vector<2x10x128xf32>
    tpu.vector_store %arg7[%c0, %c0_0, %c0_1], %0 {strides = array<i32>} : memref<2x10x128xf32, #tpu.memory_space<vmem>>, vector<2x10x128xf32>,
    %c0_2 = arith.constant 0 : index
    %c0_3 = arith.constant 0 : index
    %c0_4 = arith.constant 0 : index
    %2 = vector.load %arg0[%c0_2, %c0_3, %c0_4] : memref<2x8x128xf32, #tpu.memory_space<vmem>>, vector<2x8x128xf32>
    %c0_5 = arith.constant 0 : index
    %c1 = arith.constant 1 : index
    %c0_6 = arith.constant 0 : index
    %3 = vector.load %arg7[%c0_5, %c1, %c0_6] : memref<2x10x128xf32, #tpu.memory_space<vmem>>, vector<2x8x128xf32>
    tpu.vector_store %arg7[%c0_5, %c1, %c0_6], %2 {strides = array<i32>} : memref<2x10x128xf32, #tpu.memory_space<vmem>>, vector<2x8x128xf32>,
    %cst_7 = arith.constant 0.000000e+00 : f32
    %4 = vector.broadcast %cst_7 : f32 to vector<16x128xf32>
    %c0_8 = arith.constant 0 : index
    %c0_9 = arith.constant 0 : index
    %c0_10 = arith.constant 0 : index
    %5 = vector.load %arg7[%c0_8, %c0_9, %c0_10] : memref<2x10x128xf32, #tpu.memory_space<vmem>>, vector<2x8x128xf32>
    %6 = vector.shape_cast %5 : vector<2x8x128xf32> to vector<16x128xf32>
    %7 = arith.truncf %6 : vector<16x128xf32> to vector<16x128xbf16>
    %c0_11 = arith.constant 0 : index
    %c0_12 = arith.constant 0 : index
    %c0_13 = arith.constant 0 : index
    %8 = vector.load %arg1[%c0_11, %c0_12, %c0_13] : memref<3x128x128xbf16, #tpu.memory_space<vmem>>, vector<1x128x128xbf16>
    %9 = vector.shape_cast %8 : vector<1x128x128xbf16> to vector<128x128xbf16>
    %cst_14 = arith.constant dense<0.000000e+00> : vector<16x128xf32>
    %10 = tpu.matmul %7, %9, %cst_14 {dimension_numbers = #tpu.dot_dimension_numbers<[1], [0], [0], [1], [0, 0, 1, 1], [], []>} : vector<16x128xbf16>, vector<128x128xbf16>, vector<16x128xf32> -> vector<16x128xf32>
    %11 = arith.addf %4, %10 : vector<16x128xf32>
    %c0_15 = arith.constant 0 : index
    %c1_16 = arith.constant 1 : index
    %c0_17 = arith.constant 0 : index
    %12 = vector.load %arg7[%c0_15, %c1_16, %c0_17] : memref<2x10x128xf32, #tpu.memory_space<vmem>>, vector<2x8x128xf32>
    %13 = vector.shape_cast %12 : vector<2x8x128xf32> to vector<16x128xf32>
    %14 = arith.truncf %13 : vector<16x128xf32> to vector<16x128xbf16>
    %c1_18 = arith.constant 1 : index
    %c0_19 = arith.constant 0 : index
    %c0_20 = arith.constant 0 : index
    %15 = vector.load %arg1[%c1_18, %c0_19, %c0_20] : memref<3x128x128xbf16, #tpu.memory_space<vmem>>, vector<1x128x128xbf16>
    %16 = vector.shape_cast %15 : vector<1x128x128xbf16> to vector<128x128xbf16>
    %cst_21 = arith.constant dense<0.000000e+00> : vector<16x128xf32>
    %17 = tpu.matmul %14, %16, %cst_21 {dimension_numbers = #tpu.dot_dimension_numbers<[1], [0], [0], [1], [0, 0, 1, 1], [], []>} : vector<16x128xbf16>, vector<128x128xbf16>, vector<16x128xf32> -> vector<16x128xf32>
    %18 = arith.addf %11, %17 : vector<16x128xf32>
    %c0_22 = arith.constant 0 : index
    %c2 = arith.constant 2 : index
    %c0_23 = arith.constant 0 : index
    %19 = vector.load %arg7[%c0_22, %c2, %c0_23] : memref<2x10x128xf32, #tpu.memory_space<vmem>>, vector<2x8x128xf32>
    %20 = vector.shape_cast %19 : vector<2x8x128xf32> to vector<16x128xf32>
    %21 = arith.truncf %20 : vector<16x128xf32> to vector<16x128xbf16>
    %c2_24 = arith.constant 2 : index
    %c0_25 = arith.constant 0 : index
    %c0_26 = arith.constant 0 : index
    %22 = vector.load %arg1[%c2_24, %c0_25, %c0_26] : memref<3x128x128xbf16, #tpu.memory_space<vmem>>, vector<1x128x128xbf16>
    %23 = vector.shape_cast %22 : vector<1x128x128xbf16> to vector<128x128xbf16>
    %cst_27 = arith.constant dense<0.000000e+00> : vector<16x128xf32>
    %24 = tpu.matmul %21, %23, %cst_27 {dimension_numbers = #tpu.dot_dimension_numbers<[1], [0], [0], [1], [0, 0, 1, 1], [], []>} : vector<16x128xbf16>, vector<128x128xbf16>, vector<16x128xf32> -> vector<16x128xf32>
    %25 = arith.addf %18, %24 : vector<16x128xf32>
    %c0_28 = arith.constant 0 : index
    %c0_29 = arith.constant 0 : index
    %26 = vector.load %arg2[%c0_28, %c0_29] : memref<1x128xf32, #tpu.memory_space<vmem>>, vector<1x128xf32>
    %27 = vector.broadcast %26 : vector<1x128xf32> to vector<16x128xf32>
    %28 = arith.addf %25, %27 : vector<16x128xf32>
    %cst_30 = arith.constant 5.000000e-01 : f32
    %29 = vector.broadcast %cst_30 : f32 to vector<16x128xf32>
    %30 = arith.mulf %29, %28 : vector<16x128xf32>
    %cst_31 = arith.constant 4.471500e-02 : f32
    %31 = vector.broadcast %cst_31 : f32 to vector<16x128xf32>
    %32 = arith.mulf %31, %28 : vector<16x128xf32>
    %33 = arith.mulf %32, %28 : vector<16x128xf32>
    %34 = arith.mulf %33, %28 : vector<16x128xf32>
    %35 = arith.addf %28, %34 : vector<16x128xf32>
    %cst_32 = arith.constant 0.797884583 : f32
    %36 = vector.broadcast %cst_32 : f32 to vector<16x128xf32>
    %37 = arith.mulf %36, %35 : vector<16x128xf32>
    %38 = math.tanh %37 : vector<16x128xf32>
    %cst_33 = arith.constant 1.000000e+00 : f32
    %39 = vector.broadcast %cst_33 : f32 to vector<16x128xf32>
    %40 = arith.addf %39, %38 : vector<16x128xf32>
    %41 = arith.mulf %30, %40 : vector<16x128xf32>
    %42 = vector.shape_cast %41 : vector<16x128xf32> to vector<2x8x128xf32>
    %c0_34 = arith.constant 0 : index
    %c0_35 = arith.constant 0 : index
    %43 = vector.load %arg3[%c0_34, %c0_35] : memref<2x128xf32, #tpu.memory_space<vmem>>, vector<2x128xf32>
    %44 = vector.shape_cast %43 : vector<2x128xf32> to vector<2x1x128xf32>
    %45 = vector.broadcast %44 : vector<2x1x128xf32> to vector<2x8x128xf32>
    %46 = arith.addf %42, %45 : vector<2x8x128xf32>
    %cst_36 = arith.constant 0.000000e+00 : f32
    %47 = vector.broadcast %cst_36 : f32 to vector<2x10x128xf32>
    %c0_37 = arith.constant 0 : index
    %c0_38 = arith.constant 0 : index
    %c0_39 = arith.constant 0 : index
    %48 = vector.load %arg8[%c0_37, %c0_38, %c0_39] : memref<2x10x128xf32, #tpu.memory_space<vmem>>, vector<2x10x128xf32>
    tpu.vector_store %arg8[%c0_37, %c0_38, %c0_39], %47 {strides = array<i32>} : memref<2x10x128xf32, #tpu.memory_space<vmem>>, vector<2x10x128xf32>,
    %c0_40 = arith.constant 0 : index
    %c1_41 = arith.constant 1 : index
    %c0_42 = arith.constant 0 : index
    %49 = vector.load %arg8[%c0_40, %c1_41, %c0_42] : memref<2x10x128xf32, #tpu.memory_space<vmem>>, vector<2x8x128xf32>
    tpu.vector_store %arg8[%c0_40, %c1_41, %c0_42], %46 {strides = array<i32>} : memref<2x10x128xf32, #tpu.memory_space<vmem>>, vector<2x8x128xf32>,
    %cst_43 = arith.constant 0.000000e+00 : f32
    %50 = vector.broadcast %cst_43 : f32 to vector<16x128xf32>
    %c0_44 = arith.constant 0 : index
    %c0_45 = arith.constant 0 : index
    %c0_46 = arith.constant 0 : index
    %51 = vector.load %arg8[%c0_44, %c0_45, %c0_46] : memref<2x10x128xf32, #tpu.memory_space<vmem>>, vector<2x8x128xf32>
    %52 = vector.shape_cast %51 : vector<2x8x128xf32> to vector<16x128xf32>
    %53 = arith.truncf %52 : vector<16x128xf32> to vector<16x128xbf16>
    %c0_47 = arith.constant 0 : index
    %c0_48 = arith.constant 0 : index
    %c0_49 = arith.constant 0 : index
    %54 = vector.load %arg4[%c0_47, %c0_48, %c0_49] : memref<3x128x128xbf16, #tpu.memory_space<vmem>>, vector<1x128x128xbf16>
    %55 = vector.shape_cast %54 : vector<1x128x128xbf16> to vector<128x128xbf16>
    %cst_50 = arith.constant dense<0.000000e+00> : vector<16x128xf32>
    %56 = tpu.matmul %53, %55, %cst_50 {dimension_numbers = #tpu.dot_dimension_numbers<[1], [0], [0], [1], [0, 0, 1, 1], [], []>} : vector<16x128xbf16>, vector<128x128xbf16>, vector<16x128xf32> -> vector<16x128xf32>
    %57 = arith.addf %50, %56 : vector<16x128xf32>
    %c0_51 = arith.constant 0 : index
    %c1_52 = arith.constant 1 : index
    %c0_53 = arith.constant 0 : index
    %58 = vector.load %arg8[%c0_51, %c1_52, %c0_53] : memref<2x10x128xf32, #tpu.memory_space<vmem>>, vector<2x8x128xf32>
    %59 = vector.shape_cast %58 : vector<2x8x128xf32> to vector<16x128xf32>
    %60 = arith.truncf %59 : vector<16x128xf32> to vector<16x128xbf16>
    %c1_54 = arith.constant 1 : index
    %c0_55 = arith.constant 0 : index
    %c0_56 = arith.constant 0 : index
    %61 = vector.load %arg4[%c1_54, %c0_55, %c0_56] : memref<3x128x128xbf16, #tpu.memory_space<vmem>>, vector<1x128x128xbf16>
    %62 = vector.shape_cast %61 : vector<1x128x128xbf16> to vector<128x128xbf16>
    %cst_57 = arith.constant dense<0.000000e+00> : vector<16x128xf32>
    %63 = tpu.matmul %60, %62, %cst_57 {dimension_numbers = #tpu.dot_dimension_numbers<[1], [0], [0], [1], [0, 0, 1, 1], [], []>} : vector<16x128xbf16>, vector<128x128xbf16>, vector<16x128xf32> -> vector<16x128xf32>
    %64 = arith.addf %57, %63 : vector<16x128xf32>
    %c0_58 = arith.constant 0 : index
    %c2_59 = arith.constant 2 : index
    %c0_60 = arith.constant 0 : index
    %65 = vector.load %arg8[%c0_58, %c2_59, %c0_60] : memref<2x10x128xf32, #tpu.memory_space<vmem>>, vector<2x8x128xf32>
    %66 = vector.shape_cast %65 : vector<2x8x128xf32> to vector<16x128xf32>
    %67 = arith.truncf %66 : vector<16x128xf32> to vector<16x128xbf16>
    %c2_61 = arith.constant 2 : index
    %c0_62 = arith.constant 0 : index
    %c0_63 = arith.constant 0 : index
    %68 = vector.load %arg4[%c2_61, %c0_62, %c0_63] : memref<3x128x128xbf16, #tpu.memory_space<vmem>>, vector<1x128x128xbf16>
    %69 = vector.shape_cast %68 : vector<1x128x128xbf16> to vector<128x128xbf16>
    %cst_64 = arith.constant dense<0.000000e+00> : vector<16x128xf32>
    %70 = tpu.matmul %67, %69, %cst_64 {dimension_numbers = #tpu.dot_dimension_numbers<[1], [0], [0], [1], [0, 0, 1, 1], [], []>} : vector<16x128xbf16>, vector<128x128xbf16>, vector<16x128xf32> -> vector<16x128xf32>
    %71 = arith.addf %64, %70 : vector<16x128xf32>
    %c0_65 = arith.constant 0 : index
    %c0_66 = arith.constant 0 : index
    %72 = vector.load %arg5[%c0_65, %c0_66] : memref<1x128xf32, #tpu.memory_space<vmem>>, vector<1x128xf32>
    %73 = vector.broadcast %72 : vector<1x128xf32> to vector<16x128xf32>
    %74 = arith.addf %71, %73 : vector<16x128xf32>
    %cst_67 = arith.constant 5.000000e-01 : f32
    %75 = vector.broadcast %cst_67 : f32 to vector<16x128xf32>
    %76 = arith.mulf %75, %74 : vector<16x128xf32>
    %cst_68 = arith.constant 4.471500e-02 : f32
    %77 = vector.broadcast %cst_68 : f32 to vector<16x128xf32>
    %78 = arith.mulf %77, %74 : vector<16x128xf32>
    %79 = arith.mulf %78, %74 : vector<16x128xf32>
    %80 = arith.mulf %79, %74 : vector<16x128xf32>
    %81 = arith.addf %74, %80 : vector<16x128xf32>
    %cst_69 = arith.constant 0.797884583 : f32
    %82 = vector.broadcast %cst_69 : f32 to vector<16x128xf32>
    %83 = arith.mulf %82, %81 : vector<16x128xf32>
    %84 = math.tanh %83 : vector<16x128xf32>
    %cst_70 = arith.constant 1.000000e+00 : f32
    %85 = vector.broadcast %cst_70 : f32 to vector<16x128xf32>
    %86 = arith.addf %85, %84 : vector<16x128xf32>
    %87 = arith.mulf %76, %86 : vector<16x128xf32>
    %c0_71 = arith.constant 0 : index
    %c0_72 = arith.constant 0 : index
    %c0_73 = arith.constant 0 : index
    %88 = vector.load %arg0[%c0_71, %c0_72, %c0_73] : memref<2x8x128xf32, #tpu.memory_space<vmem>>, vector<2x8x128xf32>
    %89 = vector.shape_cast %88 : vector<2x8x128xf32> to vector<16x128xf32>
    %90 = arith.addf %87, %89 : vector<16x128xf32>
    %91 = vector.shape_cast %90 : vector<16x128xf32> to vector<2x8x128xf32>
    %c0_74 = arith.constant 0 : index
    %c0_75 = arith.constant 0 : index
    %c0_76 = arith.constant 0 : index
    %92 = vector.load %arg6[%c0_74, %c0_75, %c0_76] : memref<2x8x128xf32, #tpu.memory_space<vmem>>, vector<2x8x128xf32>
    tpu.vector_store %arg6[%c0_74, %c0_75, %c0_76], %91 {strides = array<i32>} : memref<2x8x128xf32, #tpu.memory_space<vmem>>, vector<2x8x128xf32>,
    return
  }
}

module attributes {stable_mosaic.version = 11 : i64} {
  func.func @kernel(%arg0: memref<2x8x128xf32, #tpu.memory_space<vmem>>, %arg1: memref<4x128x256xbf16, #tpu.memory_space<vmem>>, %arg2: memref<1x256xf32, #tpu.memory_space<vmem>>, %arg3: memref<2x16x256xf32, #tpu.memory_space<vmem>>, %arg4: memref<2x10x128xf32, #tpu.memory_space<vmem>>) attributes {dimension_semantics = [], scalar_prefetch = 0 : i64, scratch_operands = 1 : i64, tpu.core_type = #tpu.core_type<tc>} {
    %cst = arith.constant 0.000000e+00 : f32
    %0 = vector.broadcast %cst : f32 to vector<2x10x128xf32>
    %c0 = arith.constant 0 : index
    %c0_0 = arith.constant 0 : index
    %c0_1 = arith.constant 0 : index
    %1 = vector.load %arg4[%c0, %c0_0, %c0_1] : memref<2x10x128xf32, #tpu.memory_space<vmem>>, vector<2x10x128xf32>
    tpu.vector_store %arg4[%c0, %c0_0, %c0_1], %0 {strides = array<i32>} : memref<2x10x128xf32, #tpu.memory_space<vmem>>, vector<2x10x128xf32>,
    %c0_2 = arith.constant 0 : index
    %c0_3 = arith.constant 0 : index
    %c0_4 = arith.constant 0 : index
    %2 = vector.load %arg0[%c0_2, %c0_3, %c0_4] : memref<2x8x128xf32, #tpu.memory_space<vmem>>, vector<2x8x128xf32>
    %c0_5 = arith.constant 0 : index
    %c1 = arith.constant 1 : index
    %c0_6 = arith.constant 0 : index
    %3 = vector.load %arg4[%c0_5, %c1, %c0_6] : memref<2x10x128xf32, #tpu.memory_space<vmem>>, vector<2x8x128xf32>
    tpu.vector_store %arg4[%c0_5, %c1, %c0_6], %2 {strides = array<i32>} : memref<2x10x128xf32, #tpu.memory_space<vmem>>, vector<2x8x128xf32>,
    %cst_7 = arith.constant 0.000000e+00 : f32
    %4 = vector.broadcast %cst_7 : f32 to vector<16x256xf32>
    %c0_8 = arith.constant 0 : index
    %c0_9 = arith.constant 0 : index
    %c0_10 = arith.constant 0 : index
    %5 = vector.load %arg4[%c0_8, %c0_9, %c0_10] : memref<2x10x128xf32, #tpu.memory_space<vmem>>, vector<2x8x128xf32>
    %6 = vector.shape_cast %5 : vector<2x8x128xf32> to vector<16x128xf32>
    %7 = arith.truncf %6 : vector<16x128xf32> to vector<16x128xbf16>
    %c0_11 = arith.constant 0 : index
    %c0_12 = arith.constant 0 : index
    %c0_13 = arith.constant 0 : index
    %8 = vector.load %arg1[%c0_11, %c0_12, %c0_13] : memref<4x128x256xbf16, #tpu.memory_space<vmem>>, vector<1x128x256xbf16>
    %9 = vector.shape_cast %8 : vector<1x128x256xbf16> to vector<128x256xbf16>
    %cst_14 = arith.constant dense<0.000000e+00> : vector<16x256xf32>
    %10 = tpu.matmul %7, %9, %cst_14 {dimension_numbers = #tpu.dot_dimension_numbers<[1], [0], [0], [1], [0, 0, 1, 1], [], []>} : vector<16x128xbf16>, vector<128x256xbf16>, vector<16x256xf32> -> vector<16x256xf32>
    %11 = arith.addf %4, %10 : vector<16x256xf32>
    %c0_15 = arith.constant 0 : index
    %c1_16 = arith.constant 1 : index
    %c0_17 = arith.constant 0 : index
    %12 = vector.load %arg4[%c0_15, %c1_16, %c0_17] : memref<2x10x128xf32, #tpu.memory_space<vmem>>, vector<2x8x128xf32>
    %13 = vector.shape_cast %12 : vector<2x8x128xf32> to vector<16x128xf32>
    %14 = arith.truncf %13 : vector<16x128xf32> to vector<16x128xbf16>
    %c1_18 = arith.constant 1 : index
    %c0_19 = arith.constant 0 : index
    %c0_20 = arith.constant 0 : index
    %15 = vector.load %arg1[%c1_18, %c0_19, %c0_20] : memref<4x128x256xbf16, #tpu.memory_space<vmem>>, vector<1x128x256xbf16>
    %16 = vector.shape_cast %15 : vector<1x128x256xbf16> to vector<128x256xbf16>
    %cst_21 = arith.constant dense<0.000000e+00> : vector<16x256xf32>
    %17 = tpu.matmul %14, %16, %cst_21 {dimension_numbers = #tpu.dot_dimension_numbers<[1], [0], [0], [1], [0, 0, 1, 1], [], []>} : vector<16x128xbf16>, vector<128x256xbf16>, vector<16x256xf32> -> vector<16x256xf32>
    %18 = arith.addf %11, %17 : vector<16x256xf32>
    %c0_22 = arith.constant 0 : index
    %c0_23 = arith.constant 0 : index
    %19 = vector.load %arg2[%c0_22, %c0_23] : memref<1x256xf32, #tpu.memory_space<vmem>>, vector<1x256xf32>
    %20 = vector.broadcast %19 : vector<1x256xf32> to vector<16x256xf32>
    %21 = arith.addf %18, %20 : vector<16x256xf32>
    %22 = vector.shape_cast %21 : vector<16x256xf32> to vector<2x8x256xf32>
    %23 = vector.extract_strided_slice %22 {offsets = [0, 0, 0], sizes = [2, 1, 256], strides = [1, 1, 1]} : vector<2x8x256xf32> to vector<2x1x256xf32>
    %c0_24 = arith.constant 0 : index
    %c0_25 = arith.constant 0 : index
    %c0_26 = arith.constant 0 : index
    %24 = vector.load %arg3[%c0_24, %c0_25, %c0_26] : memref<2x16x256xf32, #tpu.memory_space<vmem>>, vector<2x1x256xf32>
    tpu.vector_store %arg3[%c0_24, %c0_25, %c0_26], %23 {strides = array<i32>} : memref<2x16x256xf32, #tpu.memory_space<vmem>>, vector<2x1x256xf32>,
    %25 = vector.extract_strided_slice %22 {offsets = [0, 1, 0], sizes = [2, 1, 256], strides = [1, 1, 1]} : vector<2x8x256xf32> to vector<2x1x256xf32>
    %c0_27 = arith.constant 0 : index
    %c2 = arith.constant 2 : index
    %c0_28 = arith.constant 0 : index
    %26 = vector.load %arg3[%c0_27, %c2, %c0_28] : memref<2x16x256xf32, #tpu.memory_space<vmem>>, vector<2x1x256xf32>
    tpu.vector_store %arg3[%c0_27, %c2, %c0_28], %25 {strides = array<i32>} : memref<2x16x256xf32, #tpu.memory_space<vmem>>, vector<2x1x256xf32>,
    %27 = vector.extract_strided_slice %22 {offsets = [0, 2, 0], sizes = [2, 1, 256], strides = [1, 1, 1]} : vector<2x8x256xf32> to vector<2x1x256xf32>
    %c0_29 = arith.constant 0 : index
    %c4 = arith.constant 4 : index
    %c0_30 = arith.constant 0 : index
    %28 = vector.load %arg3[%c0_29, %c4, %c0_30] : memref<2x16x256xf32, #tpu.memory_space<vmem>>, vector<2x1x256xf32>
    tpu.vector_store %arg3[%c0_29, %c4, %c0_30], %27 {strides = array<i32>} : memref<2x16x256xf32, #tpu.memory_space<vmem>>, vector<2x1x256xf32>,
    %29 = vector.extract_strided_slice %22 {offsets = [0, 3, 0], sizes = [2, 1, 256], strides = [1, 1, 1]} : vector<2x8x256xf32> to vector<2x1x256xf32>
    %c0_31 = arith.constant 0 : index
    %c6 = arith.constant 6 : index
    %c0_32 = arith.constant 0 : index
    %30 = vector.load %arg3[%c0_31, %c6, %c0_32] : memref<2x16x256xf32, #tpu.memory_space<vmem>>, vector<2x1x256xf32>
    tpu.vector_store %arg3[%c0_31, %c6, %c0_32], %29 {strides = array<i32>} : memref<2x16x256xf32, #tpu.memory_space<vmem>>, vector<2x1x256xf32>,
    %31 = vector.extract_strided_slice %22 {offsets = [0, 4, 0], sizes = [2, 1, 256], strides = [1, 1, 1]} : vector<2x8x256xf32> to vector<2x1x256xf32>
    %c0_33 = arith.constant 0 : index
    %c8 = arith.constant 8 : index
    %c0_34 = arith.constant 0 : index
    %32 = vector.load %arg3[%c0_33, %c8, %c0_34] : memref<2x16x256xf32, #tpu.memory_space<vmem>>, vector<2x1x256xf32>
    tpu.vector_store %arg3[%c0_33, %c8, %c0_34], %31 {strides = array<i32>} : memref<2x16x256xf32, #tpu.memory_space<vmem>>, vector<2x1x256xf32>,
    %33 = vector.extract_strided_slice %22 {offsets = [0, 5, 0], sizes = [2, 1, 256], strides = [1, 1, 1]} : vector<2x8x256xf32> to vector<2x1x256xf32>
    %c0_35 = arith.constant 0 : index
    %c10 = arith.constant 10 : index
    %c0_36 = arith.constant 0 : index
    %34 = vector.load %arg3[%c0_35, %c10, %c0_36] : memref<2x16x256xf32, #tpu.memory_space<vmem>>, vector<2x1x256xf32>
    tpu.vector_store %arg3[%c0_35, %c10, %c0_36], %33 {strides = array<i32>} : memref<2x16x256xf32, #tpu.memory_space<vmem>>, vector<2x1x256xf32>,
    %35 = vector.extract_strided_slice %22 {offsets = [0, 6, 0], sizes = [2, 1, 256], strides = [1, 1, 1]} : vector<2x8x256xf32> to vector<2x1x256xf32>
    %c0_37 = arith.constant 0 : index
    %c12 = arith.constant 12 : index
    %c0_38 = arith.constant 0 : index
    %36 = vector.load %arg3[%c0_37, %c12, %c0_38] : memref<2x16x256xf32, #tpu.memory_space<vmem>>, vector<2x1x256xf32>
    tpu.vector_store %arg3[%c0_37, %c12, %c0_38], %35 {strides = array<i32>} : memref<2x16x256xf32, #tpu.memory_space<vmem>>, vector<2x1x256xf32>,
    %37 = vector.extract_strided_slice %22 {offsets = [0, 7, 0], sizes = [2, 1, 256], strides = [1, 1, 1]} : vector<2x8x256xf32> to vector<2x1x256xf32>
    %c0_39 = arith.constant 0 : index
    %c14 = arith.constant 14 : index
    %c0_40 = arith.constant 0 : index
    %38 = vector.load %arg3[%c0_39, %c14, %c0_40] : memref<2x16x256xf32, #tpu.memory_space<vmem>>, vector<2x1x256xf32>
    tpu.vector_store %arg3[%c0_39, %c14, %c0_40], %37 {strides = array<i32>} : memref<2x16x256xf32, #tpu.memory_space<vmem>>, vector<2x1x256xf32>,
    %cst_41 = arith.constant 0.000000e+00 : f32
    %39 = vector.broadcast %cst_41 : f32 to vector<16x256xf32>
    %c0_42 = arith.constant 0 : index
    %c1_43 = arith.constant 1 : index
    %c0_44 = arith.constant 0 : index
    %40 = vector.load %arg4[%c0_42, %c1_43, %c0_44] : memref<2x10x128xf32, #tpu.memory_space<vmem>>, vector<2x8x128xf32>
    %41 = vector.shape_cast %40 : vector<2x8x128xf32> to vector<16x128xf32>
    %42 = arith.truncf %41 : vector<16x128xf32> to vector<16x128xbf16>
    %c2_45 = arith.constant 2 : index
    %c0_46 = arith.constant 0 : index
    %c0_47 = arith.constant 0 : index
    %43 = vector.load %arg1[%c2_45, %c0_46, %c0_47] : memref<4x128x256xbf16, #tpu.memory_space<vmem>>, vector<1x128x256xbf16>
    %44 = vector.shape_cast %43 : vector<1x128x256xbf16> to vector<128x256xbf16>
    %cst_48 = arith.constant dense<0.000000e+00> : vector<16x256xf32>
    %45 = tpu.matmul %42, %44, %cst_48 {dimension_numbers = #tpu.dot_dimension_numbers<[1], [0], [0], [1], [0, 0, 1, 1], [], []>} : vector<16x128xbf16>, vector<128x256xbf16>, vector<16x256xf32> -> vector<16x256xf32>
    %46 = arith.addf %39, %45 : vector<16x256xf32>
    %c0_49 = arith.constant 0 : index
    %c2_50 = arith.constant 2 : index
    %c0_51 = arith.constant 0 : index
    %47 = vector.load %arg4[%c0_49, %c2_50, %c0_51] : memref<2x10x128xf32, #tpu.memory_space<vmem>>, vector<2x8x128xf32>
    %48 = vector.shape_cast %47 : vector<2x8x128xf32> to vector<16x128xf32>
    %49 = arith.truncf %48 : vector<16x128xf32> to vector<16x128xbf16>
    %c3 = arith.constant 3 : index
    %c0_52 = arith.constant 0 : index
    %c0_53 = arith.constant 0 : index
    %50 = vector.load %arg1[%c3, %c0_52, %c0_53] : memref<4x128x256xbf16, #tpu.memory_space<vmem>>, vector<1x128x256xbf16>
    %51 = vector.shape_cast %50 : vector<1x128x256xbf16> to vector<128x256xbf16>
    %cst_54 = arith.constant dense<0.000000e+00> : vector<16x256xf32>
    %52 = tpu.matmul %49, %51, %cst_54 {dimension_numbers = #tpu.dot_dimension_numbers<[1], [0], [0], [1], [0, 0, 1, 1], [], []>} : vector<16x128xbf16>, vector<128x256xbf16>, vector<16x256xf32> -> vector<16x256xf32>
    %53 = arith.addf %46, %52 : vector<16x256xf32>
    %c0_55 = arith.constant 0 : index
    %c0_56 = arith.constant 0 : index
    %54 = vector.load %arg2[%c0_55, %c0_56] : memref<1x256xf32, #tpu.memory_space<vmem>>, vector<1x256xf32>
    %55 = vector.broadcast %54 : vector<1x256xf32> to vector<16x256xf32>
    %56 = arith.addf %53, %55 : vector<16x256xf32>
    %57 = vector.shape_cast %56 : vector<16x256xf32> to vector<2x8x256xf32>
    %58 = vector.extract_strided_slice %57 {offsets = [0, 0, 0], sizes = [2, 1, 256], strides = [1, 1, 1]} : vector<2x8x256xf32> to vector<2x1x256xf32>
    %c0_57 = arith.constant 0 : index
    %c1_58 = arith.constant 1 : index
    %c0_59 = arith.constant 0 : index
    %59 = vector.load %arg3[%c0_57, %c1_58, %c0_59] : memref<2x16x256xf32, #tpu.memory_space<vmem>>, vector<2x1x256xf32>
    tpu.vector_store %arg3[%c0_57, %c1_58, %c0_59], %58 {strides = array<i32>} : memref<2x16x256xf32, #tpu.memory_space<vmem>>, vector<2x1x256xf32>,
    %60 = vector.extract_strided_slice %57 {offsets = [0, 1, 0], sizes = [2, 1, 256], strides = [1, 1, 1]} : vector<2x8x256xf32> to vector<2x1x256xf32>
    %c0_60 = arith.constant 0 : index
    %c3_61 = arith.constant 3 : index
    %c0_62 = arith.constant 0 : index
    %61 = vector.load %arg3[%c0_60, %c3_61, %c0_62] : memref<2x16x256xf32, #tpu.memory_space<vmem>>, vector<2x1x256xf32>
    tpu.vector_store %arg3[%c0_60, %c3_61, %c0_62], %60 {strides = array<i32>} : memref<2x16x256xf32, #tpu.memory_space<vmem>>, vector<2x1x256xf32>,
    %62 = vector.extract_strided_slice %57 {offsets = [0, 2, 0], sizes = [2, 1, 256], strides = [1, 1, 1]} : vector<2x8x256xf32> to vector<2x1x256xf32>
    %c0_63 = arith.constant 0 : index
    %c5 = arith.constant 5 : index
    %c0_64 = arith.constant 0 : index
    %63 = vector.load %arg3[%c0_63, %c5, %c0_64] : memref<2x16x256xf32, #tpu.memory_space<vmem>>, vector<2x1x256xf32>
    tpu.vector_store %arg3[%c0_63, %c5, %c0_64], %62 {strides = array<i32>} : memref<2x16x256xf32, #tpu.memory_space<vmem>>, vector<2x1x256xf32>,
    %64 = vector.extract_strided_slice %57 {offsets = [0, 3, 0], sizes = [2, 1, 256], strides = [1, 1, 1]} : vector<2x8x256xf32> to vector<2x1x256xf32>
    %c0_65 = arith.constant 0 : index
    %c7 = arith.constant 7 : index
    %c0_66 = arith.constant 0 : index
    %65 = vector.load %arg3[%c0_65, %c7, %c0_66] : memref<2x16x256xf32, #tpu.memory_space<vmem>>, vector<2x1x256xf32>
    tpu.vector_store %arg3[%c0_65, %c7, %c0_66], %64 {strides = array<i32>} : memref<2x16x256xf32, #tpu.memory_space<vmem>>, vector<2x1x256xf32>,
    %66 = vector.extract_strided_slice %57 {offsets = [0, 4, 0], sizes = [2, 1, 256], strides = [1, 1, 1]} : vector<2x8x256xf32> to vector<2x1x256xf32>
    %c0_67 = arith.constant 0 : index
    %c9 = arith.constant 9 : index
    %c0_68 = arith.constant 0 : index
    %67 = vector.load %arg3[%c0_67, %c9, %c0_68] : memref<2x16x256xf32, #tpu.memory_space<vmem>>, vector<2x1x256xf32>
    tpu.vector_store %arg3[%c0_67, %c9, %c0_68], %66 {strides = array<i32>} : memref<2x16x256xf32, #tpu.memory_space<vmem>>, vector<2x1x256xf32>,
    %68 = vector.extract_strided_slice %57 {offsets = [0, 5, 0], sizes = [2, 1, 256], strides = [1, 1, 1]} : vector<2x8x256xf32> to vector<2x1x256xf32>
    %c0_69 = arith.constant 0 : index
    %c11 = arith.constant 11 : index
    %c0_70 = arith.constant 0 : index
    %69 = vector.load %arg3[%c0_69, %c11, %c0_70] : memref<2x16x256xf32, #tpu.memory_space<vmem>>, vector<2x1x256xf32>
    tpu.vector_store %arg3[%c0_69, %c11, %c0_70], %68 {strides = array<i32>} : memref<2x16x256xf32, #tpu.memory_space<vmem>>, vector<2x1x256xf32>,
    %70 = vector.extract_strided_slice %57 {offsets = [0, 6, 0], sizes = [2, 1, 256], strides = [1, 1, 1]} : vector<2x8x256xf32> to vector<2x1x256xf32>
    %c0_71 = arith.constant 0 : index
    %c13 = arith.constant 13 : index
    %c0_72 = arith.constant 0 : index
    %71 = vector.load %arg3[%c0_71, %c13, %c0_72] : memref<2x16x256xf32, #tpu.memory_space<vmem>>, vector<2x1x256xf32>
    tpu.vector_store %arg3[%c0_71, %c13, %c0_72], %70 {strides = array<i32>} : memref<2x16x256xf32, #tpu.memory_space<vmem>>, vector<2x1x256xf32>,
    %72 = vector.extract_strided_slice %57 {offsets = [0, 7, 0], sizes = [2, 1, 256], strides = [1, 1, 1]} : vector<2x8x256xf32> to vector<2x1x256xf32>
    %c0_73 = arith.constant 0 : index
    %c15 = arith.constant 15 : index
    %c0_74 = arith.constant 0 : index
    %73 = vector.load %arg3[%c0_73, %c15, %c0_74] : memref<2x16x256xf32, #tpu.memory_space<vmem>>, vector<2x1x256xf32>
    tpu.vector_store %arg3[%c0_73, %c15, %c0_74], %72 {strides = array<i32>} : memref<2x16x256xf32, #tpu.memory_space<vmem>>, vector<2x1x256xf32>,
    return
  }
}

module attributes {stable_mosaic.version = 11 : i64} {
  func.func @kernel(%arg0: memref<2x16x128xf32, #tpu.memory_space<vmem>>, %arg1: memref<3x128x128xbf16, #tpu.memory_space<vmem>>, %arg2: memref<1x128xf32, #tpu.memory_space<vmem>>, %arg3: memref<2x128xf32, #tpu.memory_space<vmem>>, %arg4: memref<3x128x128xbf16, #tpu.memory_space<vmem>>, %arg5: memref<1x128xf32, #tpu.memory_space<vmem>>, %arg6: memref<2x16x128xf32, #tpu.memory_space<vmem>>, %arg7: memref<2x18x128xf32, #tpu.memory_space<vmem>>, %arg8: memref<2x18x128xf32, #tpu.memory_space<vmem>>) attributes {dimension_semantics = [], scalar_prefetch = 0 : i64, scratch_operands = 2 : i64, tpu.core_type = #tpu.core_type<tc>} {
    %cst = arith.constant 0.000000e+00 : f32
    %0 = vector.broadcast %cst : f32 to vector<2x18x128xf32>
    %c0 = arith.constant 0 : index
    %c0_0 = arith.constant 0 : index
    %c0_1 = arith.constant 0 : index
    %1 = vector.load %arg7[%c0, %c0_0, %c0_1] : memref<2x18x128xf32, #tpu.memory_space<vmem>>, vector<2x18x128xf32>
    tpu.vector_store %arg7[%c0, %c0_0, %c0_1], %0 {strides = array<i32>} : memref<2x18x128xf32, #tpu.memory_space<vmem>>, vector<2x18x128xf32>,
    %c0_2 = arith.constant 0 : index
    %c0_3 = arith.constant 0 : index
    %c0_4 = arith.constant 0 : index
    %2 = vector.load %arg0[%c0_2, %c0_3, %c0_4] : memref<2x16x128xf32, #tpu.memory_space<vmem>>, vector<2x16x128xf32>
    %c0_5 = arith.constant 0 : index
    %c1 = arith.constant 1 : index
    %c0_6 = arith.constant 0 : index
    %3 = vector.load %arg7[%c0_5, %c1, %c0_6] : memref<2x18x128xf32, #tpu.memory_space<vmem>>, vector<2x16x128xf32>
    tpu.vector_store %arg7[%c0_5, %c1, %c0_6], %2 {strides = array<i32>} : memref<2x18x128xf32, #tpu.memory_space<vmem>>, vector<2x16x128xf32>,
    %cst_7 = arith.constant 0.000000e+00 : f32
    %4 = vector.broadcast %cst_7 : f32 to vector<32x128xf32>
    %c0_8 = arith.constant 0 : index
    %c0_9 = arith.constant 0 : index
    %c0_10 = arith.constant 0 : index
    %5 = vector.load %arg7[%c0_8, %c0_9, %c0_10] : memref<2x18x128xf32, #tpu.memory_space<vmem>>, vector<2x16x128xf32>
    %6 = vector.shape_cast %5 : vector<2x16x128xf32> to vector<32x128xf32>
    %7 = arith.truncf %6 : vector<32x128xf32> to vector<32x128xbf16>
    %c0_11 = arith.constant 0 : index
    %c0_12 = arith.constant 0 : index
    %c0_13 = arith.constant 0 : index
    %8 = vector.load %arg1[%c0_11, %c0_12, %c0_13] : memref<3x128x128xbf16, #tpu.memory_space<vmem>>, vector<1x128x128xbf16>
    %9 = vector.shape_cast %8 : vector<1x128x128xbf16> to vector<128x128xbf16>
    %cst_14 = arith.constant dense<0.000000e+00> : vector<32x128xf32>
    %10 = tpu.matmul %7, %9, %cst_14 {dimension_numbers = #tpu.dot_dimension_numbers<[1], [0], [0], [1], [0, 0, 1, 1], [], []>} : vector<32x128xbf16>, vector<128x128xbf16>, vector<32x128xf32> -> vector<32x128xf32>
    %11 = arith.addf %4, %10 : vector<32x128xf32>
    %c0_15 = arith.constant 0 : index
    %c1_16 = arith.constant 1 : index
    %c0_17 = arith.constant 0 : index
    %12 = vector.load %arg7[%c0_15, %c1_16, %c0_17] : memref<2x18x128xf32, #tpu.memory_space<vmem>>, vector<2x16x128xf32>
    %13 = vector.shape_cast %12 : vector<2x16x128xf32> to vector<32x128xf32>
    %14 = arith.truncf %13 : vector<32x128xf32> to vector<32x128xbf16>
    %c1_18 = arith.constant 1 : index
    %c0_19 = arith.constant 0 : index
    %c0_20 = arith.constant 0 : index
    %15 = vector.load %arg1[%c1_18, %c0_19, %c0_20] : memref<3x128x128xbf16, #tpu.memory_space<vmem>>, vector<1x128x128xbf16>
    %16 = vector.shape_cast %15 : vector<1x128x128xbf16> to vector<128x128xbf16>
    %cst_21 = arith.constant dense<0.000000e+00> : vector<32x128xf32>
    %17 = tpu.matmul %14, %16, %cst_21 {dimension_numbers = #tpu.dot_dimension_numbers<[1], [0], [0], [1], [0, 0, 1, 1], [], []>} : vector<32x128xbf16>, vector<128x128xbf16>, vector<32x128xf32> -> vector<32x128xf32>
    %18 = arith.addf %11, %17 : vector<32x128xf32>
    %c0_22 = arith.constant 0 : index
    %c2 = arith.constant 2 : index
    %c0_23 = arith.constant 0 : index
    %19 = vector.load %arg7[%c0_22, %c2, %c0_23] : memref<2x18x128xf32, #tpu.memory_space<vmem>>, vector<2x16x128xf32>
    %20 = vector.shape_cast %19 : vector<2x16x128xf32> to vector<32x128xf32>
    %21 = arith.truncf %20 : vector<32x128xf32> to vector<32x128xbf16>
    %c2_24 = arith.constant 2 : index
    %c0_25 = arith.constant 0 : index
    %c0_26 = arith.constant 0 : index
    %22 = vector.load %arg1[%c2_24, %c0_25, %c0_26] : memref<3x128x128xbf16, #tpu.memory_space<vmem>>, vector<1x128x128xbf16>
    %23 = vector.shape_cast %22 : vector<1x128x128xbf16> to vector<128x128xbf16>
    %cst_27 = arith.constant dense<0.000000e+00> : vector<32x128xf32>
    %24 = tpu.matmul %21, %23, %cst_27 {dimension_numbers = #tpu.dot_dimension_numbers<[1], [0], [0], [1], [0, 0, 1, 1], [], []>} : vector<32x128xbf16>, vector<128x128xbf16>, vector<32x128xf32> -> vector<32x128xf32>
    %25 = arith.addf %18, %24 : vector<32x128xf32>
    %c0_28 = arith.constant 0 : index
    %c0_29 = arith.constant 0 : index
    %26 = vector.load %arg2[%c0_28, %c0_29] : memref<1x128xf32, #tpu.memory_space<vmem>>, vector<1x128xf32>
    %27 = vector.broadcast %26 : vector<1x128xf32> to vector<32x128xf32>
    %28 = arith.addf %25, %27 : vector<32x128xf32>
    %cst_30 = arith.constant 5.000000e-01 : f32
    %29 = vector.broadcast %cst_30 : f32 to vector<32x128xf32>
    %30 = arith.mulf %29, %28 : vector<32x128xf32>
    %cst_31 = arith.constant 4.471500e-02 : f32
    %31 = vector.broadcast %cst_31 : f32 to vector<32x128xf32>
    %32 = arith.mulf %31, %28 : vector<32x128xf32>
    %33 = arith.mulf %32, %28 : vector<32x128xf32>
    %34 = arith.mulf %33, %28 : vector<32x128xf32>
    %35 = arith.addf %28, %34 : vector<32x128xf32>
    %cst_32 = arith.constant 0.797884583 : f32
    %36 = vector.broadcast %cst_32 : f32 to vector<32x128xf32>
    %37 = arith.mulf %36, %35 : vector<32x128xf32>
    %38 = math.tanh %37 : vector<32x128xf32>
    %cst_33 = arith.constant 1.000000e+00 : f32
    %39 = vector.broadcast %cst_33 : f32 to vector<32x128xf32>
    %40 = arith.addf %39, %38 : vector<32x128xf32>
    %41 = arith.mulf %30, %40 : vector<32x128xf32>
    %42 = vector.shape_cast %41 : vector<32x128xf32> to vector<2x16x128xf32>
    %c0_34 = arith.constant 0 : index
    %c0_35 = arith.constant 0 : index
    %43 = vector.load %arg3[%c0_34, %c0_35] : memref<2x128xf32, #tpu.memory_space<vmem>>, vector<2x128xf32>
    %44 = vector.shape_cast %43 : vector<2x128xf32> to vector<2x1x128xf32>
    %45 = vector.broadcast %44 : vector<2x1x128xf32> to vector<2x16x128xf32>
    %46 = arith.addf %42, %45 : vector<2x16x128xf32>
    %cst_36 = arith.constant 0.000000e+00 : f32
    %47 = vector.broadcast %cst_36 : f32 to vector<2x18x128xf32>
    %c0_37 = arith.constant 0 : index
    %c0_38 = arith.constant 0 : index
    %c0_39 = arith.constant 0 : index
    %48 = vector.load %arg8[%c0_37, %c0_38, %c0_39] : memref<2x18x128xf32, #tpu.memory_space<vmem>>, vector<2x18x128xf32>
    tpu.vector_store %arg8[%c0_37, %c0_38, %c0_39], %47 {strides = array<i32>} : memref<2x18x128xf32, #tpu.memory_space<vmem>>, vector<2x18x128xf32>,
    %c0_40 = arith.constant 0 : index
    %c1_41 = arith.constant 1 : index
    %c0_42 = arith.constant 0 : index
    %49 = vector.load %arg8[%c0_40, %c1_41, %c0_42] : memref<2x18x128xf32, #tpu.memory_space<vmem>>, vector<2x16x128xf32>
    tpu.vector_store %arg8[%c0_40, %c1_41, %c0_42], %46 {strides = array<i32>} : memref<2x18x128xf32, #tpu.memory_space<vmem>>, vector<2x16x128xf32>,
    %cst_43 = arith.constant 0.000000e+00 : f32
    %50 = vector.broadcast %cst_43 : f32 to vector<32x128xf32>
    %c0_44 = arith.constant 0 : index
    %c0_45 = arith.constant 0 : index
    %c0_46 = arith.constant 0 : index
    %51 = vector.load %arg8[%c0_44, %c0_45, %c0_46] : memref<2x18x128xf32, #tpu.memory_space<vmem>>, vector<2x16x128xf32>
    %52 = vector.shape_cast %51 : vector<2x16x128xf32> to vector<32x128xf32>
    %53 = arith.truncf %52 : vector<32x128xf32> to vector<32x128xbf16>
    %c0_47 = arith.constant 0 : index
    %c0_48 = arith.constant 0 : index
    %c0_49 = arith.constant 0 : index
    %54 = vector.load %arg4[%c0_47, %c0_48, %c0_49] : memref<3x128x128xbf16, #tpu.memory_space<vmem>>, vector<1x128x128xbf16>
    %55 = vector.shape_cast %54 : vector<1x128x128xbf16> to vector<128x128xbf16>
    %cst_50 = arith.constant dense<0.000000e+00> : vector<32x128xf32>
    %56 = tpu.matmul %53, %55, %cst_50 {dimension_numbers = #tpu.dot_dimension_numbers<[1], [0], [0], [1], [0, 0, 1, 1], [], []>} : vector<32x128xbf16>, vector<128x128xbf16>, vector<32x128xf32> -> vector<32x128xf32>
    %57 = arith.addf %50, %56 : vector<32x128xf32>
    %c0_51 = arith.constant 0 : index
    %c1_52 = arith.constant 1 : index
    %c0_53 = arith.constant 0 : index
    %58 = vector.load %arg8[%c0_51, %c1_52, %c0_53] : memref<2x18x128xf32, #tpu.memory_space<vmem>>, vector<2x16x128xf32>
    %59 = vector.shape_cast %58 : vector<2x16x128xf32> to vector<32x128xf32>
    %60 = arith.truncf %59 : vector<32x128xf32> to vector<32x128xbf16>
    %c1_54 = arith.constant 1 : index
    %c0_55 = arith.constant 0 : index
    %c0_56 = arith.constant 0 : index
    %61 = vector.load %arg4[%c1_54, %c0_55, %c0_56] : memref<3x128x128xbf16, #tpu.memory_space<vmem>>, vector<1x128x128xbf16>
    %62 = vector.shape_cast %61 : vector<1x128x128xbf16> to vector<128x128xbf16>
    %cst_57 = arith.constant dense<0.000000e+00> : vector<32x128xf32>
    %63 = tpu.matmul %60, %62, %cst_57 {dimension_numbers = #tpu.dot_dimension_numbers<[1], [0], [0], [1], [0, 0, 1, 1], [], []>} : vector<32x128xbf16>, vector<128x128xbf16>, vector<32x128xf32> -> vector<32x128xf32>
    %64 = arith.addf %57, %63 : vector<32x128xf32>
    %c0_58 = arith.constant 0 : index
    %c2_59 = arith.constant 2 : index
    %c0_60 = arith.constant 0 : index
    %65 = vector.load %arg8[%c0_58, %c2_59, %c0_60] : memref<2x18x128xf32, #tpu.memory_space<vmem>>, vector<2x16x128xf32>
    %66 = vector.shape_cast %65 : vector<2x16x128xf32> to vector<32x128xf32>
    %67 = arith.truncf %66 : vector<32x128xf32> to vector<32x128xbf16>
    %c2_61 = arith.constant 2 : index
    %c0_62 = arith.constant 0 : index
    %c0_63 = arith.constant 0 : index
    %68 = vector.load %arg4[%c2_61, %c0_62, %c0_63] : memref<3x128x128xbf16, #tpu.memory_space<vmem>>, vector<1x128x128xbf16>
    %69 = vector.shape_cast %68 : vector<1x128x128xbf16> to vector<128x128xbf16>
    %cst_64 = arith.constant dense<0.000000e+00> : vector<32x128xf32>
    %70 = tpu.matmul %67, %69, %cst_64 {dimension_numbers = #tpu.dot_dimension_numbers<[1], [0], [0], [1], [0, 0, 1, 1], [], []>} : vector<32x128xbf16>, vector<128x128xbf16>, vector<32x128xf32> -> vector<32x128xf32>
    %71 = arith.addf %64, %70 : vector<32x128xf32>
    %c0_65 = arith.constant 0 : index
    %c0_66 = arith.constant 0 : index
    %72 = vector.load %arg5[%c0_65, %c0_66] : memref<1x128xf32, #tpu.memory_space<vmem>>, vector<1x128xf32>
    %73 = vector.broadcast %72 : vector<1x128xf32> to vector<32x128xf32>
    %74 = arith.addf %71, %73 : vector<32x128xf32>
    %cst_67 = arith.constant 5.000000e-01 : f32
    %75 = vector.broadcast %cst_67 : f32 to vector<32x128xf32>
    %76 = arith.mulf %75, %74 : vector<32x128xf32>
    %cst_68 = arith.constant 4.471500e-02 : f32
    %77 = vector.broadcast %cst_68 : f32 to vector<32x128xf32>
    %78 = arith.mulf %77, %74 : vector<32x128xf32>
    %79 = arith.mulf %78, %74 : vector<32x128xf32>
    %80 = arith.mulf %79, %74 : vector<32x128xf32>
    %81 = arith.addf %74, %80 : vector<32x128xf32>
    %cst_69 = arith.constant 0.797884583 : f32
    %82 = vector.broadcast %cst_69 : f32 to vector<32x128xf32>
    %83 = arith.mulf %82, %81 : vector<32x128xf32>
    %84 = math.tanh %83 : vector<32x128xf32>
    %cst_70 = arith.constant 1.000000e+00 : f32
    %85 = vector.broadcast %cst_70 : f32 to vector<32x128xf32>
    %86 = arith.addf %85, %84 : vector<32x128xf32>
    %87 = arith.mulf %76, %86 : vector<32x128xf32>
    %c0_71 = arith.constant 0 : index
    %c0_72 = arith.constant 0 : index
    %c0_73 = arith.constant 0 : index
    %88 = vector.load %arg0[%c0_71, %c0_72, %c0_73] : memref<2x16x128xf32, #tpu.memory_space<vmem>>, vector<2x16x128xf32>
    %89 = vector.shape_cast %88 : vector<2x16x128xf32> to vector<32x128xf32>
    %90 = arith.addf %87, %89 : vector<32x128xf32>
    %91 = vector.shape_cast %90 : vector<32x128xf32> to vector<2x16x128xf32>
    %c0_74 = arith.constant 0 : index
    %c0_75 = arith.constant 0 : index
    %c0_76 = arith.constant 0 : index
    %92 = vector.load %arg6[%c0_74, %c0_75, %c0_76] : memref<2x16x128xf32, #tpu.memory_space<vmem>>, vector<2x16x128xf32>
    tpu.vector_store %arg6[%c0_74, %c0_75, %c0_76], %91 {strides = array<i32>} : memref<2x16x128xf32, #tpu.memory_space<vmem>>, vector<2x16x128xf32>,
    return
  }
}

module attributes {stable_mosaic.version = 11 : i64} {
  func.func @kernel(%arg0: memref<2x16x128xf32, #tpu.memory_space<vmem>>, %arg1: memref<3x128x64xbf16, #tpu.memory_space<vmem>>, %arg2: memref<1x64xf32, #tpu.memory_space<vmem>>, %arg3: memref<2x64xf32, #tpu.memory_space<vmem>>, %arg4: memref<3x64x64xbf16, #tpu.memory_space<vmem>>, %arg5: memref<1x64xf32, #tpu.memory_space<vmem>>, %arg6: memref<128x64xbf16, #tpu.memory_space<vmem>>, %arg7: memref<1x64xf32, #tpu.memory_space<vmem>>, %arg8: memref<2x16x64xf32, #tpu.memory_space<vmem>>, %arg9: memref<2x18x128xf32, #tpu.memory_space<vmem>>, %arg10: memref<2x18x64xf32, #tpu.memory_space<vmem>>) attributes {dimension_semantics = [], scalar_prefetch = 0 : i64, scratch_operands = 2 : i64, tpu.core_type = #tpu.core_type<tc>} {
    %cst = arith.constant 0.000000e+00 : f32
    %0 = vector.broadcast %cst : f32 to vector<2x18x128xf32>
    %c0 = arith.constant 0 : index
    %c0_0 = arith.constant 0 : index
    %c0_1 = arith.constant 0 : index
    %1 = vector.load %arg9[%c0, %c0_0, %c0_1] : memref<2x18x128xf32, #tpu.memory_space<vmem>>, vector<2x18x128xf32>
    tpu.vector_store %arg9[%c0, %c0_0, %c0_1], %0 {strides = array<i32>} : memref<2x18x128xf32, #tpu.memory_space<vmem>>, vector<2x18x128xf32>,
    %c0_2 = arith.constant 0 : index
    %c0_3 = arith.constant 0 : index
    %c0_4 = arith.constant 0 : index
    %2 = vector.load %arg0[%c0_2, %c0_3, %c0_4] : memref<2x16x128xf32, #tpu.memory_space<vmem>>, vector<2x16x128xf32>
    %c0_5 = arith.constant 0 : index
    %c1 = arith.constant 1 : index
    %c0_6 = arith.constant 0 : index
    %3 = vector.load %arg9[%c0_5, %c1, %c0_6] : memref<2x18x128xf32, #tpu.memory_space<vmem>>, vector<2x16x128xf32>
    tpu.vector_store %arg9[%c0_5, %c1, %c0_6], %2 {strides = array<i32>} : memref<2x18x128xf32, #tpu.memory_space<vmem>>, vector<2x16x128xf32>,
    %cst_7 = arith.constant 0.000000e+00 : f32
    %4 = vector.broadcast %cst_7 : f32 to vector<32x64xf32>
    %c0_8 = arith.constant 0 : index
    %c0_9 = arith.constant 0 : index
    %c0_10 = arith.constant 0 : index
    %5 = vector.load %arg9[%c0_8, %c0_9, %c0_10] : memref<2x18x128xf32, #tpu.memory_space<vmem>>, vector<2x16x128xf32>
    %6 = vector.shape_cast %5 : vector<2x16x128xf32> to vector<32x128xf32>
    %7 = arith.truncf %6 : vector<32x128xf32> to vector<32x128xbf16>
    %c0_11 = arith.constant 0 : index
    %c0_12 = arith.constant 0 : index
    %c0_13 = arith.constant 0 : index
    %8 = vector.load %arg1[%c0_11, %c0_12, %c0_13] : memref<3x128x64xbf16, #tpu.memory_space<vmem>>, vector<1x128x64xbf16>
    %9 = vector.shape_cast %8 : vector<1x128x64xbf16> to vector<128x64xbf16>
    %cst_14 = arith.constant dense<0.000000e+00> : vector<32x64xf32>
    %10 = tpu.matmul %7, %9, %cst_14 {dimension_numbers = #tpu.dot_dimension_numbers<[1], [0], [0], [1], [0, 0, 1, 1], [], []>} : vector<32x128xbf16>, vector<128x64xbf16>, vector<32x64xf32> -> vector<32x64xf32>
    %11 = arith.addf %4, %10 : vector<32x64xf32>
    %c0_15 = arith.constant 0 : index
    %c1_16 = arith.constant 1 : index
    %c0_17 = arith.constant 0 : index
    %12 = vector.load %arg9[%c0_15, %c1_16, %c0_17] : memref<2x18x128xf32, #tpu.memory_space<vmem>>, vector<2x16x128xf32>
    %13 = vector.shape_cast %12 : vector<2x16x128xf32> to vector<32x128xf32>
    %14 = arith.truncf %13 : vector<32x128xf32> to vector<32x128xbf16>
    %c1_18 = arith.constant 1 : index
    %c0_19 = arith.constant 0 : index
    %c0_20 = arith.constant 0 : index
    %15 = vector.load %arg1[%c1_18, %c0_19, %c0_20] : memref<3x128x64xbf16, #tpu.memory_space<vmem>>, vector<1x128x64xbf16>
    %16 = vector.shape_cast %15 : vector<1x128x64xbf16> to vector<128x64xbf16>
    %cst_21 = arith.constant dense<0.000000e+00> : vector<32x64xf32>
    %17 = tpu.matmul %14, %16, %cst_21 {dimension_numbers = #tpu.dot_dimension_numbers<[1], [0], [0], [1], [0, 0, 1, 1], [], []>} : vector<32x128xbf16>, vector<128x64xbf16>, vector<32x64xf32> -> vector<32x64xf32>
    %18 = arith.addf %11, %17 : vector<32x64xf32>
    %c0_22 = arith.constant 0 : index
    %c2 = arith.constant 2 : index
    %c0_23 = arith.constant 0 : index
    %19 = vector.load %arg9[%c0_22, %c2, %c0_23] : memref<2x18x128xf32, #tpu.memory_space<vmem>>, vector<2x16x128xf32>
    %20 = vector.shape_cast %19 : vector<2x16x128xf32> to vector<32x128xf32>
    %21 = arith.truncf %20 : vector<32x128xf32> to vector<32x128xbf16>
    %c2_24 = arith.constant 2 : index
    %c0_25 = arith.constant 0 : index
    %c0_26 = arith.constant 0 : index
    %22 = vector.load %arg1[%c2_24, %c0_25, %c0_26] : memref<3x128x64xbf16, #tpu.memory_space<vmem>>, vector<1x128x64xbf16>
    %23 = vector.shape_cast %22 : vector<1x128x64xbf16> to vector<128x64xbf16>
    %cst_27 = arith.constant dense<0.000000e+00> : vector<32x64xf32>
    %24 = tpu.matmul %21, %23, %cst_27 {dimension_numbers = #tpu.dot_dimension_numbers<[1], [0], [0], [1], [0, 0, 1, 1], [], []>} : vector<32x128xbf16>, vector<128x64xbf16>, vector<32x64xf32> -> vector<32x64xf32>
    %25 = arith.addf %18, %24 : vector<32x64xf32>
    %c0_28 = arith.constant 0 : index
    %c0_29 = arith.constant 0 : index
    %26 = vector.load %arg2[%c0_28, %c0_29] : memref<1x64xf32, #tpu.memory_space<vmem>>, vector<1x64xf32>
    %27 = vector.broadcast %26 : vector<1x64xf32> to vector<32x64xf32>
    %28 = arith.addf %25, %27 : vector<32x64xf32>
    %cst_30 = arith.constant 5.000000e-01 : f32
    %29 = vector.broadcast %cst_30 : f32 to vector<32x64xf32>
    %30 = arith.mulf %29, %28 : vector<32x64xf32>
    %cst_31 = arith.constant 4.471500e-02 : f32
    %31 = vector.broadcast %cst_31 : f32 to vector<32x64xf32>
    %32 = arith.mulf %31, %28 : vector<32x64xf32>
    %33 = arith.mulf %32, %28 : vector<32x64xf32>
    %34 = arith.mulf %33, %28 : vector<32x64xf32>
    %35 = arith.addf %28, %34 : vector<32x64xf32>
    %cst_32 = arith.constant 0.797884583 : f32
    %36 = vector.broadcast %cst_32 : f32 to vector<32x64xf32>
    %37 = arith.mulf %36, %35 : vector<32x64xf32>
    %38 = math.tanh %37 : vector<32x64xf32>
    %cst_33 = arith.constant 1.000000e+00 : f32
    %39 = vector.broadcast %cst_33 : f32 to vector<32x64xf32>
    %40 = arith.addf %39, %38 : vector<32x64xf32>
    %41 = arith.mulf %30, %40 : vector<32x64xf32>
    %42 = vector.shape_cast %41 : vector<32x64xf32> to vector<2x16x64xf32>
    %c0_34 = arith.constant 0 : index
    %c0_35 = arith.constant 0 : index
    %43 = vector.load %arg3[%c0_34, %c0_35] : memref<2x64xf32, #tpu.memory_space<vmem>>, vector<2x64xf32>
    %44 = vector.shape_cast %43 : vector<2x64xf32> to vector<2x1x64xf32>
    %45 = vector.broadcast %44 : vector<2x1x64xf32> to vector<2x16x64xf32>
    %46 = arith.addf %42, %45 : vector<2x16x64xf32>
    %cst_36 = arith.constant 0.000000e+00 : f32
    %47 = vector.broadcast %cst_36 : f32 to vector<2x18x64xf32>
    %c0_37 = arith.constant 0 : index
    %c0_38 = arith.constant 0 : index
    %c0_39 = arith.constant 0 : index
    %48 = vector.load %arg10[%c0_37, %c0_38, %c0_39] : memref<2x18x64xf32, #tpu.memory_space<vmem>>, vector<2x18x64xf32>
    tpu.vector_store %arg10[%c0_37, %c0_38, %c0_39], %47 {strides = array<i32>} : memref<2x18x64xf32, #tpu.memory_space<vmem>>, vector<2x18x64xf32>,
    %c0_40 = arith.constant 0 : index
    %c1_41 = arith.constant 1 : index
    %c0_42 = arith.constant 0 : index
    %49 = vector.load %arg10[%c0_40, %c1_41, %c0_42] : memref<2x18x64xf32, #tpu.memory_space<vmem>>, vector<2x16x64xf32>
    tpu.vector_store %arg10[%c0_40, %c1_41, %c0_42], %46 {strides = array<i32>} : memref<2x18x64xf32, #tpu.memory_space<vmem>>, vector<2x16x64xf32>,
    %cst_43 = arith.constant 0.000000e+00 : f32
    %50 = vector.broadcast %cst_43 : f32 to vector<32x64xf32>
    %c0_44 = arith.constant 0 : index
    %c0_45 = arith.constant 0 : index
    %c0_46 = arith.constant 0 : index
    %51 = vector.load %arg10[%c0_44, %c0_45, %c0_46] : memref<2x18x64xf32, #tpu.memory_space<vmem>>, vector<2x16x64xf32>
    %52 = vector.shape_cast %51 : vector<2x16x64xf32> to vector<32x64xf32>
    %53 = arith.truncf %52 : vector<32x64xf32> to vector<32x64xbf16>
    %c0_47 = arith.constant 0 : index
    %c0_48 = arith.constant 0 : index
    %c0_49 = arith.constant 0 : index
    %54 = vector.load %arg4[%c0_47, %c0_48, %c0_49] : memref<3x64x64xbf16, #tpu.memory_space<vmem>>, vector<1x64x64xbf16>
    %55 = vector.shape_cast %54 : vector<1x64x64xbf16> to vector<64x64xbf16>
    %cst_50 = arith.constant dense<0.000000e+00> : vector<32x64xf32>
    %56 = tpu.matmul %53, %55, %cst_50 {dimension_numbers = #tpu.dot_dimension_numbers<[1], [0], [0], [1], [0, 0, 1, 1], [], []>} : vector<32x64xbf16>, vector<64x64xbf16>, vector<32x64xf32> -> vector<32x64xf32>
    %57 = arith.addf %50, %56 : vector<32x64xf32>
    %c0_51 = arith.constant 0 : index
    %c1_52 = arith.constant 1 : index
    %c0_53 = arith.constant 0 : index
    %58 = vector.load %arg10[%c0_51, %c1_52, %c0_53] : memref<2x18x64xf32, #tpu.memory_space<vmem>>, vector<2x16x64xf32>
    %59 = vector.shape_cast %58 : vector<2x16x64xf32> to vector<32x64xf32>
    %60 = arith.truncf %59 : vector<32x64xf32> to vector<32x64xbf16>
    %c1_54 = arith.constant 1 : index
    %c0_55 = arith.constant 0 : index
    %c0_56 = arith.constant 0 : index
    %61 = vector.load %arg4[%c1_54, %c0_55, %c0_56] : memref<3x64x64xbf16, #tpu.memory_space<vmem>>, vector<1x64x64xbf16>
    %62 = vector.shape_cast %61 : vector<1x64x64xbf16> to vector<64x64xbf16>
    %cst_57 = arith.constant dense<0.000000e+00> : vector<32x64xf32>
    %63 = tpu.matmul %60, %62, %cst_57 {dimension_numbers = #tpu.dot_dimension_numbers<[1], [0], [0], [1], [0, 0, 1, 1], [], []>} : vector<32x64xbf16>, vector<64x64xbf16>, vector<32x64xf32> -> vector<32x64xf32>
    %64 = arith.addf %57, %63 : vector<32x64xf32>
    %c0_58 = arith.constant 0 : index
    %c2_59 = arith.constant 2 : index
    %c0_60 = arith.constant 0 : index
    %65 = vector.load %arg10[%c0_58, %c2_59, %c0_60] : memref<2x18x64xf32, #tpu.memory_space<vmem>>, vector<2x16x64xf32>
    %66 = vector.shape_cast %65 : vector<2x16x64xf32> to vector<32x64xf32>
    %67 = arith.truncf %66 : vector<32x64xf32> to vector<32x64xbf16>
    %c2_61 = arith.constant 2 : index
    %c0_62 = arith.constant 0 : index
    %c0_63 = arith.constant 0 : index
    %68 = vector.load %arg4[%c2_61, %c0_62, %c0_63] : memref<3x64x64xbf16, #tpu.memory_space<vmem>>, vector<1x64x64xbf16>
    %69 = vector.shape_cast %68 : vector<1x64x64xbf16> to vector<64x64xbf16>
    %cst_64 = arith.constant dense<0.000000e+00> : vector<32x64xf32>
    %70 = tpu.matmul %67, %69, %cst_64 {dimension_numbers = #tpu.dot_dimension_numbers<[1], [0], [0], [1], [0, 0, 1, 1], [], []>} : vector<32x64xbf16>, vector<64x64xbf16>, vector<32x64xf32> -> vector<32x64xf32>
    %71 = arith.addf %64, %70 : vector<32x64xf32>
    %c0_65 = arith.constant 0 : index
    %c0_66 = arith.constant 0 : index
    %72 = vector.load %arg5[%c0_65, %c0_66] : memref<1x64xf32, #tpu.memory_space<vmem>>, vector<1x64xf32>
    %73 = vector.broadcast %72 : vector<1x64xf32> to vector<32x64xf32>
    %74 = arith.addf %71, %73 : vector<32x64xf32>
    %cst_67 = arith.constant 5.000000e-01 : f32
    %75 = vector.broadcast %cst_67 : f32 to vector<32x64xf32>
    %76 = arith.mulf %75, %74 : vector<32x64xf32>
    %cst_68 = arith.constant 4.471500e-02 : f32
    %77 = vector.broadcast %cst_68 : f32 to vector<32x64xf32>
    %78 = arith.mulf %77, %74 : vector<32x64xf32>
    %79 = arith.mulf %78, %74 : vector<32x64xf32>
    %80 = arith.mulf %79, %74 : vector<32x64xf32>
    %81 = arith.addf %74, %80 : vector<32x64xf32>
    %cst_69 = arith.constant 0.797884583 : f32
    %82 = vector.broadcast %cst_69 : f32 to vector<32x64xf32>
    %83 = arith.mulf %82, %81 : vector<32x64xf32>
    %84 = math.tanh %83 : vector<32x64xf32>
    %cst_70 = arith.constant 1.000000e+00 : f32
    %85 = vector.broadcast %cst_70 : f32 to vector<32x64xf32>
    %86 = arith.addf %85, %84 : vector<32x64xf32>
    %87 = arith.mulf %76, %86 : vector<32x64xf32>
    %c0_71 = arith.constant 0 : index
    %c0_72 = arith.constant 0 : index
    %88 = vector.load %arg7[%c0_71, %c0_72] : memref<1x64xf32, #tpu.memory_space<vmem>>, vector<1x64xf32>
    %c0_73 = arith.constant 0 : index
    %c0_74 = arith.constant 0 : index
    %c0_75 = arith.constant 0 : index
    %89 = vector.load %arg0[%c0_73, %c0_74, %c0_75] : memref<2x16x128xf32, #tpu.memory_space<vmem>>, vector<2x16x128xf32>
    %90 = vector.shape_cast %89 : vector<2x16x128xf32> to vector<32x128xf32>
    %91 = arith.truncf %90 : vector<32x128xf32> to vector<32x128xbf16>
    %c0_76 = arith.constant 0 : index
    %c0_77 = arith.constant 0 : index
    %92 = vector.load %arg6[%c0_76, %c0_77] : memref<128x64xbf16, #tpu.memory_space<vmem>>, vector<128x64xbf16>
    %cst_78 = arith.constant dense<0.000000e+00> : vector<32x64xf32>
    %93 = tpu.matmul %91, %92, %cst_78 {dimension_numbers = #tpu.dot_dimension_numbers<[1], [0], [0], [1], [0, 0, 1, 1], [], []>} : vector<32x128xbf16>, vector<128x64xbf16>, vector<32x64xf32> -> vector<32x64xf32>
    %94 = vector.broadcast %88 : vector<1x64xf32> to vector<32x64xf32>
    %95 = arith.addf %94, %93 : vector<32x64xf32>
    %96 = arith.addf %87, %95 : vector<32x64xf32>
    %97 = vector.shape_cast %96 : vector<32x64xf32> to vector<2x16x64xf32>
    %c0_79 = arith.constant 0 : index
    %c0_80 = arith.constant 0 : index
    %c0_81 = arith.constant 0 : index
    %98 = vector.load %arg8[%c0_79, %c0_80, %c0_81] : memref<2x16x64xf32, #tpu.memory_space<vmem>>, vector<2x16x64xf32>
    tpu.vector_store %arg8[%c0_79, %c0_80, %c0_81], %97 {strides = array<i32>} : memref<2x16x64xf32, #tpu.memory_space<vmem>>, vector<2x16x64xf32>,
    return
  }
}

module attributes {stable_mosaic.version = 11 : i64} {
  func.func @kernel(%arg0: memref<2x16x256xf32, #tpu.memory_space<vmem>>, %arg1: memref<2x16x256xf32, #tpu.memory_space<vmem>>, %arg2: memref<3x256x128xbf16, #tpu.memory_space<vmem>>, %arg3: memref<3x256x128xbf16, #tpu.memory_space<vmem>>, %arg4: memref<1x128xf32, #tpu.memory_space<vmem>>, %arg5: memref<2x128xf32, #tpu.memory_space<vmem>>, %arg6: memref<3x128x128xbf16, #tpu.memory_space<vmem>>, %arg7: memref<1x128xf32, #tpu.memory_space<vmem>>, %arg8: memref<256x128xbf16, #tpu.memory_space<vmem>>, %arg9: memref<256x128xbf16, #tpu.memory_space<vmem>>, %arg10: memref<1x128xf32, #tpu.memory_space<vmem>>, %arg11: memref<2x16x128xf32, #tpu.memory_space<vmem>>, %arg12: memref<2x18x256xf32, #tpu.memory_space<vmem>>, %arg13: memref<2x18x256xf32, #tpu.memory_space<vmem>>, %arg14: memref<2x18x128xf32, #tpu.memory_space<vmem>>) attributes {dimension_semantics = [], scalar_prefetch = 0 : i64, scratch_operands = 3 : i64, tpu.core_type = #tpu.core_type<tc>} {
    %cst = arith.constant 0.000000e+00 : f32
    %0 = vector.broadcast %cst : f32 to vector<2x18x256xf32>
    %c0 = arith.constant 0 : index
    %c0_0 = arith.constant 0 : index
    %c0_1 = arith.constant 0 : index
    %1 = vector.load %arg12[%c0, %c0_0, %c0_1] : memref<2x18x256xf32, #tpu.memory_space<vmem>>, vector<2x18x256xf32>
    tpu.vector_store %arg12[%c0, %c0_0, %c0_1], %0 {strides = array<i32>} : memref<2x18x256xf32, #tpu.memory_space<vmem>>, vector<2x18x256xf32>,
    %c0_2 = arith.constant 0 : index
    %c0_3 = arith.constant 0 : index
    %c0_4 = arith.constant 0 : index
    %2 = vector.load %arg0[%c0_2, %c0_3, %c0_4] : memref<2x16x256xf32, #tpu.memory_space<vmem>>, vector<2x16x256xf32>
    %c0_5 = arith.constant 0 : index
    %c1 = arith.constant 1 : index
    %c0_6 = arith.constant 0 : index
    %3 = vector.load %arg12[%c0_5, %c1, %c0_6] : memref<2x18x256xf32, #tpu.memory_space<vmem>>, vector<2x16x256xf32>
    tpu.vector_store %arg12[%c0_5, %c1, %c0_6], %2 {strides = array<i32>} : memref<2x18x256xf32, #tpu.memory_space<vmem>>, vector<2x16x256xf32>,
    %cst_7 = arith.constant 0.000000e+00 : f32
    %4 = vector.broadcast %cst_7 : f32 to vector<2x18x256xf32>
    %c0_8 = arith.constant 0 : index
    %c0_9 = arith.constant 0 : index
    %c0_10 = arith.constant 0 : index
    %5 = vector.load %arg13[%c0_8, %c0_9, %c0_10] : memref<2x18x256xf32, #tpu.memory_space<vmem>>, vector<2x18x256xf32>
    tpu.vector_store %arg13[%c0_8, %c0_9, %c0_10], %4 {strides = array<i32>} : memref<2x18x256xf32, #tpu.memory_space<vmem>>, vector<2x18x256xf32>,
    %c0_11 = arith.constant 0 : index
    %c0_12 = arith.constant 0 : index
    %c0_13 = arith.constant 0 : index
    %6 = vector.load %arg1[%c0_11, %c0_12, %c0_13] : memref<2x16x256xf32, #tpu.memory_space<vmem>>, vector<2x16x256xf32>
    %c0_14 = arith.constant 0 : index
    %c1_15 = arith.constant 1 : index
    %c0_16 = arith.constant 0 : index
    %7 = vector.load %arg13[%c0_14, %c1_15, %c0_16] : memref<2x18x256xf32, #tpu.memory_space<vmem>>, vector<2x16x256xf32>
    tpu.vector_store %arg13[%c0_14, %c1_15, %c0_16], %6 {strides = array<i32>} : memref<2x18x256xf32, #tpu.memory_space<vmem>>, vector<2x16x256xf32>,
    %cst_17 = arith.constant 0.000000e+00 : f32
    %8 = vector.broadcast %cst_17 : f32 to vector<32x128xf32>
    %c0_18 = arith.constant 0 : index
    %c0_19 = arith.constant 0 : index
    %c0_20 = arith.constant 0 : index
    %9 = vector.load %arg12[%c0_18, %c0_19, %c0_20] : memref<2x18x256xf32, #tpu.memory_space<vmem>>, vector<2x16x256xf32>
    %10 = vector.shape_cast %9 : vector<2x16x256xf32> to vector<32x256xf32>
    %11 = arith.truncf %10 : vector<32x256xf32> to vector<32x256xbf16>
    %c0_21 = arith.constant 0 : index
    %c0_22 = arith.constant 0 : index
    %c0_23 = arith.constant 0 : index
    %12 = vector.load %arg2[%c0_21, %c0_22, %c0_23] : memref<3x256x128xbf16, #tpu.memory_space<vmem>>, vector<1x256x128xbf16>
    %13 = vector.shape_cast %12 : vector<1x256x128xbf16> to vector<256x128xbf16>
    %cst_24 = arith.constant dense<0.000000e+00> : vector<32x128xf32>
    %14 = tpu.matmul %11, %13, %cst_24 {dimension_numbers = #tpu.dot_dimension_numbers<[1], [0], [0], [1], [0, 0, 1, 1], [], []>} : vector<32x256xbf16>, vector<256x128xbf16>, vector<32x128xf32> -> vector<32x128xf32>
    %15 = arith.addf %8, %14 : vector<32x128xf32>
    %c0_25 = arith.constant 0 : index
    %c1_26 = arith.constant 1 : index
    %c0_27 = arith.constant 0 : index
    %16 = vector.load %arg12[%c0_25, %c1_26, %c0_27] : memref<2x18x256xf32, #tpu.memory_space<vmem>>, vector<2x16x256xf32>
    %17 = vector.shape_cast %16 : vector<2x16x256xf32> to vector<32x256xf32>
    %18 = arith.truncf %17 : vector<32x256xf32> to vector<32x256xbf16>
    %c1_28 = arith.constant 1 : index
    %c0_29 = arith.constant 0 : index
    %c0_30 = arith.constant 0 : index
    %19 = vector.load %arg2[%c1_28, %c0_29, %c0_30] : memref<3x256x128xbf16, #tpu.memory_space<vmem>>, vector<1x256x128xbf16>
    %20 = vector.shape_cast %19 : vector<1x256x128xbf16> to vector<256x128xbf16>
    %cst_31 = arith.constant dense<0.000000e+00> : vector<32x128xf32>
    %21 = tpu.matmul %18, %20, %cst_31 {dimension_numbers = #tpu.dot_dimension_numbers<[1], [0], [0], [1], [0, 0, 1, 1], [], []>} : vector<32x256xbf16>, vector<256x128xbf16>, vector<32x128xf32> -> vector<32x128xf32>
    %22 = arith.addf %15, %21 : vector<32x128xf32>
    %c0_32 = arith.constant 0 : index
    %c2 = arith.constant 2 : index
    %c0_33 = arith.constant 0 : index
    %23 = vector.load %arg12[%c0_32, %c2, %c0_33] : memref<2x18x256xf32, #tpu.memory_space<vmem>>, vector<2x16x256xf32>
    %24 = vector.shape_cast %23 : vector<2x16x256xf32> to vector<32x256xf32>
    %25 = arith.truncf %24 : vector<32x256xf32> to vector<32x256xbf16>
    %c2_34 = arith.constant 2 : index
    %c0_35 = arith.constant 0 : index
    %c0_36 = arith.constant 0 : index
    %26 = vector.load %arg2[%c2_34, %c0_35, %c0_36] : memref<3x256x128xbf16, #tpu.memory_space<vmem>>, vector<1x256x128xbf16>
    %27 = vector.shape_cast %26 : vector<1x256x128xbf16> to vector<256x128xbf16>
    %cst_37 = arith.constant dense<0.000000e+00> : vector<32x128xf32>
    %28 = tpu.matmul %25, %27, %cst_37 {dimension_numbers = #tpu.dot_dimension_numbers<[1], [0], [0], [1], [0, 0, 1, 1], [], []>} : vector<32x256xbf16>, vector<256x128xbf16>, vector<32x128xf32> -> vector<32x128xf32>
    %29 = arith.addf %22, %28 : vector<32x128xf32>
    %c0_38 = arith.constant 0 : index
    %c0_39 = arith.constant 0 : index
    %c0_40 = arith.constant 0 : index
    %30 = vector.load %arg13[%c0_38, %c0_39, %c0_40] : memref<2x18x256xf32, #tpu.memory_space<vmem>>, vector<2x16x256xf32>
    %31 = vector.shape_cast %30 : vector<2x16x256xf32> to vector<32x256xf32>
    %32 = arith.truncf %31 : vector<32x256xf32> to vector<32x256xbf16>
    %c0_41 = arith.constant 0 : index
    %c0_42 = arith.constant 0 : index
    %c0_43 = arith.constant 0 : index
    %33 = vector.load %arg3[%c0_41, %c0_42, %c0_43] : memref<3x256x128xbf16, #tpu.memory_space<vmem>>, vector<1x256x128xbf16>
    %34 = vector.shape_cast %33 : vector<1x256x128xbf16> to vector<256x128xbf16>
    %cst_44 = arith.constant dense<0.000000e+00> : vector<32x128xf32>
    %35 = tpu.matmul %32, %34, %cst_44 {dimension_numbers = #tpu.dot_dimension_numbers<[1], [0], [0], [1], [0, 0, 1, 1], [], []>} : vector<32x256xbf16>, vector<256x128xbf16>, vector<32x128xf32> -> vector<32x128xf32>
    %36 = arith.addf %29, %35 : vector<32x128xf32>
    %c0_45 = arith.constant 0 : index
    %c1_46 = arith.constant 1 : index
    %c0_47 = arith.constant 0 : index
    %37 = vector.load %arg13[%c0_45, %c1_46, %c0_47] : memref<2x18x256xf32, #tpu.memory_space<vmem>>, vector<2x16x256xf32>
    %38 = vector.shape_cast %37 : vector<2x16x256xf32> to vector<32x256xf32>
    %39 = arith.truncf %38 : vector<32x256xf32> to vector<32x256xbf16>
    %c1_48 = arith.constant 1 : index
    %c0_49 = arith.constant 0 : index
    %c0_50 = arith.constant 0 : index
    %40 = vector.load %arg3[%c1_48, %c0_49, %c0_50] : memref<3x256x128xbf16, #tpu.memory_space<vmem>>, vector<1x256x128xbf16>
    %41 = vector.shape_cast %40 : vector<1x256x128xbf16> to vector<256x128xbf16>
    %cst_51 = arith.constant dense<0.000000e+00> : vector<32x128xf32>
    %42 = tpu.matmul %39, %41, %cst_51 {dimension_numbers = #tpu.dot_dimension_numbers<[1], [0], [0], [1], [0, 0, 1, 1], [], []>} : vector<32x256xbf16>, vector<256x128xbf16>, vector<32x128xf32> -> vector<32x128xf32>
    %43 = arith.addf %36, %42 : vector<32x128xf32>
    %c0_52 = arith.constant 0 : index
    %c2_53 = arith.constant 2 : index
    %c0_54 = arith.constant 0 : index
    %44 = vector.load %arg13[%c0_52, %c2_53, %c0_54] : memref<2x18x256xf32, #tpu.memory_space<vmem>>, vector<2x16x256xf32>
    %45 = vector.shape_cast %44 : vector<2x16x256xf32> to vector<32x256xf32>
    %46 = arith.truncf %45 : vector<32x256xf32> to vector<32x256xbf16>
    %c2_55 = arith.constant 2 : index
    %c0_56 = arith.constant 0 : index
    %c0_57 = arith.constant 0 : index
    %47 = vector.load %arg3[%c2_55, %c0_56, %c0_57] : memref<3x256x128xbf16, #tpu.memory_space<vmem>>, vector<1x256x128xbf16>
    %48 = vector.shape_cast %47 : vector<1x256x128xbf16> to vector<256x128xbf16>
    %cst_58 = arith.constant dense<0.000000e+00> : vector<32x128xf32>
    %49 = tpu.matmul %46, %48, %cst_58 {dimension_numbers = #tpu.dot_dimension_numbers<[1], [0], [0], [1], [0, 0, 1, 1], [], []>} : vector<32x256xbf16>, vector<256x128xbf16>, vector<32x128xf32> -> vector<32x128xf32>
    %50 = arith.addf %43, %49 : vector<32x128xf32>
    %c0_59 = arith.constant 0 : index
    %c0_60 = arith.constant 0 : index
    %51 = vector.load %arg4[%c0_59, %c0_60] : memref<1x128xf32, #tpu.memory_space<vmem>>, vector<1x128xf32>
    %52 = vector.broadcast %51 : vector<1x128xf32> to vector<32x128xf32>
    %53 = arith.addf %50, %52 : vector<32x128xf32>
    %cst_61 = arith.constant 5.000000e-01 : f32
    %54 = vector.broadcast %cst_61 : f32 to vector<32x128xf32>
    %55 = arith.mulf %54, %53 : vector<32x128xf32>
    %cst_62 = arith.constant 4.471500e-02 : f32
    %56 = vector.broadcast %cst_62 : f32 to vector<32x128xf32>
    %57 = arith.mulf %56, %53 : vector<32x128xf32>
    %58 = arith.mulf %57, %53 : vector<32x128xf32>
    %59 = arith.mulf %58, %53 : vector<32x128xf32>
    %60 = arith.addf %53, %59 : vector<32x128xf32>
    %cst_63 = arith.constant 0.797884583 : f32
    %61 = vector.broadcast %cst_63 : f32 to vector<32x128xf32>
    %62 = arith.mulf %61, %60 : vector<32x128xf32>
    %63 = math.tanh %62 : vector<32x128xf32>
    %cst_64 = arith.constant 1.000000e+00 : f32
    %64 = vector.broadcast %cst_64 : f32 to vector<32x128xf32>
    %65 = arith.addf %64, %63 : vector<32x128xf32>
    %66 = arith.mulf %55, %65 : vector<32x128xf32>
    %67 = vector.shape_cast %66 : vector<32x128xf32> to vector<2x16x128xf32>
    %c0_65 = arith.constant 0 : index
    %c0_66 = arith.constant 0 : index
    %68 = vector.load %arg5[%c0_65, %c0_66] : memref<2x128xf32, #tpu.memory_space<vmem>>, vector<2x128xf32>
    %69 = vector.shape_cast %68 : vector<2x128xf32> to vector<2x1x128xf32>
    %70 = vector.broadcast %69 : vector<2x1x128xf32> to vector<2x16x128xf32>
    %71 = arith.addf %67, %70 : vector<2x16x128xf32>
    %cst_67 = arith.constant 0.000000e+00 : f32
    %72 = vector.broadcast %cst_67 : f32 to vector<2x18x128xf32>
    %c0_68 = arith.constant 0 : index
    %c0_69 = arith.constant 0 : index
    %c0_70 = arith.constant 0 : index
    %73 = vector.load %arg14[%c0_68, %c0_69, %c0_70] : memref<2x18x128xf32, #tpu.memory_space<vmem>>, vector<2x18x128xf32>
    tpu.vector_store %arg14[%c0_68, %c0_69, %c0_70], %72 {strides = array<i32>} : memref<2x18x128xf32, #tpu.memory_space<vmem>>, vector<2x18x128xf32>,
    %c0_71 = arith.constant 0 : index
    %c1_72 = arith.constant 1 : index
    %c0_73 = arith.constant 0 : index
    %74 = vector.load %arg14[%c0_71, %c1_72, %c0_73] : memref<2x18x128xf32, #tpu.memory_space<vmem>>, vector<2x16x128xf32>
    tpu.vector_store %arg14[%c0_71, %c1_72, %c0_73], %71 {strides = array<i32>} : memref<2x18x128xf32, #tpu.memory_space<vmem>>, vector<2x16x128xf32>,
    %cst_74 = arith.constant 0.000000e+00 : f32
    %75 = vector.broadcast %cst_74 : f32 to vector<32x128xf32>
    %c0_75 = arith.constant 0 : index
    %c0_76 = arith.constant 0 : index
    %c0_77 = arith.constant 0 : index
    %76 = vector.load %arg14[%c0_75, %c0_76, %c0_77] : memref<2x18x128xf32, #tpu.memory_space<vmem>>, vector<2x16x128xf32>
    %77 = vector.shape_cast %76 : vector<2x16x128xf32> to vector<32x128xf32>
    %78 = arith.truncf %77 : vector<32x128xf32> to vector<32x128xbf16>
    %c0_78 = arith.constant 0 : index
    %c0_79 = arith.constant 0 : index
    %c0_80 = arith.constant 0 : index
    %79 = vector.load %arg6[%c0_78, %c0_79, %c0_80] : memref<3x128x128xbf16, #tpu.memory_space<vmem>>, vector<1x128x128xbf16>
    %80 = vector.shape_cast %79 : vector<1x128x128xbf16> to vector<128x128xbf16>
    %cst_81 = arith.constant dense<0.000000e+00> : vector<32x128xf32>
    %81 = tpu.matmul %78, %80, %cst_81 {dimension_numbers = #tpu.dot_dimension_numbers<[1], [0], [0], [1], [0, 0, 1, 1], [], []>} : vector<32x128xbf16>, vector<128x128xbf16>, vector<32x128xf32> -> vector<32x128xf32>
    %82 = arith.addf %75, %81 : vector<32x128xf32>
    %c0_82 = arith.constant 0 : index
    %c1_83 = arith.constant 1 : index
    %c0_84 = arith.constant 0 : index
    %83 = vector.load %arg14[%c0_82, %c1_83, %c0_84] : memref<2x18x128xf32, #tpu.memory_space<vmem>>, vector<2x16x128xf32>
    %84 = vector.shape_cast %83 : vector<2x16x128xf32> to vector<32x128xf32>
    %85 = arith.truncf %84 : vector<32x128xf32> to vector<32x128xbf16>
    %c1_85 = arith.constant 1 : index
    %c0_86 = arith.constant 0 : index
    %c0_87 = arith.constant 0 : index
    %86 = vector.load %arg6[%c1_85, %c0_86, %c0_87] : memref<3x128x128xbf16, #tpu.memory_space<vmem>>, vector<1x128x128xbf16>
    %87 = vector.shape_cast %86 : vector<1x128x128xbf16> to vector<128x128xbf16>
    %cst_88 = arith.constant dense<0.000000e+00> : vector<32x128xf32>
    %88 = tpu.matmul %85, %87, %cst_88 {dimension_numbers = #tpu.dot_dimension_numbers<[1], [0], [0], [1], [0, 0, 1, 1], [], []>} : vector<32x128xbf16>, vector<128x128xbf16>, vector<32x128xf32> -> vector<32x128xf32>
    %89 = arith.addf %82, %88 : vector<32x128xf32>
    %c0_89 = arith.constant 0 : index
    %c2_90 = arith.constant 2 : index
    %c0_91 = arith.constant 0 : index
    %90 = vector.load %arg14[%c0_89, %c2_90, %c0_91] : memref<2x18x128xf32, #tpu.memory_space<vmem>>, vector<2x16x128xf32>
    %91 = vector.shape_cast %90 : vector<2x16x128xf32> to vector<32x128xf32>
    %92 = arith.truncf %91 : vector<32x128xf32> to vector<32x128xbf16>
    %c2_92 = arith.constant 2 : index
    %c0_93 = arith.constant 0 : index
    %c0_94 = arith.constant 0 : index
    %93 = vector.load %arg6[%c2_92, %c0_93, %c0_94] : memref<3x128x128xbf16, #tpu.memory_space<vmem>>, vector<1x128x128xbf16>
    %94 = vector.shape_cast %93 : vector<1x128x128xbf16> to vector<128x128xbf16>
    %cst_95 = arith.constant dense<0.000000e+00> : vector<32x128xf32>
    %95 = tpu.matmul %92, %94, %cst_95 {dimension_numbers = #tpu.dot_dimension_numbers<[1], [0], [0], [1], [0, 0, 1, 1], [], []>} : vector<32x128xbf16>, vector<128x128xbf16>, vector<32x128xf32> -> vector<32x128xf32>
    %96 = arith.addf %89, %95 : vector<32x128xf32>
    %c0_96 = arith.constant 0 : index
    %c0_97 = arith.constant 0 : index
    %97 = vector.load %arg7[%c0_96, %c0_97] : memref<1x128xf32, #tpu.memory_space<vmem>>, vector<1x128xf32>
    %98 = vector.broadcast %97 : vector<1x128xf32> to vector<32x128xf32>
    %99 = arith.addf %96, %98 : vector<32x128xf32>
    %cst_98 = arith.constant 5.000000e-01 : f32
    %100 = vector.broadcast %cst_98 : f32 to vector<32x128xf32>
    %101 = arith.mulf %100, %99 : vector<32x128xf32>
    %cst_99 = arith.constant 4.471500e-02 : f32
    %102 = vector.broadcast %cst_99 : f32 to vector<32x128xf32>
    %103 = arith.mulf %102, %99 : vector<32x128xf32>
    %104 = arith.mulf %103, %99 : vector<32x128xf32>
    %105 = arith.mulf %104, %99 : vector<32x128xf32>
    %106 = arith.addf %99, %105 : vector<32x128xf32>
    %cst_100 = arith.constant 0.797884583 : f32
    %107 = vector.broadcast %cst_100 : f32 to vector<32x128xf32>
    %108 = arith.mulf %107, %106 : vector<32x128xf32>
    %109 = math.tanh %108 : vector<32x128xf32>
    %cst_101 = arith.constant 1.000000e+00 : f32
    %110 = vector.broadcast %cst_101 : f32 to vector<32x128xf32>
    %111 = arith.addf %110, %109 : vector<32x128xf32>
    %112 = arith.mulf %101, %111 : vector<32x128xf32>
    %c0_102 = arith.constant 0 : index
    %c0_103 = arith.constant 0 : index
    %113 = vector.load %arg10[%c0_102, %c0_103] : memref<1x128xf32, #tpu.memory_space<vmem>>, vector<1x128xf32>
    %c0_104 = arith.constant 0 : index
    %c0_105 = arith.constant 0 : index
    %c0_106 = arith.constant 0 : index
    %114 = vector.load %arg0[%c0_104, %c0_105, %c0_106] : memref<2x16x256xf32, #tpu.memory_space<vmem>>, vector<2x16x256xf32>
    %115 = vector.shape_cast %114 : vector<2x16x256xf32> to vector<32x256xf32>
    %116 = arith.truncf %115 : vector<32x256xf32> to vector<32x256xbf16>
    %c0_107 = arith.constant 0 : index
    %c0_108 = arith.constant 0 : index
    %117 = vector.load %arg8[%c0_107, %c0_108] : memref<256x128xbf16, #tpu.memory_space<vmem>>, vector<256x128xbf16>
    %cst_109 = arith.constant dense<0.000000e+00> : vector<32x128xf32>
    %118 = tpu.matmul %116, %117, %cst_109 {dimension_numbers = #tpu.dot_dimension_numbers<[1], [0], [0], [1], [0, 0, 1, 1], [], []>} : vector<32x256xbf16>, vector<256x128xbf16>, vector<32x128xf32> -> vector<32x128xf32>
    %119 = vector.broadcast %113 : vector<1x128xf32> to vector<32x128xf32>
    %120 = arith.addf %119, %118 : vector<32x128xf32>
    %c0_110 = arith.constant 0 : index
    %c0_111 = arith.constant 0 : index
    %c0_112 = arith.constant 0 : index
    %121 = vector.load %arg1[%c0_110, %c0_111, %c0_112] : memref<2x16x256xf32, #tpu.memory_space<vmem>>, vector<2x16x256xf32>
    %122 = vector.shape_cast %121 : vector<2x16x256xf32> to vector<32x256xf32>
    %123 = arith.truncf %122 : vector<32x256xf32> to vector<32x256xbf16>
    %c0_113 = arith.constant 0 : index
    %c0_114 = arith.constant 0 : index
    %124 = vector.load %arg9[%c0_113, %c0_114] : memref<256x128xbf16, #tpu.memory_space<vmem>>, vector<256x128xbf16>
    %cst_115 = arith.constant dense<0.000000e+00> : vector<32x128xf32>
    %125 = tpu.matmul %123, %124, %cst_115 {dimension_numbers = #tpu.dot_dimension_numbers<[1], [0], [0], [1], [0, 0, 1, 1], [], []>} : vector<32x256xbf16>, vector<256x128xbf16>, vector<32x128xf32> -> vector<32x128xf32>
    %126 = arith.addf %120, %125 : vector<32x128xf32>
    %127 = arith.addf %112, %126 : vector<32x128xf32>
    %128 = vector.shape_cast %127 : vector<32x128xf32> to vector<2x16x128xf32>
    %c0_116 = arith.constant 0 : index
    %c0_117 = arith.constant 0 : index
    %c0_118 = arith.constant 0 : index
    %129 = vector.load %arg11[%c0_116, %c0_117, %c0_118] : memref<2x16x128xf32, #tpu.memory_space<vmem>>, vector<2x16x128xf32>
    tpu.vector_store %arg11[%c0_116, %c0_117, %c0_118], %128 {strides = array<i32>} : memref<2x16x128xf32, #tpu.memory_space<vmem>>, vector<2x16x128xf32>,
    return
  }
}

module attributes {stable_mosaic.version = 11 : i64} {
  func.func @kernel(%arg0: memref<2x16x64xf32, #tpu.memory_space<vmem>>, %arg1: memref<7x64x64xbf16, #tpu.memory_space<vmem>>, %arg2: memref<1x64xf32, #tpu.memory_space<vmem>>, %arg3: memref<2x16x64xf32, #tpu.memory_space<vmem>>, %arg4: memref<2x22x64xf32, #tpu.memory_space<vmem>>) attributes {dimension_semantics = [], scalar_prefetch = 0 : i64, scratch_operands = 1 : i64, tpu.core_type = #tpu.core_type<tc>} {
    %cst = arith.constant 0.000000e+00 : f32
    %0 = vector.broadcast %cst : f32 to vector<2x22x64xf32>
    %c0 = arith.constant 0 : index
    %c0_0 = arith.constant 0 : index
    %c0_1 = arith.constant 0 : index
    %1 = vector.load %arg4[%c0, %c0_0, %c0_1] : memref<2x22x64xf32, #tpu.memory_space<vmem>>, vector<2x22x64xf32>
    tpu.vector_store %arg4[%c0, %c0_0, %c0_1], %0 {strides = array<i32>} : memref<2x22x64xf32, #tpu.memory_space<vmem>>, vector<2x22x64xf32>,
    %c0_2 = arith.constant 0 : index
    %c0_3 = arith.constant 0 : index
    %c0_4 = arith.constant 0 : index
    %2 = vector.load %arg0[%c0_2, %c0_3, %c0_4] : memref<2x16x64xf32, #tpu.memory_space<vmem>>, vector<2x16x64xf32>
    %c0_5 = arith.constant 0 : index
    %c3 = arith.constant 3 : index
    %c0_6 = arith.constant 0 : index
    %3 = vector.load %arg4[%c0_5, %c3, %c0_6] : memref<2x22x64xf32, #tpu.memory_space<vmem>>, vector<2x16x64xf32>
    tpu.vector_store %arg4[%c0_5, %c3, %c0_6], %2 {strides = array<i32>} : memref<2x22x64xf32, #tpu.memory_space<vmem>>, vector<2x16x64xf32>,
    %cst_7 = arith.constant 0.000000e+00 : f32
    %4 = vector.broadcast %cst_7 : f32 to vector<32x64xf32>
    %c0_8 = arith.constant 0 : index
    %c0_9 = arith.constant 0 : index
    %c0_10 = arith.constant 0 : index
    %5 = vector.load %arg4[%c0_8, %c0_9, %c0_10] : memref<2x22x64xf32, #tpu.memory_space<vmem>>, vector<2x16x64xf32>
    %6 = vector.shape_cast %5 : vector<2x16x64xf32> to vector<32x64xf32>
    %7 = arith.truncf %6 : vector<32x64xf32> to vector<32x64xbf16>
    %c0_11 = arith.constant 0 : index
    %c0_12 = arith.constant 0 : index
    %c0_13 = arith.constant 0 : index
    %8 = vector.load %arg1[%c0_11, %c0_12, %c0_13] : memref<7x64x64xbf16, #tpu.memory_space<vmem>>, vector<1x64x64xbf16>
    %9 = vector.shape_cast %8 : vector<1x64x64xbf16> to vector<64x64xbf16>
    %cst_14 = arith.constant dense<0.000000e+00> : vector<32x64xf32>
    %10 = tpu.matmul %7, %9, %cst_14 {dimension_numbers = #tpu.dot_dimension_numbers<[1], [0], [0], [1], [0, 0, 1, 1], [], []>} : vector<32x64xbf16>, vector<64x64xbf16>, vector<32x64xf32> -> vector<32x64xf32>
    %11 = arith.addf %4, %10 : vector<32x64xf32>
    %c0_15 = arith.constant 0 : index
    %c1 = arith.constant 1 : index
    %c0_16 = arith.constant 0 : index
    %12 = vector.load %arg4[%c0_15, %c1, %c0_16] : memref<2x22x64xf32, #tpu.memory_space<vmem>>, vector<2x16x64xf32>
    %13 = vector.shape_cast %12 : vector<2x16x64xf32> to vector<32x64xf32>
    %14 = arith.truncf %13 : vector<32x64xf32> to vector<32x64xbf16>
    %c1_17 = arith.constant 1 : index
    %c0_18 = arith.constant 0 : index
    %c0_19 = arith.constant 0 : index
    %15 = vector.load %arg1[%c1_17, %c0_18, %c0_19] : memref<7x64x64xbf16, #tpu.memory_space<vmem>>, vector<1x64x64xbf16>
    %16 = vector.shape_cast %15 : vector<1x64x64xbf16> to vector<64x64xbf16>
    %cst_20 = arith.constant dense<0.000000e+00> : vector<32x64xf32>
    %17 = tpu.matmul %14, %16, %cst_20 {dimension_numbers = #tpu.dot_dimension_numbers<[1], [0], [0], [1], [0, 0, 1, 1], [], []>} : vector<32x64xbf16>, vector<64x64xbf16>, vector<32x64xf32> -> vector<32x64xf32>
    %18 = arith.addf %11, %17 : vector<32x64xf32>
    %c0_21 = arith.constant 0 : index
    %c2 = arith.constant 2 : index
    %c0_22 = arith.constant 0 : index
    %19 = vector.load %arg4[%c0_21, %c2, %c0_22] : memref<2x22x64xf32, #tpu.memory_space<vmem>>, vector<2x16x64xf32>
    %20 = vector.shape_cast %19 : vector<2x16x64xf32> to vector<32x64xf32>
    %21 = arith.truncf %20 : vector<32x64xf32> to vector<32x64xbf16>
    %c2_23 = arith.constant 2 : index
    %c0_24 = arith.constant 0 : index
    %c0_25 = arith.constant 0 : index
    %22 = vector.load %arg1[%c2_23, %c0_24, %c0_25] : memref<7x64x64xbf16, #tpu.memory_space<vmem>>, vector<1x64x64xbf16>
    %23 = vector.shape_cast %22 : vector<1x64x64xbf16> to vector<64x64xbf16>
    %cst_26 = arith.constant dense<0.000000e+00> : vector<32x64xf32>
    %24 = tpu.matmul %21, %23, %cst_26 {dimension_numbers = #tpu.dot_dimension_numbers<[1], [0], [0], [1], [0, 0, 1, 1], [], []>} : vector<32x64xbf16>, vector<64x64xbf16>, vector<32x64xf32> -> vector<32x64xf32>
    %25 = arith.addf %18, %24 : vector<32x64xf32>
    %c0_27 = arith.constant 0 : index
    %c3_28 = arith.constant 3 : index
    %c0_29 = arith.constant 0 : index
    %26 = vector.load %arg4[%c0_27, %c3_28, %c0_29] : memref<2x22x64xf32, #tpu.memory_space<vmem>>, vector<2x16x64xf32>
    %27 = vector.shape_cast %26 : vector<2x16x64xf32> to vector<32x64xf32>
    %28 = arith.truncf %27 : vector<32x64xf32> to vector<32x64xbf16>
    %c3_30 = arith.constant 3 : index
    %c0_31 = arith.constant 0 : index
    %c0_32 = arith.constant 0 : index
    %29 = vector.load %arg1[%c3_30, %c0_31, %c0_32] : memref<7x64x64xbf16, #tpu.memory_space<vmem>>, vector<1x64x64xbf16>
    %30 = vector.shape_cast %29 : vector<1x64x64xbf16> to vector<64x64xbf16>
    %cst_33 = arith.constant dense<0.000000e+00> : vector<32x64xf32>
    %31 = tpu.matmul %28, %30, %cst_33 {dimension_numbers = #tpu.dot_dimension_numbers<[1], [0], [0], [1], [0, 0, 1, 1], [], []>} : vector<32x64xbf16>, vector<64x64xbf16>, vector<32x64xf32> -> vector<32x64xf32>
    %32 = arith.addf %25, %31 : vector<32x64xf32>
    %c0_34 = arith.constant 0 : index
    %c4 = arith.constant 4 : index
    %c0_35 = arith.constant 0 : index
    %33 = vector.load %arg4[%c0_34, %c4, %c0_35] : memref<2x22x64xf32, #tpu.memory_space<vmem>>, vector<2x16x64xf32>
    %34 = vector.shape_cast %33 : vector<2x16x64xf32> to vector<32x64xf32>
    %35 = arith.truncf %34 : vector<32x64xf32> to vector<32x64xbf16>
    %c4_36 = arith.constant 4 : index
    %c0_37 = arith.constant 0 : index
    %c0_38 = arith.constant 0 : index
    %36 = vector.load %arg1[%c4_36, %c0_37, %c0_38] : memref<7x64x64xbf16, #tpu.memory_space<vmem>>, vector<1x64x64xbf16>
    %37 = vector.shape_cast %36 : vector<1x64x64xbf16> to vector<64x64xbf16>
    %cst_39 = arith.constant dense<0.000000e+00> : vector<32x64xf32>
    %38 = tpu.matmul %35, %37, %cst_39 {dimension_numbers = #tpu.dot_dimension_numbers<[1], [0], [0], [1], [0, 0, 1, 1], [], []>} : vector<32x64xbf16>, vector<64x64xbf16>, vector<32x64xf32> -> vector<32x64xf32>
    %39 = arith.addf %32, %38 : vector<32x64xf32>
    %c0_40 = arith.constant 0 : index
    %c5 = arith.constant 5 : index
    %c0_41 = arith.constant 0 : index
    %40 = vector.load %arg4[%c0_40, %c5, %c0_41] : memref<2x22x64xf32, #tpu.memory_space<vmem>>, vector<2x16x64xf32>
    %41 = vector.shape_cast %40 : vector<2x16x64xf32> to vector<32x64xf32>
    %42 = arith.truncf %41 : vector<32x64xf32> to vector<32x64xbf16>
    %c5_42 = arith.constant 5 : index
    %c0_43 = arith.constant 0 : index
    %c0_44 = arith.constant 0 : index
    %43 = vector.load %arg1[%c5_42, %c0_43, %c0_44] : memref<7x64x64xbf16, #tpu.memory_space<vmem>>, vector<1x64x64xbf16>
    %44 = vector.shape_cast %43 : vector<1x64x64xbf16> to vector<64x64xbf16>
    %cst_45 = arith.constant dense<0.000000e+00> : vector<32x64xf32>
    %45 = tpu.matmul %42, %44, %cst_45 {dimension_numbers = #tpu.dot_dimension_numbers<[1], [0], [0], [1], [0, 0, 1, 1], [], []>} : vector<32x64xbf16>, vector<64x64xbf16>, vector<32x64xf32> -> vector<32x64xf32>
    %46 = arith.addf %39, %45 : vector<32x64xf32>
    %c0_46 = arith.constant 0 : index
    %c6 = arith.constant 6 : index
    %c0_47 = arith.constant 0 : index
    %47 = vector.load %arg4[%c0_46, %c6, %c0_47] : memref<2x22x64xf32, #tpu.memory_space<vmem>>, vector<2x16x64xf32>
    %48 = vector.shape_cast %47 : vector<2x16x64xf32> to vector<32x64xf32>
    %49 = arith.truncf %48 : vector<32x64xf32> to vector<32x64xbf16>
    %c6_48 = arith.constant 6 : index
    %c0_49 = arith.constant 0 : index
    %c0_50 = arith.constant 0 : index
    %50 = vector.load %arg1[%c6_48, %c0_49, %c0_50] : memref<7x64x64xbf16, #tpu.memory_space<vmem>>, vector<1x64x64xbf16>
    %51 = vector.shape_cast %50 : vector<1x64x64xbf16> to vector<64x64xbf16>
    %cst_51 = arith.constant dense<0.000000e+00> : vector<32x64xf32>
    %52 = tpu.matmul %49, %51, %cst_51 {dimension_numbers = #tpu.dot_dimension_numbers<[1], [0], [0], [1], [0, 0, 1, 1], [], []>} : vector<32x64xbf16>, vector<64x64xbf16>, vector<32x64xf32> -> vector<32x64xf32>
    %53 = arith.addf %46, %52 : vector<32x64xf32>
    %c0_52 = arith.constant 0 : index
    %c0_53 = arith.constant 0 : index
    %54 = vector.load %arg2[%c0_52, %c0_53] : memref<1x64xf32, #tpu.memory_space<vmem>>, vector<1x64xf32>
    %55 = vector.broadcast %54 : vector<1x64xf32> to vector<32x64xf32>
    %56 = arith.addf %53, %55 : vector<32x64xf32>
    %57 = vector.shape_cast %56 : vector<32x64xf32> to vector<2x16x64xf32>
    %c0_54 = arith.constant 0 : index
    %c0_55 = arith.constant 0 : index
    %c0_56 = arith.constant 0 : index
    %58 = vector.load %arg3[%c0_54, %c0_55, %c0_56] : memref<2x16x64xf32, #tpu.memory_space<vmem>>, vector<2x16x64xf32>
    tpu.vector_store %arg3[%c0_54, %c0_55, %c0_56], %57 {strides = array<i32>} : memref<2x16x64xf32, #tpu.memory_space<vmem>>, vector<2x16x64xf32>,
    return
  }
}

</mosaic_0001>

<llo_original>
// kernel: tile.44
$region0: #{tile.44}
  %s0 = inlined_call_operand.vmem [shape: f32[2,8,16], index: 0, kind: input, shape index: {}]
  %s1 = inlined_call_operand.vmem [shape: f32[2,128], index: 1, kind: output, shape index: {}]
  $region1: #{tile.44} parent=0
    #allocation0 [shape = 'u8[4096]{0}', space=vmem, size = 0x1000, scoped, tag = 'scoped mem for output reshape']
    %s2 = smov 3
    %v3 = vld [vmem:[%s0] ss:$8 sm:%s2]
    %vm4 = vcmask 130048
    %5 = vst.msk [vmem:[#allocation0] sm:$0x3] %vm4, %v3
    %s6 = scalar_lea.vmem %s0, 7
    %s7 = smov 3
    %v8 = vld [vmem:[%s6] ss:$8 sm:%s7]
    %9 = vrot.lane.b32.xlu0 %v8, 112
    %v10 = vpop.permute.xlu0 %9
    %vm11 = vcmask 1048448
    %12 = vst.msk [vmem:[#allocation0] sm:$0x3] %vm11, %v10
    %s13 = scalar_lea.vmem %s0, 6
    %s14 = smov 3
    %v15 = vld [vmem:[%s13] ss:$8 sm:%s14]
    %16 = vrot.lane.b32.xlu0 %v15, 96
    %v17 = vpop.permute.xlu0 %16
    %vm18 = vcmask 917248
    %19 = vst.msk [vmem:[#allocation0] sm:$0x3] %vm18, %v17
    %s20 = scalar_lea.vmem %s0, 5
    %s21 = smov 3
    %v22 = vld [vmem:[%s20] ss:$8 sm:%s21]
    %23 = vrot.lane.b32.xlu0 %v22, 80
    %v24 = vpop.permute.xlu0 %23
    %vm25 = vcmask 786048
    %26 = vst.msk [vmem:[#allocation0] sm:$0x3] %vm25, %v24
    %s27 = scalar_lea.vmem %s0, 4
    %s28 = smov 3
    %v29 = vld [vmem:[%s27] ss:$8 sm:%s28]
    %30 = vrot.lane.b32.xlu0 %v29, 64
    %v31 = vpop.permute.xlu0 %30
    %vm32 = vcmask 654848
    %33 = vst.msk [vmem:[#allocation0] sm:$0x3] %vm32, %v31
    %s34 = scalar_lea.vmem %s0, 3
    %s35 = smov 3
    %v36 = vld [vmem:[%s34] ss:$8 sm:%s35]
    %37 = vrot.lane.b32.xlu0 %v36, 48
    %v38 = vpop.permute.xlu0 %37
    %vm39 = vcmask 523648
    %40 = vst.msk [vmem:[#allocation0] sm:$0x3] %vm39, %v38
    %s41 = scalar_lea.vmem %s0, 2
    %s42 = smov 3
    %v43 = vld [vmem:[%s41] ss:$8 sm:%s42]
    %44 = vrot.lane.b32.xlu0 %v43, 32
    %v45 = vpop.permute.xlu0 %44
    %vm46 = vcmask 392448
    %47 = vst.msk [vmem:[#allocation0] sm:$0x3] %vm46, %v45
    %s48 = scalar_lea.vmem %s0, 1
    %s49 = smov 3
    %v50 = vld [vmem:[%s48] ss:$8 sm:%s49]
    %51 = vrot.lane.b32.xlu0 %v50, 16
    %v52 = vpop.permute.xlu0 %51
    %vm53 = vcmask 261248
    %54 = vst.msk [vmem:[#allocation0] sm:$0x3] %vm53, %v52
    %s56 = ssub.s32 4, 1
    %v57 = vld [vmem:[#allocation0] sm:%s56]
    %s59 = ssub.s32 4, 1
    %60 = vst [vmem:[%s1] sm:%s59] %v57

// kernel: tile.54
$region0: #{tile.54}
  %s0 = inlined_call_operand.vmem [shape: f32[2,16,8], index: 0, kind: input, shape index: {}]
  %s1 = inlined_call_operand.vmem [shape: f32[2,128], index: 1, kind: output, shape index: {}]
  $region1: #{tile.54} parent=0
    #allocation0 [shape = 'u8[4096]{0}', space=vmem, size = 0x1000, scoped, tag = 'scoped mem for output reshape']
    %s2 = smov 3
    %v3 = vld [vmem:[%s0] ss:$16 sm:%s2]
    %vm4 = vcmask 64512
    %5 = vst.msk [vmem:[#allocation0] sm:$0x3] %vm4, %v3
    %s6 = scalar_lea.vmem %s0, 15
    %s7 = smov 3
    %v8 = vld [vmem:[%s6] ss:$16 sm:%s7]
    %9 = vrot.lane.b32.xlu0 %v8, 120
    %v10 = vpop.permute.xlu0 %9
    %vm11 = vcmask 1048512
    %12 = vst.msk [vmem:[#allocation0] sm:$0x3] %vm11, %v10
    %s13 = scalar_lea.vmem %s0, 14
    %s14 = smov 3
    %v15 = vld [vmem:[%s13] ss:$16 sm:%s14]
    %16 = vrot.lane.b32.xlu0 %v15, 112
    %v17 = vpop.permute.xlu0 %16
    %vm18 = vcmask 982912
    %19 = vst.msk [vmem:[#allocation0] sm:$0x3] %vm18, %v17
    %s20 = scalar_lea.vmem %s0, 13
    %s21 = smov 3
    %v22 = vld [vmem:[%s20] ss:$16 sm:%s21]
    %23 = vrot.lane.b32.xlu0 %v22, 104
    %v24 = vpop.permute.xlu0 %23
    %vm25 = vcmask 917312
    %26 = vst.msk [vmem:[#allocation0] sm:$0x3] %vm25, %v24
    %s27 = scalar_lea.vmem %s0, 12
    %s28 = smov 3
    %v29 = vld [vmem:[%s27] ss:$16 sm:%s28]
    %30 = vrot.lane.b32.xlu0 %v29, 96
    %v31 = vpop.permute.xlu0 %30
    %vm32 = vcmask 851712
    %33 = vst.msk [vmem:[#allocation0] sm:$0x3] %vm32, %v31
    %s34 = scalar_lea.vmem %s0, 11
    %s35 = smov 3
    %v36 = vld [vmem:[%s34] ss:$16 sm:%s35]
    %37 = vrot.lane.b32.xlu0 %v36, 88
    %v38 = vpop.permute.xlu0 %37
    %vm39 = vcmask 786112
    %40 = vst.msk [vmem:[#allocation0] sm:$0x3] %vm39, %v38
    %s41 = scalar_lea.vmem %s0, 10
    %s42 = smov 3
    %v43 = vld [vmem:[%s41] ss:$16 sm:%s42]
    %44 = vrot.lane.b32.xlu0 %v43, 80
    %v45 = vpop.permute.xlu0 %44
    %vm46 = vcmask 720512
    %47 = vst.msk [vmem:[#allocation0] sm:$0x3] %vm46, %v45
    %s48 = scalar_lea.vmem %s0, 9
    %s49 = smov 3
    %v50 = vld [vmem:[%s48] ss:$16 sm:%s49]
    %51 = vrot.lane.b32.xlu0 %v50, 72
    %v52 = vpop.permute.xlu0 %51
    %vm53 = vcmask 654912
    %54 = vst.msk [vmem:[#allocation0] sm:$0x3] %vm53, %v52
    %s55 = scalar_lea.vmem %s0, 8
    %s56 = smov 3
    %v57 = vld [vmem:[%s55] ss:$16 sm:%s56]
    %58 = vrot.lane.b32.xlu0 %v57, 64
    %v59 = vpop.permute.xlu0 %58
    %vm60 = vcmask 589312
    %61 = vst.msk [vmem:[#allocation0] sm:$0x3] %vm60, %v59
    %s62 = scalar_lea.vmem %s0, 7
    %s63 = smov 3
    %v64 = vld [vmem:[%s62] ss:$16 sm:%s63]
    %65 = vrot.lane.b32.xlu0 %v64, 56
    %v66 = vpop.permute.xlu0 %65
    %vm67 = vcmask 523712
    %68 = vst.msk [vmem:[#allocation0] sm:$0x3] %vm67, %v66
    %s69 = scalar_lea.vmem %s0, 6
    %s70 = smov 3
    %v71 = vld [vmem:[%s69] ss:$16 sm:%s70]
    %72 = vrot.lane.b32.xlu0 %v71, 48
    %v73 = vpop.permute.xlu0 %72
    %vm74 = vcmask 458112
    %75 = vst.msk [vmem:[#allocation0] sm:$0x3] %vm74, %v73
    %s76 = scalar_lea.vmem %s0, 5
    %s77 = smov 3
    %v78 = vld [vmem:[%s76] ss:$16 sm:%s77]
    %79 = vrot.lane.b32.xlu0 %v78, 40
    %v80 = vpop.permute.xlu0 %79
    %vm81 = vcmask 392512
    %82 = vst.msk [vmem:[#allocation0] sm:$0x3] %vm81, %v80
    %s83 = scalar_lea.vmem %s0, 4
    %s84 = smov 3
    %v85 = vld [vmem:[%s83] ss:$16 sm:%s84]
    %86 = vrot.lane.b32.xlu0 %v85, 32
    %v87 = vpop.permute.xlu0 %86
    %vm88 = vcmask 326912
    %89 = vst.msk [vmem:[#allocation0] sm:$0x3] %vm88, %v87
    %s90 = scalar_lea.vmem %s0, 3
    %s91 = smov 3
    %v92 = vld [vmem:[%s90] ss:$16 sm:%s91]
    %93 = vrot.lane.b32.xlu0 %v92, 24
    %v94 = vpop.permute.xlu0 %93
    %vm95 = vcmask 261312
    %96 = vst.msk [vmem:[#allocation0] sm:$0x3] %vm95, %v94
    %s97 = scalar_lea.vmem %s0, 2
    %s98 = smov 3
    %v99 = vld [vmem:[%s97] ss:$16 sm:%s98]
    %100 = vrot.lane.b32.xlu0 %v99, 16
    %v101 = vpop.permute.xlu0 %100
    %vm102 = vcmask 195712
    %103 = vst.msk [vmem:[#allocation0] sm:$0x3] %vm102, %v101
    %s104 = scalar_lea.vmem %s0, 1
    %s105 = smov 3
    %v106 = vld [vmem:[%s104] ss:$16 sm:%s105]
    %107 = vrot.lane.b32.xlu0 %v106, 8
    %v108 = vpop.permute.xlu0 %107
    %vm109 = vcmask 130112
    %110 = vst.msk [vmem:[#allocation0] sm:$0x3] %vm109, %v108
    %s112 = ssub.s32 4, 1
    %v113 = vld [vmem:[#allocation0] sm:%s112]
    %s115 = ssub.s32 4, 1
    %116 = vst [vmem:[%s1] sm:%s115] %v113

// kernel: tile.59
$region0: #{tile.59}
  %s0 = inlined_call_operand.vmem [shape: f32[2,16,4], index: 0, kind: input, shape index: {}]
  %s1 = inlined_call_operand.vmem [shape: f32[2,64], index: 1, kind: output, shape index: {}]
  $region1: #{tile.59} parent=0
    #allocation0 [shape = 'u8[4096]{0}', space=vmem, size = 0x1000, scoped, tag = 'scoped mem for output reshape']
    %s2 = smov 3
    %v3 = vld [vmem:[%s0] ss:$16 sm:%s2]
    %vm4 = vcmask 31744
    %5 = vst.msk [vmem:[#allocation0] sm:$0x3] %vm4, %v3
    %s6 = scalar_lea.vmem %s0, 15
    %s7 = smov 3
    %v8 = vld [vmem:[%s6] ss:$16 sm:%s7]
    %9 = vrot.lane.b32.xlu0 %v8, 60
    %v10 = vpop.permute.xlu0 %9
    %vm11 = vcmask 523744
    %12 = vst.msk [vmem:[#allocation0] sm:$0x3] %vm11, %v10
    %s13 = scalar_lea.vmem %s0, 14
    %s14 = smov 3
    %v15 = vld [vmem:[%s13] ss:$16 sm:%s14]
    %16 = vrot.lane.b32.xlu0 %v15, 56
    %v17 = vpop.permute.xlu0 %16
    %vm18 = vcmask 490944
    %19 = vst.msk [vmem:[#allocation0] sm:$0x3] %vm18, %v17
    %s20 = scalar_lea.vmem %s0, 13
    %s21 = smov 3
    %v22 = vld [vmem:[%s20] ss:$16 sm:%s21]
    %23 = vrot.lane.b32.xlu0 %v22, 52
    %v24 = vpop.permute.xlu0 %23
    %vm25 = vcmask 458144
    %26 = vst.msk [vmem:[#allocation0] sm:$0x3] %vm25, %v24
    %s27 = scalar_lea.vmem %s0, 12
    %s28 = smov 3
    %v29 = vld [vmem:[%s27] ss:$16 sm:%s28]
    %30 = vrot.lane.b32.xlu0 %v29, 48
    %v31 = vpop.permute.xlu0 %30
    %vm32 = vcmask 425344
    %33 = vst.msk [vmem:[#allocation0] sm:$0x3] %vm32, %v31
    %s34 = scalar_lea.vmem %s0, 11
    %s35 = smov 3
    %v36 = vld [vmem:[%s34] ss:$16 sm:%s35]
    %37 = vrot.lane.b32.xlu0 %v36, 44
    %v38 = vpop.permute.xlu0 %37
    %vm39 = vcmask 392544
    %40 = vst.msk [vmem:[#allocation0] sm:$0x3] %vm39, %v38
    %s41 = scalar_lea.vmem %s0, 10
    %s42 = smov 3
    %v43 = vld [vmem:[%s41] ss:$16 sm:%s42]
    %44 = vrot.lane.b32.xlu0 %v43, 40
    %v45 = vpop.permute.xlu0 %44
    %vm46 = vcmask 359744
    %47 = vst.msk [vmem:[#allocation0] sm:$0x3] %vm46, %v45
    %s48 = scalar_lea.vmem %s0, 9
    %s49 = smov 3
    %v50 = vld [vmem:[%s48] ss:$16 sm:%s49]
    %51 = vrot.lane.b32.xlu0 %v50, 36
    %v52 = vpop.permute.xlu0 %51
    %vm53 = vcmask 326944
    %54 = vst.msk [vmem:[#allocation0] sm:$0x3] %vm53, %v52
    %s55 = scalar_lea.vmem %s0, 8
    %s56 = smov 3
    %v57 = vld [vmem:[%s55] ss:$16 sm:%s56]
    %58 = vrot.lane.b32.xlu0 %v57, 32
    %v59 = vpop.permute.xlu0 %58
    %vm60 = vcmask 294144
    %61 = vst.msk [vmem:[#allocation0] sm:$0x3] %vm60, %v59
    %s62 = scalar_lea.vmem %s0, 7
    %s63 = smov 3
    %v64 = vld [vmem:[%s62] ss:$16 sm:%s63]
    %65 = vrot.lane.b32.xlu0 %v64, 28
    %v66 = vpop.permute.xlu0 %65
    %vm67 = vcmask 261344
    %68 = vst.msk [vmem:[#allocation0] sm:$0x3] %vm67, %v66
    %s69 = scalar_lea.vmem %s0, 6
    %s70 = smov 3
    %v71 = vld [vmem:[%s69] ss:$16 sm:%s70]
    %72 = vrot.lane.b32.xlu0 %v71, 24
    %v73 = vpop.permute.xlu0 %72
    %vm74 = vcmask 228544
    %75 = vst.msk [vmem:[#allocation0] sm:$0x3] %vm74, %v73
    %s76 = scalar_lea.vmem %s0, 5
    %s77 = smov 3
    %v78 = vld [vmem:[%s76] ss:$16 sm:%s77]
    %79 = vrot.lane.b32.xlu0 %v78, 20
    %v80 = vpop.permute.xlu0 %79
    %vm81 = vcmask 195744
    %82 = vst.msk [vmem:[#allocation0] sm:$0x3] %vm81, %v80
    %s83 = scalar_lea.vmem %s0, 4
    %s84 = smov 3
    %v85 = vld [vmem:[%s83] ss:$16 sm:%s84]
    %86 = vrot.lane.b32.xlu0 %v85, 16
    %v87 = vpop.permute.xlu0 %86
    %vm88 = vcmask 162944
    %89 = vst.msk [vmem:[#allocation0] sm:$0x3] %vm88, %v87
    %s90 = scalar_lea.vmem %s0, 3
    %s91 = smov 3
    %v92 = vld [vmem:[%s90] ss:$16 sm:%s91]
    %93 = vrot.lane.b32.xlu0 %v92, 12
    %v94 = vpop.permute.xlu0 %93
    %vm95 = vcmask 130144
    %96 = vst.msk [vmem:[#allocation0] sm:$0x3] %vm95, %v94
    %s97 = scalar_lea.vmem %s0, 2
    %s98 = smov 3
    %v99 = vld [vmem:[%s97] ss:$16 sm:%s98]
    %100 = vrot.lane.b32.xlu0 %v99, 8
    %v101 = vpop.permute.xlu0 %100
    %vm102 = vcmask 97344
    %103 = vst.msk [vmem:[#allocation0] sm:$0x3] %vm102, %v101
    %s104 = scalar_lea.vmem %s0, 1
    %s105 = smov 3
    %v106 = vld [vmem:[%s104] ss:$16 sm:%s105]
    %107 = vrot.lane.b32.xlu0 %v106, 4
    %v108 = vpop.permute.xlu0 %107
    %vm109 = vcmask 64544
    %110 = vst.msk [vmem:[#allocation0] sm:$0x3] %vm109, %v108
    %s112 = ssub.s32 4, 1
    %v113 = vld [vmem:[#allocation0] sm:%s112]
    %s115 = ssub.s32 4, 1
    %116 = vst [vmem:[%s1] sm:%s115] %v113

// kernel: tile.34
$region0: #{tile.34}
  %s0 = inlined_call_operand.vmem [shape: f32[2,16,16], index: 0, kind: input, shape index: {}]
  %s1 = inlined_call_operand.vmem [shape: f32[2,256], index: 1, kind: output, shape index: {}]
  $region1: #{tile.34} parent=0
    #allocation0 [shape = 'u8[8192]{0}', space=vmem, size = 0x2000, scoped, tag = 'scoped mem for output reshape']
    %v2 = vld [vmem:[%s0] ss:$8 sm:$0xf]
    %vm3 = vcmask 130048
    %4 = vst.msk [vmem:[#allocation0] ss:$8 sm:$0x3] %vm3, %v2
    %s5 = scalar_lea.vmem [#allocation0], 4294967281
    %6 = vst.msk [vmem:[%s5] ss:$8 sm:$0xc] %vm3, %v2
    %s7 = scalar_lea.vmem %s0, 7
    %s8 = smov 3
    %v9 = vld [vmem:[%s7] ss:$16 sm:%s8]
    %s10 = scalar_lea.vmem %s0, 4294967279
    %s11 = smov 12
    %v12 = vld [vmem:[%s10] ss:$16 sm:%s11]
    %vm13 = vcmask 1043458
    %v14 = vsel %vm13, %v12, %v9
    %15 = vrot.lane.b32.xlu0 %v14, 112
    %v16 = vpop.permute.xlu0 %15
    %vm17 = vcmask 1048448
    %18 = vst.msk [vmem:[#allocation0] sm:$0x3] %vm17, %v16
    %s19 = scalar_lea.vmem [#allocation0], 6
    %20 = vst.msk [vmem:[%s19] sm:$0xc] %vm17, %v16
    %s21 = scalar_lea.vmem %s0, 6
    %s22 = smov 3
    %v23 = vld [vmem:[%s21] ss:$16 sm:%s22]
    %s24 = scalar_lea.vmem %s0, 4294967278
    %s25 = smov 12
    %v26 = vld [vmem:[%s24] ss:$16 sm:%s25]
    %vm27 = vcmask 1043458
    %v28 = vsel %vm27, %v26, %v23
    %29 = vrot.lane.b32.xlu0 %v28, 96
    %v30 = vpop.permute.xlu0 %29
    %vm31 = vcmask 917248
    %32 = vst.msk [vmem:[#allocation0] sm:$0x3] %vm31, %v30
    %s33 = scalar_lea.vmem [#allocation0], 6
    %34 = vst.msk [vmem:[%s33] sm:$0xc] %vm31, %v30
    %s35 = scalar_lea.vmem %s0, 5
    %s36 = smov 3
    %v37 = vld [vmem:[%s35] ss:$16 sm:%s36]
    %s38 = scalar_lea.vmem %s0, 4294967277
    %s39 = smov 12
    %v40 = vld [vmem:[%s38] ss:$16 sm:%s39]
    %vm41 = vcmask 1043458
    %v42 = vsel %vm41, %v40, %v37
    %43 = vrot.lane.b32.xlu0 %v42, 80
    %v44 = vpop.permute.xlu0 %43
    %vm45 = vcmask 786048
    %46 = vst.msk [vmem:[#allocation0] sm:$0x3] %vm45, %v44
    %s47 = scalar_lea.vmem [#allocation0], 6
    %48 = vst.msk [vmem:[%s47] sm:$0xc] %vm45, %v44
    %s49 = scalar_lea.vmem %s0, 4
    %s50 = smov 3
    %v51 = vld [vmem:[%s49] ss:$16 sm:%s50]
    %s52 = scalar_lea.vmem %s0, 4294967276
    %s53 = smov 12
    %v54 = vld [vmem:[%s52] ss:$16 sm:%s53]
    %vm55 = vcmask 1043458
    %v56 = vsel %vm55, %v54, %v51
    %57 = vrot.lane.b32.xlu0 %v56, 64
    %v58 = vpop.permute.xlu0 %57
    %vm59 = vcmask 654848
    %60 = vst.msk [vmem:[#allocation0] sm:$0x3] %vm59, %v58
    %s61 = scalar_lea.vmem [#allocation0], 6
    %62 = vst.msk [vmem:[%s61] sm:$0xc] %vm59, %v58
    %s63 = scalar_lea.vmem %s0, 3
    %s64 = smov 3
    %v65 = vld [vmem:[%s63] ss:$16 sm:%s64]
    %s66 = scalar_lea.vmem %s0, 4294967275
    %s67 = smov 12
    %v68 = vld [vmem:[%s66] ss:$16 sm:%s67]
    %vm69 = vcmask 1043458
    %v70 = vsel %vm69, %v68, %v65
    %71 = vrot.lane.b32.xlu0 %v70, 48
    %v72 = vpop.permute.xlu0 %71
    %vm73 = vcmask 523648
    %74 = vst.msk [vmem:[#allocation0] sm:$0x3] %vm73, %v72
    %s75 = scalar_lea.vmem [#allocation0], 6
    %76 = vst.msk [vmem:[%s75] sm:$0xc] %vm73, %v72
    %s77 = scalar_lea.vmem %s0, 2
    %s78 = smov 3
    %v79 = vld [vmem:[%s77] ss:$16 sm:%s78]
    %s80 = scalar_lea.vmem %s0, 4294967274
    %s81 = smov 12
    %v82 = vld [vmem:[%s80] ss:$16 sm:%s81]
    %vm83 = vcmask 1043458
    %v84 = vsel %vm83, %v82, %v79
    %85 = vrot.lane.b32.xlu0 %v84, 32
    %v86 = vpop.permute.xlu0 %85
    %vm87 = vcmask 392448
    %88 = vst.msk [vmem:[#allocation0] sm:$0x3] %vm87, %v86
    %s89 = scalar_lea.vmem [#allocation0], 6
    %90 = vst.msk [vmem:[%s89] sm:$0xc] %vm87, %v86
    %s91 = scalar_lea.vmem %s0, 1
    %s92 = smov 3
    %v93 = vld [vmem:[%s91] ss:$16 sm:%s92]
    %s94 = scalar_lea.vmem %s0, 4294967273
    %s95 = smov 12
    %v96 = vld [vmem:[%s94] ss:$16 sm:%s95]
    %vm97 = vcmask 1043458
    %v98 = vsel %vm97, %v96, %v93
    %99 = vrot.lane.b32.xlu0 %v98, 16
    %v100 = vpop.permute.xlu0 %99
    %vm101 = vcmask 261248
    %102 = vst.msk [vmem:[#allocation0] sm:$0x3] %vm101, %v100
    %s103 = scalar_lea.vmem [#allocation0], 6
    %104 = vst.msk [vmem:[%s103] sm:$0xc] %vm101, %v100
    %s106 = ssub.s32 4, 1
    %v107 = vld [vmem:[#allocation0] sm:%s106]
    %s109 = ssub.s32 4, 1
    %110 = vst [vmem:[%s1] sm:%s109] %v107
    %s111 = scalar_lea.vmem [#allocation0], 8
    %v112 = vld [vmem:[%s111] sm:%s106]
    %s114 = ssub.s32 4, 1
    %s115 = scalar_lea.vmem %s1, 2
    %116 = vst [vmem:[%s115] sm:%s114] %v112

// kernel: _lambda_.12
$region0: #{_lambda_.12}
  #allocation0 [shape = 'u32[]', space=smem, size = 0x4, offset = 0x4, fixed_abs, tag = 'smem constant byte address 0x4 - core index']
  #allocation1 [shape = 'u32[72,128]{1,0:T(1,128)}', space=vmem, size = 0x9000, scoped, tag = 'internal scratch']
  %s0 = inlined_call_operand.hbm [shape: f32[2,16], index: 0, kind: input, shape index: {}]
  %s1 = inlined_call_operand.hbm [shape: f32[2,16], index: 1, kind: input, shape index: {}]
  %s2 = inlined_call_operand.vmem [shape: bf16[16,16], index: 2, kind: input, shape index: {}]
  %s3 = inlined_call_operand.vmem [shape: f32[1,16], index: 3, kind: input, shape index: {}]
  %s4 = inlined_call_operand.vmem [shape: bf16[16,16], index: 4, kind: input, shape index: {}]
  %s5 = inlined_call_operand.vmem [shape: f32[1,16], index: 5, kind: input, shape index: {}]
  %s6 = inlined_call_operand.vmem [shape: bf16[16,68], index: 6, kind: input, shape index: {}]
  %s7 = inlined_call_operand.vmem [shape: bf16[16,68], index: 7, kind: input, shape index: {}]
  %s8 = inlined_call_operand.vmem [shape: f32[1,68], index: 8, kind: input, shape index: {}]
  %s9 = inlined_call_operand.vmem [shape: f32[2,68], index: 9, kind: output, shape index: {}]
  %s10 = sld [smem:[#allocation0]]
  $region54: #{_lambda_.12} parent=0
    _
  %s12 = ssub.s32 1, %s10
  %s13 = scalar_select 0, %s12, %s10
  $region1: #{_lambda_.12} parent=0
    #allocation2 [shape = 'u8[1024]{0}', space=vmem, size = 0x400, scoped, tag = 'input window, operand 0, single buffered']
    #allocation3 [shape = 's32[1]{0}', space=sflag, size = 0x4, scoped, tag = 'scoped memory for _lambda_.12']
    #allocation4 [shape = 'u8[1024]{0}', space=vmem, size = 0x400, scoped, tag = 'input window, operand 1, single buffered']
    #allocation5 [shape = 's32[1]{0}', space=sflag, size = 0x4, scoped, tag = 'scoped memory for _lambda_.12']
    %14 = vsyncpa [#allocation3], 0
    %15 = vsyncpa [#allocation5], 0
    // Predicated region
    $region2: #{_lambda_.12} parent=1 // pred_check
      _
    $region3: #{_lambda_.12} parent=1 // pred_check_branch
      %17 = sbr.rel (0) target = $region5
    $region4: #{_lambda_.12} parent=1 // pred_region
      %19 = vsyncadd [#allocation3], 0
      %s21 = sshll.u32 %s0, 4
      %s22 = int_to_ptr.hbm [resolvable:$true] %s21
      %s23 = sshll.u32 [#allocation2], 4
      %s24 = int_to_ptr.vmem [resolvable:$true] %s23
      %26 = dma.hbm_to_vmem [thread:$0]  %s22, 32, %s24, [#allocation3]
    $region5: #{_lambda_.12} parent=1 // pred_fallthru
      _
    // Predicated region
    $region6: #{_lambda_.12} parent=1 // pred_check
      _
    $region7: #{_lambda_.12} parent=1 // pred_check_branch
      %28 = sbr.rel (0) target = $region9
    $region8: #{_lambda_.12} parent=1 // pred_region
      %30 = vsyncadd [#allocation5], 0
      %s32 = sshll.u32 %s1, 4
      %s33 = int_to_ptr.hbm [resolvable:$true] %s32
      %s34 = sshll.u32 [#allocation4], 4
      %s35 = int_to_ptr.vmem [resolvable:$true] %s34
      %37 = dma.hbm_to_vmem [thread:$0]  %s33, 32, %s35, [#allocation5]
    $region9: #{_lambda_.12} parent=1 // pred_fallthru
      _
    // Predicated region
    $region10: #{_lambda_.12} parent=1 // pred_check
      _
    $region11: #{_lambda_.12} parent=1 // pred_check_branch
      %39 = sbr.rel (0) target = $region13
    $region12: #{_lambda_.12} parent=1 // pred_region
      _
    $region13: #{_lambda_.12} parent=1 // pred_fallthru
      _
    // Predicated region
    $region14: #{_lambda_.12} parent=1 // pred_check
      _
    $region15: #{_lambda_.12} parent=1 // pred_check_branch
      %41 = sbr.rel (0) target = $region17
    $region16: #{_lambda_.12} parent=1 // pred_region
      _
    $region17: #{_lambda_.12} parent=1 // pred_fallthru
      _
    // Predicated region
    $region18: #{_lambda_.12} parent=1 // pred_check
      _
    $region19: #{_lambda_.12} parent=1 // pred_check_branch
      %43 = sbr.rel (0) target = $region21
    $region20: #{_lambda_.12} parent=1 // pred_region
      _
    $region21: #{_lambda_.12} parent=1 // pred_fallthru
      _
    // Predicated region
    $region22: #{_lambda_.12} parent=1 // pred_check
      _
    $region23: #{_lambda_.12} parent=1 // pred_check_branch
      %45 = sbr.rel (0) target = $region25
    $region24: #{_lambda_.12} parent=1 // pred_region
      _
    $region25: #{_lambda_.12} parent=1 // pred_fallthru
      _
    // Predicated region
    $region26: #{_lambda_.12} parent=1 // pred_check
      _
    $region27: #{_lambda_.12} parent=1 // pred_check_branch
      %47 = sbr.rel (0) target = $region29
    $region28: #{_lambda_.12} parent=1 // pred_region
      _
    $region29: #{_lambda_.12} parent=1 // pred_fallthru
      _
    // Predicated region
    $region30: #{_lambda_.12} parent=1 // pred_check
      _
    $region31: #{_lambda_.12} parent=1 // pred_check_branch
      %49 = sbr.rel (0) target = $region33
    $region32: #{_lambda_.12} parent=1 // pred_region
      _
    $region33: #{_lambda_.12} parent=1 // pred_fallthru
      _
    // Predicated region
    $region34: #{_lambda_.12} parent=1 // pred_check
      _
    $region35: #{_lambda_.12} parent=1 // pred_check_branch
      %51 = sbr.rel (0) target = $region37
    $region36: #{_lambda_.12} parent=1 // pred_region
      _
    $region37: #{_lambda_.12} parent=1 // pred_fallthru
      _
    // Predicated region
    $region38: #{_lambda_.12} parent=1 // pred_check
      _
    $region39: #{_lambda_.12} parent=1 // pred_check_branch
      %53 = sbr.rel (0) target = $region41
    $region40: #{_lambda_.12} parent=1 // pred_region
      %55 = dma.done [#allocation3], 32
    $region41: #{_lambda_.12} parent=1 // pred_fallthru
      _
    // Predicated region
    $region42: #{_lambda_.12} parent=1 // pred_check
      _
    $region43: #{_lambda_.12} parent=1 // pred_check_branch
      %57 = sbr.rel (0) target = $region45
    $region44: #{_lambda_.12} parent=1 // pred_region
      %59 = dma.done [#allocation5], 32
    $region45: #{_lambda_.12} parent=1 // pred_fallthru
      _
    %v61 = vld [vmem:[#allocation2] sm:$0x3]
    %v62 = vpack.c.bf16 %v61, %v61
    %v63 = vld [vmem:[%s2] sm:$0xf]
    %v64 = vld [vmem:[%s2 + $0x4] sm:$0xf]
    %v65 = vld [vmem:[%s3] sm:$0x1]
    %v67 = vperm.slane %v65, 0
    %v71 = vunpack.c.l.b16 %v63
    %v72 = vunpack.c.l.b16 %v64
    %v73 = vpack.c.b16 %v72, %v71
    %vm75 = vcmask 130048
    %v77 = vsel %vm75, %v62, 0
    %79 = vmatpush.bf16.msra.mxu0 0
    %80 = vmatpush.bf16.msra.mxu0 0
    %81 = vmatpush.bf16.msra.mxu0 0
    %82 = vmatpush.bf16.msra.mxu0 0
    %83 = vmatpush.bf16.msra.mxu0 0
    %84 = vmatpush.bf16.msra.mxu0 0
    %85 = vmatpush.bf16.msra.mxu0 0
    %86 = vmatpush.bf16.msra.mxu0 %v73
    %87 = vmatmul.bf16.gmra.mxu0 %v77
    %v88 = vpop.f32.mrf.mxu0
    %v89 = vadd.f32 %v67, %v88
    %v90 = vpop.f32.mrf.mxu0
    %91 = vdwg.mxu0
    %v92 = vmul.f32 %v89, 0.5
    %v93 = vmul.f32 %v89, 0.044715
    %v94 = vmul.f32 %v93, %v89
    %v95 = vmul.f32 %v94, %v89
    %v96 = vadd.f32 %v89, %v95
    %v97 = vmul.f32 %v96, 0.7978846
    %v98 = vtanh.pop %v97
    %v99 = vadd.f32 %v98, 1.0
    %v100 = vmul.f32 %v92, %v99
    %v101 = vpack.c.bf16 %v100, %v100
    %v102 = vld [vmem:[%s4] sm:$0xf]
    %v103 = vld [vmem:[%s4 + $0x4] sm:$0xf]
    %v104 = vld [vmem:[%s5] sm:$0x1]
    %v106 = vperm.slane %v104, 0
    %v110 = vunpack.c.l.b16 %v102
    %v111 = vunpack.c.l.b16 %v103
    %v112 = vpack.c.b16 %v111, %v110
    %v115 = vsel %vm75, %v101, 0
    %117 = vmatpush.bf16.msra.mxu0 0
    %118 = vmatpush.bf16.msra.mxu0 0
    %119 = vmatpush.bf16.msra.mxu0 0
    %120 = vmatpush.bf16.msra.mxu0 0
    %121 = vmatpush.bf16.msra.mxu0 0
    %122 = vmatpush.bf16.msra.mxu0 0
    %123 = vmatpush.bf16.msra.mxu0 0
    %124 = vmatpush.bf16.msra.mxu0 %v112
    %125 = vmatmul.bf16.gmra.mxu0 %v115
    %v126 = vpop.f32.mrf.mxu0
    %v127 = vadd.f32 %v106, %v126
    %v128 = vpop.f32.mrf.mxu0
    %129 = vdwg.mxu0
    %v130 = vpack.c.bf16 %v127, %v127
    %v131 = vld [vmem:[%s6] sm:$0xf]
    %v132 = vld [vmem:[%s6 + $0x4] sm:$0xf]
    %v133 = vld [vmem:[#allocation4] sm:$0x3]
    %v134 = vpack.c.bf16 %v133, %v133
    %v135 = vld [vmem:[%s7] sm:$0xf]
    %v136 = vld [vmem:[%s7 + $0x4] sm:$0xf]
    %v139 = vunpack.c.l.b16 %v135
    %v140 = vunpack.c.l.b16 %v136
    %v141 = vpack.c.b16 %v140, %v139
    %v144 = vsel %vm75, %v134, 0
    %146 = vmatpush.bf16.msra.mxu0 0
    %147 = vmatpush.bf16.msra.mxu0 0
    %148 = vmatpush.bf16.msra.mxu0 0
    %149 = vmatpush.bf16.msra.mxu0 0
    %150 = vmatpush.bf16.msra.mxu0 0
    %151 = vmatpush.bf16.msra.mxu0 0
    %152 = vmatpush.bf16.msra.mxu0 0
    %153 = vmatpush.bf16.msra.mxu0 %v141
    %154 = vmatmul.bf16.gmra.mxu0 %v144
    %v155 = vpop.f32.mrf.mxu0
    %v156 = vadd.f32 0.0, %v155
    %v157 = vpop.f32.mrf.mxu0
    %158 = vdwg.mxu0
    %v161 = vunpack.c.l.b16 %v131
    %v162 = vunpack.c.l.b16 %v132
    %v163 = vpack.c.b16 %v162, %v161
    %v166 = vsel %vm75, %v130, 0
    %168 = vmatpush.bf16.msra.mxu0 0
    %169 = vmatpush.bf16.msra.mxu0 0
    %170 = vmatpush.bf16.msra.mxu0 0
    %171 = vmatpush.bf16.msra.mxu0 0
    %172 = vmatpush.bf16.msra.mxu0 0
    %173 = vmatpush.bf16.msra.mxu0 0
    %174 = vmatpush.bf16.msra.mxu0 0
    %175 = vmatpush.bf16.msra.mxu0 %v163
    %176 = vmatmul.bf16.gmra.mxu0 %v166
    %v177 = vpop.f32.mrf.mxu0
    %v178 = vadd.f32 %v156, %v177
    %v179 = vpop.f32.mrf.mxu0
    %180 = vdwg.mxu0
    %v181 = vld [vmem:[%s8] sm:$0x1]
    %v183 = vperm.slane %v181, 0
    %v185 = vadd.f32 %v178, %v183
    %vm186 = vcmask 549888
    %187 = vst.msk [vmem:[%s9] sm:$0x3] %vm186, %v185
    // Predicated region
    $region46: #{_lambda_.12} parent=1 // pred_check
      _
    $region47: #{_lambda_.12} parent=1 // pred_check_branch
      %189 = sbr.rel (0) target = $region49
    $region48: #{_lambda_.12} parent=1 // pred_region
      _
    $region49: #{_lambda_.12} parent=1 // pred_fallthru
      _
    // Predicated region
    $region50: #{_lambda_.12} parent=1 // pred_check
      _
    $region51: #{_lambda_.12} parent=1 // pred_check_branch
      %191 = sbr.rel (0) target = $region53
    $region52: #{_lambda_.12} parent=1 // pred_region
      _
    $region53: #{_lambda_.12} parent=1 // pred_fallthru
      _
    %192 = vsyncpa [#allocation3], 1
    %193 = vsyncpa [#allocation5], 1

// kernel: _lambda_.13
$region0: #{_lambda_.13}
  #allocation0 [shape = 'u32[]', space=smem, size = 0x4, offset = 0x4, fixed_abs, tag = 'smem constant byte address 0x4 - core index']
  #allocation1 [shape = 'u32[72,128]{1,0:T(1,128)}', space=vmem, size = 0x9000, scoped, tag = 'internal scratch']
  #allocation2 [shape = 'f32[2,22,64]{2,1,0:T(8,128)}', space=vmem, size = 0x6000, scoped, tag = 'scratch operand']
  %s0 = inlined_call_operand.vmem [shape: f32[2,16,64], index: 0, kind: input, shape index: {}]
  %s1 = inlined_call_operand.hbm [shape: bf16[7,64,128], index: 1, kind: input, shape index: {}]
  %s2 = inlined_call_operand.vmem [shape: f32[1,128], index: 2, kind: input, shape index: {}]
  %s3 = inlined_call_operand.vmem [shape: f32[2,16,128], index: 3, kind: output, shape index: {}]
  %s4 = sld [smem:[#allocation0]]
  $region26: #{_lambda_.13} parent=0
    _
  %s6 = ssub.s32 1, %s4
  %s7 = scalar_select 0, %s6, %s4
  $region1: #{_lambda_.13} parent=0
    #allocation3 [shape = 'u8[114688]{0}', space=vmem, size = 0x1c000, scoped, tag = 'input window, operand 1, single buffered']
    #allocation4 [shape = 's32[1]{0}', space=sflag, size = 0x4, scoped, tag = 'scoped memory for _lambda_.13']
    %8 = vsyncpa [#allocation4], 0
    // Predicated region
    $region2: #{_lambda_.13} parent=1 // pred_check
      _
    $region3: #{_lambda_.13} parent=1 // pred_check_branch
      %10 = sbr.rel (0) target = $region5
    $region4: #{_lambda_.13} parent=1 // pred_region
      _
    $region5: #{_lambda_.13} parent=1 // pred_fallthru
      _
    // Predicated region
    $region6: #{_lambda_.13} parent=1 // pred_check
      _
    $region7: #{_lambda_.13} parent=1 // pred_check_branch
      %12 = sbr.rel (0) target = $region9
    $region8: #{_lambda_.13} parent=1 // pred_region
      %14 = vsyncadd [#allocation4], 0
      %s15 = sshll.u32 %s1, 4
      %s16 = int_to_ptr.hbm [resolvable:$true] %s15
      %s17 = sshll.u32 [#allocation3], 4
      %s18 = int_to_ptr.vmem [resolvable:$true] %s17
      %23 = dma.hbm_to_vmem [thread:$0]  %s16, 3584, %s18, [#allocation4], 64, 64, 4
    $region9: #{_lambda_.13} parent=1 // pred_fallthru
      _
    // Predicated region
    $region10: #{_lambda_.13} parent=1 // pred_check
      _
    $region11: #{_lambda_.13} parent=1 // pred_check_branch
      %25 = sbr.rel (0) target = $region13
    $region12: #{_lambda_.13} parent=1 // pred_region
      _
    $region13: #{_lambda_.13} parent=1 // pred_fallthru
      _
    // Predicated region
    $region14: #{_lambda_.13} parent=1 // pred_check
      _
    $region15: #{_lambda_.13} parent=1 // pred_check_branch
      %27 = sbr.rel (0) target = $region17
    $region16: #{_lambda_.13} parent=1 // pred_region
      %29 = dma.done [#allocation4], 3584
    $region17: #{_lambda_.13} parent=1 // pred_fallthru
      _
    %vm31 = vcmask 523264
    %32 = vst.msk [vmem:[#allocation2] sm:$0xff] %vm31, 0.0
    %33 = vst.msk [vmem:[#allocation2 + $0x8] sm:$0xff] %vm31, 0.0
    %vm34 = vcmask 521216
    %35 = vst.msk [vmem:[#allocation2 + $0x10] sm:$0x3f] %vm34, 0.0
    %36 = vst.msk [vmem:[#allocation2 + $0x18] sm:$0xff] %vm31, 0.0
    %37 = vst.msk [vmem:[#allocation2 + $0x20] sm:$0xff] %vm31, 0.0
    %38 = vst.msk [vmem:[#allocation2 + $0x28] sm:$0x3f] %vm34, 0.0
    %v39 = vld [vmem:[%s0] sm:$0xff]
    %v40 = vld [vmem:[%s0 + $0x8] sm:$0xff]
    %v41 = vld [vmem:[%s0 + $0x10] sm:$0xff]
    %v42 = vld [vmem:[%s0 + $0x18] sm:$0xff]
    %43 = vst.msk [vmem:[#allocation2 + $0x3] sm:$0xff] %vm31, %v39
    %44 = vst.msk [vmem:[#allocation2 + $0xb] sm:$0xff] %vm31, %v40
    %45 = vst.msk [vmem:[#allocation2 + $0x1b] sm:$0xff] %vm31, %v41
    %46 = vst.msk [vmem:[#allocation2 + $0x23] sm:$0xff] %vm31, %v42
    %v47 = vld [vmem:[#allocation2] sm:$0xff]
    %v48 = vld [vmem:[#allocation2 + $0x8] sm:$0xff]
    %v49 = vld [vmem:[#allocation2 + $0x18] sm:$0xff]
    %v50 = vld [vmem:[#allocation2 + $0x20] sm:$0xff]
    %v51 = vpack.c.bf16 %v48, %v47
    %v52 = vpack.c.bf16 %v50, %v49
    %v53 = vld [vmem:[#allocation3] sm:$0xf]
    %v54 = vld [vmem:[#allocation3 + $0x4] sm:$0xf]
    %v55 = vld [vmem:[#allocation3 + $0x8] sm:$0xf]
    %v56 = vld [vmem:[#allocation3 + $0xc] sm:$0xf]
    %v57 = vld [vmem:[#allocation3 + $0x10] sm:$0xf]
    %v58 = vld [vmem:[#allocation3 + $0x14] sm:$0xf]
    %v59 = vld [vmem:[#allocation3 + $0x18] sm:$0xf]
    %v60 = vld [vmem:[#allocation3 + $0x1c] sm:$0xf]
    %v61 = vld [vmem:[#allocation2 + $0x1] sm:$0xff]
    %v62 = vld [vmem:[#allocation2 + $0x9] sm:$0xff]
    %v63 = vld [vmem:[#allocation2 + $0x19] sm:$0xff]
    %v64 = vld [vmem:[#allocation2 + $0x21] sm:$0xff]
    %v65 = vpack.c.bf16 %v62, %v61
    %v66 = vpack.c.bf16 %v64, %v63
    %s67 = scalar_lea.vmem [#allocation3], 32
    %v68 = vld [vmem:[%s67] sm:$0xf]
    %v69 = vld [vmem:[%s67 + $0x4] sm:$0xf]
    %v70 = vld [vmem:[%s67 + $0x8] sm:$0xf]
    %v71 = vld [vmem:[%s67 + $0xc] sm:$0xf]
    %v72 = vld [vmem:[%s67 + $0x10] sm:$0xf]
    %v73 = vld [vmem:[%s67 + $0x14] sm:$0xf]
    %v74 = vld [vmem:[%s67 + $0x18] sm:$0xf]
    %v75 = vld [vmem:[%s67 + $0x1c] sm:$0xf]
    %v84 = vunpack.c.l.b16 %v68
    %v85 = vunpack.c.l.b16 %v69
    %v86 = vunpack.c.l.b16 %v70
    %v87 = vunpack.c.l.b16 %v71
    %v88 = vunpack.c.l.b16 %v72
    %v89 = vunpack.c.l.b16 %v73
    %v90 = vunpack.c.l.b16 %v74
    %v91 = vunpack.c.l.b16 %v75
    %v92 = vpack.c.b16 %v85, %v84
    %v93 = vpack.c.b16 %v87, %v86
    %v94 = vpack.c.b16 %v89, %v88
    %v95 = vpack.c.b16 %v91, %v90
    %v101 = vsel %vm31, %v65, 0
    %v104 = vsel %vm31, %v66, 0
    %106 = vmatpush.bf16.msra.mxu0 0
    %107 = vmatpush.bf16.msra.mxu0 0
    %108 = vmatpush.bf16.msra.mxu0 0
    %109 = vmatpush.bf16.msra.mxu0 0
    %110 = vmatpush.bf16.msra.mxu0 %v95
    %111 = vmatpush.bf16.msra.mxu0 %v94
    %112 = vmatpush.bf16.msra.mxu0 %v93
    %113 = vmatpush.bf16.msra.mxu0 %v92
    %114 = vmatmul.bf16.gmra.mxu0 %v101
    %v115 = vpop.f32.mrf.mxu0
    %v116 = vadd.f32 0.0, %v115
    %v117 = vpop.f32.mrf.mxu0
    %v118 = vadd.f32 0.0, %v117
    %119 = vmatmul.bf16.gmra.mxu0 %v104
    %v120 = vpop.f32.mrf.mxu0
    %v121 = vadd.f32 0.0, %v120
    %v122 = vpop.f32.mrf.mxu0
    %v123 = vadd.f32 0.0, %v122
    %124 = vdwg.mxu0
    %v133 = vunpack.c.l.b16 %v53
    %v134 = vunpack.c.l.b16 %v54
    %v135 = vunpack.c.l.b16 %v55
    %v136 = vunpack.c.l.b16 %v56
    %v137 = vunpack.c.l.b16 %v57
    %v138 = vunpack.c.l.b16 %v58
    %v139 = vunpack.c.l.b16 %v59
    %v140 = vunpack.c.l.b16 %v60
    %v141 = vpack.c.b16 %v134, %v133
    %v142 = vpack.c.b16 %v136, %v135
    %v143 = vpack.c.b16 %v138, %v137
    %v144 = vpack.c.b16 %v140, %v139
    %v150 = vsel %vm31, %v51, 0
    %v153 = vsel %vm31, %v52, 0
    %155 = vmatpush.bf16.msra.mxu0 0
    %156 = vmatpush.bf16.msra.mxu0 0
    %157 = vmatpush.bf16.msra.mxu0 0
    %158 = vmatpush.bf16.msra.mxu0 0
    %159 = vmatpush.bf16.msra.mxu0 %v144
    %160 = vmatpush.bf16.msra.mxu0 %v143
    %161 = vmatpush.bf16.msra.mxu0 %v142
    %162 = vmatpush.bf16.msra.mxu0 %v141
    %163 = vmatmul.bf16.gmra.mxu0 %v150
    %v164 = vpop.f32.mrf.mxu0
    %v165 = vadd.f32 %v116, %v164
    %v166 = vpop.f32.mrf.mxu0
    %v167 = vadd.f32 %v118, %v166
    %168 = vmatmul.bf16.gmra.mxu0 %v153
    %v169 = vpop.f32.mrf.mxu0
    %v170 = vadd.f32 %v121, %v169
    %v171 = vpop.f32.mrf.mxu0
    %v172 = vadd.f32 %v123, %v171
    %173 = vdwg.mxu0
    %v174 = vld [vmem:[#allocation2 + $0x2] sm:$0xff]
    %v175 = vld [vmem:[#allocation2 + $0xa] sm:$0xff]
    %v176 = vld [vmem:[#allocation2 + $0x1a] sm:$0xff]
    %v177 = vld [vmem:[#allocation2 + $0x22] sm:$0xff]
    %v178 = vpack.c.bf16 %v175, %v174
    %v179 = vpack.c.bf16 %v177, %v176
    %s180 = scalar_lea.vmem [#allocation3], 64
    %v181 = vld [vmem:[%s180] sm:$0xf]
    %v182 = vld [vmem:[%s180 + $0x4] sm:$0xf]
    %v183 = vld [vmem:[%s180 + $0x8] sm:$0xf]
    %v184 = vld [vmem:[%s180 + $0xc] sm:$0xf]
    %v185 = vld [vmem:[%s180 + $0x10] sm:$0xf]
    %v186 = vld [vmem:[%s180 + $0x14] sm:$0xf]
    %v187 = vld [vmem:[%s180 + $0x18] sm:$0xf]
    %v188 = vld [vmem:[%s180 + $0x1c] sm:$0xf]
    %v197 = vunpack.c.l.b16 %v181
    %v198 = vunpack.c.l.b16 %v182
    %v199 = vunpack.c.l.b16 %v183
    %v200 = vunpack.c.l.b16 %v184
    %v201 = vunpack.c.l.b16 %v185
    %v202 = vunpack.c.l.b16 %v186
    %v203 = vunpack.c.l.b16 %v187
    %v204 = vunpack.c.l.b16 %v188
    %v205 = vpack.c.b16 %v198, %v197
    %v206 = vpack.c.b16 %v200, %v199
    %v207 = vpack.c.b16 %v202, %v201
    %v208 = vpack.c.b16 %v204, %v203
    %v214 = vsel %vm31, %v178, 0
    %v217 = vsel %vm31, %v179, 0
    %219 = vmatpush.bf16.msra.mxu0 0
    %220 = vmatpush.bf16.msra.mxu0 0
    %221 = vmatpush.bf16.msra.mxu0 0
    %222 = vmatpush.bf16.msra.mxu0 0
    %223 = vmatpush.bf16.msra.mxu0 %v208
    %224 = vmatpush.bf16.msra.mxu0 %v207
    %225 = vmatpush.bf16.msra.mxu0 %v206
    %226 = vmatpush.bf16.msra.mxu0 %v205
    %227 = vmatmul.bf16.gmra.mxu0 %v214
    %v228 = vpop.f32.mrf.mxu0
    %v229 = vadd.f32 0.0, %v228
    %v230 = vpop.f32.mrf.mxu0
    %v231 = vadd.f32 0.0, %v230
    %232 = vmatmul.bf16.gmra.mxu0 %v217
    %v233 = vpop.f32.mrf.mxu0
    %v234 = vadd.f32 0.0, %v233
    %v235 = vpop.f32.mrf.mxu0
    %v236 = vadd.f32 0.0, %v235
    %237 = vdwg.mxu0
    %v238 = vadd.f32 %v165, %v229
    %v239 = vadd.f32 %v167, %v231
    %v240 = vadd.f32 %v170, %v234
    %v241 = vadd.f32 %v172, %v236
    %v242 = vld [vmem:[#allocation2 + $0x3] sm:$0xff]
    %v243 = vld [vmem:[#allocation2 + $0xb] sm:$0xff]
    %v244 = vld [vmem:[#allocation2 + $0x1b] sm:$0xff]
    %v245 = vld [vmem:[#allocation2 + $0x23] sm:$0xff]
    %v246 = vpack.c.bf16 %v243, %v242
    %v247 = vpack.c.bf16 %v245, %v244
    %s248 = scalar_lea.vmem [#allocation3], 96
    %v249 = vld [vmem:[%s248] sm:$0xf]
    %v250 = vld [vmem:[%s248 + $0x4] sm:$0xf]
    %v251 = vld [vmem:[%s248 + $0x8] sm:$0xf]
    %v252 = vld [vmem:[%s248 + $0xc] sm:$0xf]
    %v253 = vld [vmem:[%s248 + $0x10] sm:$0xf]
    %v254 = vld [vmem:[%s248 + $0x14] sm:$0xf]
    %v255 = vld [vmem:[%s248 + $0x18] sm:$0xf]
    %v256 = vld [vmem:[%s248 + $0x1c] sm:$0xf]
    %v265 = vunpack.c.l.b16 %v249
    %v266 = vunpack.c.l.b16 %v250
    %v267 = vunpack.c.l.b16 %v251
    %v268 = vunpack.c.l.b16 %v252
    %v269 = vunpack.c.l.b16 %v253
    %v270 = vunpack.c.l.b16 %v254
    %v271 = vunpack.c.l.b16 %v255
    %v272 = vunpack.c.l.b16 %v256
    %v273 = vpack.c.b16 %v266, %v265
    %v274 = vpack.c.b16 %v268, %v267
    %v275 = vpack.c.b16 %v270, %v269
    %v276 = vpack.c.b16 %v272, %v271
    %v282 = vsel %vm31, %v246, 0
    %v285 = vsel %vm31, %v247, 0
    %287 = vmatpush.bf16.msra.mxu0 0
    %288 = vmatpush.bf16.msra.mxu0 0
    %289 = vmatpush.bf16.msra.mxu0 0
    %290 = vmatpush.bf16.msra.mxu0 0
    %291 = vmatpush.bf16.msra.mxu0 %v276
    %292 = vmatpush.bf16.msra.mxu0 %v275
    %293 = vmatpush.bf16.msra.mxu0 %v274
    %294 = vmatpush.bf16.msra.mxu0 %v273
    %295 = vmatmul.bf16.gmra.mxu0 %v282
    %v296 = vpop.f32.mrf.mxu0
    %v297 = vadd.f32 0.0, %v296
    %v298 = vpop.f32.mrf.mxu0
    %v299 = vadd.f32 0.0, %v298
    %300 = vmatmul.bf16.gmra.mxu0 %v285
    %v301 = vpop.f32.mrf.mxu0
    %v302 = vadd.f32 0.0, %v301
    %v303 = vpop.f32.mrf.mxu0
    %v304 = vadd.f32 0.0, %v303
    %305 = vdwg.mxu0
    %v306 = vadd.f32 %v238, %v297
    %v307 = vadd.f32 %v239, %v299
    %v308 = vadd.f32 %v240, %v302
    %v309 = vadd.f32 %v241, %v304
    %v310 = vld [vmem:[#allocation2 + $0x4] sm:$0xff]
    %v311 = vld [vmem:[#allocation2 + $0xc] sm:$0xff]
    %v312 = vld [vmem:[#allocation2 + $0x1c] sm:$0xff]
    %v313 = vld [vmem:[#allocation2 + $0x24] sm:$0xff]
    %v314 = vpack.c.bf16 %v311, %v310
    %v315 = vpack.c.bf16 %v313, %v312
    %s316 = scalar_lea.vmem [#allocation3], 128
    %v317 = vld [vmem:[%s316] sm:$0xf]
    %v318 = vld [vmem:[%s316 + $0x4] sm:$0xf]
    %v319 = vld [vmem:[%s316 + $0x8] sm:$0xf]
    %v320 = vld [vmem:[%s316 + $0xc] sm:$0xf]
    %v321 = vld [vmem:[%s316 + $0x10] sm:$0xf]
    %v322 = vld [vmem:[%s316 + $0x14] sm:$0xf]
    %v323 = vld [vmem:[%s316 + $0x18] sm:$0xf]
    %v324 = vld [vmem:[%s316 + $0x1c] sm:$0xf]
    %v333 = vunpack.c.l.b16 %v317
    %v334 = vunpack.c.l.b16 %v318
    %v335 = vunpack.c.l.b16 %v319
    %v336 = vunpack.c.l.b16 %v320
    %v337 = vunpack.c.l.b16 %v321
    %v338 = vunpack.c.l.b16 %v322
    %v339 = vunpack.c.l.b16 %v323
    %v340 = vunpack.c.l.b16 %v324
    %v341 = vpack.c.b16 %v334, %v333
    %v342 = vpack.c.b16 %v336, %v335
    %v343 = vpack.c.b16 %v338, %v337
    %v344 = vpack.c.b16 %v340, %v339
    %v350 = vsel %vm31, %v314, 0
    %v353 = vsel %vm31, %v315, 0
    %355 = vmatpush.bf16.msra.mxu0 0
    %356 = vmatpush.bf16.msra.mxu0 0
    %357 = vmatpush.bf16.msra.mxu0 0
    %358 = vmatpush.bf16.msra.mxu0 0
    %359 = vmatpush.bf16.msra.mxu0 %v344
    %360 = vmatpush.bf16.msra.mxu0 %v343
    %361 = vmatpush.bf16.msra.mxu0 %v342
    %362 = vmatpush.bf16.msra.mxu0 %v341
    %363 = vmatmul.bf16.gmra.mxu0 %v350
    %v364 = vpop.f32.mrf.mxu0
    %v365 = vadd.f32 0.0, %v364
    %v366 = vpop.f32.mrf.mxu0
    %v367 = vadd.f32 0.0, %v366
    %368 = vmatmul.bf16.gmra.mxu0 %v353
    %v369 = vpop.f32.mrf.mxu0
    %v370 = vadd.f32 0.0, %v369
    %v371 = vpop.f32.mrf.mxu0
    %v372 = vadd.f32 0.0, %v371
    %373 = vdwg.mxu0
    %v374 = vadd.f32 %v306, %v365
    %v375 = vadd.f32 %v307, %v367
    %v376 = vadd.f32 %v308, %v370
    %v377 = vadd.f32 %v309, %v372
    %v378 = vld [vmem:[#allocation2 + $0x5] sm:$0xff]
    %v379 = vld [vmem:[#allocation2 + $0xd] sm:$0xff]
    %v380 = vld [vmem:[#allocation2 + $0x1d] sm:$0xff]
    %v381 = vld [vmem:[#allocation2 + $0x25] sm:$0xff]
    %v382 = vpack.c.bf16 %v379, %v378
    %v383 = vpack.c.bf16 %v381, %v380
    %s384 = scalar_lea.vmem [#allocation3], 160
    %v385 = vld [vmem:[%s384] sm:$0xf]
    %v386 = vld [vmem:[%s384 + $0x4] sm:$0xf]
    %v387 = vld [vmem:[%s384 + $0x8] sm:$0xf]
    %v388 = vld [vmem:[%s384 + $0xc] sm:$0xf]
    %v389 = vld [vmem:[%s384 + $0x10] sm:$0xf]
    %v390 = vld [vmem:[%s384 + $0x14] sm:$0xf]
    %v391 = vld [vmem:[%s384 + $0x18] sm:$0xf]
    %v392 = vld [vmem:[%s384 + $0x1c] sm:$0xf]
    %v401 = vunpack.c.l.b16 %v385
    %v402 = vunpack.c.l.b16 %v386
    %v403 = vunpack.c.l.b16 %v387
    %v404 = vunpack.c.l.b16 %v388
    %v405 = vunpack.c.l.b16 %v389
    %v406 = vunpack.c.l.b16 %v390
    %v407 = vunpack.c.l.b16 %v391
    %v408 = vunpack.c.l.b16 %v392
    %v409 = vpack.c.b16 %v402, %v401
    %v410 = vpack.c.b16 %v404, %v403
    %v411 = vpack.c.b16 %v406, %v405
    %v412 = vpack.c.b16 %v408, %v407
    %v418 = vsel %vm31, %v382, 0
    %v421 = vsel %vm31, %v383, 0
    %423 = vmatpush.bf16.msra.mxu0 0
    %424 = vmatpush.bf16.msra.mxu0 0
    %425 = vmatpush.bf16.msra.mxu0 0
    %426 = vmatpush.bf16.msra.mxu0 0
    %427 = vmatpush.bf16.msra.mxu0 %v412
    %428 = vmatpush.bf16.msra.mxu0 %v411
    %429 = vmatpush.bf16.msra.mxu0 %v410
    %430 = vmatpush.bf16.msra.mxu0 %v409
    %431 = vmatmul.bf16.gmra.mxu0 %v418
    %v432 = vpop.f32.mrf.mxu0
    %v433 = vadd.f32 0.0, %v432
    %v434 = vpop.f32.mrf.mxu0
    %v435 = vadd.f32 0.0, %v434
    %436 = vmatmul.bf16.gmra.mxu0 %v421
    %v437 = vpop.f32.mrf.mxu0
    %v438 = vadd.f32 0.0, %v437
    %v439 = vpop.f32.mrf.mxu0
    %v440 = vadd.f32 0.0, %v439
    %441 = vdwg.mxu0
    %v442 = vadd.f32 %v374, %v433
    %v443 = vadd.f32 %v375, %v435
    %v444 = vadd.f32 %v376, %v438
    %v445 = vadd.f32 %v377, %v440
    %v446 = vld [vmem:[#allocation2 + $0x6] sm:$0xff]
    %v447 = vld [vmem:[#allocation2 + $0xe] sm:$0xff]
    %v448 = vld [vmem:[#allocation2 + $0x1e] sm:$0xff]
    %v449 = vld [vmem:[#allocation2 + $0x26] sm:$0xff]
    %v450 = vpack.c.bf16 %v447, %v446
    %v451 = vpack.c.bf16 %v449, %v448
    %s452 = scalar_lea.vmem [#allocation3], 192
    %v453 = vld [vmem:[%s452] sm:$0xf]
    %v454 = vld [vmem:[%s452 + $0x4] sm:$0xf]
    %v455 = vld [vmem:[%s452 + $0x8] sm:$0xf]
    %v456 = vld [vmem:[%s452 + $0xc] sm:$0xf]
    %v457 = vld [vmem:[%s452 + $0x10] sm:$0xf]
    %v458 = vld [vmem:[%s452 + $0x14] sm:$0xf]
    %v459 = vld [vmem:[%s452 + $0x18] sm:$0xf]
    %v460 = vld [vmem:[%s452 + $0x1c] sm:$0xf]
    %v469 = vunpack.c.l.b16 %v453
    %v470 = vunpack.c.l.b16 %v454
    %v471 = vunpack.c.l.b16 %v455
    %v472 = vunpack.c.l.b16 %v456
    %v473 = vunpack.c.l.b16 %v457
    %v474 = vunpack.c.l.b16 %v458
    %v475 = vunpack.c.l.b16 %v459
    %v476 = vunpack.c.l.b16 %v460
    %v477 = vpack.c.b16 %v470, %v469
    %v478 = vpack.c.b16 %v472, %v471
    %v479 = vpack.c.b16 %v474, %v473
    %v480 = vpack.c.b16 %v476, %v475
    %v486 = vsel %vm31, %v450, 0
    %v489 = vsel %vm31, %v451, 0
    %491 = vmatpush.bf16.msra.mxu0 0
    %492 = vmatpush.bf16.msra.mxu0 0
    %493 = vmatpush.bf16.msra.mxu0 0
    %494 = vmatpush.bf16.msra.mxu0 0
    %495 = vmatpush.bf16.msra.mxu0 %v480
    %496 = vmatpush.bf16.msra.mxu0 %v479
    %497 = vmatpush.bf16.msra.mxu0 %v478
    %498 = vmatpush.bf16.msra.mxu0 %v477
    %499 = vmatmul.bf16.gmra.mxu0 %v486
    %v500 = vpop.f32.mrf.mxu0
    %v501 = vadd.f32 0.0, %v500
    %v502 = vpop.f32.mrf.mxu0
    %v503 = vadd.f32 0.0, %v502
    %504 = vmatmul.bf16.gmra.mxu0 %v489
    %v505 = vpop.f32.mrf.mxu0
    %v506 = vadd.f32 0.0, %v505
    %v507 = vpop.f32.mrf.mxu0
    %v508 = vadd.f32 0.0, %v507
    %509 = vdwg.mxu0
    %v510 = vadd.f32 %v442, %v501
    %v511 = vadd.f32 %v443, %v503
    %v512 = vadd.f32 %v444, %v506
    %v513 = vadd.f32 %v445, %v508
    %v514 = vld [vmem:[%s2] sm:$0x1]
    %v516 = vperm.slane %v514, 0
    %v518 = vadd.f32 %v510, %v516
    %v519 = vadd.f32 %v511, %v516
    %v520 = vadd.f32 %v512, %v516
    %v521 = vadd.f32 %v513, %v516
    %522 = vst [vmem:[%s3] sm:$0xff] %v518
    %523 = vst [vmem:[%s3 + $0x8] sm:$0xff] %v519
    %524 = vst [vmem:[%s3 + $0x10] sm:$0xff] %v520
    %525 = vst [vmem:[%s3 + $0x18] sm:$0xff] %v521
    // Predicated region
    $region18: #{_lambda_.13} parent=1 // pred_check
      _
    $region19: #{_lambda_.13} parent=1 // pred_check_branch
      %527 = sbr.rel (0) target = $region21
    $region20: #{_lambda_.13} parent=1 // pred_region
      _
    $region21: #{_lambda_.13} parent=1 // pred_fallthru
      _
    // Predicated region
    $region22: #{_lambda_.13} parent=1 // pred_check
      _
    $region23: #{_lambda_.13} parent=1 // pred_check_branch
      %529 = sbr.rel (0) target = $region25
    $region24: #{_lambda_.13} parent=1 // pred_region
      _
    $region25: #{_lambda_.13} parent=1 // pred_fallthru
      _
    %530 = vsyncpa [#allocation4], 1

// kernel: _lambda_.15
$region0: #{_lambda_.15}
  #allocation0 [shape = 'u32[]', space=smem, size = 0x4, offset = 0x4, fixed_abs, tag = 'smem constant byte address 0x4 - core index']
  #allocation1 [shape = 'u32[72,128]{1,0:T(1,128)}', space=vmem, size = 0x9000, scoped, tag = 'internal scratch']
  #allocation2 [shape = 'f32[2,18,256]{2,1,0:T(8,128)}', space=vmem, size = 0xc000, scoped, tag = 'scratch operand']
  %s0 = inlined_call_operand.vmem [shape: f32[2,16,256], index: 0, kind: input, shape index: {}]
  %s1 = inlined_call_operand.hbm [shape: bf16[3,256,128], index: 1, kind: input, shape index: {}]
  %s2 = inlined_call_operand.hbm [shape: f32[1,128], index: 2, kind: input, shape index: {}]
  %s3 = inlined_call_operand.vmem [shape: f32[2,8,128], index: 3, kind: output, shape index: {}]
  %s4 = sld [smem:[#allocation0]]
  $region30: #{_lambda_.15} parent=0
    _
  %s6 = ssub.s32 1, %s4
  %s7 = scalar_select 0, %s6, %s4
  $region1: #{_lambda_.15} parent=0
    #allocation3 [shape = 'u8[196608]{0}', space=vmem, size = 0x30000, scoped, tag = 'input window, operand 1, single buffered']
    #allocation4 [shape = 's32[1]{0}', space=sflag, size = 0x4, scoped, tag = 'scoped memory for _lambda_.15']
    #allocation5 [shape = 'u8[512]{0}', space=vmem, size = 0x400, scoped, tag = 'input window, operand 2, single buffered']
    #allocation6 [shape = 's32[1]{0}', space=sflag, size = 0x4, scoped, tag = 'scoped memory for _lambda_.15']
    %8 = vsyncpa [#allocation4], 0
    %9 = vsyncpa [#allocation6], 0
    // Predicated region
    $region2: #{_lambda_.15} parent=1 // pred_check
      _
    $region3: #{_lambda_.15} parent=1 // pred_check_branch
      %11 = sbr.rel (0) target = $region5
    $region4: #{_lambda_.15} parent=1 // pred_region
      _
    $region5: #{_lambda_.15} parent=1 // pred_fallthru
      _
    // Predicated region
    $region6: #{_lambda_.15} parent=1 // pred_check
      _
    $region7: #{_lambda_.15} parent=1 // pred_check_branch
      %13 = sbr.rel (0) target = $region9
    $region8: #{_lambda_.15} parent=1 // pred_region
      %15 = vsyncadd [#allocation4], 0
      %s16 = sshll.u32 %s1, 4
      %s17 = int_to_ptr.hbm [resolvable:$true] %s16
      %s18 = sshll.u32 [#allocation3], 4
      %s19 = int_to_ptr.vmem [resolvable:$true] %s18
      %24 = dma.hbm_to_vmem [thread:$0]  %s17, 6144, %s19, [#allocation4], 64, 64, 4
    $region9: #{_lambda_.15} parent=1 // pred_fallthru
      _
    // Predicated region
    $region10: #{_lambda_.15} parent=1 // pred_check
      _
    $region11: #{_lambda_.15} parent=1 // pred_check_branch
      %26 = sbr.rel (0) target = $region13
    $region12: #{_lambda_.15} parent=1 // pred_region
      %28 = vsyncadd [#allocation6], 0
      %s30 = sshll.u32 %s2, 4
      %s31 = int_to_ptr.hbm [resolvable:$true] %s30
      %s32 = sshll.u32 [#allocation5], 4
      %s33 = int_to_ptr.vmem [resolvable:$true] %s32
      %35 = dma.hbm_to_vmem [thread:$0]  %s31, 16, %s33, [#allocation6]
    $region13: #{_lambda_.15} parent=1 // pred_fallthru
      _
    // Predicated region
    $region14: #{_lambda_.15} parent=1 // pred_check
      _
    $region15: #{_lambda_.15} parent=1 // pred_check_branch
      %37 = sbr.rel (0) target = $region17
    $region16: #{_lambda_.15} parent=1 // pred_region
      %39 = dma.done [#allocation4], 6144
    $region17: #{_lambda_.15} parent=1 // pred_fallthru
      _
    // Predicated region
    $region18: #{_lambda_.15} parent=1 // pred_check
      _
    $region19: #{_lambda_.15} parent=1 // pred_check_branch
      %41 = sbr.rel (0) target = $region21
    $region20: #{_lambda_.15} parent=1 // pred_region
      %43 = dma.done [#allocation6], 16
    $region21: #{_lambda_.15} parent=1 // pred_fallthru
      _
    %44 = vst [vmem:[#allocation2] sm:$0xff] 0.0
    %45 = vst [vmem:[#allocation2 + $0x8] sm:$0xff] 0.0
    %46 = vst [vmem:[#allocation2 + $0x10] sm:$0xff] 0.0
    %47 = vst [vmem:[#allocation2 + $0x18] sm:$0xff] 0.0
    %48 = vst [vmem:[#allocation2 + $0x20] sm:$0x3] 0.0
    %49 = vst [vmem:[#allocation2 + $0x28] sm:$0x3] 0.0
    %50 = vst [vmem:[#allocation2 + $0x30] sm:$0xff] 0.0
    %51 = vst [vmem:[#allocation2 + $0x38] sm:$0xff] 0.0
    %52 = vst [vmem:[#allocation2 + $0x40] sm:$0xff] 0.0
    %53 = vst [vmem:[#allocation2 + $0x48] sm:$0xff] 0.0
    %54 = vst [vmem:[#allocation2 + $0x50] sm:$0x3] 0.0
    %55 = vst [vmem:[#allocation2 + $0x58] sm:$0x3] 0.0
    %v56 = vld [vmem:[%s0] sm:$0xff]
    %v57 = vld [vmem:[%s0 + $0x8] sm:$0xff]
    %v58 = vld [vmem:[%s0 + $0x10] sm:$0xff]
    %v59 = vld [vmem:[%s0 + $0x18] sm:$0xff]
    %v60 = vld [vmem:[%s0 + $0x20] sm:$0xff]
    %v61 = vld [vmem:[%s0 + $0x28] sm:$0xff]
    %v62 = vld [vmem:[%s0 + $0x30] sm:$0xff]
    %v63 = vld [vmem:[%s0 + $0x38] sm:$0xff]
    %vm72 = vcmask 1040384
    %v73 = vrot.slane %v56, 7
    %v74 = vrot.slane %v57, 7
    %v75 = vrot.slane %v58, 7
    %v76 = vsel %vm72, %v73, %v75
    %v77 = vrot.slane %v59, 7
    %v78 = vsel %vm72, %v74, %v77
    %v79 = vrot.slane %v60, 7
    %v80 = vrot.slane %v61, 7
    %v81 = vrot.slane %v62, 7
    %v82 = vsel %vm72, %v79, %v81
    %v83 = vrot.slane %v63, 7
    %v84 = vsel %vm72, %v80, %v83
    %97 = vst [vmem:[#allocation2] sm:$0xfe] %v73
    %98 = vst [vmem:[#allocation2 + $0x8] sm:$0xfe] %v74
    %99 = vst [vmem:[#allocation2 + $0x10] sm:$0xff] %v76
    %100 = vst [vmem:[#allocation2 + $0x18] sm:$0xff] %v78
    %101 = vst [vmem:[#allocation2 + $0x20] sm:$0x1] %v75
    %102 = vst [vmem:[#allocation2 + $0x28] sm:$0x1] %v77
    %103 = vst [vmem:[#allocation2 + $0x30] sm:$0xfe] %v79
    %104 = vst [vmem:[#allocation2 + $0x38] sm:$0xfe] %v80
    %105 = vst [vmem:[#allocation2 + $0x40] sm:$0xff] %v82
    %106 = vst [vmem:[#allocation2 + $0x48] sm:$0xff] %v84
    %107 = vst [vmem:[#allocation2 + $0x50] sm:$0x1] %v81
    %108 = vst [vmem:[#allocation2 + $0x58] sm:$0x1] %v83
    %v109 = vld [vmem:[#allocation2] sm:$0xff]
    %v110 = vld [vmem:[#allocation2 + $0x8] sm:$0xff]
    %v111 = vld [vmem:[#allocation2 + $0x10] sm:$0xff]
    %v112 = vld [vmem:[#allocation2 + $0x18] sm:$0xff]
    %v113 = vld [vmem:[#allocation2 + $0x30] sm:$0xff]
    %v114 = vld [vmem:[#allocation2 + $0x38] sm:$0xff]
    %v115 = vld [vmem:[#allocation2 + $0x40] sm:$0xff]
    %v116 = vld [vmem:[#allocation2 + $0x48] sm:$0xff]
    %v117 = vpack.c.bf16 %v111, %v109
    %v118 = vpack.c.bf16 %v112, %v110
    %v119 = vpack.c.bf16 %v115, %v113
    %v120 = vpack.c.bf16 %v116, %v114
    %v121 = vld [vmem:[#allocation3] sm:$0xf]
    %v122 = vld [vmem:[#allocation3 + $0x4] sm:$0xf]
    %v123 = vld [vmem:[#allocation3 + $0x8] sm:$0xf]
    %v124 = vld [vmem:[#allocation3 + $0xc] sm:$0xf]
    %v125 = vld [vmem:[#allocation3 + $0x10] sm:$0xf]
    %v126 = vld [vmem:[#allocation3 + $0x14] sm:$0xf]
    %v127 = vld [vmem:[#allocation3 + $0x18] sm:$0xf]
    %v128 = vld [vmem:[#allocation3 + $0x1c] sm:$0xf]
    %v129 = vld [vmem:[#allocation3 + $0x20] sm:$0xf]
    %v130 = vld [vmem:[#allocation3 + $0x24] sm:$0xf]
    %v131 = vld [vmem:[#allocation3 + $0x28] sm:$0xf]
    %v132 = vld [vmem:[#allocation3 + $0x2c] sm:$0xf]
    %v133 = vld [vmem:[#allocation3 + $0x30] sm:$0xf]
    %v134 = vld [vmem:[#allocation3 + $0x34] sm:$0xf]
    %v135 = vld [vmem:[#allocation3 + $0x38] sm:$0xf]
    %v136 = vld [vmem:[#allocation3 + $0x3c] sm:$0xf]
    %v137 = vld [vmem:[#allocation3 + $0x40] sm:$0xf]
    %v138 = vld [vmem:[#allocation3 + $0x44] sm:$0xf]
    %v139 = vld [vmem:[#allocation3 + $0x48] sm:$0xf]
    %v140 = vld [vmem:[#allocation3 + $0x4c] sm:$0xf]
    %v141 = vld [vmem:[#allocation3 + $0x50] sm:$0xf]
    %v142 = vld [vmem:[#allocation3 + $0x54] sm:$0xf]
    %v143 = vld [vmem:[#allocation3 + $0x58] sm:$0xf]
    %v144 = vld [vmem:[#allocation3 + $0x5c] sm:$0xf]
    %v145 = vld [vmem:[#allocation3 + $0x60] sm:$0xf]
    %v146 = vld [vmem:[#allocation3 + $0x64] sm:$0xf]
    %v147 = vld [vmem:[#allocation3 + $0x68] sm:$0xf]
    %v148 = vld [vmem:[#allocation3 + $0x6c] sm:$0xf]
    %v149 = vld [vmem:[#allocation3 + $0x70] sm:$0xf]
    %v150 = vld [vmem:[#allocation3 + $0x74] sm:$0xf]
    %v151 = vld [vmem:[#allocation3 + $0x78] sm:$0xf]
    %v152 = vld [vmem:[#allocation3 + $0x7c] sm:$0xf]
    %v153 = vld [vmem:[#allocation2] sm:$0xfe]
    %v154 = vld [vmem:[#allocation2 + $0x8] sm:$0xfe]
    %v155 = vld [vmem:[#allocation2 + $0x20] sm:$0x1]
    %v156 = vld [vmem:[#allocation2 + $0x28] sm:$0x1]
    %v157 = vld [vmem:[#allocation2 + $0x30] sm:$0xfe]
    %v158 = vld [vmem:[#allocation2 + $0x38] sm:$0xfe]
    %v159 = vld [vmem:[#allocation2 + $0x50] sm:$0x1]
    %v160 = vld [vmem:[#allocation2 + $0x58] sm:$0x1]
    %vm173 = vcmask 1046528
    %v174 = vrot.slane %v153, 1
    %v175 = vrot.slane %v111, 1
    %v176 = vsel %vm173, %v174, %v175
    %v177 = vrot.slane %v154, 1
    %v178 = vrot.slane %v112, 1
    %v179 = vsel %vm173, %v177, %v178
    %v180 = vrot.slane %v155, 1
    %v181 = vsel %vm173, %v175, %v180
    %v182 = vrot.slane %v156, 1
    %v183 = vsel %vm173, %v178, %v182
    %v184 = vrot.slane %v157, 1
    %v185 = vrot.slane %v115, 1
    %v186 = vsel %vm173, %v184, %v185
    %v187 = vrot.slane %v158, 1
    %v188 = vrot.slane %v116, 1
    %v189 = vsel %vm173, %v187, %v188
    %v190 = vrot.slane %v159, 1
    %v191 = vsel %vm173, %v185, %v190
    %v192 = vrot.slane %v160, 1
    %v193 = vsel %vm173, %v188, %v192
    %v202 = vpack.c.bf16 %v181, %v176
    %v203 = vpack.c.bf16 %v183, %v179
    %v204 = vpack.c.bf16 %v191, %v186
    %v205 = vpack.c.bf16 %v193, %v189
    %s206 = scalar_lea.vmem [#allocation3], 128
    %v207 = vld [vmem:[%s206] sm:$0xf]
    %v208 = vld [vmem:[%s206 + $0x4] sm:$0xf]
    %v209 = vld [vmem:[%s206 + $0x8] sm:$0xf]
    %v210 = vld [vmem:[%s206 + $0xc] sm:$0xf]
    %v211 = vld [vmem:[%s206 + $0x10] sm:$0xf]
    %v212 = vld [vmem:[%s206 + $0x14] sm:$0xf]
    %v213 = vld [vmem:[%s206 + $0x18] sm:$0xf]
    %v214 = vld [vmem:[%s206 + $0x1c] sm:$0xf]
    %v215 = vld [vmem:[%s206 + $0x20] sm:$0xf]
    %v216 = vld [vmem:[%s206 + $0x24] sm:$0xf]
    %v217 = vld [vmem:[%s206 + $0x28] sm:$0xf]
    %v218 = vld [vmem:[%s206 + $0x2c] sm:$0xf]
    %v219 = vld [vmem:[%s206 + $0x30] sm:$0xf]
    %v220 = vld [vmem:[%s206 + $0x34] sm:$0xf]
    %v221 = vld [vmem:[%s206 + $0x38] sm:$0xf]
    %v222 = vld [vmem:[%s206 + $0x3c] sm:$0xf]
    %v223 = vld [vmem:[%s206 + $0x40] sm:$0xf]
    %v224 = vld [vmem:[%s206 + $0x44] sm:$0xf]
    %v225 = vld [vmem:[%s206 + $0x48] sm:$0xf]
    %v226 = vld [vmem:[%s206 + $0x4c] sm:$0xf]
    %v227 = vld [vmem:[%s206 + $0x50] sm:$0xf]
    %v228 = vld [vmem:[%s206 + $0x54] sm:$0xf]
    %v229 = vld [vmem:[%s206 + $0x58] sm:$0xf]
    %v230 = vld [vmem:[%s206 + $0x5c] sm:$0xf]
    %v231 = vld [vmem:[%s206 + $0x60] sm:$0xf]
    %v232 = vld [vmem:[%s206 + $0x64] sm:$0xf]
    %v233 = vld [vmem:[%s206 + $0x68] sm:$0xf]
    %v234 = vld [vmem:[%s206 + $0x6c] sm:$0xf]
    %v235 = vld [vmem:[%s206 + $0x70] sm:$0xf]
    %v236 = vld [vmem:[%s206 + $0x74] sm:$0xf]
    %v237 = vld [vmem:[%s206 + $0x78] sm:$0xf]
    %v238 = vld [vmem:[%s206 + $0x7c] sm:$0xf]
    %v271 = vunpack.c.l.b16 %v207
    %v272 = vunpack.c.l.b16 %v208
    %v273 = vunpack.c.l.b16 %v209
    %v274 = vunpack.c.l.b16 %v210
    %v275 = vunpack.c.l.b16 %v211
    %v276 = vunpack.c.l.b16 %v212
    %v277 = vunpack.c.l.b16 %v213
    %v278 = vunpack.c.l.b16 %v214
    %v279 = vunpack.c.l.b16 %v215
    %v280 = vunpack.c.l.b16 %v216
    %v281 = vunpack.c.l.b16 %v217
    %v282 = vunpack.c.l.b16 %v218
    %v283 = vunpack.c.l.b16 %v219
    %v284 = vunpack.c.l.b16 %v220
    %v285 = vunpack.c.l.b16 %v221
    %v286 = vunpack.c.l.b16 %v222
    %v287 = vunpack.c.l.b16 %v223
    %v288 = vunpack.c.l.b16 %v224
    %v289 = vunpack.c.l.b16 %v225
    %v290 = vunpack.c.l.b16 %v226
    %v291 = vunpack.c.l.b16 %v227
    %v292 = vunpack.c.l.b16 %v228
    %v293 = vunpack.c.l.b16 %v229
    %v294 = vunpack.c.l.b16 %v230
    %v295 = vunpack.c.l.b16 %v231
    %v296 = vunpack.c.l.b16 %v232
    %v297 = vunpack.c.l.b16 %v233
    %v298 = vunpack.c.l.b16 %v234
    %v299 = vunpack.c.l.b16 %v235
    %v300 = vunpack.c.l.b16 %v236
    %v301 = vunpack.c.l.b16 %v237
    %v302 = vunpack.c.l.b16 %v238
    %v303 = vpack.c.b16 %v272, %v271
    %v304 = vpack.c.b16 %v274, %v273
    %v305 = vpack.c.b16 %v276, %v275
    %v306 = vpack.c.b16 %v278, %v277
    %v307 = vpack.c.b16 %v280, %v279
    %v308 = vpack.c.b16 %v282, %v281
    %v309 = vpack.c.b16 %v284, %v283
    %v310 = vpack.c.b16 %v286, %v285
    %v311 = vpack.c.b16 %v288, %v287
    %v312 = vpack.c.b16 %v290, %v289
    %v313 = vpack.c.b16 %v292, %v291
    %v314 = vpack.c.b16 %v294, %v293
    %v315 = vpack.c.b16 %v296, %v295
    %v316 = vpack.c.b16 %v298, %v297
    %v317 = vpack.c.b16 %v300, %v299
    %v318 = vpack.c.b16 %v302, %v301
    %335 = vmatpush.bf16.msra.mxu0 %v310
    %336 = vmatpush.bf16.msra.mxu0 %v309
    %337 = vmatpush.bf16.msra.mxu0 %v308
    %338 = vmatpush.bf16.msra.mxu0 %v307
    %339 = vmatpush.bf16.msra.mxu0 %v306
    %340 = vmatpush.bf16.msra.mxu0 %v305
    %341 = vmatpush.bf16.msra.mxu0 %v304
    %342 = vmatpush.bf16.msra.mxu0 %v303
    %343 = vmatmul.bf16.gmra.mxu0 %v202
    %v344 = vpop.f32.mrf.mxu0
    %v345 = vadd.f32 0.0, %v344
    %v346 = vpop.f32.mrf.mxu0
    %v347 = vadd.f32 0.0, %v346
    %348 = vmatmul.bf16.gmra.mxu0 %v204
    %v349 = vpop.f32.mrf.mxu0
    %v350 = vadd.f32 0.0, %v349
    %v351 = vpop.f32.mrf.mxu0
    %v352 = vadd.f32 0.0, %v351
    %353 = vdwg.mxu0
    %354 = vmatpush.bf16.msra.mxu0 %v318
    %355 = vmatpush.bf16.msra.mxu0 %v317
    %356 = vmatpush.bf16.msra.mxu0 %v316
    %357 = vmatpush.bf16.msra.mxu0 %v315
    %358 = vmatpush.bf16.msra.mxu0 %v314
    %359 = vmatpush.bf16.msra.mxu0 %v313
    %360 = vmatpush.bf16.msra.mxu0 %v312
    %361 = vmatpush.bf16.msra.mxu0 %v311
    %362 = vmatmul.bf16.gmra.mxu0 %v203
    %v363 = vpop.f32.mrf.mxu0
    %v364 = vadd.f32 %v345, %v363
    %v365 = vpop.f32.mrf.mxu0
    %v366 = vadd.f32 %v347, %v365
    %367 = vmatmul.bf16.gmra.mxu0 %v205
    %v368 = vpop.f32.mrf.mxu0
    %v369 = vadd.f32 %v350, %v368
    %v370 = vpop.f32.mrf.mxu0
    %v371 = vadd.f32 %v352, %v370
    %372 = vdwg.mxu0
    %v405 = vunpack.c.l.b16 %v121
    %v406 = vunpack.c.l.b16 %v122
    %v407 = vunpack.c.l.b16 %v123
    %v408 = vunpack.c.l.b16 %v124
    %v409 = vunpack.c.l.b16 %v125
    %v410 = vunpack.c.l.b16 %v126
    %v411 = vunpack.c.l.b16 %v127
    %v412 = vunpack.c.l.b16 %v128
    %v413 = vunpack.c.l.b16 %v129
    %v414 = vunpack.c.l.b16 %v130
    %v415 = vunpack.c.l.b16 %v131
    %v416 = vunpack.c.l.b16 %v132
    %v417 = vunpack.c.l.b16 %v133
    %v418 = vunpack.c.l.b16 %v134
    %v419 = vunpack.c.l.b16 %v135
    %v420 = vunpack.c.l.b16 %v136
    %v421 = vunpack.c.l.b16 %v137
    %v422 = vunpack.c.l.b16 %v138
    %v423 = vunpack.c.l.b16 %v139
    %v424 = vunpack.c.l.b16 %v140
    %v425 = vunpack.c.l.b16 %v141
    %v426 = vunpack.c.l.b16 %v142
    %v427 = vunpack.c.l.b16 %v143
    %v428 = vunpack.c.l.b16 %v144
    %v429 = vunpack.c.l.b16 %v145
    %v430 = vunpack.c.l.b16 %v146
    %v431 = vunpack.c.l.b16 %v147
    %v432 = vunpack.c.l.b16 %v148
    %v433 = vunpack.c.l.b16 %v149
    %v434 = vunpack.c.l.b16 %v150
    %v435 = vunpack.c.l.b16 %v151
    %v436 = vunpack.c.l.b16 %v152
    %v437 = vpack.c.b16 %v406, %v405
    %v438 = vpack.c.b16 %v408, %v407
    %v439 = vpack.c.b16 %v410, %v409
    %v440 = vpack.c.b16 %v412, %v411
    %v441 = vpack.c.b16 %v414, %v413
    %v442 = vpack.c.b16 %v416, %v415
    %v443 = vpack.c.b16 %v418, %v417
    %v444 = vpack.c.b16 %v420, %v419
    %v445 = vpack.c.b16 %v422, %v421
    %v446 = vpack.c.b16 %v424, %v423
    %v447 = vpack.c.b16 %v426, %v425
    %v448 = vpack.c.b16 %v428, %v427
    %v449 = vpack.c.b16 %v430, %v429
    %v450 = vpack.c.b16 %v432, %v431
    %v451 = vpack.c.b16 %v434, %v433
    %v452 = vpack.c.b16 %v436, %v435
    %469 = vmatpush.bf16.msra.mxu0 %v444
    %470 = vmatpush.bf16.msra.mxu0 %v443
    %471 = vmatpush.bf16.msra.mxu0 %v442
    %472 = vmatpush.bf16.msra.mxu0 %v441
    %473 = vmatpush.bf16.msra.mxu0 %v440
    %474 = vmatpush.bf16.msra.mxu0 %v439
    %475 = vmatpush.bf16.msra.mxu0 %v438
    %476 = vmatpush.bf16.msra.mxu0 %v437
    %477 = vmatmul.bf16.gmra.mxu0 %v117
    %v478 = vpop.f32.mrf.mxu0
    %v479 = vadd.f32 %v364, %v478
    %v480 = vpop.f32.mrf.mxu0
    %v481 = vadd.f32 %v366, %v480
    %482 = vmatmul.bf16.gmra.mxu0 %v119
    %v483 = vpop.f32.mrf.mxu0
    %v484 = vadd.f32 %v369, %v483
    %v485 = vpop.f32.mrf.mxu0
    %v486 = vadd.f32 %v371, %v485
    %487 = vdwg.mxu0
    %488 = vmatpush.bf16.msra.mxu0 %v452
    %489 = vmatpush.bf16.msra.mxu0 %v451
    %490 = vmatpush.bf16.msra.mxu0 %v450
    %491 = vmatpush.bf16.msra.mxu0 %v449
    %492 = vmatpush.bf16.msra.mxu0 %v448
    %493 = vmatpush.bf16.msra.mxu0 %v447
    %494 = vmatpush.bf16.msra.mxu0 %v446
    %495 = vmatpush.bf16.msra.mxu0 %v445
    %496 = vmatmul.bf16.gmra.mxu0 %v118
    %v497 = vpop.f32.mrf.mxu0
    %v498 = vadd.f32 %v479, %v497
    %v499 = vpop.f32.mrf.mxu0
    %v500 = vadd.f32 %v481, %v499
    %501 = vmatmul.bf16.gmra.mxu0 %v120
    %v502 = vpop.f32.mrf.mxu0
    %v503 = vadd.f32 %v484, %v502
    %v504 = vpop.f32.mrf.mxu0
    %v505 = vadd.f32 %v486, %v504
    %506 = vdwg.mxu0
    %v507 = vld [vmem:[#allocation2] sm:$0xfc]
    %v508 = vld [vmem:[#allocation2 + $0x8] sm:$0xfc]
    %v509 = vld [vmem:[#allocation2 + $0x20] sm:$0x3]
    %v510 = vld [vmem:[#allocation2 + $0x28] sm:$0x3]
    %v511 = vld [vmem:[#allocation2 + $0x30] sm:$0xfc]
    %v512 = vld [vmem:[#allocation2 + $0x38] sm:$0xfc]
    %v513 = vld [vmem:[#allocation2 + $0x50] sm:$0x3]
    %v514 = vld [vmem:[#allocation2 + $0x58] sm:$0x3]
    %vm523 = vcmask 1045504
    %v524 = vrot.slane %v507, 2
    %v525 = vrot.slane %v111, 2
    %v526 = vsel %vm523, %v524, %v525
    %v527 = vrot.slane %v508, 2
    %v528 = vrot.slane %v112, 2
    %v529 = vsel %vm523, %v527, %v528
    %v530 = vrot.slane %v509, 2
    %v531 = vsel %vm523, %v525, %v530
    %v532 = vrot.slane %v510, 2
    %v533 = vsel %vm523, %v528, %v532
    %v534 = vrot.slane %v511, 2
    %v535 = vrot.slane %v115, 2
    %v536 = vsel %vm523, %v534, %v535
    %v537 = vrot.slane %v512, 2
    %v538 = vrot.slane %v116, 2
    %v539 = vsel %vm523, %v537, %v538
    %v540 = vrot.slane %v513, 2
    %v541 = vsel %vm523, %v535, %v540
    %v542 = vrot.slane %v514, 2
    %v543 = vsel %vm523, %v538, %v542
    %v552 = vpack.c.bf16 %v531, %v526
    %v553 = vpack.c.bf16 %v533, %v529
    %v554 = vpack.c.bf16 %v541, %v536
    %v555 = vpack.c.bf16 %v543, %v539
    %s556 = scalar_lea.vmem [#allocation3], 256
    %v557 = vld [vmem:[%s556] sm:$0xf]
    %v558 = vld [vmem:[%s556 + $0x4] sm:$0xf]
    %v559 = vld [vmem:[%s556 + $0x8] sm:$0xf]
    %v560 = vld [vmem:[%s556 + $0xc] sm:$0xf]
    %v561 = vld [vmem:[%s556 + $0x10] sm:$0xf]
    %v562 = vld [vmem:[%s556 + $0x14] sm:$0xf]
    %v563 = vld [vmem:[%s556 + $0x18] sm:$0xf]
    %v564 = vld [vmem:[%s556 + $0x1c] sm:$0xf]
    %v565 = vld [vmem:[%s556 + $0x20] sm:$0xf]
    %v566 = vld [vmem:[%s556 + $0x24] sm:$0xf]
    %v567 = vld [vmem:[%s556 + $0x28] sm:$0xf]
    %v568 = vld [vmem:[%s556 + $0x2c] sm:$0xf]
    %v569 = vld [vmem:[%s556 + $0x30] sm:$0xf]
    %v570 = vld [vmem:[%s556 + $0x34] sm:$0xf]
    %v571 = vld [vmem:[%s556 + $0x38] sm:$0xf]
    %v572 = vld [vmem:[%s556 + $0x3c] sm:$0xf]
    %v573 = vld [vmem:[%s556 + $0x40] sm:$0xf]
    %v574 = vld [vmem:[%s556 + $0x44] sm:$0xf]
    %v575 = vld [vmem:[%s556 + $0x48] sm:$0xf]
    %v576 = vld [vmem:[%s556 + $0x4c] sm:$0xf]
    %v577 = vld [vmem:[%s556 + $0x50] sm:$0xf]
    %v578 = vld [vmem:[%s556 + $0x54] sm:$0xf]
    %v579 = vld [vmem:[%s556 + $0x58] sm:$0xf]
    %v580 = vld [vmem:[%s556 + $0x5c] sm:$0xf]
    %v581 = vld [vmem:[%s556 + $0x60] sm:$0xf]
    %v582 = vld [vmem:[%s556 + $0x64] sm:$0xf]
    %v583 = vld [vmem:[%s556 + $0x68] sm:$0xf]
    %v584 = vld [vmem:[%s556 + $0x6c] sm:$0xf]
    %v585 = vld [vmem:[%s556 + $0x70] sm:$0xf]
    %v586 = vld [vmem:[%s556 + $0x74] sm:$0xf]
    %v587 = vld [vmem:[%s556 + $0x78] sm:$0xf]
    %v588 = vld [vmem:[%s556 + $0x7c] sm:$0xf]
    %v621 = vunpack.c.l.b16 %v557
    %v622 = vunpack.c.l.b16 %v558
    %v623 = vunpack.c.l.b16 %v559
    %v624 = vunpack.c.l.b16 %v560
    %v625 = vunpack.c.l.b16 %v561
    %v626 = vunpack.c.l.b16 %v562
    %v627 = vunpack.c.l.b16 %v563
    %v628 = vunpack.c.l.b16 %v564
    %v629 = vunpack.c.l.b16 %v565
    %v630 = vunpack.c.l.b16 %v566
    %v631 = vunpack.c.l.b16 %v567
    %v632 = vunpack.c.l.b16 %v568
    %v633 = vunpack.c.l.b16 %v569
    %v634 = vunpack.c.l.b16 %v570
    %v635 = vunpack.c.l.b16 %v571
    %v636 = vunpack.c.l.b16 %v572
    %v637 = vunpack.c.l.b16 %v573
    %v638 = vunpack.c.l.b16 %v574
    %v639 = vunpack.c.l.b16 %v575
    %v640 = vunpack.c.l.b16 %v576
    %v641 = vunpack.c.l.b16 %v577
    %v642 = vunpack.c.l.b16 %v578
    %v643 = vunpack.c.l.b16 %v579
    %v644 = vunpack.c.l.b16 %v580
    %v645 = vunpack.c.l.b16 %v581
    %v646 = vunpack.c.l.b16 %v582
    %v647 = vunpack.c.l.b16 %v583
    %v648 = vunpack.c.l.b16 %v584
    %v649 = vunpack.c.l.b16 %v585
    %v650 = vunpack.c.l.b16 %v586
    %v651 = vunpack.c.l.b16 %v587
    %v652 = vunpack.c.l.b16 %v588
    %v653 = vpack.c.b16 %v622, %v621
    %v654 = vpack.c.b16 %v624, %v623
    %v655 = vpack.c.b16 %v626, %v625
    %v656 = vpack.c.b16 %v628, %v627
    %v657 = vpack.c.b16 %v630, %v629
    %v658 = vpack.c.b16 %v632, %v631
    %v659 = vpack.c.b16 %v634, %v633
    %v660 = vpack.c.b16 %v636, %v635
    %v661 = vpack.c.b16 %v638, %v637
    %v662 = vpack.c.b16 %v640, %v639
    %v663 = vpack.c.b16 %v642, %v641
    %v664 = vpack.c.b16 %v644, %v643
    %v665 = vpack.c.b16 %v646, %v645
    %v666 = vpack.c.b16 %v648, %v647
    %v667 = vpack.c.b16 %v650, %v649
    %v668 = vpack.c.b16 %v652, %v651
    %685 = vmatpush.bf16.msra.mxu0 %v660
    %686 = vmatpush.bf16.msra.mxu0 %v659
    %687 = vmatpush.bf16.msra.mxu0 %v658
    %688 = vmatpush.bf16.msra.mxu0 %v657
    %689 = vmatpush.bf16.msra.mxu0 %v656
    %690 = vmatpush.bf16.msra.mxu0 %v655
    %691 = vmatpush.bf16.msra.mxu0 %v654
    %692 = vmatpush.bf16.msra.mxu0 %v653
    %693 = vmatmul.bf16.gmra.mxu0 %v552
    %v694 = vpop.f32.mrf.mxu0
    %v695 = vadd.f32 0.0, %v694
    %v696 = vpop.f32.mrf.mxu0
    %v697 = vadd.f32 0.0, %v696
    %698 = vmatmul.bf16.gmra.mxu0 %v554
    %v699 = vpop.f32.mrf.mxu0
    %v700 = vadd.f32 0.0, %v699
    %v701 = vpop.f32.mrf.mxu0
    %v702 = vadd.f32 0.0, %v701
    %703 = vdwg.mxu0
    %704 = vmatpush.bf16.msra.mxu0 %v668
    %705 = vmatpush.bf16.msra.mxu0 %v667
    %706 = vmatpush.bf16.msra.mxu0 %v666
    %707 = vmatpush.bf16.msra.mxu0 %v665
    %708 = vmatpush.bf16.msra.mxu0 %v664
    %709 = vmatpush.bf16.msra.mxu0 %v663
    %710 = vmatpush.bf16.msra.mxu0 %v662
    %711 = vmatpush.bf16.msra.mxu0 %v661
    %712 = vmatmul.bf16.gmra.mxu0 %v553
    %v713 = vpop.f32.mrf.mxu0
    %v714 = vadd.f32 %v695, %v713
    %v715 = vpop.f32.mrf.mxu0
    %v716 = vadd.f32 %v697, %v715
    %717 = vmatmul.bf16.gmra.mxu0 %v555
    %v718 = vpop.f32.mrf.mxu0
    %v719 = vadd.f32 %v700, %v718
    %v720 = vpop.f32.mrf.mxu0
    %v721 = vadd.f32 %v702, %v720
    %722 = vdwg.mxu0
    %v723 = vadd.f32 %v498, %v714
    %v724 = vadd.f32 %v500, %v716
    %v725 = vadd.f32 %v503, %v719
    %v726 = vadd.f32 %v505, %v721
    %v727 = vld [vmem:[#allocation5] sm:$0x1]
    %v729 = vperm.slane %v727, 0
    %v731 = vadd.f32 %v723, %v729
    %v732 = vadd.f32 %v724, %v729
    %v733 = vadd.f32 %v725, %v729
    %v734 = vadd.f32 %v726, %v729
    %735 = vst [vmem:[%s3] sm:$0x1] %v731
    %736 = vst [vmem:[%s3 + $0x8] sm:$0x1] %v733
    %737 = vst [vmem:[%s3 - $0x1] sm:$0x4] %v731
    %738 = vst [vmem:[%s3 + $0x7] sm:$0x4] %v733
    %739 = vst [vmem:[%s3 - $0x2] sm:$0x10] %v731
    %740 = vst [vmem:[%s3 + $0x6] sm:$0x10] %v733
    %741 = vst [vmem:[%s3 - $0x3] sm:$0x40] %v731
    %742 = vst [vmem:[%s3 + $0x5] sm:$0x40] %v733
    %743 = vst [vmem:[%s3 + $0x4] sm:$0x1] %v732
    %744 = vst [vmem:[%s3 + $0xc] sm:$0x1] %v734
    %745 = vst [vmem:[%s3 + $0x3] sm:$0x4] %v732
    %746 = vst [vmem:[%s3 + $0xb] sm:$0x4] %v734
    %747 = vst [vmem:[%s3 + $0x2] sm:$0x10] %v732
    %748 = vst [vmem:[%s3 + $0xa] sm:$0x10] %v734
    %749 = vst [vmem:[%s3 + $0x1] sm:$0x40] %v732
    %750 = vst [vmem:[%s3 + $0x9] sm:$0x40] %v734
    // Predicated region
    $region22: #{_lambda_.15} parent=1 // pred_check
      _
    $region23: #{_lambda_.15} parent=1 // pred_check_branch
      %752 = sbr.rel (0) target = $region25
    $region24: #{_lambda_.15} parent=1 // pred_region
      _
    $region25: #{_lambda_.15} parent=1 // pred_fallthru
      _
    // Predicated region
    $region26: #{_lambda_.15} parent=1 // pred_check
      _
    $region27: #{_lambda_.15} parent=1 // pred_check_branch
      %754 = sbr.rel (0) target = $region29
    $region28: #{_lambda_.15} parent=1 // pred_region
      _
    $region29: #{_lambda_.15} parent=1 // pred_fallthru
      _
    %755 = vsyncpa [#allocation4], 1
    %756 = vsyncpa [#allocation6], 1

// kernel: _lambda_.14
$region0: #{_lambda_.14}
  #allocation0 [shape = 'u32[]', space=smem, size = 0x4, offset = 0x4, fixed_abs, tag = 'smem constant byte address 0x4 - core index']
  #allocation1 [shape = 'u32[72,128]{1,0:T(1,128)}', space=vmem, size = 0x9000, scoped, tag = 'internal scratch']
  #allocation2 [shape = 'f32[2,18,128]{2,1,0:T(8,128)}', space=vmem, size = 0x6000, scoped, tag = 'scratch operand']
  #allocation3 [shape = 'f32[2,18,256]{2,1,0:T(8,128)}', space=vmem, size = 0xc000, scoped, tag = 'scratch operand']
  %s0 = inlined_call_operand.vmem [shape: f32[2,16,128], index: 0, kind: input, shape index: {}]
  %s1 = inlined_call_operand.hbm [shape: bf16[3,128,256], index: 1, kind: input, shape index: {}]
  %s2 = inlined_call_operand.vmem [shape: f32[1,256], index: 2, kind: input, shape index: {}]
  %s3 = inlined_call_operand.vmem [shape: f32[2,256], index: 3, kind: input, shape index: {}]
  %s4 = inlined_call_operand.hbm [shape: bf16[3,256,256], index: 4, kind: input, shape index: {}]
  %s5 = inlined_call_operand.vmem [shape: f32[1,256], index: 5, kind: input, shape index: {}]
  %s6 = inlined_call_operand.hbm [shape: bf16[128,256], index: 6, kind: input, shape index: {}]
  %s7 = inlined_call_operand.vmem [shape: f32[1,256], index: 7, kind: input, shape index: {}]
  %s8 = inlined_call_operand.vmem [shape: f32[2,16,256], index: 8, kind: output, shape index: {}]
  %s9 = sld [smem:[#allocation0]]
  $region54: #{_lambda_.14} parent=0
    _
  %s11 = ssub.s32 1, %s9
  %s12 = scalar_select 0, %s11, %s9
  $region1: #{_lambda_.14} parent=0
    #allocation4 [shape = 'u8[196608]{0}', space=vmem, size = 0x30000, scoped, tag = 'input window, operand 1, single buffered']
    #allocation5 [shape = 's32[1]{0}', space=sflag, size = 0x4, scoped, tag = 'scoped memory for _lambda_.14']
    #allocation6 [shape = 'u8[393216]{0}', space=vmem, size = 0x60000, scoped, tag = 'input window, operand 4, single buffered']
    #allocation7 [shape = 's32[1]{0}', space=sflag, size = 0x4, scoped, tag = 'scoped memory for _lambda_.14']
    #allocation8 [shape = 'u8[65536]{0}', space=vmem, size = 0x10000, scoped, tag = 'input window, operand 6, single buffered']
    %13 = vsyncpa [#allocation5], 0
    %14 = vsyncpa [#allocation7], 0
    // Predicated region
    $region2: #{_lambda_.14} parent=1 // pred_check
      _
    $region3: #{_lambda_.14} parent=1 // pred_check_branch
      %16 = sbr.rel (0) target = $region5
    $region4: #{_lambda_.14} parent=1 // pred_region
      _
    $region5: #{_lambda_.14} parent=1 // pred_fallthru
      _
    // Predicated region
    $region6: #{_lambda_.14} parent=1 // pred_check
      _
    $region7: #{_lambda_.14} parent=1 // pred_check_branch
      %18 = sbr.rel (0) target = $region9
    $region8: #{_lambda_.14} parent=1 // pred_region
      %20 = vsyncadd [#allocation5], 0
      %s21 = sshll.u32 %s1, 4
      %s22 = int_to_ptr.hbm [resolvable:$true] %s21
      %s23 = sshll.u32 [#allocation4], 4
      %s24 = int_to_ptr.vmem [resolvable:$true] %s23
      %29 = dma.hbm_to_vmem [thread:$0]  %s22, 6144, %s24, [#allocation5], 128, 128, 8
    $region9: #{_lambda_.14} parent=1 // pred_fallthru
      _
    // Predicated region
    $region10: #{_lambda_.14} parent=1 // pred_check
      _
    $region11: #{_lambda_.14} parent=1 // pred_check_branch
      %31 = sbr.rel (0) target = $region13
    $region12: #{_lambda_.14} parent=1 // pred_region
      _
    $region13: #{_lambda_.14} parent=1 // pred_fallthru
      _
    // Predicated region
    $region14: #{_lambda_.14} parent=1 // pred_check
      _
    $region15: #{_lambda_.14} parent=1 // pred_check_branch
      %33 = sbr.rel (0) target = $region17
    $region16: #{_lambda_.14} parent=1 // pred_region
      _
    $region17: #{_lambda_.14} parent=1 // pred_fallthru
      _
    // Predicated region
    $region18: #{_lambda_.14} parent=1 // pred_check
      _
    $region19: #{_lambda_.14} parent=1 // pred_check_branch
      %35 = sbr.rel (0) target = $region21
    $region20: #{_lambda_.14} parent=1 // pred_region
      %37 = vsyncadd [#allocation7], 0
      %s38 = sshll.u32 %s4, 4
      %s39 = int_to_ptr.hbm [resolvable:$true] %s38
      %s40 = sshll.u32 [#allocation6], 4
      %s41 = int_to_ptr.vmem [resolvable:$true] %s40
      %46 = dma.hbm_to_vmem [thread:$0]  %s39, 12288, %s41, [#allocation7], 128, 128, 8
    $region21: #{_lambda_.14} parent=1 // pred_fallthru
      _
    // Predicated region
    $region22: #{_lambda_.14} parent=1 // pred_check
      _
    $region23: #{_lambda_.14} parent=1 // pred_check_branch
      %48 = sbr.rel (0) target = $region25
    $region24: #{_lambda_.14} parent=1 // pred_region
      _
    $region25: #{_lambda_.14} parent=1 // pred_fallthru
      _
    // Predicated region
    $region26: #{_lambda_.14} parent=1 // pred_check
      _
    $region27: #{_lambda_.14} parent=1 // pred_check_branch
      %50 = sbr.rel (0) target = $region29
    $region28: #{_lambda_.14} parent=1 // pred_region
      %52 = vsyncadd [#allocation7], 0
      %s53 = sshll.u32 %s6, 4
      %s54 = int_to_ptr.hbm [resolvable:$true] %s53
      %s55 = sshll.u32 [#allocation8], 4
      %s56 = int_to_ptr.vmem [resolvable:$true] %s55
      %61 = dma.hbm_to_vmem [thread:$0]  %s54, 2048, %s56, [#allocation7], 128, 128, 8
    $region29: #{_lambda_.14} parent=1 // pred_fallthru
      _
    // Predicated region
    $region30: #{_lambda_.14} parent=1 // pred_check
      _
    $region31: #{_lambda_.14} parent=1 // pred_check_branch
      %63 = sbr.rel (0) target = $region33
    $region32: #{_lambda_.14} parent=1 // pred_region
      _
    $region33: #{_lambda_.14} parent=1 // pred_fallthru
      _
    // Predicated region
    $region34: #{_lambda_.14} parent=1 // pred_check
      _
    $region35: #{_lambda_.14} parent=1 // pred_check_branch
      %65 = sbr.rel (0) target = $region37
    $region36: #{_lambda_.14} parent=1 // pred_region
      %67 = dma.done [#allocation5], 6144
    $region37: #{_lambda_.14} parent=1 // pred_fallthru
      _
    // Predicated region
    $region38: #{_lambda_.14} parent=1 // pred_check
      _
    $region39: #{_lambda_.14} parent=1 // pred_check_branch
      %69 = sbr.rel (0) target = $region41
    $region40: #{_lambda_.14} parent=1 // pred_region
      %71 = dma.done [#allocation7], 12288
    $region41: #{_lambda_.14} parent=1 // pred_fallthru
      _
    // Predicated region
    $region42: #{_lambda_.14} parent=1 // pred_check
      _
    $region43: #{_lambda_.14} parent=1 // pred_check_branch
      %73 = sbr.rel (0) target = $region45
    $region44: #{_lambda_.14} parent=1 // pred_region
      %75 = dma.done [#allocation7], 2048
    $region45: #{_lambda_.14} parent=1 // pred_fallthru
      _
    %76 = vst [vmem:[#allocation2] sm:$0xff] 0.0
    %77 = vst [vmem:[#allocation2 + $0x8] sm:$0xff] 0.0
    %78 = vst [vmem:[#allocation2 + $0x10] sm:$0x3] 0.0
    %79 = vst [vmem:[#allocation2 + $0x18] sm:$0xff] 0.0
    %80 = vst [vmem:[#allocation2 + $0x20] sm:$0xff] 0.0
    %81 = vst [vmem:[#allocation2 + $0x28] sm:$0x3] 0.0
    %v82 = vld [vmem:[%s0] sm:$0xff]
    %v83 = vld [vmem:[%s0 + $0x8] sm:$0xff]
    %v84 = vld [vmem:[%s0 + $0x10] sm:$0xff]
    %v85 = vld [vmem:[%s0 + $0x18] sm:$0xff]
    %86 = vst [vmem:[#allocation2 + $0x1] sm:$0xff] %v82
    %87 = vst [vmem:[#allocation2 + $0x9] sm:$0xff] %v83
    %88 = vst [vmem:[#allocation2 + $0x19] sm:$0xff] %v84
    %89 = vst [vmem:[#allocation2 + $0x21] sm:$0xff] %v85
    %v90 = vld [vmem:[#allocation2] sm:$0xff]
    %v91 = vld [vmem:[#allocation2 + $0x8] sm:$0xff]
    %v92 = vld [vmem:[#allocation2 + $0x18] sm:$0xff]
    %v93 = vld [vmem:[#allocation2 + $0x20] sm:$0xff]
    %v94 = vpack.c.bf16 %v91, %v90
    %v95 = vpack.c.bf16 %v93, %v92
    %v96 = vld [vmem:[#allocation4] sm:$0xff]
    %v97 = vld [vmem:[#allocation4 + $0x8] sm:$0xff]
    %v98 = vld [vmem:[#allocation4 + $0x10] sm:$0xff]
    %v99 = vld [vmem:[#allocation4 + $0x18] sm:$0xff]
    %v100 = vld [vmem:[#allocation4 + $0x20] sm:$0xff]
    %v101 = vld [vmem:[#allocation4 + $0x28] sm:$0xff]
    %v102 = vld [vmem:[#allocation4 + $0x30] sm:$0xff]
    %v103 = vld [vmem:[#allocation4 + $0x38] sm:$0xff]
    %v104 = vld [vmem:[#allocation4 + $0x40] sm:$0xff]
    %v105 = vld [vmem:[#allocation4 + $0x48] sm:$0xff]
    %v106 = vld [vmem:[#allocation4 + $0x50] sm:$0xff]
    %v107 = vld [vmem:[#allocation4 + $0x58] sm:$0xff]
    %v108 = vld [vmem:[#allocation4 + $0x60] sm:$0xff]
    %v109 = vld [vmem:[#allocation4 + $0x68] sm:$0xff]
    %v110 = vld [vmem:[#allocation4 + $0x70] sm:$0xff]
    %v111 = vld [vmem:[#allocation4 + $0x78] sm:$0xff]
    %v112 = vld [vmem:[#allocation2 + $0x1] sm:$0xff]
    %v113 = vld [vmem:[#allocation2 + $0x9] sm:$0xff]
    %v114 = vld [vmem:[#allocation2 + $0x19] sm:$0xff]
    %v115 = vld [vmem:[#allocation2 + $0x21] sm:$0xff]
    %v116 = vpack.c.bf16 %v113, %v112
    %v117 = vpack.c.bf16 %v115, %v114
    %s118 = scalar_lea.vmem [#allocation4], 128
    %v119 = vld [vmem:[%s118] sm:$0xff]
    %v120 = vld [vmem:[%s118 + $0x8] sm:$0xff]
    %v121 = vld [vmem:[%s118 + $0x10] sm:$0xff]
    %v122 = vld [vmem:[%s118 + $0x18] sm:$0xff]
    %v123 = vld [vmem:[%s118 + $0x20] sm:$0xff]
    %v124 = vld [vmem:[%s118 + $0x28] sm:$0xff]
    %v125 = vld [vmem:[%s118 + $0x30] sm:$0xff]
    %v126 = vld [vmem:[%s118 + $0x38] sm:$0xff]
    %v127 = vld [vmem:[%s118 + $0x40] sm:$0xff]
    %v128 = vld [vmem:[%s118 + $0x48] sm:$0xff]
    %v129 = vld [vmem:[%s118 + $0x50] sm:$0xff]
    %v130 = vld [vmem:[%s118 + $0x58] sm:$0xff]
    %v131 = vld [vmem:[%s118 + $0x60] sm:$0xff]
    %v132 = vld [vmem:[%s118 + $0x68] sm:$0xff]
    %v133 = vld [vmem:[%s118 + $0x70] sm:$0xff]
    %v134 = vld [vmem:[%s118 + $0x78] sm:$0xff]
    %v151 = vunpack.c.l.b16 %v119
    %v152 = vunpack.c.h.b16 %v119
    %v153 = vunpack.c.l.b16 %v120
    %v154 = vunpack.c.h.b16 %v120
    %v155 = vunpack.c.l.b16 %v121
    %v156 = vunpack.c.h.b16 %v121
    %v157 = vunpack.c.l.b16 %v122
    %v158 = vunpack.c.h.b16 %v122
    %v159 = vunpack.c.l.b16 %v123
    %v160 = vunpack.c.h.b16 %v123
    %v161 = vunpack.c.l.b16 %v124
    %v162 = vunpack.c.h.b16 %v124
    %v163 = vunpack.c.l.b16 %v125
    %v164 = vunpack.c.h.b16 %v125
    %v165 = vunpack.c.l.b16 %v126
    %v166 = vunpack.c.h.b16 %v126
    %v167 = vunpack.c.l.b16 %v127
    %v168 = vunpack.c.h.b16 %v127
    %v169 = vunpack.c.l.b16 %v128
    %v170 = vunpack.c.h.b16 %v128
    %v171 = vunpack.c.l.b16 %v129
    %v172 = vunpack.c.h.b16 %v129
    %v173 = vunpack.c.l.b16 %v130
    %v174 = vunpack.c.h.b16 %v130
    %v175 = vunpack.c.l.b16 %v131
    %v176 = vunpack.c.h.b16 %v131
    %v177 = vunpack.c.l.b16 %v132
    %v178 = vunpack.c.h.b16 %v132
    %v179 = vunpack.c.l.b16 %v133
    %v180 = vunpack.c.h.b16 %v133
    %v181 = vunpack.c.l.b16 %v134
    %v182 = vunpack.c.h.b16 %v134
    %v183 = vpack.c.b16 %v153, %v151
    %v184 = vpack.c.b16 %v154, %v152
    %v185 = vpack.c.b16 %v157, %v155
    %v186 = vpack.c.b16 %v158, %v156
    %v187 = vpack.c.b16 %v161, %v159
    %v188 = vpack.c.b16 %v162, %v160
    %v189 = vpack.c.b16 %v165, %v163
    %v190 = vpack.c.b16 %v166, %v164
    %v191 = vpack.c.b16 %v169, %v167
    %v192 = vpack.c.b16 %v170, %v168
    %v193 = vpack.c.b16 %v173, %v171
    %v194 = vpack.c.b16 %v174, %v172
    %v195 = vpack.c.b16 %v177, %v175
    %v196 = vpack.c.b16 %v178, %v176
    %v197 = vpack.c.b16 %v181, %v179
    %v198 = vpack.c.b16 %v182, %v180
    %215 = vmatpush.bf16.msra.mxu0 %v197
    %216 = vmatpush.bf16.msra.mxu0 %v195
    %217 = vmatpush.bf16.msra.mxu0 %v193
    %218 = vmatpush.bf16.msra.mxu0 %v191
    %219 = vmatpush.bf16.msra.mxu0 %v189
    %220 = vmatpush.bf16.msra.mxu0 %v187
    %221 = vmatpush.bf16.msra.mxu0 %v185
    %222 = vmatpush.bf16.msra.mxu0 %v183
    %223 = vmatmul.bf16.gmra.mxu0 %v116
    %v224 = vpop.f32.mrf.mxu0
    %v225 = vadd.f32 0.0, %v224
    %v226 = vpop.f32.mrf.mxu0
    %v227 = vadd.f32 0.0, %v226
    %228 = vmatmul.bf16.gmra.mxu0 %v117
    %v229 = vpop.f32.mrf.mxu0
    %v230 = vadd.f32 0.0, %v229
    %v231 = vpop.f32.mrf.mxu0
    %v232 = vadd.f32 0.0, %v231
    %233 = vdwg.mxu0
    %234 = vmatpush.bf16.msra.mxu0 %v198
    %235 = vmatpush.bf16.msra.mxu0 %v196
    %236 = vmatpush.bf16.msra.mxu0 %v194
    %237 = vmatpush.bf16.msra.mxu0 %v192
    %238 = vmatpush.bf16.msra.mxu0 %v190
    %239 = vmatpush.bf16.msra.mxu0 %v188
    %240 = vmatpush.bf16.msra.mxu0 %v186
    %241 = vmatpush.bf16.msra.mxu0 %v184
    %242 = vmatmul.bf16.gmra.mxu0 %v116
    %v243 = vpop.f32.mrf.mxu0
    %v244 = vadd.f32 0.0, %v243
    %v245 = vpop.f32.mrf.mxu0
    %v246 = vadd.f32 0.0, %v245
    %247 = vmatmul.bf16.gmra.mxu0 %v117
    %v248 = vpop.f32.mrf.mxu0
    %v249 = vadd.f32 0.0, %v248
    %v250 = vpop.f32.mrf.mxu0
    %v251 = vadd.f32 0.0, %v250
    %252 = vdwg.mxu0
    %v269 = vunpack.c.l.b16 %v96
    %v270 = vunpack.c.h.b16 %v96
    %v271 = vunpack.c.l.b16 %v97
    %v272 = vunpack.c.h.b16 %v97
    %v273 = vunpack.c.l.b16 %v98
    %v274 = vunpack.c.h.b16 %v98
    %v275 = vunpack.c.l.b16 %v99
    %v276 = vunpack.c.h.b16 %v99
    %v277 = vunpack.c.l.b16 %v100
    %v278 = vunpack.c.h.b16 %v100
    %v279 = vunpack.c.l.b16 %v101
    %v280 = vunpack.c.h.b16 %v101
    %v281 = vunpack.c.l.b16 %v102
    %v282 = vunpack.c.h.b16 %v102
    %v283 = vunpack.c.l.b16 %v103
    %v284 = vunpack.c.h.b16 %v103
    %v285 = vunpack.c.l.b16 %v104
    %v286 = vunpack.c.h.b16 %v104
    %v287 = vunpack.c.l.b16 %v105
    %v288 = vunpack.c.h.b16 %v105
    %v289 = vunpack.c.l.b16 %v106
    %v290 = vunpack.c.h.b16 %v106
    %v291 = vunpack.c.l.b16 %v107
    %v292 = vunpack.c.h.b16 %v107
    %v293 = vunpack.c.l.b16 %v108
    %v294 = vunpack.c.h.b16 %v108
    %v295 = vunpack.c.l.b16 %v109
    %v296 = vunpack.c.h.b16 %v109
    %v297 = vunpack.c.l.b16 %v110
    %v298 = vunpack.c.h.b16 %v110
    %v299 = vunpack.c.l.b16 %v111
    %v300 = vunpack.c.h.b16 %v111
    %v301 = vpack.c.b16 %v271, %v269
    %v302 = vpack.c.b16 %v272, %v270
    %v303 = vpack.c.b16 %v275, %v273
    %v304 = vpack.c.b16 %v276, %v274
    %v305 = vpack.c.b16 %v279, %v277
    %v306 = vpack.c.b16 %v280, %v278
    %v307 = vpack.c.b16 %v283, %v281
    %v308 = vpack.c.b16 %v284, %v282
    %v309 = vpack.c.b16 %v287, %v285
    %v310 = vpack.c.b16 %v288, %v286
    %v311 = vpack.c.b16 %v291, %v289
    %v312 = vpack.c.b16 %v292, %v290
    %v313 = vpack.c.b16 %v295, %v293
    %v314 = vpack.c.b16 %v296, %v294
    %v315 = vpack.c.b16 %v299, %v297
    %v316 = vpack.c.b16 %v300, %v298
    %333 = vmatpush.bf16.msra.mxu0 %v315
    %334 = vmatpush.bf16.msra.mxu0 %v313
    %335 = vmatpush.bf16.msra.mxu0 %v311
    %336 = vmatpush.bf16.msra.mxu0 %v309
    %337 = vmatpush.bf16.msra.mxu0 %v307
    %338 = vmatpush.bf16.msra.mxu0 %v305
    %339 = vmatpush.bf16.msra.mxu0 %v303
    %340 = vmatpush.bf16.msra.mxu0 %v301
    %341 = vmatmul.bf16.gmra.mxu0 %v94
    %v342 = vpop.f32.mrf.mxu0
    %v343 = vadd.f32 %v225, %v342
    %v344 = vpop.f32.mrf.mxu0
    %v345 = vadd.f32 %v227, %v344
    %346 = vmatmul.bf16.gmra.mxu0 %v95
    %v347 = vpop.f32.mrf.mxu0
    %v348 = vadd.f32 %v230, %v347
    %v349 = vpop.f32.mrf.mxu0
    %v350 = vadd.f32 %v232, %v349
    %351 = vdwg.mxu0
    %352 = vmatpush.bf16.msra.mxu0 %v316
    %353 = vmatpush.bf16.msra.mxu0 %v314
    %354 = vmatpush.bf16.msra.mxu0 %v312
    %355 = vmatpush.bf16.msra.mxu0 %v310
    %356 = vmatpush.bf16.msra.mxu0 %v308
    %357 = vmatpush.bf16.msra.mxu0 %v306
    %358 = vmatpush.bf16.msra.mxu0 %v304
    %359 = vmatpush.bf16.msra.mxu0 %v302
    %360 = vmatmul.bf16.gmra.mxu0 %v94
    %v361 = vpop.f32.mrf.mxu0
    %v362 = vadd.f32 %v244, %v361
    %v363 = vpop.f32.mrf.mxu0
    %v364 = vadd.f32 %v246, %v363
    %365 = vmatmul.bf16.gmra.mxu0 %v95
    %v366 = vpop.f32.mrf.mxu0
    %v367 = vadd.f32 %v249, %v366
    %v368 = vpop.f32.mrf.mxu0
    %v369 = vadd.f32 %v251, %v368
    %370 = vdwg.mxu0
    %v371 = vld [vmem:[#allocation2 + $0x2] sm:$0xff]
    %v372 = vld [vmem:[#allocation2 + $0xa] sm:$0xff]
    %v373 = vld [vmem:[#allocation2 + $0x1a] sm:$0xff]
    %v374 = vld [vmem:[#allocation2 + $0x22] sm:$0xff]
    %v375 = vpack.c.bf16 %v372, %v371
    %v376 = vpack.c.bf16 %v374, %v373
    %s377 = scalar_lea.vmem [#allocation4], 256
    %v378 = vld [vmem:[%s377] sm:$0xff]
    %v379 = vld [vmem:[%s377 + $0x8] sm:$0xff]
    %v380 = vld [vmem:[%s377 + $0x10] sm:$0xff]
    %v381 = vld [vmem:[%s377 + $0x18] sm:$0xff]
    %v382 = vld [vmem:[%s377 + $0x20] sm:$0xff]
    %v383 = vld [vmem:[%s377 + $0x28] sm:$0xff]
    %v384 = vld [vmem:[%s377 + $0x30] sm:$0xff]
    %v385 = vld [vmem:[%s377 + $0x38] sm:$0xff]
    %v386 = vld [vmem:[%s377 + $0x40] sm:$0xff]
    %v387 = vld [vmem:[%s377 + $0x48] sm:$0xff]
    %v388 = vld [vmem:[%s377 + $0x50] sm:$0xff]
    %v389 = vld [vmem:[%s377 + $0x58] sm:$0xff]
    %v390 = vld [vmem:[%s377 + $0x60] sm:$0xff]
    %v391 = vld [vmem:[%s377 + $0x68] sm:$0xff]
    %v392 = vld [vmem:[%s377 + $0x70] sm:$0xff]
    %v393 = vld [vmem:[%s377 + $0x78] sm:$0xff]
    %v410 = vunpack.c.l.b16 %v378
    %v411 = vunpack.c.h.b16 %v378
    %v412 = vunpack.c.l.b16 %v379
    %v413 = vunpack.c.h.b16 %v379
    %v414 = vunpack.c.l.b16 %v380
    %v415 = vunpack.c.h.b16 %v380
    %v416 = vunpack.c.l.b16 %v381
    %v417 = vunpack.c.h.b16 %v381
    %v418 = vunpack.c.l.b16 %v382
    %v419 = vunpack.c.h.b16 %v382
    %v420 = vunpack.c.l.b16 %v383
    %v421 = vunpack.c.h.b16 %v383
    %v422 = vunpack.c.l.b16 %v384
    %v423 = vunpack.c.h.b16 %v384
    %v424 = vunpack.c.l.b16 %v385
    %v425 = vunpack.c.h.b16 %v385
    %v426 = vunpack.c.l.b16 %v386
    %v427 = vunpack.c.h.b16 %v386
    %v428 = vunpack.c.l.b16 %v387
    %v429 = vunpack.c.h.b16 %v387
    %v430 = vunpack.c.l.b16 %v388
    %v431 = vunpack.c.h.b16 %v388
    %v432 = vunpack.c.l.b16 %v389
    %v433 = vunpack.c.h.b16 %v389
    %v434 = vunpack.c.l.b16 %v390
    %v435 = vunpack.c.h.b16 %v390
    %v436 = vunpack.c.l.b16 %v391
    %v437 = vunpack.c.h.b16 %v391
    %v438 = vunpack.c.l.b16 %v392
    %v439 = vunpack.c.h.b16 %v392
    %v440 = vunpack.c.l.b16 %v393
    %v441 = vunpack.c.h.b16 %v393
    %v442 = vpack.c.b16 %v412, %v410
    %v443 = vpack.c.b16 %v413, %v411
    %v444 = vpack.c.b16 %v416, %v414
    %v445 = vpack.c.b16 %v417, %v415
    %v446 = vpack.c.b16 %v420, %v418
    %v447 = vpack.c.b16 %v421, %v419
    %v448 = vpack.c.b16 %v424, %v422
    %v449 = vpack.c.b16 %v425, %v423
    %v450 = vpack.c.b16 %v428, %v426
    %v451 = vpack.c.b16 %v429, %v427
    %v452 = vpack.c.b16 %v432, %v430
    %v453 = vpack.c.b16 %v433, %v431
    %v454 = vpack.c.b16 %v436, %v434
    %v455 = vpack.c.b16 %v437, %v435
    %v456 = vpack.c.b16 %v440, %v438
    %v457 = vpack.c.b16 %v441, %v439
    %474 = vmatpush.bf16.msra.mxu0 %v456
    %475 = vmatpush.bf16.msra.mxu0 %v454
    %476 = vmatpush.bf16.msra.mxu0 %v452
    %477 = vmatpush.bf16.msra.mxu0 %v450
    %478 = vmatpush.bf16.msra.mxu0 %v448
    %479 = vmatpush.bf16.msra.mxu0 %v446
    %480 = vmatpush.bf16.msra.mxu0 %v444
    %481 = vmatpush.bf16.msra.mxu0 %v442
    %482 = vmatmul.bf16.gmra.mxu0 %v375
    %v483 = vpop.f32.mrf.mxu0
    %v484 = vadd.f32 0.0, %v483
    %v485 = vpop.f32.mrf.mxu0
    %v486 = vadd.f32 0.0, %v485
    %487 = vmatmul.bf16.gmra.mxu0 %v376
    %v488 = vpop.f32.mrf.mxu0
    %v489 = vadd.f32 0.0, %v488
    %v490 = vpop.f32.mrf.mxu0
    %v491 = vadd.f32 0.0, %v490
    %492 = vdwg.mxu0
    %493 = vmatpush.bf16.msra.mxu0 %v457
    %494 = vmatpush.bf16.msra.mxu0 %v455
    %495 = vmatpush.bf16.msra.mxu0 %v453
    %496 = vmatpush.bf16.msra.mxu0 %v451
    %497 = vmatpush.bf16.msra.mxu0 %v449
    %498 = vmatpush.bf16.msra.mxu0 %v447
    %499 = vmatpush.bf16.msra.mxu0 %v445
    %500 = vmatpush.bf16.msra.mxu0 %v443
    %501 = vmatmul.bf16.gmra.mxu0 %v375
    %v502 = vpop.f32.mrf.mxu0
    %v503 = vadd.f32 0.0, %v502
    %v504 = vpop.f32.mrf.mxu0
    %v505 = vadd.f32 0.0, %v504
    %506 = vmatmul.bf16.gmra.mxu0 %v376
    %v507 = vpop.f32.mrf.mxu0
    %v508 = vadd.f32 0.0, %v507
    %v509 = vpop.f32.mrf.mxu0
    %v510 = vadd.f32 0.0, %v509
    %511 = vdwg.mxu0
    %v512 = vadd.f32 %v343, %v484
    %v513 = vadd.f32 %v362, %v503
    %v514 = vadd.f32 %v345, %v486
    %v515 = vadd.f32 %v364, %v505
    %v516 = vadd.f32 %v348, %v489
    %v517 = vadd.f32 %v367, %v508
    %v518 = vadd.f32 %v350, %v491
    %v519 = vadd.f32 %v369, %v510
    %v520 = vld [vmem:[%s2] sm:$0x3]
    %v522 = vperm.slane %v520, 0
    %v523 = vperm.slane %v520, 1
    %v526 = vadd.f32 %v512, %v522
    %v527 = vadd.f32 %v513, %v523
    %v528 = vadd.f32 %v514, %v522
    %v529 = vadd.f32 %v515, %v523
    %v530 = vadd.f32 %v516, %v522
    %v531 = vadd.f32 %v517, %v523
    %v532 = vadd.f32 %v518, %v522
    %v533 = vadd.f32 %v519, %v523
    %v534 = vmul.f32 %v526, 0.5
    %v535 = vmul.f32 %v527, 0.5
    %v536 = vmul.f32 %v528, 0.5
    %v537 = vmul.f32 %v529, 0.5
    %v538 = vmul.f32 %v530, 0.5
    %v539 = vmul.f32 %v531, 0.5
    %v540 = vmul.f32 %v532, 0.5
    %v541 = vmul.f32 %v533, 0.5
    %v542 = vmul.f32 %v526, 0.044715
    %v543 = vmul.f32 %v527, 0.044715
    %v544 = vmul.f32 %v528, 0.044715
    %v545 = vmul.f32 %v529, 0.044715
    %v546 = vmul.f32 %v530, 0.044715
    %v547 = vmul.f32 %v531, 0.044715
    %v548 = vmul.f32 %v532, 0.044715
    %v549 = vmul.f32 %v533, 0.044715
    %v550 = vmul.f32 %v542, %v526
    %v551 = vmul.f32 %v543, %v527
    %v552 = vmul.f32 %v544, %v528
    %v553 = vmul.f32 %v545, %v529
    %v554 = vmul.f32 %v546, %v530
    %v555 = vmul.f32 %v547, %v531
    %v556 = vmul.f32 %v548, %v532
    %v557 = vmul.f32 %v549, %v533
    %v558 = vmul.f32 %v550, %v526
    %v559 = vmul.f32 %v551, %v527
    %v560 = vmul.f32 %v552, %v528
    %v561 = vmul.f32 %v553, %v529
    %v562 = vmul.f32 %v554, %v530
    %v563 = vmul.f32 %v555, %v531
    %v564 = vmul.f32 %v556, %v532
    %v565 = vmul.f32 %v557, %v533
    %v566 = vadd.f32 %v526, %v558
    %v567 = vadd.f32 %v527, %v559
    %v568 = vadd.f32 %v528, %v560
    %v569 = vadd.f32 %v529, %v561
    %v570 = vadd.f32 %v530, %v562
    %v571 = vadd.f32 %v531, %v563
    %v572 = vadd.f32 %v532, %v564
    %v573 = vadd.f32 %v533, %v565
    %v574 = vmul.f32 %v566, 0.7978846
    %v575 = vmul.f32 %v567, 0.7978846
    %v576 = vmul.f32 %v568, 0.7978846
    %v577 = vmul.f32 %v569, 0.7978846
    %v578 = vmul.f32 %v570, 0.7978846
    %v579 = vmul.f32 %v571, 0.7978846
    %v580 = vmul.f32 %v572, 0.7978846
    %v581 = vmul.f32 %v573, 0.7978846
    %v582 = vtanh.pop %v574
    %v583 = vtanh.pop %v575
    %v584 = vtanh.pop %v576
    %v585 = vtanh.pop %v577
    %v586 = vtanh.pop %v578
    %v587 = vtanh.pop %v579
    %v588 = vtanh.pop %v580
    %v589 = vtanh.pop %v581
    %v590 = vadd.f32 %v582, 1.0
    %v591 = vadd.f32 %v583, 1.0
    %v592 = vadd.f32 %v584, 1.0
    %v593 = vadd.f32 %v585, 1.0
    %v594 = vadd.f32 %v586, 1.0
    %v595 = vadd.f32 %v587, 1.0
    %v596 = vadd.f32 %v588, 1.0
    %v597 = vadd.f32 %v589, 1.0
    %v598 = vmul.f32 %v534, %v590
    %v599 = vmul.f32 %v535, %v591
    %v600 = vmul.f32 %v536, %v592
    %v601 = vmul.f32 %v537, %v593
    %v602 = vmul.f32 %v538, %v594
    %v603 = vmul.f32 %v539, %v595
    %v604 = vmul.f32 %v540, %v596
    %v605 = vmul.f32 %v541, %v597
    %v606 = vld [vmem:[%s3] sm:$0xf]
    %v608 = vrot.slane %v606, 1
    %v609 = vrot.slane %v606, 2
    %v610 = vrot.slane %v606, 3
    %vm611 = vcmask 1040384
    %v612 = vsel %vm611, %v606, %v608
    %vm613 = vcmask 1042434
    %v614 = vsel %vm613, %v609, %v610
    %vm615 = vcmask 1041408
    %v616 = vsel %vm615, %v612, %v614
    %vm617 = vcmask 1041409
    %v618 = vsel %vm617, %v606, %v608
    %vm619 = vcmask 1043459
    %v620 = vsel %vm619, %v609, %v610
    %vm621 = vcmask 1042433
    %v622 = vsel %vm621, %v618, %v620
    %v623 = vrot.slane %v622, 1
    %v624 = vperm.slane %v616, 0
    %v625 = vperm.slane %v616, 1
    %v626 = vperm.slane %v623, 0
    %v627 = vperm.slane %v623, 1
    %v632 = vadd.f32 %v598, %v624
    %v633 = vadd.f32 %v599, %v625
    %v634 = vadd.f32 %v600, %v624
    %v635 = vadd.f32 %v601, %v625
    %v636 = vadd.f32 %v602, %v626
    %v637 = vadd.f32 %v603, %v627
    %v638 = vadd.f32 %v604, %v626
    %v639 = vadd.f32 %v605, %v627
    %640 = vst [vmem:[#allocation3] sm:$0xff] 0.0
    %641 = vst [vmem:[#allocation3 + $0x8] sm:$0xff] 0.0
    %642 = vst [vmem:[#allocation3 + $0x10] sm:$0xff] 0.0
    %643 = vst [vmem:[#allocation3 + $0x18] sm:$0xff] 0.0
    %644 = vst [vmem:[#allocation3 + $0x20] sm:$0x3] 0.0
    %645 = vst [vmem:[#allocation3 + $0x28] sm:$0x3] 0.0
    %646 = vst [vmem:[#allocation3 + $0x30] sm:$0xff] 0.0
    %647 = vst [vmem:[#allocation3 + $0x38] sm:$0xff] 0.0
    %648 = vst [vmem:[#allocation3 + $0x40] sm:$0xff] 0.0
    %649 = vst [vmem:[#allocation3 + $0x48] sm:$0xff] 0.0
    %650 = vst [vmem:[#allocation3 + $0x50] sm:$0x3] 0.0
    %651 = vst [vmem:[#allocation3 + $0x58] sm:$0x3] 0.0
    %v660 = vrot.slane %v632, 7
    %v661 = vrot.slane %v633, 7
    %v662 = vrot.slane %v634, 7
    %v663 = vsel %vm611, %v660, %v662
    %v664 = vrot.slane %v635, 7
    %v665 = vsel %vm611, %v661, %v664
    %v666 = vrot.slane %v636, 7
    %v667 = vrot.slane %v637, 7
    %v668 = vrot.slane %v638, 7
    %v669 = vsel %vm611, %v666, %v668
    %v670 = vrot.slane %v639, 7
    %v671 = vsel %vm611, %v667, %v670
    %684 = vst [vmem:[#allocation3] sm:$0xfe] %v660
    %685 = vst [vmem:[#allocation3 + $0x8] sm:$0xfe] %v661
    %686 = vst [vmem:[#allocation3 + $0x10] sm:$0xff] %v663
    %687 = vst [vmem:[#allocation3 + $0x18] sm:$0xff] %v665
    %688 = vst [vmem:[#allocation3 + $0x20] sm:$0x1] %v662
    %689 = vst [vmem:[#allocation3 + $0x28] sm:$0x1] %v664
    %690 = vst [vmem:[#allocation3 + $0x30] sm:$0xfe] %v666
    %691 = vst [vmem:[#allocation3 + $0x38] sm:$0xfe] %v667
    %692 = vst [vmem:[#allocation3 + $0x40] sm:$0xff] %v669
    %693 = vst [vmem:[#allocation3 + $0x48] sm:$0xff] %v671
    %694 = vst [vmem:[#allocation3 + $0x50] sm:$0x1] %v668
    %695 = vst [vmem:[#allocation3 + $0x58] sm:$0x1] %v670
    %v696 = vld [vmem:[#allocation3] sm:$0xff]
    %v697 = vld [vmem:[#allocation3 + $0x8] sm:$0xff]
    %v698 = vld [vmem:[#allocation3 + $0x10] sm:$0xff]
    %v699 = vld [vmem:[#allocation3 + $0x18] sm:$0xff]
    %v700 = vld [vmem:[#allocation3 + $0x30] sm:$0xff]
    %v701 = vld [vmem:[#allocation3 + $0x38] sm:$0xff]
    %v702 = vld [vmem:[#allocation3 + $0x40] sm:$0xff]
    %v703 = vld [vmem:[#allocation3 + $0x48] sm:$0xff]
    %v704 = vpack.c.bf16 %v698, %v696
    %v705 = vpack.c.bf16 %v699, %v697
    %v706 = vpack.c.bf16 %v702, %v700
    %v707 = vpack.c.bf16 %v703, %v701
    %v708 = vld [vmem:[#allocation6] sm:$0xff]
    %v709 = vld [vmem:[#allocation6 + $0x8] sm:$0xff]
    %v710 = vld [vmem:[#allocation6 + $0x10] sm:$0xff]
    %v711 = vld [vmem:[#allocation6 + $0x18] sm:$0xff]
    %v712 = vld [vmem:[#allocation6 + $0x20] sm:$0xff]
    %v713 = vld [vmem:[#allocation6 + $0x28] sm:$0xff]
    %v714 = vld [vmem:[#allocation6 + $0x30] sm:$0xff]
    %v715 = vld [vmem:[#allocation6 + $0x38] sm:$0xff]
    %v716 = vld [vmem:[#allocation6 + $0x40] sm:$0xff]
    %v717 = vld [vmem:[#allocation6 + $0x48] sm:$0xff]
    %v718 = vld [vmem:[#allocation6 + $0x50] sm:$0xff]
    %v719 = vld [vmem:[#allocation6 + $0x58] sm:$0xff]
    %v720 = vld [vmem:[#allocation6 + $0x60] sm:$0xff]
    %v721 = vld [vmem:[#allocation6 + $0x68] sm:$0xff]
    %v722 = vld [vmem:[#allocation6 + $0x70] sm:$0xff]
    %v723 = vld [vmem:[#allocation6 + $0x78] sm:$0xff]
    %v724 = vld [vmem:[#allocation6 + $0x80] sm:$0xff]
    %v725 = vld [vmem:[#allocation6 + $0x88] sm:$0xff]
    %v726 = vld [vmem:[#allocation6 + $0x90] sm:$0xff]
    %v727 = vld [vmem:[#allocation6 + $0x98] sm:$0xff]
    %v728 = vld [vmem:[#allocation6 + $0xa0] sm:$0xff]
    %v729 = vld [vmem:[#allocation6 + $0xa8] sm:$0xff]
    %v730 = vld [vmem:[#allocation6 + $0xb0] sm:$0xff]
    %v731 = vld [vmem:[#allocation6 + $0xb8] sm:$0xff]
    %v732 = vld [vmem:[#allocation6 + $0xc0] sm:$0xff]
    %v733 = vld [vmem:[#allocation6 + $0xc8] sm:$0xff]
    %v734 = vld [vmem:[#allocation6 + $0xd0] sm:$0xff]
    %v735 = vld [vmem:[#allocation6 + $0xd8] sm:$0xff]
    %v736 = vld [vmem:[#allocation6 + $0xe0] sm:$0xff]
    %v737 = vld [vmem:[#allocation6 + $0xe8] sm:$0xff]
    %v738 = vld [vmem:[#allocation6 + $0xf0] sm:$0xff]
    %v739 = vld [vmem:[#allocation6 + $0xf8] sm:$0xff]
    %v740 = vld [vmem:[#allocation3] sm:$0xfe]
    %v741 = vld [vmem:[#allocation3 + $0x8] sm:$0xfe]
    %v742 = vld [vmem:[#allocation3 + $0x20] sm:$0x1]
    %v743 = vld [vmem:[#allocation3 + $0x28] sm:$0x1]
    %v744 = vld [vmem:[#allocation3 + $0x30] sm:$0xfe]
    %v745 = vld [vmem:[#allocation3 + $0x38] sm:$0xfe]
    %v746 = vld [vmem:[#allocation3 + $0x50] sm:$0x1]
    %v747 = vld [vmem:[#allocation3 + $0x58] sm:$0x1]
    %vm760 = vcmask 1046528
    %v761 = vrot.slane %v740, 1
    %v762 = vrot.slane %v698, 1
    %v763 = vsel %vm760, %v761, %v762
    %v764 = vrot.slane %v741, 1
    %v765 = vrot.slane %v699, 1
    %v766 = vsel %vm760, %v764, %v765
    %v767 = vrot.slane %v742, 1
    %v768 = vsel %vm760, %v762, %v767
    %v769 = vrot.slane %v743, 1
    %v770 = vsel %vm760, %v765, %v769
    %v771 = vrot.slane %v744, 1
    %v772 = vrot.slane %v702, 1
    %v773 = vsel %vm760, %v771, %v772
    %v774 = vrot.slane %v745, 1
    %v775 = vrot.slane %v703, 1
    %v776 = vsel %vm760, %v774, %v775
    %v777 = vrot.slane %v746, 1
    %v778 = vsel %vm760, %v772, %v777
    %v779 = vrot.slane %v747, 1
    %v780 = vsel %vm760, %v775, %v779
    %v789 = vpack.c.bf16 %v768, %v763
    %v790 = vpack.c.bf16 %v770, %v766
    %v791 = vpack.c.bf16 %v778, %v773
    %v792 = vpack.c.bf16 %v780, %v776
    %s793 = scalar_lea.vmem [#allocation6], 256
    %v794 = vld [vmem:[%s793] sm:$0xff]
    %v795 = vld [vmem:[%s793 + $0x8] sm:$0xff]
    %v796 = vld [vmem:[%s793 + $0x10] sm:$0xff]
    %v797 = vld [vmem:[%s793 + $0x18] sm:$0xff]
    %v798 = vld [vmem:[%s793 + $0x20] sm:$0xff]
    %v799 = vld [vmem:[%s793 + $0x28] sm:$0xff]
    %v800 = vld [vmem:[%s793 + $0x30] sm:$0xff]
    %v801 = vld [vmem:[%s793 + $0x38] sm:$0xff]
    %v802 = vld [vmem:[%s793 + $0x40] sm:$0xff]
    %v803 = vld [vmem:[%s793 + $0x48] sm:$0xff]
    %v804 = vld [vmem:[%s793 + $0x50] sm:$0xff]
    %v805 = vld [vmem:[%s793 + $0x58] sm:$0xff]
    %v806 = vld [vmem:[%s793 + $0x60] sm:$0xff]
    %v807 = vld [vmem:[%s793 + $0x68] sm:$0xff]
    %v808 = vld [vmem:[%s793 + $0x70] sm:$0xff]
    %v809 = vld [vmem:[%s793 + $0x78] sm:$0xff]
    %v810 = vld [vmem:[%s793 + $0x80] sm:$0xff]
    %v811 = vld [vmem:[%s793 + $0x88] sm:$0xff]
    %v812 = vld [vmem:[%s793 + $0x90] sm:$0xff]
    %v813 = vld [vmem:[%s793 + $0x98] sm:$0xff]
    %v814 = vld [vmem:[%s793 + $0xa0] sm:$0xff]
    %v815 = vld [vmem:[%s793 + $0xa8] sm:$0xff]
    %v816 = vld [vmem:[%s793 + $0xb0] sm:$0xff]
    %v817 = vld [vmem:[%s793 + $0xb8] sm:$0xff]
    %v818 = vld [vmem:[%s793 + $0xc0] sm:$0xff]
    %v819 = vld [vmem:[%s793 + $0xc8] sm:$0xff]
    %v820 = vld [vmem:[%s793 + $0xd0] sm:$0xff]
    %v821 = vld [vmem:[%s793 + $0xd8] sm:$0xff]
    %v822 = vld [vmem:[%s793 + $0xe0] sm:$0xff]
    %v823 = vld [vmem:[%s793 + $0xe8] sm:$0xff]
    %v824 = vld [vmem:[%s793 + $0xf0] sm:$0xff]
    %v825 = vld [vmem:[%s793 + $0xf8] sm:$0xff]
    %v858 = vunpack.c.l.b16 %v794
    %v859 = vunpack.c.h.b16 %v794
    %v860 = vunpack.c.l.b16 %v795
    %v861 = vunpack.c.h.b16 %v795
    %v862 = vunpack.c.l.b16 %v796
    %v863 = vunpack.c.h.b16 %v796
    %v864 = vunpack.c.l.b16 %v797
    %v865 = vunpack.c.h.b16 %v797
    %v866 = vunpack.c.l.b16 %v798
    %v867 = vunpack.c.h.b16 %v798
    %v868 = vunpack.c.l.b16 %v799
    %v869 = vunpack.c.h.b16 %v799
    %v870 = vunpack.c.l.b16 %v800
    %v871 = vunpack.c.h.b16 %v800
    %v872 = vunpack.c.l.b16 %v801
    %v873 = vunpack.c.h.b16 %v801
    %v874 = vunpack.c.l.b16 %v802
    %v875 = vunpack.c.h.b16 %v802
    %v876 = vunpack.c.l.b16 %v803
    %v877 = vunpack.c.h.b16 %v803
    %v878 = vunpack.c.l.b16 %v804
    %v879 = vunpack.c.h.b16 %v804
    %v880 = vunpack.c.l.b16 %v805
    %v881 = vunpack.c.h.b16 %v805
    %v882 = vunpack.c.l.b16 %v806
    %v883 = vunpack.c.h.b16 %v806
    %v884 = vunpack.c.l.b16 %v807
    %v885 = vunpack.c.h.b16 %v807
    %v886 = vunpack.c.l.b16 %v808
    %v887 = vunpack.c.h.b16 %v808
    %v888 = vunpack.c.l.b16 %v809
    %v889 = vunpack.c.h.b16 %v809
    %v890 = vunpack.c.l.b16 %v810
    %v891 = vunpack.c.h.b16 %v810
    %v892 = vunpack.c.l.b16 %v811
    %v893 = vunpack.c.h.b16 %v811
    %v894 = vunpack.c.l.b16 %v812
    %v895 = vunpack.c.h.b16 %v812
    %v896 = vunpack.c.l.b16 %v813
    %v897 = vunpack.c.h.b16 %v813
    %v898 = vunpack.c.l.b16 %v814
    %v899 = vunpack.c.h.b16 %v814
    %v900 = vunpack.c.l.b16 %v815
    %v901 = vunpack.c.h.b16 %v815
    %v902 = vunpack.c.l.b16 %v816
    %v903 = vunpack.c.h.b16 %v816
    %v904 = vunpack.c.l.b16 %v817
    %v905 = vunpack.c.h.b16 %v817
    %v906 = vunpack.c.l.b16 %v818
    %v907 = vunpack.c.h.b16 %v818
    %v908 = vunpack.c.l.b16 %v819
    %v909 = vunpack.c.h.b16 %v819
    %v910 = vunpack.c.l.b16 %v820
    %v911 = vunpack.c.h.b16 %v820
    %v912 = vunpack.c.l.b16 %v821
    %v913 = vunpack.c.h.b16 %v821
    %v914 = vunpack.c.l.b16 %v822
    %v915 = vunpack.c.h.b16 %v822
    %v916 = vunpack.c.l.b16 %v823
    %v917 = vunpack.c.h.b16 %v823
    %v918 = vunpack.c.l.b16 %v824
    %v919 = vunpack.c.h.b16 %v824
    %v920 = vunpack.c.l.b16 %v825
    %v921 = vunpack.c.h.b16 %v825
    %v922 = vpack.c.b16 %v860, %v858
    %v923 = vpack.c.b16 %v861, %v859
    %v924 = vpack.c.b16 %v864, %v862
    %v925 = vpack.c.b16 %v865, %v863
    %v926 = vpack.c.b16 %v868, %v866
    %v927 = vpack.c.b16 %v869, %v867
    %v928 = vpack.c.b16 %v872, %v870
    %v929 = vpack.c.b16 %v873, %v871
    %v930 = vpack.c.b16 %v876, %v874
    %v931 = vpack.c.b16 %v877, %v875
    %v932 = vpack.c.b16 %v880, %v878
    %v933 = vpack.c.b16 %v881, %v879
    %v934 = vpack.c.b16 %v884, %v882
    %v935 = vpack.c.b16 %v885, %v883
    %v936 = vpack.c.b16 %v888, %v886
    %v937 = vpack.c.b16 %v889, %v887
    %v938 = vpack.c.b16 %v892, %v890
    %v939 = vpack.c.b16 %v893, %v891
    %v940 = vpack.c.b16 %v896, %v894
    %v941 = vpack.c.b16 %v897, %v895
    %v942 = vpack.c.b16 %v900, %v898
    %v943 = vpack.c.b16 %v901, %v899
    %v944 = vpack.c.b16 %v904, %v902
    %v945 = vpack.c.b16 %v905, %v903
    %v946 = vpack.c.b16 %v908, %v906
    %v947 = vpack.c.b16 %v909, %v907
    %v948 = vpack.c.b16 %v912, %v910
    %v949 = vpack.c.b16 %v913, %v911
    %v950 = vpack.c.b16 %v916, %v914
    %v951 = vpack.c.b16 %v917, %v915
    %v952 = vpack.c.b16 %v920, %v918
    %v953 = vpack.c.b16 %v921, %v919
    %986 = vmatpush.bf16.msra.mxu0 %v936
    %987 = vmatpush.bf16.msra.mxu0 %v934
    %988 = vmatpush.bf16.msra.mxu0 %v932
    %989 = vmatpush.bf16.msra.mxu0 %v930
    %990 = vmatpush.bf16.msra.mxu0 %v928
    %991 = vmatpush.bf16.msra.mxu0 %v926
    %992 = vmatpush.bf16.msra.mxu0 %v924
    %993 = vmatpush.bf16.msra.mxu0 %v922
    %994 = vmatmul.bf16.gmra.mxu0 %v789
    %v995 = vpop.f32.mrf.mxu0
    %v996 = vadd.f32 0.0, %v995
    %v997 = vpop.f32.mrf.mxu0
    %v998 = vadd.f32 0.0, %v997
    %999 = vmatmul.bf16.gmra.mxu0 %v791
    %v1000 = vpop.f32.mrf.mxu0
    %v1001 = vadd.f32 0.0, %v1000
    %v1002 = vpop.f32.mrf.mxu0
    %v1003 = vadd.f32 0.0, %v1002
    %1004 = vdwg.mxu0
    %1005 = vmatpush.bf16.msra.mxu0 %v952
    %1006 = vmatpush.bf16.msra.mxu0 %v950
    %1007 = vmatpush.bf16.msra.mxu0 %v948
    %1008 = vmatpush.bf16.msra.mxu0 %v946
    %1009 = vmatpush.bf16.msra.mxu0 %v944
    %1010 = vmatpush.bf16.msra.mxu0 %v942
    %1011 = vmatpush.bf16.msra.mxu0 %v940
    %1012 = vmatpush.bf16.msra.mxu0 %v938
    %1013 = vmatmul.bf16.gmra.mxu0 %v790
    %v1014 = vpop.f32.mrf.mxu0
    %v1015 = vadd.f32 %v996, %v1014
    %v1016 = vpop.f32.mrf.mxu0
    %v1017 = vadd.f32 %v998, %v1016
    %1018 = vmatmul.bf16.gmra.mxu0 %v792
    %v1019 = vpop.f32.mrf.mxu0
    %v1020 = vadd.f32 %v1001, %v1019
    %v1021 = vpop.f32.mrf.mxu0
    %v1022 = vadd.f32 %v1003, %v1021
    %1023 = vdwg.mxu0
    %1024 = vmatpush.bf16.msra.mxu0 %v937
    %1025 = vmatpush.bf16.msra.mxu0 %v935
    %1026 = vmatpush.bf16.msra.mxu0 %v933
    %1027 = vmatpush.bf16.msra.mxu0 %v931
    %1028 = vmatpush.bf16.msra.mxu0 %v929
    %1029 = vmatpush.bf16.msra.mxu0 %v927
    %1030 = vmatpush.bf16.msra.mxu0 %v925
    %1031 = vmatpush.bf16.msra.mxu0 %v923
    %1032 = vmatmul.bf16.gmra.mxu0 %v789
    %v1033 = vpop.f32.mrf.mxu0
    %v1034 = vadd.f32 0.0, %v1033
    %v1035 = vpop.f32.mrf.mxu0
    %v1036 = vadd.f32 0.0, %v1035
    %1037 = vmatmul.bf16.gmra.mxu0 %v791
    %v1038 = vpop.f32.mrf.mxu0
    %v1039 = vadd.f32 0.0, %v1038
    %v1040 = vpop.f32.mrf.mxu0
    %v1041 = vadd.f32 0.0, %v1040
    %1042 = vdwg.mxu0
    %1043 = vmatpush.bf16.msra.mxu0 %v953
    %1044 = vmatpush.bf16.msra.mxu0 %v951
    %1045 = vmatpush.bf16.msra.mxu0 %v949
    %1046 = vmatpush.bf16.msra.mxu0 %v947
    %1047 = vmatpush.bf16.msra.mxu0 %v945
    %1048 = vmatpush.bf16.msra.mxu0 %v943
    %1049 = vmatpush.bf16.msra.mxu0 %v941
    %1050 = vmatpush.bf16.msra.mxu0 %v939
    %1051 = vmatmul.bf16.gmra.mxu0 %v790
    %v1052 = vpop.f32.mrf.mxu0
    %v1053 = vadd.f32 %v1034, %v1052
    %v1054 = vpop.f32.mrf.mxu0
    %v1055 = vadd.f32 %v1036, %v1054
    %1056 = vmatmul.bf16.gmra.mxu0 %v792
    %v1057 = vpop.f32.mrf.mxu0
    %v1058 = vadd.f32 %v1039, %v1057
    %v1059 = vpop.f32.mrf.mxu0
    %v1060 = vadd.f32 %v1041, %v1059
    %1061 = vdwg.mxu0
    %v1094 = vunpack.c.l.b16 %v708
    %v1095 = vunpack.c.h.b16 %v708
    %v1096 = vunpack.c.l.b16 %v709
    %v1097 = vunpack.c.h.b16 %v709
    %v1098 = vunpack.c.l.b16 %v710
    %v1099 = vunpack.c.h.b16 %v710
    %v1100 = vunpack.c.l.b16 %v711
    %v1101 = vunpack.c.h.b16 %v711
    %v1102 = vunpack.c.l.b16 %v712
    %v1103 = vunpack.c.h.b16 %v712
    %v1104 = vunpack.c.l.b16 %v713
    %v1105 = vunpack.c.h.b16 %v713
    %v1106 = vunpack.c.l.b16 %v714
    %v1107 = vunpack.c.h.b16 %v714
    %v1108 = vunpack.c.l.b16 %v715
    %v1109 = vunpack.c.h.b16 %v715
    %v1110 = vunpack.c.l.b16 %v716
    %v1111 = vunpack.c.h.b16 %v716
    %v1112 = vunpack.c.l.b16 %v717
    %v1113 = vunpack.c.h.b16 %v717
    %v1114 = vunpack.c.l.b16 %v718
    %v1115 = vunpack.c.h.b16 %v718
    %v1116 = vunpack.c.l.b16 %v719
    %v1117 = vunpack.c.h.b16 %v719
    %v1118 = vunpack.c.l.b16 %v720
    %v1119 = vunpack.c.h.b16 %v720
    %v1120 = vunpack.c.l.b16 %v721
    %v1121 = vunpack.c.h.b16 %v721
    %v1122 = vunpack.c.l.b16 %v722
    %v1123 = vunpack.c.h.b16 %v722
    %v1124 = vunpack.c.l.b16 %v723
    %v1125 = vunpack.c.h.b16 %v723
    %v1126 = vunpack.c.l.b16 %v724
    %v1127 = vunpack.c.h.b16 %v724
    %v1128 = vunpack.c.l.b16 %v725
    %v1129 = vunpack.c.h.b16 %v725
    %v1130 = vunpack.c.l.b16 %v726
    %v1131 = vunpack.c.h.b16 %v726
    %v1132 = vunpack.c.l.b16 %v727
    %v1133 = vunpack.c.h.b16 %v727
    %v1134 = vunpack.c.l.b16 %v728
    %v1135 = vunpack.c.h.b16 %v728
    %v1136 = vunpack.c.l.b16 %v729
    %v1137 = vunpack.c.h.b16 %v729
    %v1138 = vunpack.c.l.b16 %v730
    %v1139 = vunpack.c.h.b16 %v730
    %v1140 = vunpack.c.l.b16 %v731
    %v1141 = vunpack.c.h.b16 %v731
    %v1142 = vunpack.c.l.b16 %v732
    %v1143 = vunpack.c.h.b16 %v732
    %v1144 = vunpack.c.l.b16 %v733
    %v1145 = vunpack.c.h.b16 %v733
    %v1146 = vunpack.c.l.b16 %v734
    %v1147 = vunpack.c.h.b16 %v734
    %v1148 = vunpack.c.l.b16 %v735
    %v1149 = vunpack.c.h.b16 %v735
    %v1150 = vunpack.c.l.b16 %v736
    %v1151 = vunpack.c.h.b16 %v736
    %v1152 = vunpack.c.l.b16 %v737
    %v1153 = vunpack.c.h.b16 %v737
    %v1154 = vunpack.c.l.b16 %v738
    %v1155 = vunpack.c.h.b16 %v738
    %v1156 = vunpack.c.l.b16 %v739
    %v1157 = vunpack.c.h.b16 %v739
    %v1158 = vpack.c.b16 %v1096, %v1094
    %v1159 = vpack.c.b16 %v1097, %v1095
    %v1160 = vpack.c.b16 %v1100, %v1098
    %v1161 = vpack.c.b16 %v1101, %v1099
    %v1162 = vpack.c.b16 %v1104, %v1102
    %v1163 = vpack.c.b16 %v1105, %v1103
    %v1164 = vpack.c.b16 %v1108, %v1106
    %v1165 = vpack.c.b16 %v1109, %v1107
    %v1166 = vpack.c.b16 %v1112, %v1110
    %v1167 = vpack.c.b16 %v1113, %v1111
    %v1168 = vpack.c.b16 %v1116, %v1114
    %v1169 = vpack.c.b16 %v1117, %v1115
    %v1170 = vpack.c.b16 %v1120, %v1118
    %v1171 = vpack.c.b16 %v1121, %v1119
    %v1172 = vpack.c.b16 %v1124, %v1122
    %v1173 = vpack.c.b16 %v1125, %v1123
    %v1174 = vpack.c.b16 %v1128, %v1126
    %v1175 = vpack.c.b16 %v1129, %v1127
    %v1176 = vpack.c.b16 %v1132, %v1130
    %v1177 = vpack.c.b16 %v1133, %v1131
    %v1178 = vpack.c.b16 %v1136, %v1134
    %v1179 = vpack.c.b16 %v1137, %v1135
    %v1180 = vpack.c.b16 %v1140, %v1138
    %v1181 = vpack.c.b16 %v1141, %v1139
    %v1182 = vpack.c.b16 %v1144, %v1142
    %v1183 = vpack.c.b16 %v1145, %v1143
    %v1184 = vpack.c.b16 %v1148, %v1146
    %v1185 = vpack.c.b16 %v1149, %v1147
    %v1186 = vpack.c.b16 %v1152, %v1150
    %v1187 = vpack.c.b16 %v1153, %v1151
    %v1188 = vpack.c.b16 %v1156, %v1154
    %v1189 = vpack.c.b16 %v1157, %v1155
    %1222 = vmatpush.bf16.msra.mxu0 %v1172
    %1223 = vmatpush.bf16.msra.mxu0 %v1170
    %1224 = vmatpush.bf16.msra.mxu0 %v1168
    %1225 = vmatpush.bf16.msra.mxu0 %v1166
    %1226 = vmatpush.bf16.msra.mxu0 %v1164
    %1227 = vmatpush.bf16.msra.mxu0 %v1162
    %1228 = vmatpush.bf16.msra.mxu0 %v1160
    %1229 = vmatpush.bf16.msra.mxu0 %v1158
    %1230 = vmatmul.bf16.gmra.mxu0 %v704
    %v1231 = vpop.f32.mrf.mxu0
    %v1232 = vadd.f32 %v1015, %v1231
    %v1233 = vpop.f32.mrf.mxu0
    %v1234 = vadd.f32 %v1017, %v1233
    %1235 = vmatmul.bf16.gmra.mxu0 %v706
    %v1236 = vpop.f32.mrf.mxu0
    %v1237 = vadd.f32 %v1020, %v1236
    %v1238 = vpop.f32.mrf.mxu0
    %v1239 = vadd.f32 %v1022, %v1238
    %1240 = vdwg.mxu0
    %1241 = vmatpush.bf16.msra.mxu0 %v1188
    %1242 = vmatpush.bf16.msra.mxu0 %v1186
    %1243 = vmatpush.bf16.msra.mxu0 %v1184
    %1244 = vmatpush.bf16.msra.mxu0 %v1182
    %1245 = vmatpush.bf16.msra.mxu0 %v1180
    %1246 = vmatpush.bf16.msra.mxu0 %v1178
    %1247 = vmatpush.bf16.msra.mxu0 %v1176
    %1248 = vmatpush.bf16.msra.mxu0 %v1174
    %1249 = vmatmul.bf16.gmra.mxu0 %v705
    %v1250 = vpop.f32.mrf.mxu0
    %v1251 = vadd.f32 %v1232, %v1250
    %v1252 = vpop.f32.mrf.mxu0
    %v1253 = vadd.f32 %v1234, %v1252
    %1254 = vmatmul.bf16.gmra.mxu0 %v707
    %v1255 = vpop.f32.mrf.mxu0
    %v1256 = vadd.f32 %v1237, %v1255
    %v1257 = vpop.f32.mrf.mxu0
    %v1258 = vadd.f32 %v1239, %v1257
    %1259 = vdwg.mxu0
    %1260 = vmatpush.bf16.msra.mxu0 %v1173
    %1261 = vmatpush.bf16.msra.mxu0 %v1171
    %1262 = vmatpush.bf16.msra.mxu0 %v1169
    %1263 = vmatpush.bf16.msra.mxu0 %v1167
    %1264 = vmatpush.bf16.msra.mxu0 %v1165
    %1265 = vmatpush.bf16.msra.mxu0 %v1163
    %1266 = vmatpush.bf16.msra.mxu0 %v1161
    %1267 = vmatpush.bf16.msra.mxu0 %v1159
    %1268 = vmatmul.bf16.gmra.mxu0 %v704
    %v1269 = vpop.f32.mrf.mxu0
    %v1270 = vadd.f32 %v1053, %v1269
    %v1271 = vpop.f32.mrf.mxu0
    %v1272 = vadd.f32 %v1055, %v1271
    %1273 = vmatmul.bf16.gmra.mxu0 %v706
    %v1274 = vpop.f32.mrf.mxu0
    %v1275 = vadd.f32 %v1058, %v1274
    %v1276 = vpop.f32.mrf.mxu0
    %v1277 = vadd.f32 %v1060, %v1276
    %1278 = vdwg.mxu0
    %1279 = vmatpush.bf16.msra.mxu0 %v1189
    %1280 = vmatpush.bf16.msra.mxu0 %v1187
    %1281 = vmatpush.bf16.msra.mxu0 %v1185
    %1282 = vmatpush.bf16.msra.mxu0 %v1183
    %1283 = vmatpush.bf16.msra.mxu0 %v1181
    %1284 = vmatpush.bf16.msra.mxu0 %v1179
    %1285 = vmatpush.bf16.msra.mxu0 %v1177
    %1286 = vmatpush.bf16.msra.mxu0 %v1175
    %1287 = vmatmul.bf16.gmra.mxu0 %v705
    %v1288 = vpop.f32.mrf.mxu0
    %v1289 = vadd.f32 %v1270, %v1288
    %v1290 = vpop.f32.mrf.mxu0
    %v1291 = vadd.f32 %v1272, %v1290
    %1292 = vmatmul.bf16.gmra.mxu0 %v707
    %v1293 = vpop.f32.mrf.mxu0
    %v1294 = vadd.f32 %v1275, %v1293
    %v1295 = vpop.f32.mrf.mxu0
    %v1296 = vadd.f32 %v1277, %v1295
    %1297 = vdwg.mxu0
    %v1298 = vld [vmem:[#allocation3] sm:$0xfc]
    %v1299 = vld [vmem:[#allocation3 + $0x8] sm:$0xfc]
    %v1300 = vld [vmem:[#allocation3 + $0x20] sm:$0x3]
    %v1301 = vld [vmem:[#allocation3 + $0x28] sm:$0x3]
    %v1302 = vld [vmem:[#allocation3 + $0x30] sm:$0xfc]
    %v1303 = vld [vmem:[#allocation3 + $0x38] sm:$0xfc]
    %v1304 = vld [vmem:[#allocation3 + $0x50] sm:$0x3]
    %v1305 = vld [vmem:[#allocation3 + $0x58] sm:$0x3]
    %vm1314 = vcmask 1045504
    %v1315 = vrot.slane %v1298, 2
    %v1316 = vrot.slane %v698, 2
    %v1317 = vsel %vm1314, %v1315, %v1316
    %v1318 = vrot.slane %v1299, 2
    %v1319 = vrot.slane %v699, 2
    %v1320 = vsel %vm1314, %v1318, %v1319
    %v1321 = vrot.slane %v1300, 2
    %v1322 = vsel %vm1314, %v1316, %v1321
    %v1323 = vrot.slane %v1301, 2
    %v1324 = vsel %vm1314, %v1319, %v1323
    %v1325 = vrot.slane %v1302, 2
    %v1326 = vrot.slane %v702, 2
    %v1327 = vsel %vm1314, %v1325, %v1326
    %v1328 = vrot.slane %v1303, 2
    %v1329 = vrot.slane %v703, 2
    %v1330 = vsel %vm1314, %v1328, %v1329
    %v1331 = vrot.slane %v1304, 2
    %v1332 = vsel %vm1314, %v1326, %v1331
    %v1333 = vrot.slane %v1305, 2
    %v1334 = vsel %vm1314, %v1329, %v1333
    %v1343 = vpack.c.bf16 %v1322, %v1317
    %v1344 = vpack.c.bf16 %v1324, %v1320
    %v1345 = vpack.c.bf16 %v1332, %v1327
    %v1346 = vpack.c.bf16 %v1334, %v1330
    %s1347 = scalar_lea.vmem [#allocation6], 512
    %v1348 = vld [vmem:[%s1347] sm:$0xff]
    %v1349 = vld [vmem:[%s1347 + $0x8] sm:$0xff]
    %v1350 = vld [vmem:[%s1347 + $0x10] sm:$0xff]
    %v1351 = vld [vmem:[%s1347 + $0x18] sm:$0xff]
    %v1352 = vld [vmem:[%s1347 + $0x20] sm:$0xff]
    %v1353 = vld [vmem:[%s1347 + $0x28] sm:$0xff]
    %v1354 = vld [vmem:[%s1347 + $0x30] sm:$0xff]
    %v1355 = vld [vmem:[%s1347 + $0x38] sm:$0xff]
    %v1356 = vld [vmem:[%s1347 + $0x40] sm:$0xff]
    %v1357 = vld [vmem:[%s1347 + $0x48] sm:$0xff]
    %v1358 = vld [vmem:[%s1347 + $0x50] sm:$0xff]
    %v1359 = vld [vmem:[%s1347 + $0x58] sm:$0xff]
    %v1360 = vld [vmem:[%s1347 + $0x60] sm:$0xff]
    %v1361 = vld [vmem:[%s1347 + $0x68] sm:$0xff]
    %v1362 = vld [vmem:[%s1347 + $0x70] sm:$0xff]
    %v1363 = vld [vmem:[%s1347 + $0x78] sm:$0xff]
    %v1364 = vld [vmem:[%s1347 + $0x80] sm:$0xff]
    %v1365 = vld [vmem:[%s1347 + $0x88] sm:$0xff]
    %v1366 = vld [vmem:[%s1347 + $0x90] sm:$0xff]
    %v1367 = vld [vmem:[%s1347 + $0x98] sm:$0xff]
    %v1368 = vld [vmem:[%s1347 + $0xa0] sm:$0xff]
    %v1369 = vld [vmem:[%s1347 + $0xa8] sm:$0xff]
    %v1370 = vld [vmem:[%s1347 + $0xb0] sm:$0xff]
    %v1371 = vld [vmem:[%s1347 + $0xb8] sm:$0xff]
    %v1372 = vld [vmem:[%s1347 + $0xc0] sm:$0xff]
    %v1373 = vld [vmem:[%s1347 + $0xc8] sm:$0xff]
    %v1374 = vld [vmem:[%s1347 + $0xd0] sm:$0xff]
    %v1375 = vld [vmem:[%s1347 + $0xd8] sm:$0xff]
    %v1376 = vld [vmem:[%s1347 + $0xe0] sm:$0xff]
    %v1377 = vld [vmem:[%s1347 + $0xe8] sm:$0xff]
    %v1378 = vld [vmem:[%s1347 + $0xf0] sm:$0xff]
    %v1379 = vld [vmem:[%s1347 + $0xf8] sm:$0xff]
    %v1412 = vunpack.c.l.b16 %v1348
    %v1413 = vunpack.c.h.b16 %v1348
    %v1414 = vunpack.c.l.b16 %v1349
    %v1415 = vunpack.c.h.b16 %v1349
    %v1416 = vunpack.c.l.b16 %v1350
    %v1417 = vunpack.c.h.b16 %v1350
    %v1418 = vunpack.c.l.b16 %v1351
    %v1419 = vunpack.c.h.b16 %v1351
    %v1420 = vunpack.c.l.b16 %v1352
    %v1421 = vunpack.c.h.b16 %v1352
    %v1422 = vunpack.c.l.b16 %v1353
    %v1423 = vunpack.c.h.b16 %v1353
    %v1424 = vunpack.c.l.b16 %v1354
    %v1425 = vunpack.c.h.b16 %v1354
    %v1426 = vunpack.c.l.b16 %v1355
    %v1427 = vunpack.c.h.b16 %v1355
    %v1428 = vunpack.c.l.b16 %v1356
    %v1429 = vunpack.c.h.b16 %v1356
    %v1430 = vunpack.c.l.b16 %v1357
    %v1431 = vunpack.c.h.b16 %v1357
    %v1432 = vunpack.c.l.b16 %v1358
    %v1433 = vunpack.c.h.b16 %v1358
    %v1434 = vunpack.c.l.b16 %v1359
    %v1435 = vunpack.c.h.b16 %v1359
    %v1436 = vunpack.c.l.b16 %v1360
    %v1437 = vunpack.c.h.b16 %v1360
    %v1438 = vunpack.c.l.b16 %v1361
    %v1439 = vunpack.c.h.b16 %v1361
    %v1440 = vunpack.c.l.b16 %v1362
    %v1441 = vunpack.c.h.b16 %v1362
    %v1442 = vunpack.c.l.b16 %v1363
    %v1443 = vunpack.c.h.b16 %v1363
    %v1444 = vunpack.c.l.b16 %v1364
    %v1445 = vunpack.c.h.b16 %v1364
    %v1446 = vunpack.c.l.b16 %v1365
    %v1447 = vunpack.c.h.b16 %v1365
    %v1448 = vunpack.c.l.b16 %v1366
    %v1449 = vunpack.c.h.b16 %v1366
    %v1450 = vunpack.c.l.b16 %v1367
    %v1451 = vunpack.c.h.b16 %v1367
    %v1452 = vunpack.c.l.b16 %v1368
    %v1453 = vunpack.c.h.b16 %v1368
    %v1454 = vunpack.c.l.b16 %v1369
    %v1455 = vunpack.c.h.b16 %v1369
    %v1456 = vunpack.c.l.b16 %v1370
    %v1457 = vunpack.c.h.b16 %v1370
    %v1458 = vunpack.c.l.b16 %v1371
    %v1459 = vunpack.c.h.b16 %v1371
    %v1460 = vunpack.c.l.b16 %v1372
    %v1461 = vunpack.c.h.b16 %v1372
    %v1462 = vunpack.c.l.b16 %v1373
    %v1463 = vunpack.c.h.b16 %v1373
    %v1464 = vunpack.c.l.b16 %v1374
    %v1465 = vunpack.c.h.b16 %v1374
    %v1466 = vunpack.c.l.b16 %v1375
    %v1467 = vunpack.c.h.b16 %v1375
    %v1468 = vunpack.c.l.b16 %v1376
    %v1469 = vunpack.c.h.b16 %v1376
    %v1470 = vunpack.c.l.b16 %v1377
    %v1471 = vunpack.c.h.b16 %v1377
    %v1472 = vunpack.c.l.b16 %v1378
    %v1473 = vunpack.c.h.b16 %v1378
    %v1474 = vunpack.c.l.b16 %v1379
    %v1475 = vunpack.c.h.b16 %v1379
    %v1476 = vpack.c.b16 %v1414, %v1412
    %v1477 = vpack.c.b16 %v1415, %v1413
    %v1478 = vpack.c.b16 %v1418, %v1416
    %v1479 = vpack.c.b16 %v1419, %v1417
    %v1480 = vpack.c.b16 %v1422, %v1420
    %v1481 = vpack.c.b16 %v1423, %v1421
    %v1482 = vpack.c.b16 %v1426, %v1424
    %v1483 = vpack.c.b16 %v1427, %v1425
    %v1484 = vpack.c.b16 %v1430, %v1428
    %v1485 = vpack.c.b16 %v1431, %v1429
    %v1486 = vpack.c.b16 %v1434, %v1432
    %v1487 = vpack.c.b16 %v1435, %v1433
    %v1488 = vpack.c.b16 %v1438, %v1436
    %v1489 = vpack.c.b16 %v1439, %v1437
    %v1490 = vpack.c.b16 %v1442, %v1440
    %v1491 = vpack.c.b16 %v1443, %v1441
    %v1492 = vpack.c.b16 %v1446, %v1444
    %v1493 = vpack.c.b16 %v1447, %v1445
    %v1494 = vpack.c.b16 %v1450, %v1448
    %v1495 = vpack.c.b16 %v1451, %v1449
    %v1496 = vpack.c.b16 %v1454, %v1452
    %v1497 = vpack.c.b16 %v1455, %v1453
    %v1498 = vpack.c.b16 %v1458, %v1456
    %v1499 = vpack.c.b16 %v1459, %v1457
    %v1500 = vpack.c.b16 %v1462, %v1460
    %v1501 = vpack.c.b16 %v1463, %v1461
    %v1502 = vpack.c.b16 %v1466, %v1464
    %v1503 = vpack.c.b16 %v1467, %v1465
    %v1504 = vpack.c.b16 %v1470, %v1468
    %v1505 = vpack.c.b16 %v1471, %v1469
    %v1506 = vpack.c.b16 %v1474, %v1472
    %v1507 = vpack.c.b16 %v1475, %v1473
    %1540 = vmatpush.bf16.msra.mxu0 %v1490
    %1541 = vmatpush.bf16.msra.mxu0 %v1488
    %1542 = vmatpush.bf16.msra.mxu0 %v1486
    %1543 = vmatpush.bf16.msra.mxu0 %v1484
    %1544 = vmatpush.bf16.msra.mxu0 %v1482
    %1545 = vmatpush.bf16.msra.mxu0 %v1480
    %1546 = vmatpush.bf16.msra.mxu0 %v1478
    %1547 = vmatpush.bf16.msra.mxu0 %v1476
    %1548 = vmatmul.bf16.gmra.mxu0 %v1343
    %v1549 = vpop.f32.mrf.mxu0
    %v1550 = vadd.f32 0.0, %v1549
    %v1551 = vpop.f32.mrf.mxu0
    %v1552 = vadd.f32 0.0, %v1551
    %1553 = vmatmul.bf16.gmra.mxu0 %v1345
    %v1554 = vpop.f32.mrf.mxu0
    %v1555 = vadd.f32 0.0, %v1554
    %v1556 = vpop.f32.mrf.mxu0
    %v1557 = vadd.f32 0.0, %v1556
    %1558 = vdwg.mxu0
    %1559 = vmatpush.bf16.msra.mxu0 %v1506
    %1560 = vmatpush.bf16.msra.mxu0 %v1504
    %1561 = vmatpush.bf16.msra.mxu0 %v1502
    %1562 = vmatpush.bf16.msra.mxu0 %v1500
    %1563 = vmatpush.bf16.msra.mxu0 %v1498
    %1564 = vmatpush.bf16.msra.mxu0 %v1496
    %1565 = vmatpush.bf16.msra.mxu0 %v1494
    %1566 = vmatpush.bf16.msra.mxu0 %v1492
    %1567 = vmatmul.bf16.gmra.mxu0 %v1344
    %v1568 = vpop.f32.mrf.mxu0
    %v1569 = vadd.f32 %v1550, %v1568
    %v1570 = vpop.f32.mrf.mxu0
    %v1571 = vadd.f32 %v1552, %v1570
    %1572 = vmatmul.bf16.gmra.mxu0 %v1346
    %v1573 = vpop.f32.mrf.mxu0
    %v1574 = vadd.f32 %v1555, %v1573
    %v1575 = vpop.f32.mrf.mxu0
    %v1576 = vadd.f32 %v1557, %v1575
    %1577 = vdwg.mxu0
    %1578 = vmatpush.bf16.msra.mxu0 %v1491
    %1579 = vmatpush.bf16.msra.mxu0 %v1489
    %1580 = vmatpush.bf16.msra.mxu0 %v1487
    %1581 = vmatpush.bf16.msra.mxu0 %v1485
    %1582 = vmatpush.bf16.msra.mxu0 %v1483
    %1583 = vmatpush.bf16.msra.mxu0 %v1481
    %1584 = vmatpush.bf16.msra.mxu0 %v1479
    %1585 = vmatpush.bf16.msra.mxu0 %v1477
    %1586 = vmatmul.bf16.gmra.mxu0 %v1343
    %v1587 = vpop.f32.mrf.mxu0
    %v1588 = vadd.f32 0.0, %v1587
    %v1589 = vpop.f32.mrf.mxu0
    %v1590 = vadd.f32 0.0, %v1589
    %1591 = vmatmul.bf16.gmra.mxu0 %v1345
    %v1592 = vpop.f32.mrf.mxu0
    %v1593 = vadd.f32 0.0, %v1592
    %v1594 = vpop.f32.mrf.mxu0
    %v1595 = vadd.f32 0.0, %v1594
    %1596 = vdwg.mxu0
    %1597 = vmatpush.bf16.msra.mxu0 %v1507
    %1598 = vmatpush.bf16.msra.mxu0 %v1505
    %1599 = vmatpush.bf16.msra.mxu0 %v1503
    %1600 = vmatpush.bf16.msra.mxu0 %v1501
    %1601 = vmatpush.bf16.msra.mxu0 %v1499
    %1602 = vmatpush.bf16.msra.mxu0 %v1497
    %1603 = vmatpush.bf16.msra.mxu0 %v1495
    %1604 = vmatpush.bf16.msra.mxu0 %v1493
    %1605 = vmatmul.bf16.gmra.mxu0 %v1344
    %v1606 = vpop.f32.mrf.mxu0
    %v1607 = vadd.f32 %v1588, %v1606
    %v1608 = vpop.f32.mrf.mxu0
    %v1609 = vadd.f32 %v1590, %v1608
    %1610 = vmatmul.bf16.gmra.mxu0 %v1346
    %v1611 = vpop.f32.mrf.mxu0
    %v1612 = vadd.f32 %v1593, %v1611
    %v1613 = vpop.f32.mrf.mxu0
    %v1614 = vadd.f32 %v1595, %v1613
    %1615 = vdwg.mxu0
    %v1616 = vadd.f32 %v1251, %v1569
    %v1617 = vadd.f32 %v1289, %v1607
    %v1618 = vadd.f32 %v1253, %v1571
    %v1619 = vadd.f32 %v1291, %v1609
    %v1620 = vadd.f32 %v1256, %v1574
    %v1621 = vadd.f32 %v1294, %v1612
    %v1622 = vadd.f32 %v1258, %v1576
    %v1623 = vadd.f32 %v1296, %v1614
    %v1624 = vld [vmem:[%s5] sm:$0x3]
    %v1626 = vperm.slane %v1624, 0
    %v1627 = vperm.slane %v1624, 1
    %v1630 = vadd.f32 %v1616, %v1626
    %v1631 = vadd.f32 %v1617, %v1627
    %v1632 = vadd.f32 %v1618, %v1626
    %v1633 = vadd.f32 %v1619, %v1627
    %v1634 = vadd.f32 %v1620, %v1626
    %v1635 = vadd.f32 %v1621, %v1627
    %v1636 = vadd.f32 %v1622, %v1626
    %v1637 = vadd.f32 %v1623, %v1627
    %v1638 = vmul.f32 %v1630, 0.5
    %v1639 = vmul.f32 %v1631, 0.5
    %v1640 = vmul.f32 %v1632, 0.5
    %v1641 = vmul.f32 %v1633, 0.5
    %v1642 = vmul.f32 %v1634, 0.5
    %v1643 = vmul.f32 %v1635, 0.5
    %v1644 = vmul.f32 %v1636, 0.5
    %v1645 = vmul.f32 %v1637, 0.5
    %v1646 = vmul.f32 %v1630, 0.044715
    %v1647 = vmul.f32 %v1631, 0.044715
    %v1648 = vmul.f32 %v1632, 0.044715
    %v1649 = vmul.f32 %v1633, 0.044715
    %v1650 = vmul.f32 %v1634, 0.044715
    %v1651 = vmul.f32 %v1635, 0.044715
    %v1652 = vmul.f32 %v1636, 0.044715
    %v1653 = vmul.f32 %v1637, 0.044715
    %v1654 = vmul.f32 %v1646, %v1630
    %v1655 = vmul.f32 %v1647, %v1631
    %v1656 = vmul.f32 %v1648, %v1632
    %v1657 = vmul.f32 %v1649, %v1633
    %v1658 = vmul.f32 %v1650, %v1634
    %v1659 = vmul.f32 %v1651, %v1635
    %v1660 = vmul.f32 %v1652, %v1636
    %v1661 = vmul.f32 %v1653, %v1637
    %v1662 = vmul.f32 %v1654, %v1630
    %v1663 = vmul.f32 %v1655, %v1631
    %v1664 = vmul.f32 %v1656, %v1632
    %v1665 = vmul.f32 %v1657, %v1633
    %v1666 = vmul.f32 %v1658, %v1634
    %v1667 = vmul.f32 %v1659, %v1635
    %v1668 = vmul.f32 %v1660, %v1636
    %v1669 = vmul.f32 %v1661, %v1637
    %v1670 = vadd.f32 %v1630, %v1662
    %v1671 = vadd.f32 %v1631, %v1663
    %v1672 = vadd.f32 %v1632, %v1664
    %v1673 = vadd.f32 %v1633, %v1665
    %v1674 = vadd.f32 %v1634, %v1666
    %v1675 = vadd.f32 %v1635, %v1667
    %v1676 = vadd.f32 %v1636, %v1668
    %v1677 = vadd.f32 %v1637, %v1669
    %v1678 = vmul.f32 %v1670, 0.7978846
    %v1679 = vmul.f32 %v1671, 0.7978846
    %v1680 = vmul.f32 %v1672, 0.7978846
    %v1681 = vmul.f32 %v1673, 0.7978846
    %v1682 = vmul.f32 %v1674, 0.7978846
    %v1683 = vmul.f32 %v1675, 0.7978846
    %v1684 = vmul.f32 %v1676, 0.7978846
    %v1685 = vmul.f32 %v1677, 0.7978846
    %v1686 = vtanh.pop %v1678
    %v1687 = vtanh.pop %v1679
    %v1688 = vtanh.pop %v1680
    %v1689 = vtanh.pop %v1681
    %v1690 = vtanh.pop %v1682
    %v1691 = vtanh.pop %v1683
    %v1692 = vtanh.pop %v1684
    %v1693 = vtanh.pop %v1685
    %v1694 = vadd.f32 %v1686, 1.0
    %v1695 = vadd.f32 %v1687, 1.0
    %v1696 = vadd.f32 %v1688, 1.0
    %v1697 = vadd.f32 %v1689, 1.0
    %v1698 = vadd.f32 %v1690, 1.0
    %v1699 = vadd.f32 %v1691, 1.0
    %v1700 = vadd.f32 %v1692, 1.0
    %v1701 = vadd.f32 %v1693, 1.0
    %v1702 = vmul.f32 %v1638, %v1694
    %v1703 = vmul.f32 %v1639, %v1695
    %v1704 = vmul.f32 %v1640, %v1696
    %v1705 = vmul.f32 %v1641, %v1697
    %v1706 = vmul.f32 %v1642, %v1698
    %v1707 = vmul.f32 %v1643, %v1699
    %v1708 = vmul.f32 %v1644, %v1700
    %v1709 = vmul.f32 %v1645, %v1701
    %v1710 = vld [vmem:[%s7] sm:$0x3]
    %v1711 = vld [vmem:[%s0] sm:$0xff]
    %v1712 = vld [vmem:[%s0 + $0x8] sm:$0xff]
    %v1713 = vld [vmem:[%s0 + $0x10] sm:$0xff]
    %v1714 = vld [vmem:[%s0 + $0x18] sm:$0xff]
    %v1715 = vpack.c.bf16 %v1712, %v1711
    %v1716 = vpack.c.bf16 %v1714, %v1713
    %v1717 = vld [vmem:[#allocation8] sm:$0xff]
    %v1718 = vld [vmem:[#allocation8 + $0x8] sm:$0xff]
    %v1719 = vld [vmem:[#allocation8 + $0x10] sm:$0xff]
    %v1720 = vld [vmem:[#allocation8 + $0x18] sm:$0xff]
    %v1721 = vld [vmem:[#allocation8 + $0x20] sm:$0xff]
    %v1722 = vld [vmem:[#allocation8 + $0x28] sm:$0xff]
    %v1723 = vld [vmem:[#allocation8 + $0x30] sm:$0xff]
    %v1724 = vld [vmem:[#allocation8 + $0x38] sm:$0xff]
    %v1725 = vld [vmem:[#allocation8 + $0x40] sm:$0xff]
    %v1726 = vld [vmem:[#allocation8 + $0x48] sm:$0xff]
    %v1727 = vld [vmem:[#allocation8 + $0x50] sm:$0xff]
    %v1728 = vld [vmem:[#allocation8 + $0x58] sm:$0xff]
    %v1729 = vld [vmem:[#allocation8 + $0x60] sm:$0xff]
    %v1730 = vld [vmem:[#allocation8 + $0x68] sm:$0xff]
    %v1731 = vld [vmem:[#allocation8 + $0x70] sm:$0xff]
    %v1732 = vld [vmem:[#allocation8 + $0x78] sm:$0xff]
    %v1749 = vunpack.c.l.b16 %v1717
    %v1750 = vunpack.c.h.b16 %v1717
    %v1751 = vunpack.c.l.b16 %v1718
    %v1752 = vunpack.c.h.b16 %v1718
    %v1753 = vunpack.c.l.b16 %v1719
    %v1754 = vunpack.c.h.b16 %v1719
    %v1755 = vunpack.c.l.b16 %v1720
    %v1756 = vunpack.c.h.b16 %v1720
    %v1757 = vunpack.c.l.b16 %v1721
    %v1758 = vunpack.c.h.b16 %v1721
    %v1759 = vunpack.c.l.b16 %v1722
    %v1760 = vunpack.c.h.b16 %v1722
    %v1761 = vunpack.c.l.b16 %v1723
    %v1762 = vunpack.c.h.b16 %v1723
    %v1763 = vunpack.c.l.b16 %v1724
    %v1764 = vunpack.c.h.b16 %v1724
    %v1765 = vunpack.c.l.b16 %v1725
    %v1766 = vunpack.c.h.b16 %v1725
    %v1767 = vunpack.c.l.b16 %v1726
    %v1768 = vunpack.c.h.b16 %v1726
    %v1769 = vunpack.c.l.b16 %v1727
    %v1770 = vunpack.c.h.b16 %v1727
    %v1771 = vunpack.c.l.b16 %v1728
    %v1772 = vunpack.c.h.b16 %v1728
    %v1773 = vunpack.c.l.b16 %v1729
    %v1774 = vunpack.c.h.b16 %v1729
    %v1775 = vunpack.c.l.b16 %v1730
    %v1776 = vunpack.c.h.b16 %v1730
    %v1777 = vunpack.c.l.b16 %v1731
    %v1778 = vunpack.c.h.b16 %v1731
    %v1779 = vunpack.c.l.b16 %v1732
    %v1780 = vunpack.c.h.b16 %v1732
    %v1781 = vpack.c.b16 %v1751, %v1749
    %v1782 = vpack.c.b16 %v1752, %v1750
    %v1783 = vpack.c.b16 %v1755, %v1753
    %v1784 = vpack.c.b16 %v1756, %v1754
    %v1785 = vpack.c.b16 %v1759, %v1757
    %v1786 = vpack.c.b16 %v1760, %v1758
    %v1787 = vpack.c.b16 %v1763, %v1761
    %v1788 = vpack.c.b16 %v1764, %v1762
    %v1789 = vpack.c.b16 %v1767, %v1765
    %v1790 = vpack.c.b16 %v1768, %v1766
    %v1791 = vpack.c.b16 %v1771, %v1769
    %v1792 = vpack.c.b16 %v1772, %v1770
    %v1793 = vpack.c.b16 %v1775, %v1773
    %v1794 = vpack.c.b16 %v1776, %v1774
    %v1795 = vpack.c.b16 %v1779, %v1777
    %v1796 = vpack.c.b16 %v1780, %v1778
    %1813 = vmatpush.bf16.msra.mxu0 %v1795
    %1814 = vmatpush.bf16.msra.mxu0 %v1793
    %1815 = vmatpush.bf16.msra.mxu0 %v1791
    %1816 = vmatpush.bf16.msra.mxu0 %v1789
    %1817 = vmatpush.bf16.msra.mxu0 %v1787
    %1818 = vmatpush.bf16.msra.mxu0 %v1785
    %1819 = vmatpush.bf16.msra.mxu0 %v1783
    %1820 = vmatpush.bf16.msra.mxu0 %v1781
    %1821 = vmatmul.bf16.gmra.mxu0 %v1715
    %v1822 = vpop.f32.mrf.mxu0
    %v1823 = vadd.f32 0.0, %v1822
    %v1824 = vpop.f32.mrf.mxu0
    %v1825 = vadd.f32 0.0, %v1824
    %1826 = vmatmul.bf16.gmra.mxu0 %v1716
    %v1827 = vpop.f32.mrf.mxu0
    %v1828 = vadd.f32 0.0, %v1827
    %v1829 = vpop.f32.mrf.mxu0
    %v1830 = vadd.f32 0.0, %v1829
    %1831 = vdwg.mxu0
    %1832 = vmatpush.bf16.msra.mxu0 %v1796
    %1833 = vmatpush.bf16.msra.mxu0 %v1794
    %1834 = vmatpush.bf16.msra.mxu0 %v1792
    %1835 = vmatpush.bf16.msra.mxu0 %v1790
    %1836 = vmatpush.bf16.msra.mxu0 %v1788
    %1837 = vmatpush.bf16.msra.mxu0 %v1786
    %1838 = vmatpush.bf16.msra.mxu0 %v1784
    %1839 = vmatpush.bf16.msra.mxu0 %v1782
    %1840 = vmatmul.bf16.gmra.mxu0 %v1715
    %v1841 = vpop.f32.mrf.mxu0
    %v1842 = vadd.f32 0.0, %v1841
    %v1843 = vpop.f32.mrf.mxu0
    %v1844 = vadd.f32 0.0, %v1843
    %1845 = vmatmul.bf16.gmra.mxu0 %v1716
    %v1846 = vpop.f32.mrf.mxu0
    %v1847 = vadd.f32 0.0, %v1846
    %v1848 = vpop.f32.mrf.mxu0
    %v1849 = vadd.f32 0.0, %v1848
    %1850 = vdwg.mxu0
    %v1852 = vperm.slane %v1710, 0
    %v1853 = vperm.slane %v1710, 1
    %v1856 = vadd.f32 %v1852, %v1823
    %v1857 = vadd.f32 %v1853, %v1842
    %v1858 = vadd.f32 %v1852, %v1825
    %v1859 = vadd.f32 %v1853, %v1844
    %v1860 = vadd.f32 %v1852, %v1828
    %v1861 = vadd.f32 %v1853, %v1847
    %v1862 = vadd.f32 %v1852, %v1830
    %v1863 = vadd.f32 %v1853, %v1849
    %v1864 = vadd.f32 %v1702, %v1856
    %v1865 = vadd.f32 %v1703, %v1857
    %v1866 = vadd.f32 %v1704, %v1858
    %v1867 = vadd.f32 %v1705, %v1859
    %v1868 = vadd.f32 %v1706, %v1860
    %v1869 = vadd.f32 %v1707, %v1861
    %v1870 = vadd.f32 %v1708, %v1862
    %v1871 = vadd.f32 %v1709, %v1863
    %1872 = vst [vmem:[%s8] sm:$0xff] %v1864
    %1873 = vst [vmem:[%s8 + $0x8] sm:$0xff] %v1865
    %1874 = vst [vmem:[%s8 + $0x10] sm:$0xff] %v1866
    %1875 = vst [vmem:[%s8 + $0x18] sm:$0xff] %v1867
    %1876 = vst [vmem:[%s8 + $0x20] sm:$0xff] %v1868
    %1877 = vst [vmem:[%s8 + $0x28] sm:$0xff] %v1869
    %1878 = vst [vmem:[%s8 + $0x30] sm:$0xff] %v1870
    %1879 = vst [vmem:[%s8 + $0x38] sm:$0xff] %v1871
    // Predicated region
    $region46: #{_lambda_.14} parent=1 // pred_check
      _
    $region47: #{_lambda_.14} parent=1 // pred_check_branch
      %1881 = sbr.rel (0) target = $region49
    $region48: #{_lambda_.14} parent=1 // pred_region
      _
    $region49: #{_lambda_.14} parent=1 // pred_fallthru
      _
    // Predicated region
    $region50: #{_lambda_.14} parent=1 // pred_check
      _
    $region51: #{_lambda_.14} parent=1 // pred_check_branch
      %1883 = sbr.rel (0) target = $region53
    $region52: #{_lambda_.14} parent=1 // pred_region
      _
    $region53: #{_lambda_.14} parent=1 // pred_fallthru
      _
    %1884 = vsyncpa [#allocation5], 1
    %1885 = vsyncpa [#allocation7], 1

// kernel: _lambda_.17
$region0: #{_lambda_.17}
  #allocation0 [shape = 'u32[]', space=smem, size = 0x4, offset = 0x4, fixed_abs, tag = 'smem constant byte address 0x4 - core index']
  #allocation1 [shape = 'u32[72,128]{1,0:T(1,128)}', space=vmem, size = 0x9000, scoped, tag = 'internal scratch']
  %s0 = inlined_call_operand.vmem [shape: f32[2,8,128], index: 0, kind: input, shape index: {}]
  %s1 = inlined_call_operand.hbm [shape: f32[128,16], index: 1, kind: input, shape index: {}]
  %s2 = inlined_call_operand.vmem [shape: f32[16,128], index: 2, kind: input, shape index: {}]
  %s3 = inlined_call_operand.vmem [shape: bf16[16,16], index: 3, kind: input, shape index: {}]
  %s4 = inlined_call_operand.hbm [shape: f32[1,16], index: 4, kind: input, shape index: {}]
  %s5 = inlined_call_operand.vmem [shape: f32[2,8,128], index: 5, kind: output, shape index: {}]
  %s6 = sld [smem:[#allocation0]]
  $region38: #{_lambda_.17} parent=0
    _
  %s8 = ssub.s32 1, %s6
  %s9 = scalar_select 0, %s8, %s6
  $region1: #{_lambda_.17} parent=0
    #allocation2 [shape = 'u8[65536]{0}', space=vmem, size = 0x10000, scoped, tag = 'input window, operand 1, single buffered']
    #allocation3 [shape = 's32[1]{0}', space=sflag, size = 0x4, scoped, tag = 'scoped memory for _lambda_.17']
    #allocation4 [shape = 'u8[512]{0}', space=vmem, size = 0x400, scoped, tag = 'input window, operand 4, single buffered']
    #allocation5 [shape = 's32[1]{0}', space=sflag, size = 0x4, scoped, tag = 'scoped memory for _lambda_.17']
    %10 = vsyncpa [#allocation3], 0
    %11 = vsyncpa [#allocation5], 0
    // Predicated region
    $region2: #{_lambda_.17} parent=1 // pred_check
      _
    $region3: #{_lambda_.17} parent=1 // pred_check_branch
      %13 = sbr.rel (0) target = $region5
    $region4: #{_lambda_.17} parent=1 // pred_region
      _
    $region5: #{_lambda_.17} parent=1 // pred_fallthru
      _
    // Predicated region
    $region6: #{_lambda_.17} parent=1 // pred_check
      _
    $region7: #{_lambda_.17} parent=1 // pred_check_branch
      %15 = sbr.rel (0) target = $region9
    $region8: #{_lambda_.17} parent=1 // pred_region
      %17 = vsyncadd [#allocation3], 0
      %s18 = sshll.u32 %s1, 4
      %s19 = int_to_ptr.hbm [resolvable:$true] %s18
      %s20 = sshll.u32 [#allocation2], 4
      %s21 = int_to_ptr.vmem [resolvable:$true] %s20
      %26 = dma.hbm_to_vmem [thread:$0]  %s19, 2048, %s21, [#allocation3], 128, 128, 8
    $region9: #{_lambda_.17} parent=1 // pred_fallthru
      _
    // Predicated region
    $region10: #{_lambda_.17} parent=1 // pred_check
      _
    $region11: #{_lambda_.17} parent=1 // pred_check_branch
      %28 = sbr.rel (0) target = $region13
    $region12: #{_lambda_.17} parent=1 // pred_region
      _
    $region13: #{_lambda_.17} parent=1 // pred_fallthru
      _
    // Predicated region
    $region14: #{_lambda_.17} parent=1 // pred_check
      _
    $region15: #{_lambda_.17} parent=1 // pred_check_branch
      %30 = sbr.rel (0) target = $region17
    $region16: #{_lambda_.17} parent=1 // pred_region
      _
    $region17: #{_lambda_.17} parent=1 // pred_fallthru
      _
    // Predicated region
    $region18: #{_lambda_.17} parent=1 // pred_check
      _
    $region19: #{_lambda_.17} parent=1 // pred_check_branch
      %32 = sbr.rel (0) target = $region21
    $region20: #{_lambda_.17} parent=1 // pred_region
      %34 = vsyncadd [#allocation5], 0
      %s36 = sshll.u32 %s4, 4
      %s37 = int_to_ptr.hbm [resolvable:$true] %s36
      %s38 = sshll.u32 [#allocation4], 4
      %s39 = int_to_ptr.vmem [resolvable:$true] %s38
      %41 = dma.hbm_to_vmem [thread:$0]  %s37, 16, %s39, [#allocation5]
    $region21: #{_lambda_.17} parent=1 // pred_fallthru
      _
    // Predicated region
    $region22: #{_lambda_.17} parent=1 // pred_check
      _
    $region23: #{_lambda_.17} parent=1 // pred_check_branch
      %43 = sbr.rel (0) target = $region25
    $region24: #{_lambda_.17} parent=1 // pred_region
      %45 = dma.done [#allocation3], 2048
    $region25: #{_lambda_.17} parent=1 // pred_fallthru
      _
    // Predicated region
    $region26: #{_lambda_.17} parent=1 // pred_check
      _
    $region27: #{_lambda_.17} parent=1 // pred_check_branch
      %47 = sbr.rel (0) target = $region29
    $region28: #{_lambda_.17} parent=1 // pred_region
      %49 = dma.done [#allocation5], 16
    $region29: #{_lambda_.17} parent=1 // pred_fallthru
      _
    %v51 = vld [vmem:[%s0] sm:$0xff]
    %v52 = vld [vmem:[%s0 + $0x8] sm:$0xff]
    %v53 = vld [vmem:[#allocation2] sm:$0xff]
    %v54 = vld [vmem:[#allocation2 + $0x8] sm:$0xff]
    %v55 = vld [vmem:[#allocation2 + $0x10] sm:$0xff]
    %v56 = vld [vmem:[#allocation2 + $0x18] sm:$0xff]
    %v57 = vld [vmem:[#allocation2 + $0x20] sm:$0xff]
    %v58 = vld [vmem:[#allocation2 + $0x28] sm:$0xff]
    %v59 = vld [vmem:[#allocation2 + $0x30] sm:$0xff]
    %v60 = vld [vmem:[#allocation2 + $0x38] sm:$0xff]
    %v61 = vld [vmem:[#allocation2 + $0x40] sm:$0xff]
    %v62 = vld [vmem:[#allocation2 + $0x48] sm:$0xff]
    %v63 = vld [vmem:[#allocation2 + $0x50] sm:$0xff]
    %v64 = vld [vmem:[#allocation2 + $0x58] sm:$0xff]
    %v65 = vld [vmem:[#allocation2 + $0x60] sm:$0xff]
    %v66 = vld [vmem:[#allocation2 + $0x68] sm:$0xff]
    %v67 = vld [vmem:[#allocation2 + $0x70] sm:$0xff]
    %v68 = vld [vmem:[#allocation2 + $0x78] sm:$0xff]
    %69 = vmatpush.msra.mxu0 %v68
    %70 = vmatpush.msra.mxu0 %v67
    %71 = vmatpush.msra.mxu0 %v66
    %72 = vmatpush.msra.mxu0 %v65
    %73 = vmatpush.msra.mxu0 %v64
    %74 = vmatpush.msra.mxu0 %v63
    %75 = vmatpush.msra.mxu0 %v62
    %76 = vmatpush.msra.mxu0 %v61
    %77 = vmatpush.msra.mxu0 %v60
    %78 = vmatpush.msra.mxu0 %v59
    %79 = vmatpush.msra.mxu0 %v58
    %80 = vmatpush.msra.mxu0 %v57
    %81 = vmatpush.msra.mxu0 %v56
    %82 = vmatpush.msra.mxu0 %v55
    %83 = vmatpush.msra.mxu0 %v54
    %84 = vmatpush.msra.mxu0 %v53
    %85 = vmatmul.f32.gmra.mxu0 %v51
    %v86 = vpop.f32.mrf.mxu0
    %v87 = vadd.f32 0.0, %v86
    %88 = vmatmul.f32.gmra.mxu0 %v52
    %v89 = vpop.f32.mrf.mxu0
    %v90 = vadd.f32 0.0, %v89
    %91 = vdwg.mxu0
    %vm92 = vcmask 130048
    %v93 = vsel %vm92, %v87, 0.0
    %v94 = vrot.slane %v93, 4
    %v95 = vadd.f32 %v93, %v94
    %v96 = vrot.slane %v95, 2
    %v97 = vadd.f32 %v95, %v96
    %v98 = vrot.slane %v97, 1
    %v99 = vadd.f32 %v97, %v98
    %v100 = vsel %vm92, %v90, 0.0
    %v101 = vrot.slane %v100, 4
    %v102 = vadd.f32 %v100, %v101
    %v103 = vrot.slane %v102, 2
    %v104 = vadd.f32 %v102, %v103
    %v105 = vrot.slane %v104, 1
    %v106 = vadd.f32 %v104, %v105
    %v107 = vrcp.pop 8.0
    %v108 = vmul.f32 8.0, %v107
    %v109 = vsub.f32 1.0, %v108
    %v110 = vmul.f32 %v107, %v109
    %v111 = vadd.f32 %v107, %v110
    %vm112 = vweird.f32 %v107
    %v113 = vsel %vm112, %v107, %v111
    %v114 = vmul.f32 %v99, %v113
    %v115 = vmul.f32 %v106, %v113
    %v116 = vpack.c.bf16 %v114, %v114
    %v117 = vpack.c.bf16 %v115, %v115
    %v118 = vld [vmem:[%s3] sm:$0xf]
    %v119 = vld [vmem:[%s3 + $0x4] sm:$0xf]
    %v120 = vld [vmem:[#allocation4] sm:$0x1]
    %v122 = vperm.slane %v120, 0
    %v126 = vunpack.c.l.b16 %v116
    %v127 = vunpack.c.l.b16 %v117
    %vm128 = vcmask 1041409
    %v129 = vsel %vm128, %v127, %v126
    %v130 = vpack.c.b16 %v129, %v129
    %v133 = vunpack.c.l.b16 %v118
    %v134 = vunpack.c.l.b16 %v119
    %v135 = vpack.c.b16 %v134, %v133
    %v138 = vsel %vm92, %v130, 0
    %140 = vmatpush.bf16.msra.mxu0 0
    %141 = vmatpush.bf16.msra.mxu0 0
    %142 = vmatpush.bf16.msra.mxu0 0
    %143 = vmatpush.bf16.msra.mxu0 0
    %144 = vmatpush.bf16.msra.mxu0 0
    %145 = vmatpush.bf16.msra.mxu0 0
    %146 = vmatpush.bf16.msra.mxu0 0
    %147 = vmatpush.bf16.msra.mxu0 %v135
    %148 = vmatmul.bf16.gmra.mxu0 %v138
    %v149 = vpop.f32.mrf.mxu0
    %v150 = vadd.f32 %v122, %v149
    %v151 = vpop.f32.mrf.mxu0
    %152 = vdwg.mxu0
    %v153 = vsub.f32 0.0, %v150
    %v154 = vmul.f32 %v153, 1.442695
    %v155 = vpow.pop %v154
    %v156 = vadd.f32 %v155, 1.0
    %v157 = vrcp.pop %v156
    %v158 = vmul.f32 %v156, %v157
    %v159 = vsub.f32 1.0, %v158
    %v160 = vmul.f32 %v157, %v159
    %v161 = vadd.f32 %v157, %v160
    %vm162 = vweird.f32 %v156
    %vm163 = vweird.f32 %v157
    %vm164 = vmor %vm162, %vm163
    %v165 = vsel %vm164, %v157, %v161
    %v166 = vand.u32 2147483647, %v156
    %vm167 = vcmp.eq.f32.partialorder %v166, 8.507059e+37
    %v168 = vand.u32 %v156, 2147483648
    %v169 = vor.u32 1.1754944e-38, %v168
    %v170 = vsel %vm167, %v169, %v165
    %v171 = vmul.f32 1.0, %v170
    %v172 = vld [vmem:[%s2] sm:$0xff]
    %v173 = vld [vmem:[%s2 + $0x8] sm:$0xff]
    %v175 = vsel %vm92, %v171, 0
    %177 = vmatpush.msra.mxu0 0.0
    %178 = vmatpush.msra.mxu0 0.0
    %179 = vmatpush.msra.mxu0 0.0
    %180 = vmatpush.msra.mxu0 0.0
    %181 = vmatpush.msra.mxu0 0.0
    %182 = vmatpush.msra.mxu0 0.0
    %183 = vmatpush.msra.mxu0 0.0
    %184 = vmatpush.msra.mxu0 0.0
    %185 = vmatpush.msra.mxu0 0.0
    %186 = vmatpush.msra.mxu0 0.0
    %187 = vmatpush.msra.mxu0 0.0
    %188 = vmatpush.msra.mxu0 0.0
    %189 = vmatpush.msra.mxu0 0.0
    %190 = vmatpush.msra.mxu0 0.0
    %191 = vmatpush.msra.mxu0 %v173
    %192 = vmatpush.msra.mxu0 %v172
    %193 = vmatmul.f32.gmra.mxu0 %v175
    %v194 = vpop.f32.mrf.mxu0
    %v195 = vadd.f32 0.0, %v194
    %196 = vdwg.mxu0
    %v198 = vrot.slane %v195, 1
    %v199 = vperm.slane %v195, 0
    %v200 = vperm.slane %v198, 0
    %v203 = vmul.f32 %v51, %v199
    %v204 = vmul.f32 %v52, %v200
    %205 = vst [vmem:[%s5] sm:$0xff] %v203
    %206 = vst [vmem:[%s5 + $0x8] sm:$0xff] %v204
    // Predicated region
    $region30: #{_lambda_.17} parent=1 // pred_check
      _
    $region31: #{_lambda_.17} parent=1 // pred_check_branch
      %208 = sbr.rel (0) target = $region33
    $region32: #{_lambda_.17} parent=1 // pred_region
      _
    $region33: #{_lambda_.17} parent=1 // pred_fallthru
      _
    // Predicated region
    $region34: #{_lambda_.17} parent=1 // pred_check
      _
    $region35: #{_lambda_.17} parent=1 // pred_check_branch
      %210 = sbr.rel (0) target = $region37
    $region36: #{_lambda_.17} parent=1 // pred_region
      _
    $region37: #{_lambda_.17} parent=1 // pred_fallthru
      _
    %211 = vsyncpa [#allocation3], 1
    %212 = vsyncpa [#allocation5], 1

// kernel: _lambda_.16
$region0: #{_lambda_.16}
  #allocation0 [shape = 'u32[]', space=smem, size = 0x4, offset = 0x4, fixed_abs, tag = 'smem constant byte address 0x4 - core index']
  #allocation1 [shape = 'u32[72,128]{1,0:T(1,128)}', space=vmem, size = 0x9000, scoped, tag = 'internal scratch']
  #allocation2 [shape = 'f32[2,10,128]{2,1,0:T(8,128)}', space=vmem, size = 0x4000, scoped, tag = 'scratch operand']
  #allocation3 [shape = 'f32[2,10,128]{2,1,0:T(8,128)}', space=vmem, size = 0x4000, scoped, tag = 'scratch operand']
  %s0 = inlined_call_operand.vmem [shape: f32[2,8,128], index: 0, kind: input, shape index: {}]
  %s1 = inlined_call_operand.hbm [shape: bf16[3,128,128], index: 1, kind: input, shape index: {}]
  %s2 = inlined_call_operand.hbm [shape: f32[1,128], index: 2, kind: input, shape index: {}]
  %s3 = inlined_call_operand.vmem [shape: f32[2,128], index: 3, kind: input, shape index: {}]
  %s4 = inlined_call_operand.hbm [shape: bf16[3,128,128], index: 4, kind: input, shape index: {}]
  %s5 = inlined_call_operand.hbm [shape: f32[1,128], index: 5, kind: input, shape index: {}]
  %s6 = inlined_call_operand.vmem [shape: f32[2,8,128], index: 6, kind: output, shape index: {}]
  %s7 = sld [smem:[#allocation0]]
  $region50: #{_lambda_.16} parent=0
    _
  %s9 = ssub.s32 1, %s7
  %s10 = scalar_select 0, %s9, %s7
  $region1: #{_lambda_.16} parent=0
    #allocation4 [shape = 'u8[98304]{0}', space=vmem, size = 0x18000, scoped, tag = 'input window, operand 1, single buffered']
    #allocation5 [shape = 's32[1]{0}', space=sflag, size = 0x4, scoped, tag = 'scoped memory for _lambda_.16']
    #allocation6 [shape = 'u8[512]{0}', space=vmem, size = 0x400, scoped, tag = 'input window, operand 2, single buffered']
    #allocation7 [shape = 's32[1]{0}', space=sflag, size = 0x4, scoped, tag = 'scoped memory for _lambda_.16']
    #allocation8 [shape = 'u8[98304]{0}', space=vmem, size = 0x18000, scoped, tag = 'input window, operand 4, single buffered']
    #allocation9 [shape = 'u8[512]{0}', space=vmem, size = 0x400, scoped, tag = 'input window, operand 5, single buffered']
    #allocation10 [shape = 's32[1]{0}', space=sflag, size = 0x4, scoped, tag = 'scoped memory for _lambda_.16']
    %11 = vsyncpa [#allocation5], 0
    %12 = vsyncpa [#allocation7], 0
    %13 = vsyncpa [#allocation10], 0
    // Predicated region
    $region2: #{_lambda_.16} parent=1 // pred_check
      _
    $region3: #{_lambda_.16} parent=1 // pred_check_branch
      %15 = sbr.rel (0) target = $region5
    $region4: #{_lambda_.16} parent=1 // pred_region
      _
    $region5: #{_lambda_.16} parent=1 // pred_fallthru
      _
    // Predicated region
    $region6: #{_lambda_.16} parent=1 // pred_check
      _
    $region7: #{_lambda_.16} parent=1 // pred_check_branch
      %17 = sbr.rel (0) target = $region9
    $region8: #{_lambda_.16} parent=1 // pred_region
      %19 = vsyncadd [#allocation5], 0
      %s20 = sshll.u32 %s1, 4
      %s21 = int_to_ptr.hbm [resolvable:$true] %s20
      %s22 = sshll.u32 [#allocation4], 4
      %s23 = int_to_ptr.vmem [resolvable:$true] %s22
      %28 = dma.hbm_to_vmem [thread:$0]  %s21, 3072, %s23, [#allocation5], 64, 64, 4
    $region9: #{_lambda_.16} parent=1 // pred_fallthru
      _
    // Predicated region
    $region10: #{_lambda_.16} parent=1 // pred_check
      _
    $region11: #{_lambda_.16} parent=1 // pred_check_branch
      %30 = sbr.rel (0) target = $region13
    $region12: #{_lambda_.16} parent=1 // pred_region
      %32 = vsyncadd [#allocation7], 0
      %s34 = sshll.u32 %s2, 4
      %s35 = int_to_ptr.hbm [resolvable:$true] %s34
      %s36 = sshll.u32 [#allocation6], 4
      %s37 = int_to_ptr.vmem [resolvable:$true] %s36
      %39 = dma.hbm_to_vmem [thread:$0]  %s35, 16, %s37, [#allocation7]
    $region13: #{_lambda_.16} parent=1 // pred_fallthru
      _
    // Predicated region
    $region14: #{_lambda_.16} parent=1 // pred_check
      _
    $region15: #{_lambda_.16} parent=1 // pred_check_branch
      %41 = sbr.rel (0) target = $region17
    $region16: #{_lambda_.16} parent=1 // pred_region
      _
    $region17: #{_lambda_.16} parent=1 // pred_fallthru
      _
    // Predicated region
    $region18: #{_lambda_.16} parent=1 // pred_check
      _
    $region19: #{_lambda_.16} parent=1 // pred_check_branch
      %43 = sbr.rel (0) target = $region21
    $region20: #{_lambda_.16} parent=1 // pred_region
      %45 = vsyncadd [#allocation7], 0
      %s46 = sshll.u32 %s4, 4
      %s47 = int_to_ptr.hbm [resolvable:$true] %s46
      %s48 = sshll.u32 [#allocation8], 4
      %s49 = int_to_ptr.vmem [resolvable:$true] %s48
      %54 = dma.hbm_to_vmem [thread:$0]  %s47, 3072, %s49, [#allocation7], 64, 64, 4
    $region21: #{_lambda_.16} parent=1 // pred_fallthru
      _
    // Predicated region
    $region22: #{_lambda_.16} parent=1 // pred_check
      _
    $region23: #{_lambda_.16} parent=1 // pred_check_branch
      %56 = sbr.rel (0) target = $region25
    $region24: #{_lambda_.16} parent=1 // pred_region
      %58 = vsyncadd [#allocation10], 0
      %s60 = sshll.u32 %s5, 4
      %s61 = int_to_ptr.hbm [resolvable:$true] %s60
      %s62 = sshll.u32 [#allocation9], 4
      %s63 = int_to_ptr.vmem [resolvable:$true] %s62
      %65 = dma.hbm_to_vmem [thread:$0]  %s61, 16, %s63, [#allocation10]
    $region25: #{_lambda_.16} parent=1 // pred_fallthru
      _
    // Predicated region
    $region26: #{_lambda_.16} parent=1 // pred_check
      _
    $region27: #{_lambda_.16} parent=1 // pred_check_branch
      %67 = sbr.rel (0) target = $region29
    $region28: #{_lambda_.16} parent=1 // pred_region
      %69 = dma.done [#allocation5], 3072
    $region29: #{_lambda_.16} parent=1 // pred_fallthru
      _
    // Predicated region
    $region30: #{_lambda_.16} parent=1 // pred_check
      _
    $region31: #{_lambda_.16} parent=1 // pred_check_branch
      %71 = sbr.rel (0) target = $region33
    $region32: #{_lambda_.16} parent=1 // pred_region
      %73 = dma.done [#allocation7], 16
    $region33: #{_lambda_.16} parent=1 // pred_fallthru
      _
    // Predicated region
    $region34: #{_lambda_.16} parent=1 // pred_check
      _
    $region35: #{_lambda_.16} parent=1 // pred_check_branch
      %75 = sbr.rel (0) target = $region37
    $region36: #{_lambda_.16} parent=1 // pred_region
      %77 = dma.done [#allocation7], 3072
    $region37: #{_lambda_.16} parent=1 // pred_fallthru
      _
    // Predicated region
    $region38: #{_lambda_.16} parent=1 // pred_check
      _
    $region39: #{_lambda_.16} parent=1 // pred_check_branch
      %79 = sbr.rel (0) target = $region41
    $region40: #{_lambda_.16} parent=1 // pred_region
      %81 = dma.done [#allocation10], 16
    $region41: #{_lambda_.16} parent=1 // pred_fallthru
      _
    %82 = vst [vmem:[#allocation2] sm:$0xff] 0.0
    %83 = vst [vmem:[#allocation2 + $0x8] sm:$0x3] 0.0
    %84 = vst [vmem:[#allocation2 + $0x10] sm:$0xff] 0.0
    %85 = vst [vmem:[#allocation2 + $0x18] sm:$0x3] 0.0
    %v86 = vld [vmem:[%s0] sm:$0xff]
    %v87 = vld [vmem:[%s0 + $0x8] sm:$0xff]
    %88 = vst [vmem:[#allocation2 + $0x1] sm:$0xff] %v86
    %89 = vst [vmem:[#allocation2 + $0x11] sm:$0xff] %v87
    %v90 = vld [vmem:[#allocation2] sm:$0xff]
    %v91 = vld [vmem:[#allocation2 + $0x10] sm:$0xff]
    %v92 = vpack.c.bf16 %v91, %v90
    %v93 = vld [vmem:[#allocation4] sm:$0xf]
    %v94 = vld [vmem:[#allocation4 + $0x4] sm:$0xf]
    %v95 = vld [vmem:[#allocation4 + $0x8] sm:$0xf]
    %v96 = vld [vmem:[#allocation4 + $0xc] sm:$0xf]
    %v97 = vld [vmem:[#allocation4 + $0x10] sm:$0xf]
    %v98 = vld [vmem:[#allocation4 + $0x14] sm:$0xf]
    %v99 = vld [vmem:[#allocation4 + $0x18] sm:$0xf]
    %v100 = vld [vmem:[#allocation4 + $0x1c] sm:$0xf]
    %v101 = vld [vmem:[#allocation4 + $0x20] sm:$0xf]
    %v102 = vld [vmem:[#allocation4 + $0x24] sm:$0xf]
    %v103 = vld [vmem:[#allocation4 + $0x28] sm:$0xf]
    %v104 = vld [vmem:[#allocation4 + $0x2c] sm:$0xf]
    %v105 = vld [vmem:[#allocation4 + $0x30] sm:$0xf]
    %v106 = vld [vmem:[#allocation4 + $0x34] sm:$0xf]
    %v107 = vld [vmem:[#allocation4 + $0x38] sm:$0xf]
    %v108 = vld [vmem:[#allocation4 + $0x3c] sm:$0xf]
    %v109 = vld [vmem:[#allocation2 + $0x1] sm:$0xff]
    %v110 = vld [vmem:[#allocation2 + $0x11] sm:$0xff]
    %v111 = vpack.c.bf16 %v110, %v109
    %s112 = scalar_lea.vmem [#allocation4], 64
    %v113 = vld [vmem:[%s112] sm:$0xf]
    %v114 = vld [vmem:[%s112 + $0x4] sm:$0xf]
    %v115 = vld [vmem:[%s112 + $0x8] sm:$0xf]
    %v116 = vld [vmem:[%s112 + $0xc] sm:$0xf]
    %v117 = vld [vmem:[%s112 + $0x10] sm:$0xf]
    %v118 = vld [vmem:[%s112 + $0x14] sm:$0xf]
    %v119 = vld [vmem:[%s112 + $0x18] sm:$0xf]
    %v120 = vld [vmem:[%s112 + $0x1c] sm:$0xf]
    %v121 = vld [vmem:[%s112 + $0x20] sm:$0xf]
    %v122 = vld [vmem:[%s112 + $0x24] sm:$0xf]
    %v123 = vld [vmem:[%s112 + $0x28] sm:$0xf]
    %v124 = vld [vmem:[%s112 + $0x2c] sm:$0xf]
    %v125 = vld [vmem:[%s112 + $0x30] sm:$0xf]
    %v126 = vld [vmem:[%s112 + $0x34] sm:$0xf]
    %v127 = vld [vmem:[%s112 + $0x38] sm:$0xf]
    %v128 = vld [vmem:[%s112 + $0x3c] sm:$0xf]
    %v145 = vunpack.c.l.b16 %v113
    %v146 = vunpack.c.l.b16 %v114
    %v147 = vunpack.c.l.b16 %v115
    %v148 = vunpack.c.l.b16 %v116
    %v149 = vunpack.c.l.b16 %v117
    %v150 = vunpack.c.l.b16 %v118
    %v151 = vunpack.c.l.b16 %v119
    %v152 = vunpack.c.l.b16 %v120
    %v153 = vunpack.c.l.b16 %v121
    %v154 = vunpack.c.l.b16 %v122
    %v155 = vunpack.c.l.b16 %v123
    %v156 = vunpack.c.l.b16 %v124
    %v157 = vunpack.c.l.b16 %v125
    %v158 = vunpack.c.l.b16 %v126
    %v159 = vunpack.c.l.b16 %v127
    %v160 = vunpack.c.l.b16 %v128
    %v161 = vpack.c.b16 %v146, %v145
    %v162 = vpack.c.b16 %v148, %v147
    %v163 = vpack.c.b16 %v150, %v149
    %v164 = vpack.c.b16 %v152, %v151
    %v165 = vpack.c.b16 %v154, %v153
    %v166 = vpack.c.b16 %v156, %v155
    %v167 = vpack.c.b16 %v158, %v157
    %v168 = vpack.c.b16 %v160, %v159
    %177 = vmatpush.bf16.msra.mxu0 %v168
    %178 = vmatpush.bf16.msra.mxu0 %v167
    %179 = vmatpush.bf16.msra.mxu0 %v166
    %180 = vmatpush.bf16.msra.mxu0 %v165
    %181 = vmatpush.bf16.msra.mxu0 %v164
    %182 = vmatpush.bf16.msra.mxu0 %v163
    %183 = vmatpush.bf16.msra.mxu0 %v162
    %184 = vmatpush.bf16.msra.mxu0 %v161
    %185 = vmatmul.bf16.gmra.mxu0 %v111
    %v186 = vpop.f32.mrf.mxu0
    %v187 = vadd.f32 0.0, %v186
    %v188 = vpop.f32.mrf.mxu0
    %v189 = vadd.f32 0.0, %v188
    %190 = vdwg.mxu0
    %v207 = vunpack.c.l.b16 %v93
    %v208 = vunpack.c.l.b16 %v94
    %v209 = vunpack.c.l.b16 %v95
    %v210 = vunpack.c.l.b16 %v96
    %v211 = vunpack.c.l.b16 %v97
    %v212 = vunpack.c.l.b16 %v98
    %v213 = vunpack.c.l.b16 %v99
    %v214 = vunpack.c.l.b16 %v100
    %v215 = vunpack.c.l.b16 %v101
    %v216 = vunpack.c.l.b16 %v102
    %v217 = vunpack.c.l.b16 %v103
    %v218 = vunpack.c.l.b16 %v104
    %v219 = vunpack.c.l.b16 %v105
    %v220 = vunpack.c.l.b16 %v106
    %v221 = vunpack.c.l.b16 %v107
    %v222 = vunpack.c.l.b16 %v108
    %v223 = vpack.c.b16 %v208, %v207
    %v224 = vpack.c.b16 %v210, %v209
    %v225 = vpack.c.b16 %v212, %v211
    %v226 = vpack.c.b16 %v214, %v213
    %v227 = vpack.c.b16 %v216, %v215
    %v228 = vpack.c.b16 %v218, %v217
    %v229 = vpack.c.b16 %v220, %v219
    %v230 = vpack.c.b16 %v222, %v221
    %239 = vmatpush.bf16.msra.mxu0 %v230
    %240 = vmatpush.bf16.msra.mxu0 %v229
    %241 = vmatpush.bf16.msra.mxu0 %v228
    %242 = vmatpush.bf16.msra.mxu0 %v227
    %243 = vmatpush.bf16.msra.mxu0 %v226
    %244 = vmatpush.bf16.msra.mxu0 %v225
    %245 = vmatpush.bf16.msra.mxu0 %v224
    %246 = vmatpush.bf16.msra.mxu0 %v223
    %247 = vmatmul.bf16.gmra.mxu0 %v92
    %v248 = vpop.f32.mrf.mxu0
    %v249 = vadd.f32 %v187, %v248
    %v250 = vpop.f32.mrf.mxu0
    %v251 = vadd.f32 %v189, %v250
    %252 = vdwg.mxu0
    %v253 = vld [vmem:[#allocation2 + $0x2] sm:$0xff]
    %v254 = vld [vmem:[#allocation2 + $0x12] sm:$0xff]
    %v255 = vpack.c.bf16 %v254, %v253
    %s256 = scalar_lea.vmem [#allocation4], 128
    %v257 = vld [vmem:[%s256] sm:$0xf]
    %v258 = vld [vmem:[%s256 + $0x4] sm:$0xf]
    %v259 = vld [vmem:[%s256 + $0x8] sm:$0xf]
    %v260 = vld [vmem:[%s256 + $0xc] sm:$0xf]
    %v261 = vld [vmem:[%s256 + $0x10] sm:$0xf]
    %v262 = vld [vmem:[%s256 + $0x14] sm:$0xf]
    %v263 = vld [vmem:[%s256 + $0x18] sm:$0xf]
    %v264 = vld [vmem:[%s256 + $0x1c] sm:$0xf]
    %v265 = vld [vmem:[%s256 + $0x20] sm:$0xf]
    %v266 = vld [vmem:[%s256 + $0x24] sm:$0xf]
    %v267 = vld [vmem:[%s256 + $0x28] sm:$0xf]
    %v268 = vld [vmem:[%s256 + $0x2c] sm:$0xf]
    %v269 = vld [vmem:[%s256 + $0x30] sm:$0xf]
    %v270 = vld [vmem:[%s256 + $0x34] sm:$0xf]
    %v271 = vld [vmem:[%s256 + $0x38] sm:$0xf]
    %v272 = vld [vmem:[%s256 + $0x3c] sm:$0xf]
    %v289 = vunpack.c.l.b16 %v257
    %v290 = vunpack.c.l.b16 %v258
    %v291 = vunpack.c.l.b16 %v259
    %v292 = vunpack.c.l.b16 %v260
    %v293 = vunpack.c.l.b16 %v261
    %v294 = vunpack.c.l.b16 %v262
    %v295 = vunpack.c.l.b16 %v263
    %v296 = vunpack.c.l.b16 %v264
    %v297 = vunpack.c.l.b16 %v265
    %v298 = vunpack.c.l.b16 %v266
    %v299 = vunpack.c.l.b16 %v267
    %v300 = vunpack.c.l.b16 %v268
    %v301 = vunpack.c.l.b16 %v269
    %v302 = vunpack.c.l.b16 %v270
    %v303 = vunpack.c.l.b16 %v271
    %v304 = vunpack.c.l.b16 %v272
    %v305 = vpack.c.b16 %v290, %v289
    %v306 = vpack.c.b16 %v292, %v291
    %v307 = vpack.c.b16 %v294, %v293
    %v308 = vpack.c.b16 %v296, %v295
    %v309 = vpack.c.b16 %v298, %v297
    %v310 = vpack.c.b16 %v300, %v299
    %v311 = vpack.c.b16 %v302, %v301
    %v312 = vpack.c.b16 %v304, %v303
    %321 = vmatpush.bf16.msra.mxu0 %v312
    %322 = vmatpush.bf16.msra.mxu0 %v311
    %323 = vmatpush.bf16.msra.mxu0 %v310
    %324 = vmatpush.bf16.msra.mxu0 %v309
    %325 = vmatpush.bf16.msra.mxu0 %v308
    %326 = vmatpush.bf16.msra.mxu0 %v307
    %327 = vmatpush.bf16.msra.mxu0 %v306
    %328 = vmatpush.bf16.msra.mxu0 %v305
    %329 = vmatmul.bf16.gmra.mxu0 %v255
    %v330 = vpop.f32.mrf.mxu0
    %v331 = vadd.f32 0.0, %v330
    %v332 = vpop.f32.mrf.mxu0
    %v333 = vadd.f32 0.0, %v332
    %334 = vdwg.mxu0
    %v335 = vadd.f32 %v249, %v331
    %v336 = vadd.f32 %v251, %v333
    %v337 = vld [vmem:[#allocation6] sm:$0x1]
    %v339 = vperm.slane %v337, 0
    %v341 = vadd.f32 %v335, %v339
    %v342 = vadd.f32 %v336, %v339
    %v343 = vmul.f32 %v341, 0.5
    %v344 = vmul.f32 %v342, 0.5
    %v345 = vmul.f32 %v341, 0.044715
    %v346 = vmul.f32 %v342, 0.044715
    %v347 = vmul.f32 %v345, %v341
    %v348 = vmul.f32 %v346, %v342
    %v349 = vmul.f32 %v347, %v341
    %v350 = vmul.f32 %v348, %v342
    %v351 = vadd.f32 %v341, %v349
    %v352 = vadd.f32 %v342, %v350
    %v353 = vmul.f32 %v351, 0.7978846
    %v354 = vmul.f32 %v352, 0.7978846
    %v355 = vtanh.pop %v353
    %v356 = vtanh.pop %v354
    %v357 = vadd.f32 %v355, 1.0
    %v358 = vadd.f32 %v356, 1.0
    %v359 = vmul.f32 %v343, %v357
    %v360 = vmul.f32 %v344, %v358
    %v361 = vld [vmem:[%s3] sm:$0x3]
    %v363 = vrot.slane %v361, 1
    %v364 = vperm.slane %v361, 0
    %v365 = vperm.slane %v363, 0
    %v368 = vadd.f32 %v359, %v364
    %v369 = vadd.f32 %v360, %v365
    %370 = vst [vmem:[#allocation3] sm:$0xff] 0.0
    %371 = vst [vmem:[#allocation3 + $0x8] sm:$0x3] 0.0
    %372 = vst [vmem:[#allocation3 + $0x10] sm:$0xff] 0.0
    %373 = vst [vmem:[#allocation3 + $0x18] sm:$0x3] 0.0
    %374 = vst [vmem:[#allocation3 + $0x1] sm:$0xff] %v368
    %375 = vst [vmem:[#allocation3 + $0x11] sm:$0xff] %v369
    %v376 = vld [vmem:[#allocation3] sm:$0xff]
    %v377 = vld [vmem:[#allocation3 + $0x10] sm:$0xff]
    %v378 = vpack.c.bf16 %v377, %v376
    %v379 = vld [vmem:[#allocation8] sm:$0xf]
    %v380 = vld [vmem:[#allocation8 + $0x4] sm:$0xf]
    %v381 = vld [vmem:[#allocation8 + $0x8] sm:$0xf]
    %v382 = vld [vmem:[#allocation8 + $0xc] sm:$0xf]
    %v383 = vld [vmem:[#allocation8 + $0x10] sm:$0xf]
    %v384 = vld [vmem:[#allocation8 + $0x14] sm:$0xf]
    %v385 = vld [vmem:[#allocation8 + $0x18] sm:$0xf]
    %v386 = vld [vmem:[#allocation8 + $0x1c] sm:$0xf]
    %v387 = vld [vmem:[#allocation8 + $0x20] sm:$0xf]
    %v388 = vld [vmem:[#allocation8 + $0x24] sm:$0xf]
    %v389 = vld [vmem:[#allocation8 + $0x28] sm:$0xf]
    %v390 = vld [vmem:[#allocation8 + $0x2c] sm:$0xf]
    %v391 = vld [vmem:[#allocation8 + $0x30] sm:$0xf]
    %v392 = vld [vmem:[#allocation8 + $0x34] sm:$0xf]
    %v393 = vld [vmem:[#allocation8 + $0x38] sm:$0xf]
    %v394 = vld [vmem:[#allocation8 + $0x3c] sm:$0xf]
    %v395 = vld [vmem:[#allocation3 + $0x1] sm:$0xff]
    %v396 = vld [vmem:[#allocation3 + $0x11] sm:$0xff]
    %v397 = vpack.c.bf16 %v396, %v395
    %s398 = scalar_lea.vmem [#allocation8], 64
    %v399 = vld [vmem:[%s398] sm:$0xf]
    %v400 = vld [vmem:[%s398 + $0x4] sm:$0xf]
    %v401 = vld [vmem:[%s398 + $0x8] sm:$0xf]
    %v402 = vld [vmem:[%s398 + $0xc] sm:$0xf]
    %v403 = vld [vmem:[%s398 + $0x10] sm:$0xf]
    %v404 = vld [vmem:[%s398 + $0x14] sm:$0xf]
    %v405 = vld [vmem:[%s398 + $0x18] sm:$0xf]
    %v406 = vld [vmem:[%s398 + $0x1c] sm:$0xf]
    %v407 = vld [vmem:[%s398 + $0x20] sm:$0xf]
    %v408 = vld [vmem:[%s398 + $0x24] sm:$0xf]
    %v409 = vld [vmem:[%s398 + $0x28] sm:$0xf]
    %v410 = vld [vmem:[%s398 + $0x2c] sm:$0xf]
    %v411 = vld [vmem:[%s398 + $0x30] sm:$0xf]
    %v412 = vld [vmem:[%s398 + $0x34] sm:$0xf]
    %v413 = vld [vmem:[%s398 + $0x38] sm:$0xf]
    %v414 = vld [vmem:[%s398 + $0x3c] sm:$0xf]
    %v431 = vunpack.c.l.b16 %v399
    %v432 = vunpack.c.l.b16 %v400
    %v433 = vunpack.c.l.b16 %v401
    %v434 = vunpack.c.l.b16 %v402
    %v435 = vunpack.c.l.b16 %v403
    %v436 = vunpack.c.l.b16 %v404
    %v437 = vunpack.c.l.b16 %v405
    %v438 = vunpack.c.l.b16 %v406
    %v439 = vunpack.c.l.b16 %v407
    %v440 = vunpack.c.l.b16 %v408
    %v441 = vunpack.c.l.b16 %v409
    %v442 = vunpack.c.l.b16 %v410
    %v443 = vunpack.c.l.b16 %v411
    %v444 = vunpack.c.l.b16 %v412
    %v445 = vunpack.c.l.b16 %v413
    %v446 = vunpack.c.l.b16 %v414
    %v447 = vpack.c.b16 %v432, %v431
    %v448 = vpack.c.b16 %v434, %v433
    %v449 = vpack.c.b16 %v436, %v435
    %v450 = vpack.c.b16 %v438, %v437
    %v451 = vpack.c.b16 %v440, %v439
    %v452 = vpack.c.b16 %v442, %v441
    %v453 = vpack.c.b16 %v444, %v443
    %v454 = vpack.c.b16 %v446, %v445
    %463 = vmatpush.bf16.msra.mxu0 %v454
    %464 = vmatpush.bf16.msra.mxu0 %v453
    %465 = vmatpush.bf16.msra.mxu0 %v452
    %466 = vmatpush.bf16.msra.mxu0 %v451
    %467 = vmatpush.bf16.msra.mxu0 %v450
    %468 = vmatpush.bf16.msra.mxu0 %v449
    %469 = vmatpush.bf16.msra.mxu0 %v448
    %470 = vmatpush.bf16.msra.mxu0 %v447
    %471 = vmatmul.bf16.gmra.mxu0 %v397
    %v472 = vpop.f32.mrf.mxu0
    %v473 = vadd.f32 0.0, %v472
    %v474 = vpop.f32.mrf.mxu0
    %v475 = vadd.f32 0.0, %v474
    %476 = vdwg.mxu0
    %v493 = vunpack.c.l.b16 %v379
    %v494 = vunpack.c.l.b16 %v380
    %v495 = vunpack.c.l.b16 %v381
    %v496 = vunpack.c.l.b16 %v382
    %v497 = vunpack.c.l.b16 %v383
    %v498 = vunpack.c.l.b16 %v384
    %v499 = vunpack.c.l.b16 %v385
    %v500 = vunpack.c.l.b16 %v386
    %v501 = vunpack.c.l.b16 %v387
    %v502 = vunpack.c.l.b16 %v388
    %v503 = vunpack.c.l.b16 %v389
    %v504 = vunpack.c.l.b16 %v390
    %v505 = vunpack.c.l.b16 %v391
    %v506 = vunpack.c.l.b16 %v392
    %v507 = vunpack.c.l.b16 %v393
    %v508 = vunpack.c.l.b16 %v394
    %v509 = vpack.c.b16 %v494, %v493
    %v510 = vpack.c.b16 %v496, %v495
    %v511 = vpack.c.b16 %v498, %v497
    %v512 = vpack.c.b16 %v500, %v499
    %v513 = vpack.c.b16 %v502, %v501
    %v514 = vpack.c.b16 %v504, %v503
    %v515 = vpack.c.b16 %v506, %v505
    %v516 = vpack.c.b16 %v508, %v507
    %525 = vmatpush.bf16.msra.mxu0 %v516
    %526 = vmatpush.bf16.msra.mxu0 %v515
    %527 = vmatpush.bf16.msra.mxu0 %v514
    %528 = vmatpush.bf16.msra.mxu0 %v513
    %529 = vmatpush.bf16.msra.mxu0 %v512
    %530 = vmatpush.bf16.msra.mxu0 %v511
    %531 = vmatpush.bf16.msra.mxu0 %v510
    %532 = vmatpush.bf16.msra.mxu0 %v509
    %533 = vmatmul.bf16.gmra.mxu0 %v378
    %v534 = vpop.f32.mrf.mxu0
    %v535 = vadd.f32 %v473, %v534
    %v536 = vpop.f32.mrf.mxu0
    %v537 = vadd.f32 %v475, %v536
    %538 = vdwg.mxu0
    %v539 = vld [vmem:[#allocation3 + $0x2] sm:$0xff]
    %v540 = vld [vmem:[#allocation3 + $0x12] sm:$0xff]
    %v541 = vpack.c.bf16 %v540, %v539
    %s542 = scalar_lea.vmem [#allocation8], 128
    %v543 = vld [vmem:[%s542] sm:$0xf]
    %v544 = vld [vmem:[%s542 + $0x4] sm:$0xf]
    %v545 = vld [vmem:[%s542 + $0x8] sm:$0xf]
    %v546 = vld [vmem:[%s542 + $0xc] sm:$0xf]
    %v547 = vld [vmem:[%s542 + $0x10] sm:$0xf]
    %v548 = vld [vmem:[%s542 + $0x14] sm:$0xf]
    %v549 = vld [vmem:[%s542 + $0x18] sm:$0xf]
    %v550 = vld [vmem:[%s542 + $0x1c] sm:$0xf]
    %v551 = vld [vmem:[%s542 + $0x20] sm:$0xf]
    %v552 = vld [vmem:[%s542 + $0x24] sm:$0xf]
    %v553 = vld [vmem:[%s542 + $0x28] sm:$0xf]
    %v554 = vld [vmem:[%s542 + $0x2c] sm:$0xf]
    %v555 = vld [vmem:[%s542 + $0x30] sm:$0xf]
    %v556 = vld [vmem:[%s542 + $0x34] sm:$0xf]
    %v557 = vld [vmem:[%s542 + $0x38] sm:$0xf]
    %v558 = vld [vmem:[%s542 + $0x3c] sm:$0xf]
    %v575 = vunpack.c.l.b16 %v543
    %v576 = vunpack.c.l.b16 %v544
    %v577 = vunpack.c.l.b16 %v545
    %v578 = vunpack.c.l.b16 %v546
    %v579 = vunpack.c.l.b16 %v547
    %v580 = vunpack.c.l.b16 %v548
    %v581 = vunpack.c.l.b16 %v549
    %v582 = vunpack.c.l.b16 %v550
    %v583 = vunpack.c.l.b16 %v551
    %v584 = vunpack.c.l.b16 %v552
    %v585 = vunpack.c.l.b16 %v553
    %v586 = vunpack.c.l.b16 %v554
    %v587 = vunpack.c.l.b16 %v555
    %v588 = vunpack.c.l.b16 %v556
    %v589 = vunpack.c.l.b16 %v557
    %v590 = vunpack.c.l.b16 %v558
    %v591 = vpack.c.b16 %v576, %v575
    %v592 = vpack.c.b16 %v578, %v577
    %v593 = vpack.c.b16 %v580, %v579
    %v594 = vpack.c.b16 %v582, %v581
    %v595 = vpack.c.b16 %v584, %v583
    %v596 = vpack.c.b16 %v586, %v585
    %v597 = vpack.c.b16 %v588, %v587
    %v598 = vpack.c.b16 %v590, %v589
    %607 = vmatpush.bf16.msra.mxu0 %v598
    %608 = vmatpush.bf16.msra.mxu0 %v597
    %609 = vmatpush.bf16.msra.mxu0 %v596
    %610 = vmatpush.bf16.msra.mxu0 %v595
    %611 = vmatpush.bf16.msra.mxu0 %v594
    %612 = vmatpush.bf16.msra.mxu0 %v593
    %613 = vmatpush.bf16.msra.mxu0 %v592
    %614 = vmatpush.bf16.msra.mxu0 %v591
    %615 = vmatmul.bf16.gmra.mxu0 %v541
    %v616 = vpop.f32.mrf.mxu0
    %v617 = vadd.f32 0.0, %v616
    %v618 = vpop.f32.mrf.mxu0
    %v619 = vadd.f32 0.0, %v618
    %620 = vdwg.mxu0
    %v621 = vadd.f32 %v535, %v617
    %v622 = vadd.f32 %v537, %v619
    %v623 = vld [vmem:[#allocation9] sm:$0x1]
    %v625 = vperm.slane %v623, 0
    %v627 = vadd.f32 %v621, %v625
    %v628 = vadd.f32 %v622, %v625
    %v629 = vmul.f32 %v627, 0.5
    %v630 = vmul.f32 %v628, 0.5
    %v631 = vmul.f32 %v627, 0.044715
    %v632 = vmul.f32 %v628, 0.044715
    %v633 = vmul.f32 %v631, %v627
    %v634 = vmul.f32 %v632, %v628
    %v635 = vmul.f32 %v633, %v627
    %v636 = vmul.f32 %v634, %v628
    %v637 = vadd.f32 %v627, %v635
    %v638 = vadd.f32 %v628, %v636
    %v639 = vmul.f32 %v637, 0.7978846
    %v640 = vmul.f32 %v638, 0.7978846
    %v641 = vtanh.pop %v639
    %v642 = vtanh.pop %v640
    %v643 = vadd.f32 %v641, 1.0
    %v644 = vadd.f32 %v642, 1.0
    %v645 = vmul.f32 %v629, %v643
    %v646 = vmul.f32 %v630, %v644
    %v647 = vld [vmem:[%s0] sm:$0xff]
    %v648 = vld [vmem:[%s0 + $0x8] sm:$0xff]
    %v649 = vadd.f32 %v645, %v647
    %v650 = vadd.f32 %v646, %v648
    %651 = vst [vmem:[%s6] sm:$0xff] %v649
    %652 = vst [vmem:[%s6 + $0x8] sm:$0xff] %v650
    // Predicated region
    $region42: #{_lambda_.16} parent=1 // pred_check
      _
    $region43: #{_lambda_.16} parent=1 // pred_check_branch
      %654 = sbr.rel (0) target = $region45
    $region44: #{_lambda_.16} parent=1 // pred_region
      _
    $region45: #{_lambda_.16} parent=1 // pred_fallthru
      _
    // Predicated region
    $region46: #{_lambda_.16} parent=1 // pred_check
      _
    $region47: #{_lambda_.16} parent=1 // pred_check_branch
      %656 = sbr.rel (0) target = $region49
    $region48: #{_lambda_.16} parent=1 // pred_region
      _
    $region49: #{_lambda_.16} parent=1 // pred_fallthru
      _
    %657 = vsyncpa [#allocation5], 1
    %658 = vsyncpa [#allocation7], 1
    %659 = vsyncpa [#allocation10], 1

// kernel: _lambda_.19
$region0: #{_lambda_.19}
  #allocation0 [shape = 'u32[]', space=smem, size = 0x4, offset = 0x4, fixed_abs, tag = 'smem constant byte address 0x4 - core index']
  #allocation1 [shape = 'u32[72,128]{1,0:T(1,128)}', space=vmem, size = 0x9000, scoped, tag = 'internal scratch']
  #allocation2 [shape = 'f32[2,10,128]{2,1,0:T(8,128)}', space=vmem, size = 0x4000, scoped, tag = 'scratch operand']
  %s0 = inlined_call_operand.vmem [shape: f32[2,8,128], index: 0, kind: input, shape index: {}]
  %s1 = inlined_call_operand.vmem [shape: bf16[4,128,256], index: 1, kind: input, shape index: {}]
  %s2 = inlined_call_operand.vmem [shape: f32[1,256], index: 2, kind: input, shape index: {}]
  %s3 = inlined_call_operand.vmem [shape: f32[2,16,256], index: 3, kind: output, shape index: {}]
  %s4 = sld [smem:[#allocation0]]
  $region22: #{_lambda_.19} parent=0
    _
  %s6 = ssub.s32 1, %s4
  %s7 = scalar_select 0, %s6, %s4
  // Predicated region
  $region2: #{_lambda_.19} parent=0 // pred_check
    _
  $region3: #{_lambda_.19} parent=0 // pred_check_branch
    %9 = sbr.rel (0) target = $region5
  $region4: #{_lambda_.19} parent=0 // pred_region
    _
  $region5: #{_lambda_.19} parent=0 // pred_fallthru
    _
  // Predicated region
  $region6: #{_lambda_.19} parent=0 // pred_check
    _
  $region7: #{_lambda_.19} parent=0 // pred_check_branch
    %11 = sbr.rel (0) target = $region9
  $region8: #{_lambda_.19} parent=0 // pred_region
    _
  $region9: #{_lambda_.19} parent=0 // pred_fallthru
    _
  // Predicated region
  $region10: #{_lambda_.19} parent=0 // pred_check
    _
  $region11: #{_lambda_.19} parent=0 // pred_check_branch
    %13 = sbr.rel (0) target = $region13
  $region12: #{_lambda_.19} parent=0 // pred_region
    _
  $region13: #{_lambda_.19} parent=0 // pred_fallthru
    _
  %14 = vst [vmem:[#allocation2] sm:$0xff] 0.0
  %15 = vst [vmem:[#allocation2 + $0x8] sm:$0x3] 0.0
  %16 = vst [vmem:[#allocation2 + $0x10] sm:$0xff] 0.0
  %17 = vst [vmem:[#allocation2 + $0x18] sm:$0x3] 0.0
  %v18 = vld [vmem:[%s0] sm:$0xff]
  %v19 = vld [vmem:[%s0 + $0x8] sm:$0xff]
  %20 = vst [vmem:[#allocation2 + $0x1] sm:$0xff] %v18
  %21 = vst [vmem:[#allocation2 + $0x11] sm:$0xff] %v19
  %v22 = vld [vmem:[#allocation2] sm:$0xff]
  %v23 = vld [vmem:[#allocation2 + $0x10] sm:$0xff]
  %v24 = vpack.c.bf16 %v23, %v22
  %v25 = vld [vmem:[%s1] sm:$0xff]
  %v26 = vld [vmem:[%s1 + $0x8] sm:$0xff]
  %v27 = vld [vmem:[%s1 + $0x10] sm:$0xff]
  %v28 = vld [vmem:[%s1 + $0x18] sm:$0xff]
  %v29 = vld [vmem:[%s1 + $0x20] sm:$0xff]
  %v30 = vld [vmem:[%s1 + $0x28] sm:$0xff]
  %v31 = vld [vmem:[%s1 + $0x30] sm:$0xff]
  %v32 = vld [vmem:[%s1 + $0x38] sm:$0xff]
  %v33 = vld [vmem:[%s1 + $0x40] sm:$0xff]
  %v34 = vld [vmem:[%s1 + $0x48] sm:$0xff]
  %v35 = vld [vmem:[%s1 + $0x50] sm:$0xff]
  %v36 = vld [vmem:[%s1 + $0x58] sm:$0xff]
  %v37 = vld [vmem:[%s1 + $0x60] sm:$0xff]
  %v38 = vld [vmem:[%s1 + $0x68] sm:$0xff]
  %v39 = vld [vmem:[%s1 + $0x70] sm:$0xff]
  %v40 = vld [vmem:[%s1 + $0x78] sm:$0xff]
  %v41 = vld [vmem:[#allocation2 + $0x1] sm:$0xff]
  %v42 = vld [vmem:[#allocation2 + $0x11] sm:$0xff]
  %v43 = vpack.c.bf16 %v42, %v41
  %s44 = scalar_lea.vmem %s1, 128
  %v45 = vld [vmem:[%s44] sm:$0xff]
  %v46 = vld [vmem:[%s44 + $0x8] sm:$0xff]
  %v47 = vld [vmem:[%s44 + $0x10] sm:$0xff]
  %v48 = vld [vmem:[%s44 + $0x18] sm:$0xff]
  %v49 = vld [vmem:[%s44 + $0x20] sm:$0xff]
  %v50 = vld [vmem:[%s44 + $0x28] sm:$0xff]
  %v51 = vld [vmem:[%s44 + $0x30] sm:$0xff]
  %v52 = vld [vmem:[%s44 + $0x38] sm:$0xff]
  %v53 = vld [vmem:[%s44 + $0x40] sm:$0xff]
  %v54 = vld [vmem:[%s44 + $0x48] sm:$0xff]
  %v55 = vld [vmem:[%s44 + $0x50] sm:$0xff]
  %v56 = vld [vmem:[%s44 + $0x58] sm:$0xff]
  %v57 = vld [vmem:[%s44 + $0x60] sm:$0xff]
  %v58 = vld [vmem:[%s44 + $0x68] sm:$0xff]
  %v59 = vld [vmem:[%s44 + $0x70] sm:$0xff]
  %v60 = vld [vmem:[%s44 + $0x78] sm:$0xff]
  %v77 = vunpack.c.l.b16 %v45
  %v78 = vunpack.c.h.b16 %v45
  %v79 = vunpack.c.l.b16 %v46
  %v80 = vunpack.c.h.b16 %v46
  %v81 = vunpack.c.l.b16 %v47
  %v82 = vunpack.c.h.b16 %v47
  %v83 = vunpack.c.l.b16 %v48
  %v84 = vunpack.c.h.b16 %v48
  %v85 = vunpack.c.l.b16 %v49
  %v86 = vunpack.c.h.b16 %v49
  %v87 = vunpack.c.l.b16 %v50
  %v88 = vunpack.c.h.b16 %v50
  %v89 = vunpack.c.l.b16 %v51
  %v90 = vunpack.c.h.b16 %v51
  %v91 = vunpack.c.l.b16 %v52
  %v92 = vunpack.c.h.b16 %v52
  %v93 = vunpack.c.l.b16 %v53
  %v94 = vunpack.c.h.b16 %v53
  %v95 = vunpack.c.l.b16 %v54
  %v96 = vunpack.c.h.b16 %v54
  %v97 = vunpack.c.l.b16 %v55
  %v98 = vunpack.c.h.b16 %v55
  %v99 = vunpack.c.l.b16 %v56
  %v100 = vunpack.c.h.b16 %v56
  %v101 = vunpack.c.l.b16 %v57
  %v102 = vunpack.c.h.b16 %v57
  %v103 = vunpack.c.l.b16 %v58
  %v104 = vunpack.c.h.b16 %v58
  %v105 = vunpack.c.l.b16 %v59
  %v106 = vunpack.c.h.b16 %v59
  %v107 = vunpack.c.l.b16 %v60
  %v108 = vunpack.c.h.b16 %v60
  %v109 = vpack.c.b16 %v79, %v77
  %v110 = vpack.c.b16 %v80, %v78
  %v111 = vpack.c.b16 %v83, %v81
  %v112 = vpack.c.b16 %v84, %v82
  %v113 = vpack.c.b16 %v87, %v85
  %v114 = vpack.c.b16 %v88, %v86
  %v115 = vpack.c.b16 %v91, %v89
  %v116 = vpack.c.b16 %v92, %v90
  %v117 = vpack.c.b16 %v95, %v93
  %v118 = vpack.c.b16 %v96, %v94
  %v119 = vpack.c.b16 %v99, %v97
  %v120 = vpack.c.b16 %v100, %v98
  %v121 = vpack.c.b16 %v103, %v101
  %v122 = vpack.c.b16 %v104, %v102
  %v123 = vpack.c.b16 %v107, %v105
  %v124 = vpack.c.b16 %v108, %v106
  %141 = vmatpush.bf16.msra.mxu0 %v123
  %142 = vmatpush.bf16.msra.mxu0 %v121
  %143 = vmatpush.bf16.msra.mxu0 %v119
  %144 = vmatpush.bf16.msra.mxu0 %v117
  %145 = vmatpush.bf16.msra.mxu0 %v115
  %146 = vmatpush.bf16.msra.mxu0 %v113
  %147 = vmatpush.bf16.msra.mxu0 %v111
  %148 = vmatpush.bf16.msra.mxu0 %v109
  %149 = vmatmul.bf16.gmra.mxu0 %v43
  %v150 = vpop.f32.mrf.mxu0
  %v151 = vadd.f32 0.0, %v150
  %v152 = vpop.f32.mrf.mxu0
  %v153 = vadd.f32 0.0, %v152
  %154 = vdwg.mxu0
  %155 = vmatpush.bf16.msra.mxu0 %v124
  %156 = vmatpush.bf16.msra.mxu0 %v122
  %157 = vmatpush.bf16.msra.mxu0 %v120
  %158 = vmatpush.bf16.msra.mxu0 %v118
  %159 = vmatpush.bf16.msra.mxu0 %v116
  %160 = vmatpush.bf16.msra.mxu0 %v114
  %161 = vmatpush.bf16.msra.mxu0 %v112
  %162 = vmatpush.bf16.msra.mxu0 %v110
  %163 = vmatmul.bf16.gmra.mxu0 %v43
  %v164 = vpop.f32.mrf.mxu0
  %v165 = vadd.f32 0.0, %v164
  %v166 = vpop.f32.mrf.mxu0
  %v167 = vadd.f32 0.0, %v166
  %168 = vdwg.mxu0
  %v185 = vunpack.c.l.b16 %v25
  %v186 = vunpack.c.h.b16 %v25
  %v187 = vunpack.c.l.b16 %v26
  %v188 = vunpack.c.h.b16 %v26
  %v189 = vunpack.c.l.b16 %v27
  %v190 = vunpack.c.h.b16 %v27
  %v191 = vunpack.c.l.b16 %v28
  %v192 = vunpack.c.h.b16 %v28
  %v193 = vunpack.c.l.b16 %v29
  %v194 = vunpack.c.h.b16 %v29
  %v195 = vunpack.c.l.b16 %v30
  %v196 = vunpack.c.h.b16 %v30
  %v197 = vunpack.c.l.b16 %v31
  %v198 = vunpack.c.h.b16 %v31
  %v199 = vunpack.c.l.b16 %v32
  %v200 = vunpack.c.h.b16 %v32
  %v201 = vunpack.c.l.b16 %v33
  %v202 = vunpack.c.h.b16 %v33
  %v203 = vunpack.c.l.b16 %v34
  %v204 = vunpack.c.h.b16 %v34
  %v205 = vunpack.c.l.b16 %v35
  %v206 = vunpack.c.h.b16 %v35
  %v207 = vunpack.c.l.b16 %v36
  %v208 = vunpack.c.h.b16 %v36
  %v209 = vunpack.c.l.b16 %v37
  %v210 = vunpack.c.h.b16 %v37
  %v211 = vunpack.c.l.b16 %v38
  %v212 = vunpack.c.h.b16 %v38
  %v213 = vunpack.c.l.b16 %v39
  %v214 = vunpack.c.h.b16 %v39
  %v215 = vunpack.c.l.b16 %v40
  %v216 = vunpack.c.h.b16 %v40
  %v217 = vpack.c.b16 %v187, %v185
  %v218 = vpack.c.b16 %v188, %v186
  %v219 = vpack.c.b16 %v191, %v189
  %v220 = vpack.c.b16 %v192, %v190
  %v221 = vpack.c.b16 %v195, %v193
  %v222 = vpack.c.b16 %v196, %v194
  %v223 = vpack.c.b16 %v199, %v197
  %v224 = vpack.c.b16 %v200, %v198
  %v225 = vpack.c.b16 %v203, %v201
  %v226 = vpack.c.b16 %v204, %v202
  %v227 = vpack.c.b16 %v207, %v205
  %v228 = vpack.c.b16 %v208, %v206
  %v229 = vpack.c.b16 %v211, %v209
  %v230 = vpack.c.b16 %v212, %v210
  %v231 = vpack.c.b16 %v215, %v213
  %v232 = vpack.c.b16 %v216, %v214
  %249 = vmatpush.bf16.msra.mxu0 %v231
  %250 = vmatpush.bf16.msra.mxu0 %v229
  %251 = vmatpush.bf16.msra.mxu0 %v227
  %252 = vmatpush.bf16.msra.mxu0 %v225
  %253 = vmatpush.bf16.msra.mxu0 %v223
  %254 = vmatpush.bf16.msra.mxu0 %v221
  %255 = vmatpush.bf16.msra.mxu0 %v219
  %256 = vmatpush.bf16.msra.mxu0 %v217
  %257 = vmatmul.bf16.gmra.mxu0 %v24
  %v258 = vpop.f32.mrf.mxu0
  %v259 = vadd.f32 %v151, %v258
  %v260 = vpop.f32.mrf.mxu0
  %v261 = vadd.f32 %v153, %v260
  %262 = vdwg.mxu0
  %263 = vmatpush.bf16.msra.mxu0 %v232
  %264 = vmatpush.bf16.msra.mxu0 %v230
  %265 = vmatpush.bf16.msra.mxu0 %v228
  %266 = vmatpush.bf16.msra.mxu0 %v226
  %267 = vmatpush.bf16.msra.mxu0 %v224
  %268 = vmatpush.bf16.msra.mxu0 %v222
  %269 = vmatpush.bf16.msra.mxu0 %v220
  %270 = vmatpush.bf16.msra.mxu0 %v218
  %271 = vmatmul.bf16.gmra.mxu0 %v24
  %v272 = vpop.f32.mrf.mxu0
  %v273 = vadd.f32 %v165, %v272
  %v274 = vpop.f32.mrf.mxu0
  %v275 = vadd.f32 %v167, %v274
  %276 = vdwg.mxu0
  %v277 = vld [vmem:[%s2] sm:$0x3]
  %v279 = vperm.slane %v277, 0
  %v280 = vperm.slane %v277, 1
  %v283 = vadd.f32 %v259, %v279
  %v284 = vadd.f32 %v273, %v280
  %v285 = vadd.f32 %v261, %v279
  %v286 = vadd.f32 %v275, %v280
  %v291 = vrot.slane %v284, 7
  %v292 = vrot.slane %v286, 7
  %vm293 = vcmask 1040384
  %v294 = vsel %vm293, %v283, %v291
  %v295 = vsel %vm293, %v285, %v292
  %v298 = vlaneseq
  %vm299 = vcmp.ge.s32.totalorder %v298, 0
  %vm300 = vcmp.lt.s32.totalorder %v298, 256
  %vm301 = vmand %vm299, %vm300
  %302 = vst.msk [vmem:[%s3] ss:$8 sm:$0x3] %vm301, %v294
  %303 = vst.msk [vmem:[%s3] ss:$8 sm:$0x0] %vm301, %v294
  %s304 = scalar_lea.vmem %s3, 32
  %305 = vst.msk [vmem:[%s304] ss:$8 sm:$0x3] %vm301, %v295
  %306 = vst.msk [vmem:[%s304] ss:$8 sm:$0x0] %vm301, %v295
  %307 = vst [vmem:[#allocation1] sm:$0xff] %v283
  %308 = vst [vmem:[#allocation1 + $0x9] sm:$0xff] %v284
  %s309 = scalar_lea.vmem [#allocation1], 1
  %v310 = vld [vmem:[%s309] ss:$9 sm:$0xff]
  %311 = vst [vmem:[#allocation1] sm:$0xff] %v285
  %312 = vst [vmem:[#allocation1 + $0x9] sm:$0xff] %v286
  %v313 = vld [vmem:[%s309] ss:$9 sm:$0xff]
  %s316 = scalar_lea.vmem %s3, 2
  %317 = vst.msk [vmem:[%s316] ss:$8 sm:$0x3] %vm301, %v310
  %318 = vst.msk [vmem:[%s316] ss:$8 sm:$0x0] %vm301, %v310
  %s319 = scalar_lea.vmem %s3, 34
  %320 = vst.msk [vmem:[%s319] ss:$8 sm:$0x3] %vm301, %v313
  %321 = vst.msk [vmem:[%s319] ss:$8 sm:$0x0] %vm301, %v313
  %322 = vst [vmem:[#allocation1] sm:$0xff] %v283
  %323 = vst [vmem:[#allocation1 + $0x9] sm:$0xff] %v284
  %s324 = scalar_lea.vmem [#allocation1], 2
  %v325 = vld [vmem:[%s324] ss:$9 sm:$0xff]
  %326 = vst [vmem:[#allocation1] sm:$0xff] %v285
  %327 = vst [vmem:[#allocation1 + $0x9] sm:$0xff] %v286
  %v328 = vld [vmem:[%s324] ss:$9 sm:$0xff]
  %s331 = scalar_lea.vmem %s3, 4
  %332 = vst.msk [vmem:[%s331] ss:$8 sm:$0x3] %vm301, %v325
  %333 = vst.msk [vmem:[%s331] ss:$8 sm:$0x0] %vm301, %v325
  %s334 = scalar_lea.vmem %s3, 36
  %335 = vst.msk [vmem:[%s334] ss:$8 sm:$0x3] %vm301, %v328
  %336 = vst.msk [vmem:[%s334] ss:$8 sm:$0x0] %vm301, %v328
  %337 = vst [vmem:[#allocation1] sm:$0xff] %v283
  %338 = vst [vmem:[#allocation1 + $0x9] sm:$0xff] %v284
  %s339 = scalar_lea.vmem [#allocation1], 3
  %v340 = vld [vmem:[%s339] ss:$9 sm:$0xff]
  %341 = vst [vmem:[#allocation1] sm:$0xff] %v285
  %342 = vst [vmem:[#allocation1 + $0x9] sm:$0xff] %v286
  %v343 = vld [vmem:[%s339] ss:$9 sm:$0xff]
  %s346 = scalar_lea.vmem %s3, 6
  %347 = vst.msk [vmem:[%s346] ss:$8 sm:$0x3] %vm301, %v340
  %348 = vst.msk [vmem:[%s346] ss:$8 sm:$0x0] %vm301, %v340
  %s349 = scalar_lea.vmem %s3, 38
  %350 = vst.msk [vmem:[%s349] ss:$8 sm:$0x3] %vm301, %v343
  %351 = vst.msk [vmem:[%s349] ss:$8 sm:$0x0] %vm301, %v343
  %352 = vst [vmem:[#allocation1] sm:$0xff] %v283
  %353 = vst [vmem:[#allocation1 + $0x9] sm:$0xff] %v284
  %s354 = scalar_lea.vmem [#allocation1], 4
  %v355 = vld [vmem:[%s354] ss:$9 sm:$0xff]
  %356 = vst [vmem:[#allocation1] sm:$0xff] %v285
  %357 = vst [vmem:[#allocation1 + $0x9] sm:$0xff] %v286
  %v358 = vld [vmem:[%s354] ss:$9 sm:$0xff]
  %s361 = scalar_lea.vmem %s3, 16
  %362 = vst.msk [vmem:[%s361] ss:$8 sm:$0x3] %vm301, %v355
  %363 = vst.msk [vmem:[%s361] ss:$8 sm:$0x0] %vm301, %v355
  %s364 = scalar_lea.vmem %s3, 48
  %365 = vst.msk [vmem:[%s364] ss:$8 sm:$0x3] %vm301, %v358
  %366 = vst.msk [vmem:[%s364] ss:$8 sm:$0x0] %vm301, %v358
  %367 = vst [vmem:[#allocation1] sm:$0xff] %v283
  %368 = vst [vmem:[#allocation1 + $0x9] sm:$0xff] %v284
  %s369 = scalar_lea.vmem [#allocation1], 5
  %v370 = vld [vmem:[%s369] ss:$9 sm:$0xff]
  %371 = vst [vmem:[#allocation1] sm:$0xff] %v285
  %372 = vst [vmem:[#allocation1 + $0x9] sm:$0xff] %v286
  %v373 = vld [vmem:[%s369] ss:$9 sm:$0xff]
  %s376 = scalar_lea.vmem %s3, 18
  %377 = vst.msk [vmem:[%s376] ss:$8 sm:$0x3] %vm301, %v370
  %378 = vst.msk [vmem:[%s376] ss:$8 sm:$0x0] %vm301, %v370
  %s379 = scalar_lea.vmem %s3, 50
  %380 = vst.msk [vmem:[%s379] ss:$8 sm:$0x3] %vm301, %v373
  %381 = vst.msk [vmem:[%s379] ss:$8 sm:$0x0] %vm301, %v373
  %382 = vst [vmem:[#allocation1] sm:$0xff] %v283
  %383 = vst [vmem:[#allocation1 + $0x9] sm:$0xff] %v284
  %s384 = scalar_lea.vmem [#allocation1], 6
  %v385 = vld [vmem:[%s384] ss:$9 sm:$0xff]
  %386 = vst [vmem:[#allocation1] sm:$0xff] %v285
  %387 = vst [vmem:[#allocation1 + $0x9] sm:$0xff] %v286
  %v388 = vld [vmem:[%s384] ss:$9 sm:$0xff]
  %s391 = scalar_lea.vmem %s3, 20
  %392 = vst.msk [vmem:[%s391] ss:$8 sm:$0x3] %vm301, %v385
  %393 = vst.msk [vmem:[%s391] ss:$8 sm:$0x0] %vm301, %v385
  %s394 = scalar_lea.vmem %s3, 52
  %395 = vst.msk [vmem:[%s394] ss:$8 sm:$0x3] %vm301, %v388
  %396 = vst.msk [vmem:[%s394] ss:$8 sm:$0x0] %vm301, %v388
  %397 = vst [vmem:[#allocation1] sm:$0xff] %v283
  %398 = vst [vmem:[#allocation1 + $0x9] sm:$0xff] %v284
  %s399 = scalar_lea.vmem [#allocation1], 7
  %v400 = vld [vmem:[%s399] ss:$9 sm:$0xff]
  %401 = vst [vmem:[#allocation1] sm:$0xff] %v285
  %402 = vst [vmem:[#allocation1 + $0x9] sm:$0xff] %v286
  %v403 = vld [vmem:[%s399] ss:$9 sm:$0xff]
  %s406 = scalar_lea.vmem %s3, 22
  %407 = vst.msk [vmem:[%s406] ss:$8 sm:$0x3] %vm301, %v400
  %408 = vst.msk [vmem:[%s406] ss:$8 sm:$0x0] %vm301, %v400
  %s409 = scalar_lea.vmem %s3, 54
  %410 = vst.msk [vmem:[%s409] ss:$8 sm:$0x3] %vm301, %v403
  %411 = vst.msk [vmem:[%s409] ss:$8 sm:$0x0] %vm301, %v403
  %v412 = vld [vmem:[#allocation2 + $0x1] sm:$0xff]
  %v413 = vld [vmem:[#allocation2 + $0x11] sm:$0xff]
  %v414 = vpack.c.bf16 %v413, %v412
  %s415 = scalar_lea.vmem %s1, 256
  %v416 = vld [vmem:[%s415] sm:$0xff]
  %v417 = vld [vmem:[%s415 + $0x8] sm:$0xff]
  %v418 = vld [vmem:[%s415 + $0x10] sm:$0xff]
  %v419 = vld [vmem:[%s415 + $0x18] sm:$0xff]
  %v420 = vld [vmem:[%s415 + $0x20] sm:$0xff]
  %v421 = vld [vmem:[%s415 + $0x28] sm:$0xff]
  %v422 = vld [vmem:[%s415 + $0x30] sm:$0xff]
  %v423 = vld [vmem:[%s415 + $0x38] sm:$0xff]
  %v424 = vld [vmem:[%s415 + $0x40] sm:$0xff]
  %v425 = vld [vmem:[%s415 + $0x48] sm:$0xff]
  %v426 = vld [vmem:[%s415 + $0x50] sm:$0xff]
  %v427 = vld [vmem:[%s415 + $0x58] sm:$0xff]
  %v428 = vld [vmem:[%s415 + $0x60] sm:$0xff]
  %v429 = vld [vmem:[%s415 + $0x68] sm:$0xff]
  %v430 = vld [vmem:[%s415 + $0x70] sm:$0xff]
  %v431 = vld [vmem:[%s415 + $0x78] sm:$0xff]
  %v432 = vld [vmem:[#allocation2 + $0x2] sm:$0xff]
  %v433 = vld [vmem:[#allocation2 + $0x12] sm:$0xff]
  %v434 = vpack.c.bf16 %v433, %v432
  %s435 = scalar_lea.vmem %s1, 384
  %v436 = vld [vmem:[%s435] sm:$0xff]
  %v437 = vld [vmem:[%s435 + $0x8] sm:$0xff]
  %v438 = vld [vmem:[%s435 + $0x10] sm:$0xff]
  %v439 = vld [vmem:[%s435 + $0x18] sm:$0xff]
  %v440 = vld [vmem:[%s435 + $0x20] sm:$0xff]
  %v441 = vld [vmem:[%s435 + $0x28] sm:$0xff]
  %v442 = vld [vmem:[%s435 + $0x30] sm:$0xff]
  %v443 = vld [vmem:[%s435 + $0x38] sm:$0xff]
  %v444 = vld [vmem:[%s435 + $0x40] sm:$0xff]
  %v445 = vld [vmem:[%s435 + $0x48] sm:$0xff]
  %v446 = vld [vmem:[%s435 + $0x50] sm:$0xff]
  %v447 = vld [vmem:[%s435 + $0x58] sm:$0xff]
  %v448 = vld [vmem:[%s435 + $0x60] sm:$0xff]
  %v449 = vld [vmem:[%s435 + $0x68] sm:$0xff]
  %v450 = vld [vmem:[%s435 + $0x70] sm:$0xff]
  %v451 = vld [vmem:[%s435 + $0x78] sm:$0xff]
  %v468 = vunpack.c.l.b16 %v436
  %v469 = vunpack.c.h.b16 %v436
  %v470 = vunpack.c.l.b16 %v437
  %v471 = vunpack.c.h.b16 %v437
  %v472 = vunpack.c.l.b16 %v438
  %v473 = vunpack.c.h.b16 %v438
  %v474 = vunpack.c.l.b16 %v439
  %v475 = vunpack.c.h.b16 %v439
  %v476 = vunpack.c.l.b16 %v440
  %v477 = vunpack.c.h.b16 %v440
  %v478 = vunpack.c.l.b16 %v441
  %v479 = vunpack.c.h.b16 %v441
  %v480 = vunpack.c.l.b16 %v442
  %v481 = vunpack.c.h.b16 %v442
  %v482 = vunpack.c.l.b16 %v443
  %v483 = vunpack.c.h.b16 %v443
  %v484 = vunpack.c.l.b16 %v444
  %v485 = vunpack.c.h.b16 %v444
  %v486 = vunpack.c.l.b16 %v445
  %v487 = vunpack.c.h.b16 %v445
  %v488 = vunpack.c.l.b16 %v446
  %v489 = vunpack.c.h.b16 %v446
  %v490 = vunpack.c.l.b16 %v447
  %v491 = vunpack.c.h.b16 %v447
  %v492 = vunpack.c.l.b16 %v448
  %v493 = vunpack.c.h.b16 %v448
  %v494 = vunpack.c.l.b16 %v449
  %v495 = vunpack.c.h.b16 %v449
  %v496 = vunpack.c.l.b16 %v450
  %v497 = vunpack.c.h.b16 %v450
  %v498 = vunpack.c.l.b16 %v451
  %v499 = vunpack.c.h.b16 %v451
  %v500 = vpack.c.b16 %v470, %v468
  %v501 = vpack.c.b16 %v471, %v469
  %v502 = vpack.c.b16 %v474, %v472
  %v503 = vpack.c.b16 %v475, %v473
  %v504 = vpack.c.b16 %v478, %v476
  %v505 = vpack.c.b16 %v479, %v477
  %v506 = vpack.c.b16 %v482, %v480
  %v507 = vpack.c.b16 %v483, %v481
  %v508 = vpack.c.b16 %v486, %v484
  %v509 = vpack.c.b16 %v487, %v485
  %v510 = vpack.c.b16 %v490, %v488
  %v511 = vpack.c.b16 %v491, %v489
  %v512 = vpack.c.b16 %v494, %v492
  %v513 = vpack.c.b16 %v495, %v493
  %v514 = vpack.c.b16 %v498, %v496
  %v515 = vpack.c.b16 %v499, %v497
  %532 = vmatpush.bf16.msra.mxu0 %v514
  %533 = vmatpush.bf16.msra.mxu0 %v512
  %534 = vmatpush.bf16.msra.mxu0 %v510
  %535 = vmatpush.bf16.msra.mxu0 %v508
  %536 = vmatpush.bf16.msra.mxu0 %v506
  %537 = vmatpush.bf16.msra.mxu0 %v504
  %538 = vmatpush.bf16.msra.mxu0 %v502
  %539 = vmatpush.bf16.msra.mxu0 %v500
  %540 = vmatmul.bf16.gmra.mxu0 %v434
  %v541 = vpop.f32.mrf.mxu0
  %v542 = vadd.f32 0.0, %v541
  %v543 = vpop.f32.mrf.mxu0
  %v544 = vadd.f32 0.0, %v543
  %545 = vdwg.mxu0
  %546 = vmatpush.bf16.msra.mxu0 %v515
  %547 = vmatpush.bf16.msra.mxu0 %v513
  %548 = vmatpush.bf16.msra.mxu0 %v511
  %549 = vmatpush.bf16.msra.mxu0 %v509
  %550 = vmatpush.bf16.msra.mxu0 %v507
  %551 = vmatpush.bf16.msra.mxu0 %v505
  %552 = vmatpush.bf16.msra.mxu0 %v503
  %553 = vmatpush.bf16.msra.mxu0 %v501
  %554 = vmatmul.bf16.gmra.mxu0 %v434
  %v555 = vpop.f32.mrf.mxu0
  %v556 = vadd.f32 0.0, %v555
  %v557 = vpop.f32.mrf.mxu0
  %v558 = vadd.f32 0.0, %v557
  %559 = vdwg.mxu0
  %v576 = vunpack.c.l.b16 %v416
  %v577 = vunpack.c.h.b16 %v416
  %v578 = vunpack.c.l.b16 %v417
  %v579 = vunpack.c.h.b16 %v417
  %v580 = vunpack.c.l.b16 %v418
  %v581 = vunpack.c.h.b16 %v418
  %v582 = vunpack.c.l.b16 %v419
  %v583 = vunpack.c.h.b16 %v419
  %v584 = vunpack.c.l.b16 %v420
  %v585 = vunpack.c.h.b16 %v420
  %v586 = vunpack.c.l.b16 %v421
  %v587 = vunpack.c.h.b16 %v421
  %v588 = vunpack.c.l.b16 %v422
  %v589 = vunpack.c.h.b16 %v422
  %v590 = vunpack.c.l.b16 %v423
  %v591 = vunpack.c.h.b16 %v423
  %v592 = vunpack.c.l.b16 %v424
  %v593 = vunpack.c.h.b16 %v424
  %v594 = vunpack.c.l.b16 %v425
  %v595 = vunpack.c.h.b16 %v425
  %v596 = vunpack.c.l.b16 %v426
  %v597 = vunpack.c.h.b16 %v426
  %v598 = vunpack.c.l.b16 %v427
  %v599 = vunpack.c.h.b16 %v427
  %v600 = vunpack.c.l.b16 %v428
  %v601 = vunpack.c.h.b16 %v428
  %v602 = vunpack.c.l.b16 %v429
  %v603 = vunpack.c.h.b16 %v429
  %v604 = vunpack.c.l.b16 %v430
  %v605 = vunpack.c.h.b16 %v430
  %v606 = vunpack.c.l.b16 %v431
  %v607 = vunpack.c.h.b16 %v431
  %v608 = vpack.c.b16 %v578, %v576
  %v609 = vpack.c.b16 %v579, %v577
  %v610 = vpack.c.b16 %v582, %v580
  %v611 = vpack.c.b16 %v583, %v581
  %v612 = vpack.c.b16 %v586, %v584
  %v613 = vpack.c.b16 %v587, %v585
  %v614 = vpack.c.b16 %v590, %v588
  %v615 = vpack.c.b16 %v591, %v589
  %v616 = vpack.c.b16 %v594, %v592
  %v617 = vpack.c.b16 %v595, %v593
  %v618 = vpack.c.b16 %v598, %v596
  %v619 = vpack.c.b16 %v599, %v597
  %v620 = vpack.c.b16 %v602, %v600
  %v621 = vpack.c.b16 %v603, %v601
  %v622 = vpack.c.b16 %v606, %v604
  %v623 = vpack.c.b16 %v607, %v605
  %640 = vmatpush.bf16.msra.mxu0 %v622
  %641 = vmatpush.bf16.msra.mxu0 %v620
  %642 = vmatpush.bf16.msra.mxu0 %v618
  %643 = vmatpush.bf16.msra.mxu0 %v616
  %644 = vmatpush.bf16.msra.mxu0 %v614
  %645 = vmatpush.bf16.msra.mxu0 %v612
  %646 = vmatpush.bf16.msra.mxu0 %v610
  %647 = vmatpush.bf16.msra.mxu0 %v608
  %648 = vmatmul.bf16.gmra.mxu0 %v414
  %v649 = vpop.f32.mrf.mxu0
  %v650 = vadd.f32 %v542, %v649
  %v651 = vpop.f32.mrf.mxu0
  %v652 = vadd.f32 %v544, %v651
  %653 = vdwg.mxu0
  %654 = vmatpush.bf16.msra.mxu0 %v623
  %655 = vmatpush.bf16.msra.mxu0 %v621
  %656 = vmatpush.bf16.msra.mxu0 %v619
  %657 = vmatpush.bf16.msra.mxu0 %v617
  %658 = vmatpush.bf16.msra.mxu0 %v615
  %659 = vmatpush.bf16.msra.mxu0 %v613
  %660 = vmatpush.bf16.msra.mxu0 %v611
  %661 = vmatpush.bf16.msra.mxu0 %v609
  %662 = vmatmul.bf16.gmra.mxu0 %v414
  %v663 = vpop.f32.mrf.mxu0
  %v664 = vadd.f32 %v556, %v663
  %v665 = vpop.f32.mrf.mxu0
  %v666 = vadd.f32 %v558, %v665
  %667 = vdwg.mxu0
  %v668 = vld [vmem:[%s2] sm:$0x3]
  %v670 = vperm.slane %v668, 0
  %v671 = vperm.slane %v668, 1
  %v674 = vadd.f32 %v650, %v670
  %v675 = vadd.f32 %v664, %v671
  %v676 = vadd.f32 %v652, %v670
  %v677 = vadd.f32 %v666, %v671
  %v682 = vrot.slane %v675, 7
  %v683 = vrot.slane %v677, 7
  %v684 = vsel %vm293, %v674, %v682
  %v685 = vsel %vm293, %v676, %v683
  %s688 = scalar_lea.vmem %s3, 1
  %689 = vst.msk [vmem:[%s688] ss:$8 sm:$0x3] %vm301, %v684
  %690 = vst.msk [vmem:[%s688] ss:$8 sm:$0x0] %vm301, %v684
  %s691 = scalar_lea.vmem %s3, 33
  %692 = vst.msk [vmem:[%s691] ss:$8 sm:$0x3] %vm301, %v685
  %693 = vst.msk [vmem:[%s691] ss:$8 sm:$0x0] %vm301, %v685
  %694 = vst [vmem:[#allocation1] sm:$0xff] %v674
  %695 = vst [vmem:[#allocation1 + $0x9] sm:$0xff] %v675
  %s696 = scalar_lea.vmem [#allocation1], 1
  %v697 = vld [vmem:[%s696] ss:$9 sm:$0xff]
  %698 = vst [vmem:[#allocation1] sm:$0xff] %v676
  %699 = vst [vmem:[#allocation1 + $0x9] sm:$0xff] %v677
  %v700 = vld [vmem:[%s696] ss:$9 sm:$0xff]
  %s703 = scalar_lea.vmem %s3, 3
  %704 = vst.msk [vmem:[%s703] ss:$8 sm:$0x3] %vm301, %v697
  %705 = vst.msk [vmem:[%s703] ss:$8 sm:$0x0] %vm301, %v697
  %s706 = scalar_lea.vmem %s3, 35
  %707 = vst.msk [vmem:[%s706] ss:$8 sm:$0x3] %vm301, %v700
  %708 = vst.msk [vmem:[%s706] ss:$8 sm:$0x0] %vm301, %v700
  %709 = vst [vmem:[#allocation1] sm:$0xff] %v674
  %710 = vst [vmem:[#allocation1 + $0x9] sm:$0xff] %v675
  %s711 = scalar_lea.vmem [#allocation1], 2
  %v712 = vld [vmem:[%s711] ss:$9 sm:$0xff]
  %713 = vst [vmem:[#allocation1] sm:$0xff] %v676
  %714 = vst [vmem:[#allocation1 + $0x9] sm:$0xff] %v677
  %v715 = vld [vmem:[%s711] ss:$9 sm:$0xff]
  %s718 = scalar_lea.vmem %s3, 5
  %719 = vst.msk [vmem:[%s718] ss:$8 sm:$0x3] %vm301, %v712
  %720 = vst.msk [vmem:[%s718] ss:$8 sm:$0x0] %vm301, %v712
  %s721 = scalar_lea.vmem %s3, 37
  %722 = vst.msk [vmem:[%s721] ss:$8 sm:$0x3] %vm301, %v715
  %723 = vst.msk [vmem:[%s721] ss:$8 sm:$0x0] %vm301, %v715
  %724 = vst [vmem:[#allocation1] sm:$0xff] %v674
  %725 = vst [vmem:[#allocation1 + $0x9] sm:$0xff] %v675
  %s726 = scalar_lea.vmem [#allocation1], 3
  %v727 = vld [vmem:[%s726] ss:$9 sm:$0xff]
  %728 = vst [vmem:[#allocation1] sm:$0xff] %v676
  %729 = vst [vmem:[#allocation1 + $0x9] sm:$0xff] %v677
  %v730 = vld [vmem:[%s726] ss:$9 sm:$0xff]
  %s733 = scalar_lea.vmem %s3, 7
  %734 = vst.msk [vmem:[%s733] ss:$8 sm:$0x3] %vm301, %v727
  %735 = vst.msk [vmem:[%s733] ss:$8 sm:$0x0] %vm301, %v727
  %s736 = scalar_lea.vmem %s3, 39
  %737 = vst.msk [vmem:[%s736] ss:$8 sm:$0x3] %vm301, %v730
  %738 = vst.msk [vmem:[%s736] ss:$8 sm:$0x0] %vm301, %v730
  %739 = vst [vmem:[#allocation1] sm:$0xff] %v674
  %740 = vst [vmem:[#allocation1 + $0x9] sm:$0xff] %v675
  %s741 = scalar_lea.vmem [#allocation1], 4
  %v742 = vld [vmem:[%s741] ss:$9 sm:$0xff]
  %743 = vst [vmem:[#allocation1] sm:$0xff] %v676
  %744 = vst [vmem:[#allocation1 + $0x9] sm:$0xff] %v677
  %v745 = vld [vmem:[%s741] ss:$9 sm:$0xff]
  %s748 = scalar_lea.vmem %s3, 17
  %749 = vst.msk [vmem:[%s748] ss:$8 sm:$0x3] %vm301, %v742
  %750 = vst.msk [vmem:[%s748] ss:$8 sm:$0x0] %vm301, %v742
  %s751 = scalar_lea.vmem %s3, 49
  %752 = vst.msk [vmem:[%s751] ss:$8 sm:$0x3] %vm301, %v745
  %753 = vst.msk [vmem:[%s751] ss:$8 sm:$0x0] %vm301, %v745
  %754 = vst [vmem:[#allocation1] sm:$0xff] %v674
  %755 = vst [vmem:[#allocation1 + $0x9] sm:$0xff] %v675
  %s756 = scalar_lea.vmem [#allocation1], 5
  %v757 = vld [vmem:[%s756] ss:$9 sm:$0xff]
  %758 = vst [vmem:[#allocation1] sm:$0xff] %v676
  %759 = vst [vmem:[#allocation1 + $0x9] sm:$0xff] %v677
  %v760 = vld [vmem:[%s756] ss:$9 sm:$0xff]
  %s763 = scalar_lea.vmem %s3, 19
  %764 = vst.msk [vmem:[%s763] ss:$8 sm:$0x3] %vm301, %v757
  %765 = vst.msk [vmem:[%s763] ss:$8 sm:$0x0] %vm301, %v757
  %s766 = scalar_lea.vmem %s3, 51
  %767 = vst.msk [vmem:[%s766] ss:$8 sm:$0x3] %vm301, %v760
  %768 = vst.msk [vmem:[%s766] ss:$8 sm:$0x0] %vm301, %v760
  %769 = vst [vmem:[#allocation1] sm:$0xff] %v674
  %770 = vst [vmem:[#allocation1 + $0x9] sm:$0xff] %v675
  %s771 = scalar_lea.vmem [#allocation1], 6
  %v772 = vld [vmem:[%s771] ss:$9 sm:$0xff]
  %773 = vst [vmem:[#allocation1] sm:$0xff] %v676
  %774 = vst [vmem:[#allocation1 + $0x9] sm:$0xff] %v677
  %v775 = vld [vmem:[%s771] ss:$9 sm:$0xff]
  %s778 = scalar_lea.vmem %s3, 21
  %779 = vst.msk [vmem:[%s778] ss:$8 sm:$0x3] %vm301, %v772
  %780 = vst.msk [vmem:[%s778] ss:$8 sm:$0x0] %vm301, %v772
  %s781 = scalar_lea.vmem %s3, 53
  %782 = vst.msk [vmem:[%s781] ss:$8 sm:$0x3] %vm301, %v775
  %783 = vst.msk [vmem:[%s781] ss:$8 sm:$0x0] %vm301, %v775
  %784 = vst [vmem:[#allocation1] sm:$0xff] %v674
  %785 = vst [vmem:[#allocation1 + $0x9] sm:$0xff] %v675
  %s786 = scalar_lea.vmem [#allocation1], 7
  %v787 = vld [vmem:[%s786] ss:$9 sm:$0xff]
  %788 = vst [vmem:[#allocation1] sm:$0xff] %v676
  %789 = vst [vmem:[#allocation1 + $0x9] sm:$0xff] %v677
  %v790 = vld [vmem:[%s786] ss:$9 sm:$0xff]
  %s793 = scalar_lea.vmem %s3, 23
  %794 = vst.msk [vmem:[%s793] ss:$8 sm:$0x3] %vm301, %v787
  %795 = vst.msk [vmem:[%s793] ss:$8 sm:$0x0] %vm301, %v787
  %s796 = scalar_lea.vmem %s3, 55
  %797 = vst.msk [vmem:[%s796] ss:$8 sm:$0x3] %vm301, %v790
  %798 = vst.msk [vmem:[%s796] ss:$8 sm:$0x0] %vm301, %v790
  // Predicated region
  $region14: #{_lambda_.19} parent=0 // pred_check
    _
  $region15: #{_lambda_.19} parent=0 // pred_check_branch
    %800 = sbr.rel (0) target = $region17
  $region16: #{_lambda_.19} parent=0 // pred_region
    _
  $region17: #{_lambda_.19} parent=0 // pred_fallthru
    _
  // Predicated region
  $region18: #{_lambda_.19} parent=0 // pred_check
    _
  $region19: #{_lambda_.19} parent=0 // pred_check_branch
    %802 = sbr.rel (0) target = $region21
  $region20: #{_lambda_.19} parent=0 // pred_region
    _
  $region21: #{_lambda_.19} parent=0 // pred_fallthru
    _

// kernel: _lambda_.21
$region0: #{_lambda_.21}
  #allocation0 [shape = 'u32[]', space=smem, size = 0x4, offset = 0x4, fixed_abs, tag = 'smem constant byte address 0x4 - core index']
  #allocation1 [shape = 'u32[72,128]{1,0:T(1,128)}', space=vmem, size = 0x9000, scoped, tag = 'internal scratch']
  #allocation2 [shape = 'f32[2,18,128]{2,1,0:T(8,128)}', space=vmem, size = 0x6000, scoped, tag = 'scratch operand']
  #allocation3 [shape = 'f32[2,18,128]{2,1,0:T(8,128)}', space=vmem, size = 0x6000, scoped, tag = 'scratch operand']
  %s0 = inlined_call_operand.vmem [shape: f32[2,16,128], index: 0, kind: input, shape index: {}]
  %s1 = inlined_call_operand.hbm [shape: bf16[3,128,128], index: 1, kind: input, shape index: {}]
  %s2 = inlined_call_operand.hbm [shape: f32[1,128], index: 2, kind: input, shape index: {}]
  %s3 = inlined_call_operand.vmem [shape: f32[2,128], index: 3, kind: input, shape index: {}]
  %s4 = inlined_call_operand.hbm [shape: bf16[3,128,128], index: 4, kind: input, shape index: {}]
  %s5 = inlined_call_operand.hbm [shape: f32[1,128], index: 5, kind: input, shape index: {}]
  %s6 = inlined_call_operand.vmem [shape: f32[2,16,128], index: 6, kind: output, shape index: {}]
  %s7 = sld [smem:[#allocation0]]
  $region50: #{_lambda_.21} parent=0
    _
  %s9 = ssub.s32 1, %s7
  %s10 = scalar_select 0, %s9, %s7
  $region1: #{_lambda_.21} parent=0
    #allocation4 [shape = 'u8[98304]{0}', space=vmem, size = 0x18000, scoped, tag = 'input window, operand 1, single buffered']
    #allocation5 [shape = 's32[1]{0}', space=sflag, size = 0x4, scoped, tag = 'scoped memory for _lambda_.21']
    #allocation6 [shape = 'u8[512]{0}', space=vmem, size = 0x400, scoped, tag = 'input window, operand 2, single buffered']
    #allocation7 [shape = 's32[1]{0}', space=sflag, size = 0x4, scoped, tag = 'scoped memory for _lambda_.21']
    #allocation8 [shape = 'u8[98304]{0}', space=vmem, size = 0x18000, scoped, tag = 'input window, operand 4, single buffered']
    #allocation9 [shape = 'u8[512]{0}', space=vmem, size = 0x400, scoped, tag = 'input window, operand 5, single buffered']
    #allocation10 [shape = 's32[1]{0}', space=sflag, size = 0x4, scoped, tag = 'scoped memory for _lambda_.21']
    %11 = vsyncpa [#allocation5], 0
    %12 = vsyncpa [#allocation7], 0
    %13 = vsyncpa [#allocation10], 0
    // Predicated region
    $region2: #{_lambda_.21} parent=1 // pred_check
      _
    $region3: #{_lambda_.21} parent=1 // pred_check_branch
      %15 = sbr.rel (0) target = $region5
    $region4: #{_lambda_.21} parent=1 // pred_region
      _
    $region5: #{_lambda_.21} parent=1 // pred_fallthru
      _
    // Predicated region
    $region6: #{_lambda_.21} parent=1 // pred_check
      _
    $region7: #{_lambda_.21} parent=1 // pred_check_branch
      %17 = sbr.rel (0) target = $region9
    $region8: #{_lambda_.21} parent=1 // pred_region
      %19 = vsyncadd [#allocation5], 0
      %s20 = sshll.u32 %s1, 4
      %s21 = int_to_ptr.hbm [resolvable:$true] %s20
      %s22 = sshll.u32 [#allocation4], 4
      %s23 = int_to_ptr.vmem [resolvable:$true] %s22
      %28 = dma.hbm_to_vmem [thread:$0]  %s21, 3072, %s23, [#allocation5], 64, 64, 4
    $region9: #{_lambda_.21} parent=1 // pred_fallthru
      _
    // Predicated region
    $region10: #{_lambda_.21} parent=1 // pred_check
      _
    $region11: #{_lambda_.21} parent=1 // pred_check_branch
      %30 = sbr.rel (0) target = $region13
    $region12: #{_lambda_.21} parent=1 // pred_region
      %32 = vsyncadd [#allocation7], 0
      %s34 = sshll.u32 %s2, 4
      %s35 = int_to_ptr.hbm [resolvable:$true] %s34
      %s36 = sshll.u32 [#allocation6], 4
      %s37 = int_to_ptr.vmem [resolvable:$true] %s36
      %39 = dma.hbm_to_vmem [thread:$0]  %s35, 16, %s37, [#allocation7]
    $region13: #{_lambda_.21} parent=1 // pred_fallthru
      _
    // Predicated region
    $region14: #{_lambda_.21} parent=1 // pred_check
      _
    $region15: #{_lambda_.21} parent=1 // pred_check_branch
      %41 = sbr.rel (0) target = $region17
    $region16: #{_lambda_.21} parent=1 // pred_region
      _
    $region17: #{_lambda_.21} parent=1 // pred_fallthru
      _
    // Predicated region
    $region18: #{_lambda_.21} parent=1 // pred_check
      _
    $region19: #{_lambda_.21} parent=1 // pred_check_branch
      %43 = sbr.rel (0) target = $region21
    $region20: #{_lambda_.21} parent=1 // pred_region
      %45 = vsyncadd [#allocation7], 0
      %s46 = sshll.u32 %s4, 4
      %s47 = int_to_ptr.hbm [resolvable:$true] %s46
      %s48 = sshll.u32 [#allocation8], 4
      %s49 = int_to_ptr.vmem [resolvable:$true] %s48
      %54 = dma.hbm_to_vmem [thread:$0]  %s47, 3072, %s49, [#allocation7], 64, 64, 4
    $region21: #{_lambda_.21} parent=1 // pred_fallthru
      _
    // Predicated region
    $region22: #{_lambda_.21} parent=1 // pred_check
      _
    $region23: #{_lambda_.21} parent=1 // pred_check_branch
      %56 = sbr.rel (0) target = $region25
    $region24: #{_lambda_.21} parent=1 // pred_region
      %58 = vsyncadd [#allocation10], 0
      %s60 = sshll.u32 %s5, 4
      %s61 = int_to_ptr.hbm [resolvable:$true] %s60
      %s62 = sshll.u32 [#allocation9], 4
      %s63 = int_to_ptr.vmem [resolvable:$true] %s62
      %65 = dma.hbm_to_vmem [thread:$0]  %s61, 16, %s63, [#allocation10]
    $region25: #{_lambda_.21} parent=1 // pred_fallthru
      _
    // Predicated region
    $region26: #{_lambda_.21} parent=1 // pred_check
      _
    $region27: #{_lambda_.21} parent=1 // pred_check_branch
      %67 = sbr.rel (0) target = $region29
    $region28: #{_lambda_.21} parent=1 // pred_region
      %69 = dma.done [#allocation5], 3072
    $region29: #{_lambda_.21} parent=1 // pred_fallthru
      _
    // Predicated region
    $region30: #{_lambda_.21} parent=1 // pred_check
      _
    $region31: #{_lambda_.21} parent=1 // pred_check_branch
      %71 = sbr.rel (0) target = $region33
    $region32: #{_lambda_.21} parent=1 // pred_region
      %73 = dma.done [#allocation7], 16
    $region33: #{_lambda_.21} parent=1 // pred_fallthru
      _
    // Predicated region
    $region34: #{_lambda_.21} parent=1 // pred_check
      _
    $region35: #{_lambda_.21} parent=1 // pred_check_branch
      %75 = sbr.rel (0) target = $region37
    $region36: #{_lambda_.21} parent=1 // pred_region
      %77 = dma.done [#allocation7], 3072
    $region37: #{_lambda_.21} parent=1 // pred_fallthru
      _
    // Predicated region
    $region38: #{_lambda_.21} parent=1 // pred_check
      _
    $region39: #{_lambda_.21} parent=1 // pred_check_branch
      %79 = sbr.rel (0) target = $region41
    $region40: #{_lambda_.21} parent=1 // pred_region
      %81 = dma.done [#allocation10], 16
    $region41: #{_lambda_.21} parent=1 // pred_fallthru
      _
    %82 = vst [vmem:[#allocation2] sm:$0xff] 0.0
    %83 = vst [vmem:[#allocation2 + $0x8] sm:$0xff] 0.0
    %84 = vst [vmem:[#allocation2 + $0x10] sm:$0x3] 0.0
    %85 = vst [vmem:[#allocation2 + $0x18] sm:$0xff] 0.0
    %86 = vst [vmem:[#allocation2 + $0x20] sm:$0xff] 0.0
    %87 = vst [vmem:[#allocation2 + $0x28] sm:$0x3] 0.0
    %v88 = vld [vmem:[%s0] sm:$0xff]
    %v89 = vld [vmem:[%s0 + $0x8] sm:$0xff]
    %v90 = vld [vmem:[%s0 + $0x10] sm:$0xff]
    %v91 = vld [vmem:[%s0 + $0x18] sm:$0xff]
    %92 = vst [vmem:[#allocation2 + $0x1] sm:$0xff] %v88
    %93 = vst [vmem:[#allocation2 + $0x9] sm:$0xff] %v89
    %94 = vst [vmem:[#allocation2 + $0x19] sm:$0xff] %v90
    %95 = vst [vmem:[#allocation2 + $0x21] sm:$0xff] %v91
    %v96 = vld [vmem:[#allocation2] sm:$0xff]
    %v97 = vld [vmem:[#allocation2 + $0x8] sm:$0xff]
    %v98 = vld [vmem:[#allocation2 + $0x18] sm:$0xff]
    %v99 = vld [vmem:[#allocation2 + $0x20] sm:$0xff]
    %v100 = vpack.c.bf16 %v97, %v96
    %v101 = vpack.c.bf16 %v99, %v98
    %v102 = vld [vmem:[#allocation4] sm:$0xf]
    %v103 = vld [vmem:[#allocation4 + $0x4] sm:$0xf]
    %v104 = vld [vmem:[#allocation4 + $0x8] sm:$0xf]
    %v105 = vld [vmem:[#allocation4 + $0xc] sm:$0xf]
    %v106 = vld [vmem:[#allocation4 + $0x10] sm:$0xf]
    %v107 = vld [vmem:[#allocation4 + $0x14] sm:$0xf]
    %v108 = vld [vmem:[#allocation4 + $0x18] sm:$0xf]
    %v109 = vld [vmem:[#allocation4 + $0x1c] sm:$0xf]
    %v110 = vld [vmem:[#allocation4 + $0x20] sm:$0xf]
    %v111 = vld [vmem:[#allocation4 + $0x24] sm:$0xf]
    %v112 = vld [vmem:[#allocation4 + $0x28] sm:$0xf]
    %v113 = vld [vmem:[#allocation4 + $0x2c] sm:$0xf]
    %v114 = vld [vmem:[#allocation4 + $0x30] sm:$0xf]
    %v115 = vld [vmem:[#allocation4 + $0x34] sm:$0xf]
    %v116 = vld [vmem:[#allocation4 + $0x38] sm:$0xf]
    %v117 = vld [vmem:[#allocation4 + $0x3c] sm:$0xf]
    %v118 = vld [vmem:[#allocation2 + $0x1] sm:$0xff]
    %v119 = vld [vmem:[#allocation2 + $0x9] sm:$0xff]
    %v120 = vld [vmem:[#allocation2 + $0x19] sm:$0xff]
    %v121 = vld [vmem:[#allocation2 + $0x21] sm:$0xff]
    %v122 = vpack.c.bf16 %v119, %v118
    %v123 = vpack.c.bf16 %v121, %v120
    %s124 = scalar_lea.vmem [#allocation4], 64
    %v125 = vld [vmem:[%s124] sm:$0xf]
    %v126 = vld [vmem:[%s124 + $0x4] sm:$0xf]
    %v127 = vld [vmem:[%s124 + $0x8] sm:$0xf]
    %v128 = vld [vmem:[%s124 + $0xc] sm:$0xf]
    %v129 = vld [vmem:[%s124 + $0x10] sm:$0xf]
    %v130 = vld [vmem:[%s124 + $0x14] sm:$0xf]
    %v131 = vld [vmem:[%s124 + $0x18] sm:$0xf]
    %v132 = vld [vmem:[%s124 + $0x1c] sm:$0xf]
    %v133 = vld [vmem:[%s124 + $0x20] sm:$0xf]
    %v134 = vld [vmem:[%s124 + $0x24] sm:$0xf]
    %v135 = vld [vmem:[%s124 + $0x28] sm:$0xf]
    %v136 = vld [vmem:[%s124 + $0x2c] sm:$0xf]
    %v137 = vld [vmem:[%s124 + $0x30] sm:$0xf]
    %v138 = vld [vmem:[%s124 + $0x34] sm:$0xf]
    %v139 = vld [vmem:[%s124 + $0x38] sm:$0xf]
    %v140 = vld [vmem:[%s124 + $0x3c] sm:$0xf]
    %v157 = vunpack.c.l.b16 %v125
    %v158 = vunpack.c.l.b16 %v126
    %v159 = vunpack.c.l.b16 %v127
    %v160 = vunpack.c.l.b16 %v128
    %v161 = vunpack.c.l.b16 %v129
    %v162 = vunpack.c.l.b16 %v130
    %v163 = vunpack.c.l.b16 %v131
    %v164 = vunpack.c.l.b16 %v132
    %v165 = vunpack.c.l.b16 %v133
    %v166 = vunpack.c.l.b16 %v134
    %v167 = vunpack.c.l.b16 %v135
    %v168 = vunpack.c.l.b16 %v136
    %v169 = vunpack.c.l.b16 %v137
    %v170 = vunpack.c.l.b16 %v138
    %v171 = vunpack.c.l.b16 %v139
    %v172 = vunpack.c.l.b16 %v140
    %v173 = vpack.c.b16 %v158, %v157
    %v174 = vpack.c.b16 %v160, %v159
    %v175 = vpack.c.b16 %v162, %v161
    %v176 = vpack.c.b16 %v164, %v163
    %v177 = vpack.c.b16 %v166, %v165
    %v178 = vpack.c.b16 %v168, %v167
    %v179 = vpack.c.b16 %v170, %v169
    %v180 = vpack.c.b16 %v172, %v171
    %189 = vmatpush.bf16.msra.mxu0 %v180
    %190 = vmatpush.bf16.msra.mxu0 %v179
    %191 = vmatpush.bf16.msra.mxu0 %v178
    %192 = vmatpush.bf16.msra.mxu0 %v177
    %193 = vmatpush.bf16.msra.mxu0 %v176
    %194 = vmatpush.bf16.msra.mxu0 %v175
    %195 = vmatpush.bf16.msra.mxu0 %v174
    %196 = vmatpush.bf16.msra.mxu0 %v173
    %197 = vmatmul.bf16.gmra.mxu0 %v122
    %v198 = vpop.f32.mrf.mxu0
    %v199 = vadd.f32 0.0, %v198
    %v200 = vpop.f32.mrf.mxu0
    %v201 = vadd.f32 0.0, %v200
    %202 = vmatmul.bf16.gmra.mxu0 %v123
    %v203 = vpop.f32.mrf.mxu0
    %v204 = vadd.f32 0.0, %v203
    %v205 = vpop.f32.mrf.mxu0
    %v206 = vadd.f32 0.0, %v205
    %207 = vdwg.mxu0
    %v224 = vunpack.c.l.b16 %v102
    %v225 = vunpack.c.l.b16 %v103
    %v226 = vunpack.c.l.b16 %v104
    %v227 = vunpack.c.l.b16 %v105
    %v228 = vunpack.c.l.b16 %v106
    %v229 = vunpack.c.l.b16 %v107
    %v230 = vunpack.c.l.b16 %v108
    %v231 = vunpack.c.l.b16 %v109
    %v232 = vunpack.c.l.b16 %v110
    %v233 = vunpack.c.l.b16 %v111
    %v234 = vunpack.c.l.b16 %v112
    %v235 = vunpack.c.l.b16 %v113
    %v236 = vunpack.c.l.b16 %v114
    %v237 = vunpack.c.l.b16 %v115
    %v238 = vunpack.c.l.b16 %v116
    %v239 = vunpack.c.l.b16 %v117
    %v240 = vpack.c.b16 %v225, %v224
    %v241 = vpack.c.b16 %v227, %v226
    %v242 = vpack.c.b16 %v229, %v228
    %v243 = vpack.c.b16 %v231, %v230
    %v244 = vpack.c.b16 %v233, %v232
    %v245 = vpack.c.b16 %v235, %v234
    %v246 = vpack.c.b16 %v237, %v236
    %v247 = vpack.c.b16 %v239, %v238
    %256 = vmatpush.bf16.msra.mxu0 %v247
    %257 = vmatpush.bf16.msra.mxu0 %v246
    %258 = vmatpush.bf16.msra.mxu0 %v245
    %259 = vmatpush.bf16.msra.mxu0 %v244
    %260 = vmatpush.bf16.msra.mxu0 %v243
    %261 = vmatpush.bf16.msra.mxu0 %v242
    %262 = vmatpush.bf16.msra.mxu0 %v241
    %263 = vmatpush.bf16.msra.mxu0 %v240
    %264 = vmatmul.bf16.gmra.mxu0 %v100
    %v265 = vpop.f32.mrf.mxu0
    %v266 = vadd.f32 %v199, %v265
    %v267 = vpop.f32.mrf.mxu0
    %v268 = vadd.f32 %v201, %v267
    %269 = vmatmul.bf16.gmra.mxu0 %v101
    %v270 = vpop.f32.mrf.mxu0
    %v271 = vadd.f32 %v204, %v270
    %v272 = vpop.f32.mrf.mxu0
    %v273 = vadd.f32 %v206, %v272
    %274 = vdwg.mxu0
    %v275 = vld [vmem:[#allocation2 + $0x2] sm:$0xff]
    %v276 = vld [vmem:[#allocation2 + $0xa] sm:$0xff]
    %v277 = vld [vmem:[#allocation2 + $0x1a] sm:$0xff]
    %v278 = vld [vmem:[#allocation2 + $0x22] sm:$0xff]
    %v279 = vpack.c.bf16 %v276, %v275
    %v280 = vpack.c.bf16 %v278, %v277
    %s281 = scalar_lea.vmem [#allocation4], 128
    %v282 = vld [vmem:[%s281] sm:$0xf]
    %v283 = vld [vmem:[%s281 + $0x4] sm:$0xf]
    %v284 = vld [vmem:[%s281 + $0x8] sm:$0xf]
    %v285 = vld [vmem:[%s281 + $0xc] sm:$0xf]
    %v286 = vld [vmem:[%s281 + $0x10] sm:$0xf]
    %v287 = vld [vmem:[%s281 + $0x14] sm:$0xf]
    %v288 = vld [vmem:[%s281 + $0x18] sm:$0xf]
    %v289 = vld [vmem:[%s281 + $0x1c] sm:$0xf]
    %v290 = vld [vmem:[%s281 + $0x20] sm:$0xf]
    %v291 = vld [vmem:[%s281 + $0x24] sm:$0xf]
    %v292 = vld [vmem:[%s281 + $0x28] sm:$0xf]
    %v293 = vld [vmem:[%s281 + $0x2c] sm:$0xf]
    %v294 = vld [vmem:[%s281 + $0x30] sm:$0xf]
    %v295 = vld [vmem:[%s281 + $0x34] sm:$0xf]
    %v296 = vld [vmem:[%s281 + $0x38] sm:$0xf]
    %v297 = vld [vmem:[%s281 + $0x3c] sm:$0xf]
    %v314 = vunpack.c.l.b16 %v282
    %v315 = vunpack.c.l.b16 %v283
    %v316 = vunpack.c.l.b16 %v284
    %v317 = vunpack.c.l.b16 %v285
    %v318 = vunpack.c.l.b16 %v286
    %v319 = vunpack.c.l.b16 %v287
    %v320 = vunpack.c.l.b16 %v288
    %v321 = vunpack.c.l.b16 %v289
    %v322 = vunpack.c.l.b16 %v290
    %v323 = vunpack.c.l.b16 %v291
    %v324 = vunpack.c.l.b16 %v292
    %v325 = vunpack.c.l.b16 %v293
    %v326 = vunpack.c.l.b16 %v294
    %v327 = vunpack.c.l.b16 %v295
    %v328 = vunpack.c.l.b16 %v296
    %v329 = vunpack.c.l.b16 %v297
    %v330 = vpack.c.b16 %v315, %v314
    %v331 = vpack.c.b16 %v317, %v316
    %v332 = vpack.c.b16 %v319, %v318
    %v333 = vpack.c.b16 %v321, %v320
    %v334 = vpack.c.b16 %v323, %v322
    %v335 = vpack.c.b16 %v325, %v324
    %v336 = vpack.c.b16 %v327, %v326
    %v337 = vpack.c.b16 %v329, %v328
    %346 = vmatpush.bf16.msra.mxu0 %v337
    %347 = vmatpush.bf16.msra.mxu0 %v336
    %348 = vmatpush.bf16.msra.mxu0 %v335
    %349 = vmatpush.bf16.msra.mxu0 %v334
    %350 = vmatpush.bf16.msra.mxu0 %v333
    %351 = vmatpush.bf16.msra.mxu0 %v332
    %352 = vmatpush.bf16.msra.mxu0 %v331
    %353 = vmatpush.bf16.msra.mxu0 %v330
    %354 = vmatmul.bf16.gmra.mxu0 %v279
    %v355 = vpop.f32.mrf.mxu0
    %v356 = vadd.f32 0.0, %v355
    %v357 = vpop.f32.mrf.mxu0
    %v358 = vadd.f32 0.0, %v357
    %359 = vmatmul.bf16.gmra.mxu0 %v280
    %v360 = vpop.f32.mrf.mxu0
    %v361 = vadd.f32 0.0, %v360
    %v362 = vpop.f32.mrf.mxu0
    %v363 = vadd.f32 0.0, %v362
    %364 = vdwg.mxu0
    %v365 = vadd.f32 %v266, %v356
    %v366 = vadd.f32 %v268, %v358
    %v367 = vadd.f32 %v271, %v361
    %v368 = vadd.f32 %v273, %v363
    %v369 = vld [vmem:[#allocation6] sm:$0x1]
    %v371 = vperm.slane %v369, 0
    %v373 = vadd.f32 %v365, %v371
    %v374 = vadd.f32 %v366, %v371
    %v375 = vadd.f32 %v367, %v371
    %v376 = vadd.f32 %v368, %v371
    %v377 = vmul.f32 %v373, 0.5
    %v378 = vmul.f32 %v374, 0.5
    %v379 = vmul.f32 %v375, 0.5
    %v380 = vmul.f32 %v376, 0.5
    %v381 = vmul.f32 %v373, 0.044715
    %v382 = vmul.f32 %v374, 0.044715
    %v383 = vmul.f32 %v375, 0.044715
    %v384 = vmul.f32 %v376, 0.044715
    %v385 = vmul.f32 %v381, %v373
    %v386 = vmul.f32 %v382, %v374
    %v387 = vmul.f32 %v383, %v375
    %v388 = vmul.f32 %v384, %v376
    %v389 = vmul.f32 %v385, %v373
    %v390 = vmul.f32 %v386, %v374
    %v391 = vmul.f32 %v387, %v375
    %v392 = vmul.f32 %v388, %v376
    %v393 = vadd.f32 %v373, %v389
    %v394 = vadd.f32 %v374, %v390
    %v395 = vadd.f32 %v375, %v391
    %v396 = vadd.f32 %v376, %v392
    %v397 = vmul.f32 %v393, 0.7978846
    %v398 = vmul.f32 %v394, 0.7978846
    %v399 = vmul.f32 %v395, 0.7978846
    %v400 = vmul.f32 %v396, 0.7978846
    %v401 = vtanh.pop %v397
    %v402 = vtanh.pop %v398
    %v403 = vtanh.pop %v399
    %v404 = vtanh.pop %v400
    %v405 = vadd.f32 %v401, 1.0
    %v406 = vadd.f32 %v402, 1.0
    %v407 = vadd.f32 %v403, 1.0
    %v408 = vadd.f32 %v404, 1.0
    %v409 = vmul.f32 %v377, %v405
    %v410 = vmul.f32 %v378, %v406
    %v411 = vmul.f32 %v379, %v407
    %v412 = vmul.f32 %v380, %v408
    %v413 = vld [vmem:[%s3] sm:$0x3]
    %v415 = vrot.slane %v413, 1
    %v416 = vperm.slane %v413, 0
    %v417 = vperm.slane %v415, 0
    %v420 = vadd.f32 %v409, %v416
    %v421 = vadd.f32 %v410, %v416
    %v422 = vadd.f32 %v411, %v417
    %v423 = vadd.f32 %v412, %v417
    %424 = vst [vmem:[#allocation3] sm:$0xff] 0.0
    %425 = vst [vmem:[#allocation3 + $0x8] sm:$0xff] 0.0
    %426 = vst [vmem:[#allocation3 + $0x10] sm:$0x3] 0.0
    %427 = vst [vmem:[#allocation3 + $0x18] sm:$0xff] 0.0
    %428 = vst [vmem:[#allocation3 + $0x20] sm:$0xff] 0.0
    %429 = vst [vmem:[#allocation3 + $0x28] sm:$0x3] 0.0
    %430 = vst [vmem:[#allocation3 + $0x1] sm:$0xff] %v420
    %431 = vst [vmem:[#allocation3 + $0x9] sm:$0xff] %v421
    %432 = vst [vmem:[#allocation3 + $0x19] sm:$0xff] %v422
    %433 = vst [vmem:[#allocation3 + $0x21] sm:$0xff] %v423
    %v434 = vld [vmem:[#allocation3] sm:$0xff]
    %v435 = vld [vmem:[#allocation3 + $0x8] sm:$0xff]
    %v436 = vld [vmem:[#allocation3 + $0x18] sm:$0xff]
    %v437 = vld [vmem:[#allocation3 + $0x20] sm:$0xff]
    %v438 = vpack.c.bf16 %v435, %v434
    %v439 = vpack.c.bf16 %v437, %v436
    %v440 = vld [vmem:[#allocation8] sm:$0xf]
    %v441 = vld [vmem:[#allocation8 + $0x4] sm:$0xf]
    %v442 = vld [vmem:[#allocation8 + $0x8] sm:$0xf]
    %v443 = vld [vmem:[#allocation8 + $0xc] sm:$0xf]
    %v444 = vld [vmem:[#allocation8 + $0x10] sm:$0xf]
    %v445 = vld [vmem:[#allocation8 + $0x14] sm:$0xf]
    %v446 = vld [vmem:[#allocation8 + $0x18] sm:$0xf]
    %v447 = vld [vmem:[#allocation8 + $0x1c] sm:$0xf]
    %v448 = vld [vmem:[#allocation8 + $0x20] sm:$0xf]
    %v449 = vld [vmem:[#allocation8 + $0x24] sm:$0xf]
    %v450 = vld [vmem:[#allocation8 + $0x28] sm:$0xf]
    %v451 = vld [vmem:[#allocation8 + $0x2c] sm:$0xf]
    %v452 = vld [vmem:[#allocation8 + $0x30] sm:$0xf]
    %v453 = vld [vmem:[#allocation8 + $0x34] sm:$0xf]
    %v454 = vld [vmem:[#allocation8 + $0x38] sm:$0xf]
    %v455 = vld [vmem:[#allocation8 + $0x3c] sm:$0xf]
    %v456 = vld [vmem:[#allocation3 + $0x1] sm:$0xff]
    %v457 = vld [vmem:[#allocation3 + $0x9] sm:$0xff]
    %v458 = vld [vmem:[#allocation3 + $0x19] sm:$0xff]
    %v459 = vld [vmem:[#allocation3 + $0x21] sm:$0xff]
    %v460 = vpack.c.bf16 %v457, %v456
    %v461 = vpack.c.bf16 %v459, %v458
    %s462 = scalar_lea.vmem [#allocation8], 64
    %v463 = vld [vmem:[%s462] sm:$0xf]
    %v464 = vld [vmem:[%s462 + $0x4] sm:$0xf]
    %v465 = vld [vmem:[%s462 + $0x8] sm:$0xf]
    %v466 = vld [vmem:[%s462 + $0xc] sm:$0xf]
    %v467 = vld [vmem:[%s462 + $0x10] sm:$0xf]
    %v468 = vld [vmem:[%s462 + $0x14] sm:$0xf]
    %v469 = vld [vmem:[%s462 + $0x18] sm:$0xf]
    %v470 = vld [vmem:[%s462 + $0x1c] sm:$0xf]
    %v471 = vld [vmem:[%s462 + $0x20] sm:$0xf]
    %v472 = vld [vmem:[%s462 + $0x24] sm:$0xf]
    %v473 = vld [vmem:[%s462 + $0x28] sm:$0xf]
    %v474 = vld [vmem:[%s462 + $0x2c] sm:$0xf]
    %v475 = vld [vmem:[%s462 + $0x30] sm:$0xf]
    %v476 = vld [vmem:[%s462 + $0x34] sm:$0xf]
    %v477 = vld [vmem:[%s462 + $0x38] sm:$0xf]
    %v478 = vld [vmem:[%s462 + $0x3c] sm:$0xf]
    %v495 = vunpack.c.l.b16 %v463
    %v496 = vunpack.c.l.b16 %v464
    %v497 = vunpack.c.l.b16 %v465
    %v498 = vunpack.c.l.b16 %v466
    %v499 = vunpack.c.l.b16 %v467
    %v500 = vunpack.c.l.b16 %v468
    %v501 = vunpack.c.l.b16 %v469
    %v502 = vunpack.c.l.b16 %v470
    %v503 = vunpack.c.l.b16 %v471
    %v504 = vunpack.c.l.b16 %v472
    %v505 = vunpack.c.l.b16 %v473
    %v506 = vunpack.c.l.b16 %v474
    %v507 = vunpack.c.l.b16 %v475
    %v508 = vunpack.c.l.b16 %v476
    %v509 = vunpack.c.l.b16 %v477
    %v510 = vunpack.c.l.b16 %v478
    %v511 = vpack.c.b16 %v496, %v495
    %v512 = vpack.c.b16 %v498, %v497
    %v513 = vpack.c.b16 %v500, %v499
    %v514 = vpack.c.b16 %v502, %v501
    %v515 = vpack.c.b16 %v504, %v503
    %v516 = vpack.c.b16 %v506, %v505
    %v517 = vpack.c.b16 %v508, %v507
    %v518 = vpack.c.b16 %v510, %v509
    %527 = vmatpush.bf16.msra.mxu0 %v518
    %528 = vmatpush.bf16.msra.mxu0 %v517
    %529 = vmatpush.bf16.msra.mxu0 %v516
    %530 = vmatpush.bf16.msra.mxu0 %v515
    %531 = vmatpush.bf16.msra.mxu0 %v514
    %532 = vmatpush.bf16.msra.mxu0 %v513
    %533 = vmatpush.bf16.msra.mxu0 %v512
    %534 = vmatpush.bf16.msra.mxu0 %v511
    %535 = vmatmul.bf16.gmra.mxu0 %v460
    %v536 = vpop.f32.mrf.mxu0
    %v537 = vadd.f32 0.0, %v536
    %v538 = vpop.f32.mrf.mxu0
    %v539 = vadd.f32 0.0, %v538
    %540 = vmatmul.bf16.gmra.mxu0 %v461
    %v541 = vpop.f32.mrf.mxu0
    %v542 = vadd.f32 0.0, %v541
    %v543 = vpop.f32.mrf.mxu0
    %v544 = vadd.f32 0.0, %v543
    %545 = vdwg.mxu0
    %v562 = vunpack.c.l.b16 %v440
    %v563 = vunpack.c.l.b16 %v441
    %v564 = vunpack.c.l.b16 %v442
    %v565 = vunpack.c.l.b16 %v443
    %v566 = vunpack.c.l.b16 %v444
    %v567 = vunpack.c.l.b16 %v445
    %v568 = vunpack.c.l.b16 %v446
    %v569 = vunpack.c.l.b16 %v447
    %v570 = vunpack.c.l.b16 %v448
    %v571 = vunpack.c.l.b16 %v449
    %v572 = vunpack.c.l.b16 %v450
    %v573 = vunpack.c.l.b16 %v451
    %v574 = vunpack.c.l.b16 %v452
    %v575 = vunpack.c.l.b16 %v453
    %v576 = vunpack.c.l.b16 %v454
    %v577 = vunpack.c.l.b16 %v455
    %v578 = vpack.c.b16 %v563, %v562
    %v579 = vpack.c.b16 %v565, %v564
    %v580 = vpack.c.b16 %v567, %v566
    %v581 = vpack.c.b16 %v569, %v568
    %v582 = vpack.c.b16 %v571, %v570
    %v583 = vpack.c.b16 %v573, %v572
    %v584 = vpack.c.b16 %v575, %v574
    %v585 = vpack.c.b16 %v577, %v576
    %594 = vmatpush.bf16.msra.mxu0 %v585
    %595 = vmatpush.bf16.msra.mxu0 %v584
    %596 = vmatpush.bf16.msra.mxu0 %v583
    %597 = vmatpush.bf16.msra.mxu0 %v582
    %598 = vmatpush.bf16.msra.mxu0 %v581
    %599 = vmatpush.bf16.msra.mxu0 %v580
    %600 = vmatpush.bf16.msra.mxu0 %v579
    %601 = vmatpush.bf16.msra.mxu0 %v578
    %602 = vmatmul.bf16.gmra.mxu0 %v438
    %v603 = vpop.f32.mrf.mxu0
    %v604 = vadd.f32 %v537, %v603
    %v605 = vpop.f32.mrf.mxu0
    %v606 = vadd.f32 %v539, %v605
    %607 = vmatmul.bf16.gmra.mxu0 %v439
    %v608 = vpop.f32.mrf.mxu0
    %v609 = vadd.f32 %v542, %v608
    %v610 = vpop.f32.mrf.mxu0
    %v611 = vadd.f32 %v544, %v610
    %612 = vdwg.mxu0
    %v613 = vld [vmem:[#allocation3 + $0x2] sm:$0xff]
    %v614 = vld [vmem:[#allocation3 + $0xa] sm:$0xff]
    %v615 = vld [vmem:[#allocation3 + $0x1a] sm:$0xff]
    %v616 = vld [vmem:[#allocation3 + $0x22] sm:$0xff]
    %v617 = vpack.c.bf16 %v614, %v613
    %v618 = vpack.c.bf16 %v616, %v615
    %s619 = scalar_lea.vmem [#allocation8], 128
    %v620 = vld [vmem:[%s619] sm:$0xf]
    %v621 = vld [vmem:[%s619 + $0x4] sm:$0xf]
    %v622 = vld [vmem:[%s619 + $0x8] sm:$0xf]
    %v623 = vld [vmem:[%s619 + $0xc] sm:$0xf]
    %v624 = vld [vmem:[%s619 + $0x10] sm:$0xf]
    %v625 = vld [vmem:[%s619 + $0x14] sm:$0xf]
    %v626 = vld [vmem:[%s619 + $0x18] sm:$0xf]
    %v627 = vld [vmem:[%s619 + $0x1c] sm:$0xf]
    %v628 = vld [vmem:[%s619 + $0x20] sm:$0xf]
    %v629 = vld [vmem:[%s619 + $0x24] sm:$0xf]
    %v630 = vld [vmem:[%s619 + $0x28] sm:$0xf]
    %v631 = vld [vmem:[%s619 + $0x2c] sm:$0xf]
    %v632 = vld [vmem:[%s619 + $0x30] sm:$0xf]
    %v633 = vld [vmem:[%s619 + $0x34] sm:$0xf]
    %v634 = vld [vmem:[%s619 + $0x38] sm:$0xf]
    %v635 = vld [vmem:[%s619 + $0x3c] sm:$0xf]
    %v652 = vunpack.c.l.b16 %v620
    %v653 = vunpack.c.l.b16 %v621
    %v654 = vunpack.c.l.b16 %v622
    %v655 = vunpack.c.l.b16 %v623
    %v656 = vunpack.c.l.b16 %v624
    %v657 = vunpack.c.l.b16 %v625
    %v658 = vunpack.c.l.b16 %v626
    %v659 = vunpack.c.l.b16 %v627
    %v660 = vunpack.c.l.b16 %v628
    %v661 = vunpack.c.l.b16 %v629
    %v662 = vunpack.c.l.b16 %v630
    %v663 = vunpack.c.l.b16 %v631
    %v664 = vunpack.c.l.b16 %v632
    %v665 = vunpack.c.l.b16 %v633
    %v666 = vunpack.c.l.b16 %v634
    %v667 = vunpack.c.l.b16 %v635
    %v668 = vpack.c.b16 %v653, %v652
    %v669 = vpack.c.b16 %v655, %v654
    %v670 = vpack.c.b16 %v657, %v656
    %v671 = vpack.c.b16 %v659, %v658
    %v672 = vpack.c.b16 %v661, %v660
    %v673 = vpack.c.b16 %v663, %v662
    %v674 = vpack.c.b16 %v665, %v664
    %v675 = vpack.c.b16 %v667, %v666
    %684 = vmatpush.bf16.msra.mxu0 %v675
    %685 = vmatpush.bf16.msra.mxu0 %v674
    %686 = vmatpush.bf16.msra.mxu0 %v673
    %687 = vmatpush.bf16.msra.mxu0 %v672
    %688 = vmatpush.bf16.msra.mxu0 %v671
    %689 = vmatpush.bf16.msra.mxu0 %v670
    %690 = vmatpush.bf16.msra.mxu0 %v669
    %691 = vmatpush.bf16.msra.mxu0 %v668
    %692 = vmatmul.bf16.gmra.mxu0 %v617
    %v693 = vpop.f32.mrf.mxu0
    %v694 = vadd.f32 0.0, %v693
    %v695 = vpop.f32.mrf.mxu0
    %v696 = vadd.f32 0.0, %v695
    %697 = vmatmul.bf16.gmra.mxu0 %v618
    %v698 = vpop.f32.mrf.mxu0
    %v699 = vadd.f32 0.0, %v698
    %v700 = vpop.f32.mrf.mxu0
    %v701 = vadd.f32 0.0, %v700
    %702 = vdwg.mxu0
    %v703 = vadd.f32 %v604, %v694
    %v704 = vadd.f32 %v606, %v696
    %v705 = vadd.f32 %v609, %v699
    %v706 = vadd.f32 %v611, %v701
    %v707 = vld [vmem:[#allocation9] sm:$0x1]
    %v709 = vperm.slane %v707, 0
    %v711 = vadd.f32 %v703, %v709
    %v712 = vadd.f32 %v704, %v709
    %v713 = vadd.f32 %v705, %v709
    %v714 = vadd.f32 %v706, %v709
    %v715 = vmul.f32 %v711, 0.5
    %v716 = vmul.f32 %v712, 0.5
    %v717 = vmul.f32 %v713, 0.5
    %v718 = vmul.f32 %v714, 0.5
    %v719 = vmul.f32 %v711, 0.044715
    %v720 = vmul.f32 %v712, 0.044715
    %v721 = vmul.f32 %v713, 0.044715
    %v722 = vmul.f32 %v714, 0.044715
    %v723 = vmul.f32 %v719, %v711
    %v724 = vmul.f32 %v720, %v712
    %v725 = vmul.f32 %v721, %v713
    %v726 = vmul.f32 %v722, %v714
    %v727 = vmul.f32 %v723, %v711
    %v728 = vmul.f32 %v724, %v712
    %v729 = vmul.f32 %v725, %v713
    %v730 = vmul.f32 %v726, %v714
    %v731 = vadd.f32 %v711, %v727
    %v732 = vadd.f32 %v712, %v728
    %v733 = vadd.f32 %v713, %v729
    %v734 = vadd.f32 %v714, %v730
    %v735 = vmul.f32 %v731, 0.7978846
    %v736 = vmul.f32 %v732, 0.7978846
    %v737 = vmul.f32 %v733, 0.7978846
    %v738 = vmul.f32 %v734, 0.7978846
    %v739 = vtanh.pop %v735
    %v740 = vtanh.pop %v736
    %v741 = vtanh.pop %v737
    %v742 = vtanh.pop %v738
    %v743 = vadd.f32 %v739, 1.0
    %v744 = vadd.f32 %v740, 1.0
    %v745 = vadd.f32 %v741, 1.0
    %v746 = vadd.f32 %v742, 1.0
    %v747 = vmul.f32 %v715, %v743
    %v748 = vmul.f32 %v716, %v744
    %v749 = vmul.f32 %v717, %v745
    %v750 = vmul.f32 %v718, %v746
    %v751 = vld [vmem:[%s0] sm:$0xff]
    %v752 = vld [vmem:[%s0 + $0x8] sm:$0xff]
    %v753 = vld [vmem:[%s0 + $0x10] sm:$0xff]
    %v754 = vld [vmem:[%s0 + $0x18] sm:$0xff]
    %v755 = vadd.f32 %v747, %v751
    %v756 = vadd.f32 %v748, %v752
    %v757 = vadd.f32 %v749, %v753
    %v758 = vadd.f32 %v750, %v754
    %759 = vst [vmem:[%s6] sm:$0xff] %v755
    %760 = vst [vmem:[%s6 + $0x8] sm:$0xff] %v756
    %761 = vst [vmem:[%s6 + $0x10] sm:$0xff] %v757
    %762 = vst [vmem:[%s6 + $0x18] sm:$0xff] %v758
    // Predicated region
    $region42: #{_lambda_.21} parent=1 // pred_check
      _
    $region43: #{_lambda_.21} parent=1 // pred_check_branch
      %764 = sbr.rel (0) target = $region45
    $region44: #{_lambda_.21} parent=1 // pred_region
      _
    $region45: #{_lambda_.21} parent=1 // pred_fallthru
      _
    // Predicated region
    $region46: #{_lambda_.21} parent=1 // pred_check
      _
    $region47: #{_lambda_.21} parent=1 // pred_check_branch
      %766 = sbr.rel (0) target = $region49
    $region48: #{_lambda_.21} parent=1 // pred_region
      _
    $region49: #{_lambda_.21} parent=1 // pred_fallthru
      _
    %767 = vsyncpa [#allocation5], 1
    %768 = vsyncpa [#allocation7], 1
    %769 = vsyncpa [#allocation10], 1

// kernel: _lambda_.22
$region0: #{_lambda_.22}
  #allocation0 [shape = 'u32[]', space=smem, size = 0x4, offset = 0x4, fixed_abs, tag = 'smem constant byte address 0x4 - core index']
  #allocation1 [shape = 'u32[72,128]{1,0:T(1,128)}', space=vmem, size = 0x9000, scoped, tag = 'internal scratch']
  #allocation2 [shape = 'f32[2,18,128]{2,1,0:T(8,128)}', space=vmem, size = 0x6000, scoped, tag = 'scratch operand']
  #allocation3 [shape = 'f32[2,18,64]{2,1,0:T(8,128)}', space=vmem, size = 0x6000, scoped, tag = 'scratch operand']
  %s0 = inlined_call_operand.vmem [shape: f32[2,16,128], index: 0, kind: input, shape index: {}]
  %s1 = inlined_call_operand.hbm [shape: bf16[3,128,64], index: 1, kind: input, shape index: {}]
  %s2 = inlined_call_operand.vmem [shape: f32[1,64], index: 2, kind: input, shape index: {}]
  %s3 = inlined_call_operand.vmem [shape: f32[2,64], index: 3, kind: input, shape index: {}]
  %s4 = inlined_call_operand.hbm [shape: bf16[3,64,64], index: 4, kind: input, shape index: {}]
  %s5 = inlined_call_operand.vmem [shape: f32[1,64], index: 5, kind: input, shape index: {}]
  %s6 = inlined_call_operand.hbm [shape: bf16[128,64], index: 6, kind: input, shape index: {}]
  %s7 = inlined_call_operand.vmem [shape: f32[1,64], index: 7, kind: input, shape index: {}]
  %s8 = inlined_call_operand.vmem [shape: f32[2,16,64], index: 8, kind: output, shape index: {}]
  %s9 = sld [smem:[#allocation0]]
  $region54: #{_lambda_.22} parent=0
    _
  %s11 = ssub.s32 1, %s9
  %s12 = scalar_select 0, %s11, %s9
  $region1: #{_lambda_.22} parent=0
    #allocation4 [shape = 'u8[98304]{0}', space=vmem, size = 0x18000, scoped, tag = 'input window, operand 1, single buffered']
    #allocation5 [shape = 's32[1]{0}', space=sflag, size = 0x4, scoped, tag = 'scoped memory for _lambda_.22']
    #allocation6 [shape = 'u8[49152]{0}', space=vmem, size = 0xc000, scoped, tag = 'input window, operand 4, single buffered']
    #allocation7 [shape = 's32[1]{0}', space=sflag, size = 0x4, scoped, tag = 'scoped memory for _lambda_.22']
    #allocation8 [shape = 'u8[32768]{0}', space=vmem, size = 0x8000, scoped, tag = 'input window, operand 6, single buffered']
    %13 = vsyncpa [#allocation5], 0
    %14 = vsyncpa [#allocation7], 0
    // Predicated region
    $region2: #{_lambda_.22} parent=1 // pred_check
      _
    $region3: #{_lambda_.22} parent=1 // pred_check_branch
      %16 = sbr.rel (0) target = $region5
    $region4: #{_lambda_.22} parent=1 // pred_region
      _
    $region5: #{_lambda_.22} parent=1 // pred_fallthru
      _
    // Predicated region
    $region6: #{_lambda_.22} parent=1 // pred_check
      _
    $region7: #{_lambda_.22} parent=1 // pred_check_branch
      %18 = sbr.rel (0) target = $region9
    $region8: #{_lambda_.22} parent=1 // pred_region
      %20 = vsyncadd [#allocation5], 0
      %s21 = sshll.u32 %s1, 4
      %s22 = int_to_ptr.hbm [resolvable:$true] %s21
      %s23 = sshll.u32 [#allocation4], 4
      %s24 = int_to_ptr.vmem [resolvable:$true] %s23
      %29 = dma.hbm_to_vmem [thread:$0]  %s22, 3072, %s24, [#allocation5], 64, 64, 4
    $region9: #{_lambda_.22} parent=1 // pred_fallthru
      _
    // Predicated region
    $region10: #{_lambda_.22} parent=1 // pred_check
      _
    $region11: #{_lambda_.22} parent=1 // pred_check_branch
      %31 = sbr.rel (0) target = $region13
    $region12: #{_lambda_.22} parent=1 // pred_region
      _
    $region13: #{_lambda_.22} parent=1 // pred_fallthru
      _
    // Predicated region
    $region14: #{_lambda_.22} parent=1 // pred_check
      _
    $region15: #{_lambda_.22} parent=1 // pred_check_branch
      %33 = sbr.rel (0) target = $region17
    $region16: #{_lambda_.22} parent=1 // pred_region
      _
    $region17: #{_lambda_.22} parent=1 // pred_fallthru
      _
    // Predicated region
    $region18: #{_lambda_.22} parent=1 // pred_check
      _
    $region19: #{_lambda_.22} parent=1 // pred_check_branch
      %35 = sbr.rel (0) target = $region21
    $region20: #{_lambda_.22} parent=1 // pred_region
      %37 = vsyncadd [#allocation7], 0
      %s38 = sshll.u32 %s4, 4
      %s39 = int_to_ptr.hbm [resolvable:$true] %s38
      %s40 = sshll.u32 [#allocation6], 4
      %s41 = int_to_ptr.vmem [resolvable:$true] %s40
      %46 = dma.hbm_to_vmem [thread:$0]  %s39, 1536, %s41, [#allocation7], 64, 64, 4
    $region21: #{_lambda_.22} parent=1 // pred_fallthru
      _
    // Predicated region
    $region22: #{_lambda_.22} parent=1 // pred_check
      _
    $region23: #{_lambda_.22} parent=1 // pred_check_branch
      %48 = sbr.rel (0) target = $region25
    $region24: #{_lambda_.22} parent=1 // pred_region
      _
    $region25: #{_lambda_.22} parent=1 // pred_fallthru
      _
    // Predicated region
    $region26: #{_lambda_.22} parent=1 // pred_check
      _
    $region27: #{_lambda_.22} parent=1 // pred_check_branch
      %50 = sbr.rel (0) target = $region29
    $region28: #{_lambda_.22} parent=1 // pred_region
      %52 = vsyncadd [#allocation7], 0
      %s53 = sshll.u32 %s6, 4
      %s54 = int_to_ptr.hbm [resolvable:$true] %s53
      %s55 = sshll.u32 [#allocation8], 4
      %s56 = int_to_ptr.vmem [resolvable:$true] %s55
      %61 = dma.hbm_to_vmem [thread:$0]  %s54, 1024, %s56, [#allocation7], 64, 64, 4
    $region29: #{_lambda_.22} parent=1 // pred_fallthru
      _
    // Predicated region
    $region30: #{_lambda_.22} parent=1 // pred_check
      _
    $region31: #{_lambda_.22} parent=1 // pred_check_branch
      %63 = sbr.rel (0) target = $region33
    $region32: #{_lambda_.22} parent=1 // pred_region
      _
    $region33: #{_lambda_.22} parent=1 // pred_fallthru
      _
    // Predicated region
    $region34: #{_lambda_.22} parent=1 // pred_check
      _
    $region35: #{_lambda_.22} parent=1 // pred_check_branch
      %65 = sbr.rel (0) target = $region37
    $region36: #{_lambda_.22} parent=1 // pred_region
      %67 = dma.done [#allocation5], 3072
    $region37: #{_lambda_.22} parent=1 // pred_fallthru
      _
    // Predicated region
    $region38: #{_lambda_.22} parent=1 // pred_check
      _
    $region39: #{_lambda_.22} parent=1 // pred_check_branch
      %69 = sbr.rel (0) target = $region41
    $region40: #{_lambda_.22} parent=1 // pred_region
      %71 = dma.done [#allocation7], 1536
    $region41: #{_lambda_.22} parent=1 // pred_fallthru
      _
    // Predicated region
    $region42: #{_lambda_.22} parent=1 // pred_check
      _
    $region43: #{_lambda_.22} parent=1 // pred_check_branch
      %73 = sbr.rel (0) target = $region45
    $region44: #{_lambda_.22} parent=1 // pred_region
      %75 = dma.done [#allocation7], 1024
    $region45: #{_lambda_.22} parent=1 // pred_fallthru
      _
    %77 = vst [vmem:[#allocation2] sm:$0xff] 0.0
    %78 = vst [vmem:[#allocation2 + $0x8] sm:$0xff] 0.0
    %79 = vst [vmem:[#allocation2 + $0x10] sm:$0x3] 0.0
    %80 = vst [vmem:[#allocation2 + $0x18] sm:$0xff] 0.0
    %81 = vst [vmem:[#allocation2 + $0x20] sm:$0xff] 0.0
    %82 = vst [vmem:[#allocation2 + $0x28] sm:$0x3] 0.0
    %v83 = vld [vmem:[%s0] sm:$0xff]
    %v84 = vld [vmem:[%s0 + $0x8] sm:$0xff]
    %v85 = vld [vmem:[%s0 + $0x10] sm:$0xff]
    %v86 = vld [vmem:[%s0 + $0x18] sm:$0xff]
    %87 = vst [vmem:[#allocation2 + $0x1] sm:$0xff] %v83
    %88 = vst [vmem:[#allocation2 + $0x9] sm:$0xff] %v84
    %89 = vst [vmem:[#allocation2 + $0x19] sm:$0xff] %v85
    %90 = vst [vmem:[#allocation2 + $0x21] sm:$0xff] %v86
    %v91 = vld [vmem:[#allocation2] sm:$0xff]
    %v92 = vld [vmem:[#allocation2 + $0x8] sm:$0xff]
    %v93 = vld [vmem:[#allocation2 + $0x18] sm:$0xff]
    %v94 = vld [vmem:[#allocation2 + $0x20] sm:$0xff]
    %v95 = vpack.c.bf16 %v92, %v91
    %v96 = vpack.c.bf16 %v94, %v93
    %v97 = vld [vmem:[#allocation4] sm:$0xf]
    %v98 = vld [vmem:[#allocation4 + $0x4] sm:$0xf]
    %v99 = vld [vmem:[#allocation4 + $0x8] sm:$0xf]
    %v100 = vld [vmem:[#allocation4 + $0xc] sm:$0xf]
    %v101 = vld [vmem:[#allocation4 + $0x10] sm:$0xf]
    %v102 = vld [vmem:[#allocation4 + $0x14] sm:$0xf]
    %v103 = vld [vmem:[#allocation4 + $0x18] sm:$0xf]
    %v104 = vld [vmem:[#allocation4 + $0x1c] sm:$0xf]
    %v105 = vld [vmem:[#allocation4 + $0x20] sm:$0xf]
    %v106 = vld [vmem:[#allocation4 + $0x24] sm:$0xf]
    %v107 = vld [vmem:[#allocation4 + $0x28] sm:$0xf]
    %v108 = vld [vmem:[#allocation4 + $0x2c] sm:$0xf]
    %v109 = vld [vmem:[#allocation4 + $0x30] sm:$0xf]
    %v110 = vld [vmem:[#allocation4 + $0x34] sm:$0xf]
    %v111 = vld [vmem:[#allocation4 + $0x38] sm:$0xf]
    %v112 = vld [vmem:[#allocation4 + $0x3c] sm:$0xf]
    %v113 = vld [vmem:[#allocation2 + $0x1] sm:$0xff]
    %v114 = vld [vmem:[#allocation2 + $0x9] sm:$0xff]
    %v115 = vld [vmem:[#allocation2 + $0x19] sm:$0xff]
    %v116 = vld [vmem:[#allocation2 + $0x21] sm:$0xff]
    %v117 = vpack.c.bf16 %v114, %v113
    %v118 = vpack.c.bf16 %v116, %v115
    %s119 = scalar_lea.vmem [#allocation4], 64
    %v120 = vld [vmem:[%s119] sm:$0xf]
    %v121 = vld [vmem:[%s119 + $0x4] sm:$0xf]
    %v122 = vld [vmem:[%s119 + $0x8] sm:$0xf]
    %v123 = vld [vmem:[%s119 + $0xc] sm:$0xf]
    %v124 = vld [vmem:[%s119 + $0x10] sm:$0xf]
    %v125 = vld [vmem:[%s119 + $0x14] sm:$0xf]
    %v126 = vld [vmem:[%s119 + $0x18] sm:$0xf]
    %v127 = vld [vmem:[%s119 + $0x1c] sm:$0xf]
    %v128 = vld [vmem:[%s119 + $0x20] sm:$0xf]
    %v129 = vld [vmem:[%s119 + $0x24] sm:$0xf]
    %v130 = vld [vmem:[%s119 + $0x28] sm:$0xf]
    %v131 = vld [vmem:[%s119 + $0x2c] sm:$0xf]
    %v132 = vld [vmem:[%s119 + $0x30] sm:$0xf]
    %v133 = vld [vmem:[%s119 + $0x34] sm:$0xf]
    %v134 = vld [vmem:[%s119 + $0x38] sm:$0xf]
    %v135 = vld [vmem:[%s119 + $0x3c] sm:$0xf]
    %v152 = vunpack.c.l.b16 %v120
    %v153 = vunpack.c.l.b16 %v121
    %v154 = vunpack.c.l.b16 %v122
    %v155 = vunpack.c.l.b16 %v123
    %v156 = vunpack.c.l.b16 %v124
    %v157 = vunpack.c.l.b16 %v125
    %v158 = vunpack.c.l.b16 %v126
    %v159 = vunpack.c.l.b16 %v127
    %v160 = vunpack.c.l.b16 %v128
    %v161 = vunpack.c.l.b16 %v129
    %v162 = vunpack.c.l.b16 %v130
    %v163 = vunpack.c.l.b16 %v131
    %v164 = vunpack.c.l.b16 %v132
    %v165 = vunpack.c.l.b16 %v133
    %v166 = vunpack.c.l.b16 %v134
    %v167 = vunpack.c.l.b16 %v135
    %v168 = vpack.c.b16 %v153, %v152
    %v169 = vpack.c.b16 %v155, %v154
    %v170 = vpack.c.b16 %v157, %v156
    %v171 = vpack.c.b16 %v159, %v158
    %v172 = vpack.c.b16 %v161, %v160
    %v173 = vpack.c.b16 %v163, %v162
    %v174 = vpack.c.b16 %v165, %v164
    %v175 = vpack.c.b16 %v167, %v166
    %184 = vmatpush.bf16.msra.mxu0 %v175
    %185 = vmatpush.bf16.msra.mxu0 %v174
    %186 = vmatpush.bf16.msra.mxu0 %v173
    %187 = vmatpush.bf16.msra.mxu0 %v172
    %188 = vmatpush.bf16.msra.mxu0 %v171
    %189 = vmatpush.bf16.msra.mxu0 %v170
    %190 = vmatpush.bf16.msra.mxu0 %v169
    %191 = vmatpush.bf16.msra.mxu0 %v168
    %192 = vmatmul.bf16.gmra.mxu0 %v117
    %v193 = vpop.f32.mrf.mxu0
    %v194 = vadd.f32 0.0, %v193
    %v195 = vpop.f32.mrf.mxu0
    %v196 = vadd.f32 0.0, %v195
    %197 = vmatmul.bf16.gmra.mxu0 %v118
    %v198 = vpop.f32.mrf.mxu0
    %v199 = vadd.f32 0.0, %v198
    %v200 = vpop.f32.mrf.mxu0
    %v201 = vadd.f32 0.0, %v200
    %202 = vdwg.mxu0
    %v219 = vunpack.c.l.b16 %v97
    %v220 = vunpack.c.l.b16 %v98
    %v221 = vunpack.c.l.b16 %v99
    %v222 = vunpack.c.l.b16 %v100
    %v223 = vunpack.c.l.b16 %v101
    %v224 = vunpack.c.l.b16 %v102
    %v225 = vunpack.c.l.b16 %v103
    %v226 = vunpack.c.l.b16 %v104
    %v227 = vunpack.c.l.b16 %v105
    %v228 = vunpack.c.l.b16 %v106
    %v229 = vunpack.c.l.b16 %v107
    %v230 = vunpack.c.l.b16 %v108
    %v231 = vunpack.c.l.b16 %v109
    %v232 = vunpack.c.l.b16 %v110
    %v233 = vunpack.c.l.b16 %v111
    %v234 = vunpack.c.l.b16 %v112
    %v235 = vpack.c.b16 %v220, %v219
    %v236 = vpack.c.b16 %v222, %v221
    %v237 = vpack.c.b16 %v224, %v223
    %v238 = vpack.c.b16 %v226, %v225
    %v239 = vpack.c.b16 %v228, %v227
    %v240 = vpack.c.b16 %v230, %v229
    %v241 = vpack.c.b16 %v232, %v231
    %v242 = vpack.c.b16 %v234, %v233
    %251 = vmatpush.bf16.msra.mxu0 %v242
    %252 = vmatpush.bf16.msra.mxu0 %v241
    %253 = vmatpush.bf16.msra.mxu0 %v240
    %254 = vmatpush.bf16.msra.mxu0 %v239
    %255 = vmatpush.bf16.msra.mxu0 %v238
    %256 = vmatpush.bf16.msra.mxu0 %v237
    %257 = vmatpush.bf16.msra.mxu0 %v236
    %258 = vmatpush.bf16.msra.mxu0 %v235
    %259 = vmatmul.bf16.gmra.mxu0 %v95
    %v260 = vpop.f32.mrf.mxu0
    %v261 = vadd.f32 %v194, %v260
    %v262 = vpop.f32.mrf.mxu0
    %v263 = vadd.f32 %v196, %v262
    %264 = vmatmul.bf16.gmra.mxu0 %v96
    %v265 = vpop.f32.mrf.mxu0
    %v266 = vadd.f32 %v199, %v265
    %v267 = vpop.f32.mrf.mxu0
    %v268 = vadd.f32 %v201, %v267
    %269 = vdwg.mxu0
    %v270 = vld [vmem:[#allocation2 + $0x2] sm:$0xff]
    %v271 = vld [vmem:[#allocation2 + $0xa] sm:$0xff]
    %v272 = vld [vmem:[#allocation2 + $0x1a] sm:$0xff]
    %v273 = vld [vmem:[#allocation2 + $0x22] sm:$0xff]
    %v274 = vpack.c.bf16 %v271, %v270
    %v275 = vpack.c.bf16 %v273, %v272
    %s276 = scalar_lea.vmem [#allocation4], 128
    %v277 = vld [vmem:[%s276] sm:$0xf]
    %v278 = vld [vmem:[%s276 + $0x4] sm:$0xf]
    %v279 = vld [vmem:[%s276 + $0x8] sm:$0xf]
    %v280 = vld [vmem:[%s276 + $0xc] sm:$0xf]
    %v281 = vld [vmem:[%s276 + $0x10] sm:$0xf]
    %v282 = vld [vmem:[%s276 + $0x14] sm:$0xf]
    %v283 = vld [vmem:[%s276 + $0x18] sm:$0xf]
    %v284 = vld [vmem:[%s276 + $0x1c] sm:$0xf]
    %v285 = vld [vmem:[%s276 + $0x20] sm:$0xf]
    %v286 = vld [vmem:[%s276 + $0x24] sm:$0xf]
    %v287 = vld [vmem:[%s276 + $0x28] sm:$0xf]
    %v288 = vld [vmem:[%s276 + $0x2c] sm:$0xf]
    %v289 = vld [vmem:[%s276 + $0x30] sm:$0xf]
    %v290 = vld [vmem:[%s276 + $0x34] sm:$0xf]
    %v291 = vld [vmem:[%s276 + $0x38] sm:$0xf]
    %v292 = vld [vmem:[%s276 + $0x3c] sm:$0xf]
    %v309 = vunpack.c.l.b16 %v277
    %v310 = vunpack.c.l.b16 %v278
    %v311 = vunpack.c.l.b16 %v279
    %v312 = vunpack.c.l.b16 %v280
    %v313 = vunpack.c.l.b16 %v281
    %v314 = vunpack.c.l.b16 %v282
    %v315 = vunpack.c.l.b16 %v283
    %v316 = vunpack.c.l.b16 %v284
    %v317 = vunpack.c.l.b16 %v285
    %v318 = vunpack.c.l.b16 %v286
    %v319 = vunpack.c.l.b16 %v287
    %v320 = vunpack.c.l.b16 %v288
    %v321 = vunpack.c.l.b16 %v289
    %v322 = vunpack.c.l.b16 %v290
    %v323 = vunpack.c.l.b16 %v291
    %v324 = vunpack.c.l.b16 %v292
    %v325 = vpack.c.b16 %v310, %v309
    %v326 = vpack.c.b16 %v312, %v311
    %v327 = vpack.c.b16 %v314, %v313
    %v328 = vpack.c.b16 %v316, %v315
    %v329 = vpack.c.b16 %v318, %v317
    %v330 = vpack.c.b16 %v320, %v319
    %v331 = vpack.c.b16 %v322, %v321
    %v332 = vpack.c.b16 %v324, %v323
    %341 = vmatpush.bf16.msra.mxu0 %v332
    %342 = vmatpush.bf16.msra.mxu0 %v331
    %343 = vmatpush.bf16.msra.mxu0 %v330
    %344 = vmatpush.bf16.msra.mxu0 %v329
    %345 = vmatpush.bf16.msra.mxu0 %v328
    %346 = vmatpush.bf16.msra.mxu0 %v327
    %347 = vmatpush.bf16.msra.mxu0 %v326
    %348 = vmatpush.bf16.msra.mxu0 %v325
    %349 = vmatmul.bf16.gmra.mxu0 %v274
    %v350 = vpop.f32.mrf.mxu0
    %v351 = vadd.f32 0.0, %v350
    %v352 = vpop.f32.mrf.mxu0
    %v353 = vadd.f32 0.0, %v352
    %354 = vmatmul.bf16.gmra.mxu0 %v275
    %v355 = vpop.f32.mrf.mxu0
    %v356 = vadd.f32 0.0, %v355
    %v357 = vpop.f32.mrf.mxu0
    %v358 = vadd.f32 0.0, %v357
    %359 = vdwg.mxu0
    %v360 = vadd.f32 %v261, %v351
    %v361 = vadd.f32 %v263, %v353
    %v362 = vadd.f32 %v266, %v356
    %v363 = vadd.f32 %v268, %v358
    %v364 = vld [vmem:[%s2] sm:$0x1]
    %v366 = vperm.slane %v364, 0
    %v368 = vadd.f32 %v360, %v366
    %v369 = vadd.f32 %v361, %v366
    %v370 = vadd.f32 %v362, %v366
    %v371 = vadd.f32 %v363, %v366
    %v372 = vmul.f32 %v368, 0.5
    %v373 = vmul.f32 %v369, 0.5
    %v374 = vmul.f32 %v370, 0.5
    %v375 = vmul.f32 %v371, 0.5
    %v376 = vmul.f32 %v368, 0.044715
    %v377 = vmul.f32 %v369, 0.044715
    %v378 = vmul.f32 %v370, 0.044715
    %v379 = vmul.f32 %v371, 0.044715
    %v380 = vmul.f32 %v376, %v368
    %v381 = vmul.f32 %v377, %v369
    %v382 = vmul.f32 %v378, %v370
    %v383 = vmul.f32 %v379, %v371
    %v384 = vmul.f32 %v380, %v368
    %v385 = vmul.f32 %v381, %v369
    %v386 = vmul.f32 %v382, %v370
    %v387 = vmul.f32 %v383, %v371
    %v388 = vadd.f32 %v368, %v384
    %v389 = vadd.f32 %v369, %v385
    %v390 = vadd.f32 %v370, %v386
    %v391 = vadd.f32 %v371, %v387
    %v392 = vmul.f32 %v388, 0.7978846
    %v393 = vmul.f32 %v389, 0.7978846
    %v394 = vmul.f32 %v390, 0.7978846
    %v395 = vmul.f32 %v391, 0.7978846
    %v396 = vtanh.pop %v392
    %v397 = vtanh.pop %v393
    %v398 = vtanh.pop %v394
    %v399 = vtanh.pop %v395
    %v400 = vadd.f32 %v396, 1.0
    %v401 = vadd.f32 %v397, 1.0
    %v402 = vadd.f32 %v398, 1.0
    %v403 = vadd.f32 %v399, 1.0
    %v404 = vmul.f32 %v372, %v400
    %v405 = vmul.f32 %v373, %v401
    %v406 = vmul.f32 %v374, %v402
    %v407 = vmul.f32 %v375, %v403
    %v408 = vld [vmem:[%s3] sm:$0x3]
    %v410 = vrot.slane %v408, 1
    %v411 = vperm.slane %v408, 0
    %v412 = vperm.slane %v410, 0
    %v415 = vadd.f32 %v404, %v411
    %v416 = vadd.f32 %v405, %v411
    %v417 = vadd.f32 %v406, %v412
    %v418 = vadd.f32 %v407, %v412
    %vm419 = vcmask 523264
    %420 = vst.msk [vmem:[#allocation3] sm:$0xff] %vm419, 0.0
    %421 = vst.msk [vmem:[#allocation3 + $0x8] sm:$0xff] %vm419, 0.0
    %vm422 = vcmask 517120
    %423 = vst.msk [vmem:[#allocation3 + $0x10] sm:$0x3] %vm422, 0.0
    %424 = vst.msk [vmem:[#allocation3 + $0x18] sm:$0xff] %vm419, 0.0
    %425 = vst.msk [vmem:[#allocation3 + $0x20] sm:$0xff] %vm419, 0.0
    %426 = vst.msk [vmem:[#allocation3 + $0x28] sm:$0x3] %vm422, 0.0
    %427 = vst.msk [vmem:[#allocation3 + $0x1] sm:$0xff] %vm419, %v415
    %428 = vst.msk [vmem:[#allocation3 + $0x9] sm:$0xff] %vm419, %v416
    %429 = vst.msk [vmem:[#allocation3 + $0x19] sm:$0xff] %vm419, %v417
    %430 = vst.msk [vmem:[#allocation3 + $0x21] sm:$0xff] %vm419, %v418
    %v431 = vld [vmem:[#allocation3] sm:$0xff]
    %v432 = vld [vmem:[#allocation3 + $0x8] sm:$0xff]
    %v433 = vld [vmem:[#allocation3 + $0x18] sm:$0xff]
    %v434 = vld [vmem:[#allocation3 + $0x20] sm:$0xff]
    %v435 = vpack.c.bf16 %v432, %v431
    %v436 = vpack.c.bf16 %v434, %v433
    %v437 = vld [vmem:[#allocation6] sm:$0xf]
    %v438 = vld [vmem:[#allocation6 + $0x4] sm:$0xf]
    %v439 = vld [vmem:[#allocation6 + $0x8] sm:$0xf]
    %v440 = vld [vmem:[#allocation6 + $0xc] sm:$0xf]
    %v441 = vld [vmem:[#allocation6 + $0x10] sm:$0xf]
    %v442 = vld [vmem:[#allocation6 + $0x14] sm:$0xf]
    %v443 = vld [vmem:[#allocation6 + $0x18] sm:$0xf]
    %v444 = vld [vmem:[#allocation6 + $0x1c] sm:$0xf]
    %v445 = vld [vmem:[#allocation3 + $0x1] sm:$0xff]
    %v446 = vld [vmem:[#allocation3 + $0x9] sm:$0xff]
    %v447 = vld [vmem:[#allocation3 + $0x19] sm:$0xff]
    %v448 = vld [vmem:[#allocation3 + $0x21] sm:$0xff]
    %v449 = vpack.c.bf16 %v446, %v445
    %v450 = vpack.c.bf16 %v448, %v447
    %s451 = scalar_lea.vmem [#allocation6], 32
    %v452 = vld [vmem:[%s451] sm:$0xf]
    %v453 = vld [vmem:[%s451 + $0x4] sm:$0xf]
    %v454 = vld [vmem:[%s451 + $0x8] sm:$0xf]
    %v455 = vld [vmem:[%s451 + $0xc] sm:$0xf]
    %v456 = vld [vmem:[%s451 + $0x10] sm:$0xf]
    %v457 = vld [vmem:[%s451 + $0x14] sm:$0xf]
    %v458 = vld [vmem:[%s451 + $0x18] sm:$0xf]
    %v459 = vld [vmem:[%s451 + $0x1c] sm:$0xf]
    %v468 = vunpack.c.l.b16 %v452
    %v469 = vunpack.c.l.b16 %v453
    %v470 = vunpack.c.l.b16 %v454
    %v471 = vunpack.c.l.b16 %v455
    %v472 = vunpack.c.l.b16 %v456
    %v473 = vunpack.c.l.b16 %v457
    %v474 = vunpack.c.l.b16 %v458
    %v475 = vunpack.c.l.b16 %v459
    %v476 = vpack.c.b16 %v469, %v468
    %v477 = vpack.c.b16 %v471, %v470
    %v478 = vpack.c.b16 %v473, %v472
    %v479 = vpack.c.b16 %v475, %v474
    %v485 = vsel %vm419, %v449, 0
    %v488 = vsel %vm419, %v450, 0
    %490 = vmatpush.bf16.msra.mxu0 0
    %491 = vmatpush.bf16.msra.mxu0 0
    %492 = vmatpush.bf16.msra.mxu0 0
    %493 = vmatpush.bf16.msra.mxu0 0
    %494 = vmatpush.bf16.msra.mxu0 %v479
    %495 = vmatpush.bf16.msra.mxu0 %v478
    %496 = vmatpush.bf16.msra.mxu0 %v477
    %497 = vmatpush.bf16.msra.mxu0 %v476
    %498 = vmatmul.bf16.gmra.mxu0 %v485
    %v499 = vpop.f32.mrf.mxu0
    %v500 = vadd.f32 0.0, %v499
    %v501 = vpop.f32.mrf.mxu0
    %v502 = vadd.f32 0.0, %v501
    %503 = vmatmul.bf16.gmra.mxu0 %v488
    %v504 = vpop.f32.mrf.mxu0
    %v505 = vadd.f32 0.0, %v504
    %v506 = vpop.f32.mrf.mxu0
    %v507 = vadd.f32 0.0, %v506
    %508 = vdwg.mxu0
    %v517 = vunpack.c.l.b16 %v437
    %v518 = vunpack.c.l.b16 %v438
    %v519 = vunpack.c.l.b16 %v439
    %v520 = vunpack.c.l.b16 %v440
    %v521 = vunpack.c.l.b16 %v441
    %v522 = vunpack.c.l.b16 %v442
    %v523 = vunpack.c.l.b16 %v443
    %v524 = vunpack.c.l.b16 %v444
    %v525 = vpack.c.b16 %v518, %v517
    %v526 = vpack.c.b16 %v520, %v519
    %v527 = vpack.c.b16 %v522, %v521
    %v528 = vpack.c.b16 %v524, %v523
    %v534 = vsel %vm419, %v435, 0
    %v537 = vsel %vm419, %v436, 0
    %539 = vmatpush.bf16.msra.mxu0 0
    %540 = vmatpush.bf16.msra.mxu0 0
    %541 = vmatpush.bf16.msra.mxu0 0
    %542 = vmatpush.bf16.msra.mxu0 0
    %543 = vmatpush.bf16.msra.mxu0 %v528
    %544 = vmatpush.bf16.msra.mxu0 %v527
    %545 = vmatpush.bf16.msra.mxu0 %v526
    %546 = vmatpush.bf16.msra.mxu0 %v525
    %547 = vmatmul.bf16.gmra.mxu0 %v534
    %v548 = vpop.f32.mrf.mxu0
    %v549 = vadd.f32 %v500, %v548
    %v550 = vpop.f32.mrf.mxu0
    %v551 = vadd.f32 %v502, %v550
    %552 = vmatmul.bf16.gmra.mxu0 %v537
    %v553 = vpop.f32.mrf.mxu0
    %v554 = vadd.f32 %v505, %v553
    %v555 = vpop.f32.mrf.mxu0
    %v556 = vadd.f32 %v507, %v555
    %557 = vdwg.mxu0
    %v558 = vld [vmem:[#allocation3 + $0x2] sm:$0xff]
    %v559 = vld [vmem:[#allocation3 + $0xa] sm:$0xff]
    %v560 = vld [vmem:[#allocation3 + $0x1a] sm:$0xff]
    %v561 = vld [vmem:[#allocation3 + $0x22] sm:$0xff]
    %v562 = vpack.c.bf16 %v559, %v558
    %v563 = vpack.c.bf16 %v561, %v560
    %s564 = scalar_lea.vmem [#allocation6], 64
    %v565 = vld [vmem:[%s564] sm:$0xf]
    %v566 = vld [vmem:[%s564 + $0x4] sm:$0xf]
    %v567 = vld [vmem:[%s564 + $0x8] sm:$0xf]
    %v568 = vld [vmem:[%s564 + $0xc] sm:$0xf]
    %v569 = vld [vmem:[%s564 + $0x10] sm:$0xf]
    %v570 = vld [vmem:[%s564 + $0x14] sm:$0xf]
    %v571 = vld [vmem:[%s564 + $0x18] sm:$0xf]
    %v572 = vld [vmem:[%s564 + $0x1c] sm:$0xf]
    %v581 = vunpack.c.l.b16 %v565
    %v582 = vunpack.c.l.b16 %v566
    %v583 = vunpack.c.l.b16 %v567
    %v584 = vunpack.c.l.b16 %v568
    %v585 = vunpack.c.l.b16 %v569
    %v586 = vunpack.c.l.b16 %v570
    %v587 = vunpack.c.l.b16 %v571
    %v588 = vunpack.c.l.b16 %v572
    %v589 = vpack.c.b16 %v582, %v581
    %v590 = vpack.c.b16 %v584, %v583
    %v591 = vpack.c.b16 %v586, %v585
    %v592 = vpack.c.b16 %v588, %v587
    %v598 = vsel %vm419, %v562, 0
    %v601 = vsel %vm419, %v563, 0
    %603 = vmatpush.bf16.msra.mxu0 0
    %604 = vmatpush.bf16.msra.mxu0 0
    %605 = vmatpush.bf16.msra.mxu0 0
    %606 = vmatpush.bf16.msra.mxu0 0
    %607 = vmatpush.bf16.msra.mxu0 %v592
    %608 = vmatpush.bf16.msra.mxu0 %v591
    %609 = vmatpush.bf16.msra.mxu0 %v590
    %610 = vmatpush.bf16.msra.mxu0 %v589
    %611 = vmatmul.bf16.gmra.mxu0 %v598
    %v612 = vpop.f32.mrf.mxu0
    %v613 = vadd.f32 0.0, %v612
    %v614 = vpop.f32.mrf.mxu0
    %v615 = vadd.f32 0.0, %v614
    %616 = vmatmul.bf16.gmra.mxu0 %v601
    %v617 = vpop.f32.mrf.mxu0
    %v618 = vadd.f32 0.0, %v617
    %v619 = vpop.f32.mrf.mxu0
    %v620 = vadd.f32 0.0, %v619
    %621 = vdwg.mxu0
    %v622 = vadd.f32 %v549, %v613
    %v623 = vadd.f32 %v551, %v615
    %v624 = vadd.f32 %v554, %v618
    %v625 = vadd.f32 %v556, %v620
    %v626 = vld [vmem:[%s5] sm:$0x1]
    %v628 = vperm.slane %v626, 0
    %v630 = vadd.f32 %v622, %v628
    %v631 = vadd.f32 %v623, %v628
    %v632 = vadd.f32 %v624, %v628
    %v633 = vadd.f32 %v625, %v628
    %v634 = vmul.f32 %v630, 0.5
    %v635 = vmul.f32 %v631, 0.5
    %v636 = vmul.f32 %v632, 0.5
    %v637 = vmul.f32 %v633, 0.5
    %v638 = vmul.f32 %v630, 0.044715
    %v639 = vmul.f32 %v631, 0.044715
    %v640 = vmul.f32 %v632, 0.044715
    %v641 = vmul.f32 %v633, 0.044715
    %v642 = vmul.f32 %v638, %v630
    %v643 = vmul.f32 %v639, %v631
    %v644 = vmul.f32 %v640, %v632
    %v645 = vmul.f32 %v641, %v633
    %v646 = vmul.f32 %v642, %v630
    %v647 = vmul.f32 %v643, %v631
    %v648 = vmul.f32 %v644, %v632
    %v649 = vmul.f32 %v645, %v633
    %v650 = vadd.f32 %v630, %v646
    %v651 = vadd.f32 %v631, %v647
    %v652 = vadd.f32 %v632, %v648
    %v653 = vadd.f32 %v633, %v649
    %v654 = vmul.f32 %v650, 0.7978846
    %v655 = vmul.f32 %v651, 0.7978846
    %v656 = vmul.f32 %v652, 0.7978846
    %v657 = vmul.f32 %v653, 0.7978846
    %v658 = vtanh.pop %v654
    %v659 = vtanh.pop %v655
    %v660 = vtanh.pop %v656
    %v661 = vtanh.pop %v657
    %v662 = vadd.f32 %v658, 1.0
    %v663 = vadd.f32 %v659, 1.0
    %v664 = vadd.f32 %v660, 1.0
    %v665 = vadd.f32 %v661, 1.0
    %v666 = vmul.f32 %v634, %v662
    %v667 = vmul.f32 %v635, %v663
    %v668 = vmul.f32 %v636, %v664
    %v669 = vmul.f32 %v637, %v665
    %v670 = vld [vmem:[%s7] sm:$0x1]
    %v671 = vld [vmem:[%s0] sm:$0xff]
    %v672 = vld [vmem:[%s0 + $0x8] sm:$0xff]
    %v673 = vld [vmem:[%s0 + $0x10] sm:$0xff]
    %v674 = vld [vmem:[%s0 + $0x18] sm:$0xff]
    %v675 = vpack.c.bf16 %v672, %v671
    %v676 = vpack.c.bf16 %v674, %v673
    %v677 = vld [vmem:[#allocation8] sm:$0xf]
    %v678 = vld [vmem:[#allocation8 + $0x4] sm:$0xf]
    %v679 = vld [vmem:[#allocation8 + $0x8] sm:$0xf]
    %v680 = vld [vmem:[#allocation8 + $0xc] sm:$0xf]
    %v681 = vld [vmem:[#allocation8 + $0x10] sm:$0xf]
    %v682 = vld [vmem:[#allocation8 + $0x14] sm:$0xf]
    %v683 = vld [vmem:[#allocation8 + $0x18] sm:$0xf]
    %v684 = vld [vmem:[#allocation8 + $0x1c] sm:$0xf]
    %v685 = vld [vmem:[#allocation8 + $0x20] sm:$0xf]
    %v686 = vld [vmem:[#allocation8 + $0x24] sm:$0xf]
    %v687 = vld [vmem:[#allocation8 + $0x28] sm:$0xf]
    %v688 = vld [vmem:[#allocation8 + $0x2c] sm:$0xf]
    %v689 = vld [vmem:[#allocation8 + $0x30] sm:$0xf]
    %v690 = vld [vmem:[#allocation8 + $0x34] sm:$0xf]
    %v691 = vld [vmem:[#allocation8 + $0x38] sm:$0xf]
    %v692 = vld [vmem:[#allocation8 + $0x3c] sm:$0xf]
    %v709 = vunpack.c.l.b16 %v677
    %v710 = vunpack.c.l.b16 %v678
    %v711 = vunpack.c.l.b16 %v679
    %v712 = vunpack.c.l.b16 %v680
    %v713 = vunpack.c.l.b16 %v681
    %v714 = vunpack.c.l.b16 %v682
    %v715 = vunpack.c.l.b16 %v683
    %v716 = vunpack.c.l.b16 %v684
    %v717 = vunpack.c.l.b16 %v685
    %v718 = vunpack.c.l.b16 %v686
    %v719 = vunpack.c.l.b16 %v687
    %v720 = vunpack.c.l.b16 %v688
    %v721 = vunpack.c.l.b16 %v689
    %v722 = vunpack.c.l.b16 %v690
    %v723 = vunpack.c.l.b16 %v691
    %v724 = vunpack.c.l.b16 %v692
    %v725 = vpack.c.b16 %v710, %v709
    %v726 = vpack.c.b16 %v712, %v711
    %v727 = vpack.c.b16 %v714, %v713
    %v728 = vpack.c.b16 %v716, %v715
    %v729 = vpack.c.b16 %v718, %v717
    %v730 = vpack.c.b16 %v720, %v719
    %v731 = vpack.c.b16 %v722, %v721
    %v732 = vpack.c.b16 %v724, %v723
    %741 = vmatpush.bf16.msra.mxu0 %v732
    %742 = vmatpush.bf16.msra.mxu0 %v731
    %743 = vmatpush.bf16.msra.mxu0 %v730
    %744 = vmatpush.bf16.msra.mxu0 %v729
    %745 = vmatpush.bf16.msra.mxu0 %v728
    %746 = vmatpush.bf16.msra.mxu0 %v727
    %747 = vmatpush.bf16.msra.mxu0 %v726
    %748 = vmatpush.bf16.msra.mxu0 %v725
    %749 = vmatmul.bf16.gmra.mxu0 %v675
    %v750 = vpop.f32.mrf.mxu0
    %v751 = vadd.f32 0.0, %v750
    %v752 = vpop.f32.mrf.mxu0
    %v753 = vadd.f32 0.0, %v752
    %754 = vmatmul.bf16.gmra.mxu0 %v676
    %v755 = vpop.f32.mrf.mxu0
    %v756 = vadd.f32 0.0, %v755
    %v757 = vpop.f32.mrf.mxu0
    %v758 = vadd.f32 0.0, %v757
    %759 = vdwg.mxu0
    %v761 = vperm.slane %v670, 0
    %v763 = vadd.f32 %v761, %v751
    %v764 = vadd.f32 %v761, %v753
    %v765 = vadd.f32 %v761, %v756
    %v766 = vadd.f32 %v761, %v758
    %v767 = vadd.f32 %v666, %v763
    %v768 = vadd.f32 %v667, %v764
    %v769 = vadd.f32 %v668, %v765
    %v770 = vadd.f32 %v669, %v766
    %771 = vst.msk [vmem:[%s8] sm:$0xff] %vm419, %v767
    %772 = vst.msk [vmem:[%s8 + $0x8] sm:$0xff] %vm419, %v768
    %773 = vst.msk [vmem:[%s8 + $0x10] sm:$0xff] %vm419, %v769
    %774 = vst.msk [vmem:[%s8 + $0x18] sm:$0xff] %vm419, %v770
    // Predicated region
    $region46: #{_lambda_.22} parent=1 // pred_check
      _
    $region47: #{_lambda_.22} parent=1 // pred_check_branch
      %776 = sbr.rel (0) target = $region49
    $region48: #{_lambda_.22} parent=1 // pred_region
      _
    $region49: #{_lambda_.22} parent=1 // pred_fallthru
      _
    // Predicated region
    $region50: #{_lambda_.22} parent=1 // pred_check
      _
    $region51: #{_lambda_.22} parent=1 // pred_check_branch
      %778 = sbr.rel (0) target = $region53
    $region52: #{_lambda_.22} parent=1 // pred_region
      _
    $region53: #{_lambda_.22} parent=1 // pred_fallthru
      _
    %779 = vsyncpa [#allocation5], 1
    %780 = vsyncpa [#allocation7], 1

// kernel: _lambda_.23
$region0: #{_lambda_.23}
  #allocation0 [shape = 'u32[]', space=smem, size = 0x4, offset = 0x4, fixed_abs, tag = 'smem constant byte address 0x4 - core index']
  #allocation1 [shape = 'u32[72,128]{1,0:T(1,128)}', space=vmem, size = 0x9000, scoped, tag = 'internal scratch']
  #allocation2 [shape = 'f32[2,22,64]{2,1,0:T(8,128)}', space=vmem, size = 0x6000, scoped, tag = 'scratch operand']
  %s0 = inlined_call_operand.vmem [shape: f32[2,16,64], index: 0, kind: input, shape index: {}]
  %s1 = inlined_call_operand.hbm [shape: bf16[7,64,64], index: 1, kind: input, shape index: {}]
  %s2 = inlined_call_operand.vmem [shape: f32[1,64], index: 2, kind: input, shape index: {}]
  %s3 = inlined_call_operand.vmem [shape: f32[2,16,64], index: 3, kind: output, shape index: {}]
  %s4 = sld [smem:[#allocation0]]
  $region26: #{_lambda_.23} parent=0
    _
  %s6 = ssub.s32 1, %s4
  %s7 = scalar_select 0, %s6, %s4
  $region1: #{_lambda_.23} parent=0
    #allocation3 [shape = 'u8[114688]{0}', space=vmem, size = 0x1c000, scoped, tag = 'input window, operand 1, single buffered']
    #allocation4 [shape = 's32[1]{0}', space=sflag, size = 0x4, scoped, tag = 'scoped memory for _lambda_.23']
    %8 = vsyncpa [#allocation4], 0
    // Predicated region
    $region2: #{_lambda_.23} parent=1 // pred_check
      _
    $region3: #{_lambda_.23} parent=1 // pred_check_branch
      %10 = sbr.rel (0) target = $region5
    $region4: #{_lambda_.23} parent=1 // pred_region
      _
    $region5: #{_lambda_.23} parent=1 // pred_fallthru
      _
    // Predicated region
    $region6: #{_lambda_.23} parent=1 // pred_check
      _
    $region7: #{_lambda_.23} parent=1 // pred_check_branch
      %12 = sbr.rel (0) target = $region9
    $region8: #{_lambda_.23} parent=1 // pred_region
      %14 = vsyncadd [#allocation4], 0
      %s15 = sshll.u32 %s1, 4
      %s16 = int_to_ptr.hbm [resolvable:$true] %s15
      %s17 = sshll.u32 [#allocation3], 4
      %s18 = int_to_ptr.vmem [resolvable:$true] %s17
      %23 = dma.hbm_to_vmem [thread:$0]  %s16, 3584, %s18, [#allocation4], 64, 64, 4
    $region9: #{_lambda_.23} parent=1 // pred_fallthru
      _
    // Predicated region
    $region10: #{_lambda_.23} parent=1 // pred_check
      _
    $region11: #{_lambda_.23} parent=1 // pred_check_branch
      %25 = sbr.rel (0) target = $region13
    $region12: #{_lambda_.23} parent=1 // pred_region
      _
    $region13: #{_lambda_.23} parent=1 // pred_fallthru
      _
    // Predicated region
    $region14: #{_lambda_.23} parent=1 // pred_check
      _
    $region15: #{_lambda_.23} parent=1 // pred_check_branch
      %27 = sbr.rel (0) target = $region17
    $region16: #{_lambda_.23} parent=1 // pred_region
      %29 = dma.done [#allocation4], 3584
    $region17: #{_lambda_.23} parent=1 // pred_fallthru
      _
    %vm31 = vcmask 523264
    %32 = vst.msk [vmem:[#allocation2] sm:$0xff] %vm31, 0.0
    %33 = vst.msk [vmem:[#allocation2 + $0x8] sm:$0xff] %vm31, 0.0
    %vm34 = vcmask 521216
    %35 = vst.msk [vmem:[#allocation2 + $0x10] sm:$0x3f] %vm34, 0.0
    %36 = vst.msk [vmem:[#allocation2 + $0x18] sm:$0xff] %vm31, 0.0
    %37 = vst.msk [vmem:[#allocation2 + $0x20] sm:$0xff] %vm31, 0.0
    %38 = vst.msk [vmem:[#allocation2 + $0x28] sm:$0x3f] %vm34, 0.0
    %v39 = vld [vmem:[%s0] sm:$0xff]
    %v40 = vld [vmem:[%s0 + $0x8] sm:$0xff]
    %v41 = vld [vmem:[%s0 + $0x10] sm:$0xff]
    %v42 = vld [vmem:[%s0 + $0x18] sm:$0xff]
    %43 = vst.msk [vmem:[#allocation2 + $0x3] sm:$0xff] %vm31, %v39
    %44 = vst.msk [vmem:[#allocation2 + $0xb] sm:$0xff] %vm31, %v40
    %45 = vst.msk [vmem:[#allocation2 + $0x1b] sm:$0xff] %vm31, %v41
    %46 = vst.msk [vmem:[#allocation2 + $0x23] sm:$0xff] %vm31, %v42
    %v47 = vld [vmem:[#allocation2] sm:$0xff]
    %v48 = vld [vmem:[#allocation2 + $0x8] sm:$0xff]
    %v49 = vld [vmem:[#allocation2 + $0x18] sm:$0xff]
    %v50 = vld [vmem:[#allocation2 + $0x20] sm:$0xff]
    %v51 = vpack.c.bf16 %v48, %v47
    %v52 = vpack.c.bf16 %v50, %v49
    %v53 = vld [vmem:[#allocation3] sm:$0xf]
    %v54 = vld [vmem:[#allocation3 + $0x4] sm:$0xf]
    %v55 = vld [vmem:[#allocation3 + $0x8] sm:$0xf]
    %v56 = vld [vmem:[#allocation3 + $0xc] sm:$0xf]
    %v57 = vld [vmem:[#allocation3 + $0x10] sm:$0xf]
    %v58 = vld [vmem:[#allocation3 + $0x14] sm:$0xf]
    %v59 = vld [vmem:[#allocation3 + $0x18] sm:$0xf]
    %v60 = vld [vmem:[#allocation3 + $0x1c] sm:$0xf]
    %v61 = vld [vmem:[#allocation2 + $0x1] sm:$0xff]
    %v62 = vld [vmem:[#allocation2 + $0x9] sm:$0xff]
    %v63 = vld [vmem:[#allocation2 + $0x19] sm:$0xff]
    %v64 = vld [vmem:[#allocation2 + $0x21] sm:$0xff]
    %v65 = vpack.c.bf16 %v62, %v61
    %v66 = vpack.c.bf16 %v64, %v63
    %s67 = scalar_lea.vmem [#allocation3], 32
    %v68 = vld [vmem:[%s67] sm:$0xf]
    %v69 = vld [vmem:[%s67 + $0x4] sm:$0xf]
    %v70 = vld [vmem:[%s67 + $0x8] sm:$0xf]
    %v71 = vld [vmem:[%s67 + $0xc] sm:$0xf]
    %v72 = vld [vmem:[%s67 + $0x10] sm:$0xf]
    %v73 = vld [vmem:[%s67 + $0x14] sm:$0xf]
    %v74 = vld [vmem:[%s67 + $0x18] sm:$0xf]
    %v75 = vld [vmem:[%s67 + $0x1c] sm:$0xf]
    %v84 = vunpack.c.l.b16 %v68
    %v85 = vunpack.c.l.b16 %v69
    %v86 = vunpack.c.l.b16 %v70
    %v87 = vunpack.c.l.b16 %v71
    %v88 = vunpack.c.l.b16 %v72
    %v89 = vunpack.c.l.b16 %v73
    %v90 = vunpack.c.l.b16 %v74
    %v91 = vunpack.c.l.b16 %v75
    %v92 = vpack.c.b16 %v85, %v84
    %v93 = vpack.c.b16 %v87, %v86
    %v94 = vpack.c.b16 %v89, %v88
    %v95 = vpack.c.b16 %v91, %v90
    %v101 = vsel %vm31, %v65, 0
    %v104 = vsel %vm31, %v66, 0
    %106 = vmatpush.bf16.msra.mxu0 0
    %107 = vmatpush.bf16.msra.mxu0 0
    %108 = vmatpush.bf16.msra.mxu0 0
    %109 = vmatpush.bf16.msra.mxu0 0
    %110 = vmatpush.bf16.msra.mxu0 %v95
    %111 = vmatpush.bf16.msra.mxu0 %v94
    %112 = vmatpush.bf16.msra.mxu0 %v93
    %113 = vmatpush.bf16.msra.mxu0 %v92
    %114 = vmatmul.bf16.gmra.mxu0 %v101
    %v115 = vpop.f32.mrf.mxu0
    %v116 = vadd.f32 0.0, %v115
    %v117 = vpop.f32.mrf.mxu0
    %v118 = vadd.f32 0.0, %v117
    %119 = vmatmul.bf16.gmra.mxu0 %v104
    %v120 = vpop.f32.mrf.mxu0
    %v121 = vadd.f32 0.0, %v120
    %v122 = vpop.f32.mrf.mxu0
    %v123 = vadd.f32 0.0, %v122
    %124 = vdwg.mxu0
    %v133 = vunpack.c.l.b16 %v53
    %v134 = vunpack.c.l.b16 %v54
    %v135 = vunpack.c.l.b16 %v55
    %v136 = vunpack.c.l.b16 %v56
    %v137 = vunpack.c.l.b16 %v57
    %v138 = vunpack.c.l.b16 %v58
    %v139 = vunpack.c.l.b16 %v59
    %v140 = vunpack.c.l.b16 %v60
    %v141 = vpack.c.b16 %v134, %v133
    %v142 = vpack.c.b16 %v136, %v135
    %v143 = vpack.c.b16 %v138, %v137
    %v144 = vpack.c.b16 %v140, %v139
    %v150 = vsel %vm31, %v51, 0
    %v153 = vsel %vm31, %v52, 0
    %155 = vmatpush.bf16.msra.mxu0 0
    %156 = vmatpush.bf16.msra.mxu0 0
    %157 = vmatpush.bf16.msra.mxu0 0
    %158 = vmatpush.bf16.msra.mxu0 0
    %159 = vmatpush.bf16.msra.mxu0 %v144
    %160 = vmatpush.bf16.msra.mxu0 %v143
    %161 = vmatpush.bf16.msra.mxu0 %v142
    %162 = vmatpush.bf16.msra.mxu0 %v141
    %163 = vmatmul.bf16.gmra.mxu0 %v150
    %v164 = vpop.f32.mrf.mxu0
    %v165 = vadd.f32 %v116, %v164
    %v166 = vpop.f32.mrf.mxu0
    %v167 = vadd.f32 %v118, %v166
    %168 = vmatmul.bf16.gmra.mxu0 %v153
    %v169 = vpop.f32.mrf.mxu0
    %v170 = vadd.f32 %v121, %v169
    %v171 = vpop.f32.mrf.mxu0
    %v172 = vadd.f32 %v123, %v171
    %173 = vdwg.mxu0
    %v174 = vld [vmem:[#allocation2 + $0x2] sm:$0xff]
    %v175 = vld [vmem:[#allocation2 + $0xa] sm:$0xff]
    %v176 = vld [vmem:[#allocation2 + $0x1a] sm:$0xff]
    %v177 = vld [vmem:[#allocation2 + $0x22] sm:$0xff]
    %v178 = vpack.c.bf16 %v175, %v174
    %v179 = vpack.c.bf16 %v177, %v176
    %s180 = scalar_lea.vmem [#allocation3], 64
    %v181 = vld [vmem:[%s180] sm:$0xf]
    %v182 = vld [vmem:[%s180 + $0x4] sm:$0xf]
    %v183 = vld [vmem:[%s180 + $0x8] sm:$0xf]
    %v184 = vld [vmem:[%s180 + $0xc] sm:$0xf]
    %v185 = vld [vmem:[%s180 + $0x10] sm:$0xf]
    %v186 = vld [vmem:[%s180 + $0x14] sm:$0xf]
    %v187 = vld [vmem:[%s180 + $0x18] sm:$0xf]
    %v188 = vld [vmem:[%s180 + $0x1c] sm:$0xf]
    %v197 = vunpack.c.l.b16 %v181
    %v198 = vunpack.c.l.b16 %v182
    %v199 = vunpack.c.l.b16 %v183
    %v200 = vunpack.c.l.b16 %v184
    %v201 = vunpack.c.l.b16 %v185
    %v202 = vunpack.c.l.b16 %v186
    %v203 = vunpack.c.l.b16 %v187
    %v204 = vunpack.c.l.b16 %v188
    %v205 = vpack.c.b16 %v198, %v197
    %v206 = vpack.c.b16 %v200, %v199
    %v207 = vpack.c.b16 %v202, %v201
    %v208 = vpack.c.b16 %v204, %v203
    %v214 = vsel %vm31, %v178, 0
    %v217 = vsel %vm31, %v179, 0
    %219 = vmatpush.bf16.msra.mxu0 0
    %220 = vmatpush.bf16.msra.mxu0 0
    %221 = vmatpush.bf16.msra.mxu0 0
    %222 = vmatpush.bf16.msra.mxu0 0
    %223 = vmatpush.bf16.msra.mxu0 %v208
    %224 = vmatpush.bf16.msra.mxu0 %v207
    %225 = vmatpush.bf16.msra.mxu0 %v206
    %226 = vmatpush.bf16.msra.mxu0 %v205
    %227 = vmatmul.bf16.gmra.mxu0 %v214
    %v228 = vpop.f32.mrf.mxu0
    %v229 = vadd.f32 0.0, %v228
    %v230 = vpop.f32.mrf.mxu0
    %v231 = vadd.f32 0.0, %v230
    %232 = vmatmul.bf16.gmra.mxu0 %v217
    %v233 = vpop.f32.mrf.mxu0
    %v234 = vadd.f32 0.0, %v233
    %v235 = vpop.f32.mrf.mxu0
    %v236 = vadd.f32 0.0, %v235
    %237 = vdwg.mxu0
    %v238 = vadd.f32 %v165, %v229
    %v239 = vadd.f32 %v167, %v231
    %v240 = vadd.f32 %v170, %v234
    %v241 = vadd.f32 %v172, %v236
    %v242 = vld [vmem:[#allocation2 + $0x3] sm:$0xff]
    %v243 = vld [vmem:[#allocation2 + $0xb] sm:$0xff]
    %v244 = vld [vmem:[#allocation2 + $0x1b] sm:$0xff]
    %v245 = vld [vmem:[#allocation2 + $0x23] sm:$0xff]
    %v246 = vpack.c.bf16 %v243, %v242
    %v247 = vpack.c.bf16 %v245, %v244
    %s248 = scalar_lea.vmem [#allocation3], 96
    %v249 = vld [vmem:[%s248] sm:$0xf]
    %v250 = vld [vmem:[%s248 + $0x4] sm:$0xf]
    %v251 = vld [vmem:[%s248 + $0x8] sm:$0xf]
    %v252 = vld [vmem:[%s248 + $0xc] sm:$0xf]
    %v253 = vld [vmem:[%s248 + $0x10] sm:$0xf]
    %v254 = vld [vmem:[%s248 + $0x14] sm:$0xf]
    %v255 = vld [vmem:[%s248 + $0x18] sm:$0xf]
    %v256 = vld [vmem:[%s248 + $0x1c] sm:$0xf]
    %v265 = vunpack.c.l.b16 %v249
    %v266 = vunpack.c.l.b16 %v250
    %v267 = vunpack.c.l.b16 %v251
    %v268 = vunpack.c.l.b16 %v252
    %v269 = vunpack.c.l.b16 %v253
    %v270 = vunpack.c.l.b16 %v254
    %v271 = vunpack.c.l.b16 %v255
    %v272 = vunpack.c.l.b16 %v256
    %v273 = vpack.c.b16 %v266, %v265
    %v274 = vpack.c.b16 %v268, %v267
    %v275 = vpack.c.b16 %v270, %v269
    %v276 = vpack.c.b16 %v272, %v271
    %v282 = vsel %vm31, %v246, 0
    %v285 = vsel %vm31, %v247, 0
    %287 = vmatpush.bf16.msra.mxu0 0
    %288 = vmatpush.bf16.msra.mxu0 0
    %289 = vmatpush.bf16.msra.mxu0 0
    %290 = vmatpush.bf16.msra.mxu0 0
    %291 = vmatpush.bf16.msra.mxu0 %v276
    %292 = vmatpush.bf16.msra.mxu0 %v275
    %293 = vmatpush.bf16.msra.mxu0 %v274
    %294 = vmatpush.bf16.msra.mxu0 %v273
    %295 = vmatmul.bf16.gmra.mxu0 %v282
    %v296 = vpop.f32.mrf.mxu0
    %v297 = vadd.f32 0.0, %v296
    %v298 = vpop.f32.mrf.mxu0
    %v299 = vadd.f32 0.0, %v298
    %300 = vmatmul.bf16.gmra.mxu0 %v285
    %v301 = vpop.f32.mrf.mxu0
    %v302 = vadd.f32 0.0, %v301
    %v303 = vpop.f32.mrf.mxu0
    %v304 = vadd.f32 0.0, %v303
    %305 = vdwg.mxu0
    %v306 = vadd.f32 %v238, %v297
    %v307 = vadd.f32 %v239, %v299
    %v308 = vadd.f32 %v240, %v302
    %v309 = vadd.f32 %v241, %v304
    %v310 = vld [vmem:[#allocation2 + $0x4] sm:$0xff]
    %v311 = vld [vmem:[#allocation2 + $0xc] sm:$0xff]
    %v312 = vld [vmem:[#allocation2 + $0x1c] sm:$0xff]
    %v313 = vld [vmem:[#allocation2 + $0x24] sm:$0xff]
    %v314 = vpack.c.bf16 %v311, %v310
    %v315 = vpack.c.bf16 %v313, %v312
    %s316 = scalar_lea.vmem [#allocation3], 128
    %v317 = vld [vmem:[%s316] sm:$0xf]
    %v318 = vld [vmem:[%s316 + $0x4] sm:$0xf]
    %v319 = vld [vmem:[%s316 + $0x8] sm:$0xf]
    %v320 = vld [vmem:[%s316 + $0xc] sm:$0xf]
    %v321 = vld [vmem:[%s316 + $0x10] sm:$0xf]
    %v322 = vld [vmem:[%s316 + $0x14] sm:$0xf]
    %v323 = vld [vmem:[%s316 + $0x18] sm:$0xf]
    %v324 = vld [vmem:[%s316 + $0x1c] sm:$0xf]
    %v333 = vunpack.c.l.b16 %v317
    %v334 = vunpack.c.l.b16 %v318
    %v335 = vunpack.c.l.b16 %v319
    %v336 = vunpack.c.l.b16 %v320
    %v337 = vunpack.c.l.b16 %v321
    %v338 = vunpack.c.l.b16 %v322
    %v339 = vunpack.c.l.b16 %v323
    %v340 = vunpack.c.l.b16 %v324
    %v341 = vpack.c.b16 %v334, %v333
    %v342 = vpack.c.b16 %v336, %v335
    %v343 = vpack.c.b16 %v338, %v337
    %v344 = vpack.c.b16 %v340, %v339
    %v350 = vsel %vm31, %v314, 0
    %v353 = vsel %vm31, %v315, 0
    %355 = vmatpush.bf16.msra.mxu0 0
    %356 = vmatpush.bf16.msra.mxu0 0
    %357 = vmatpush.bf16.msra.mxu0 0
    %358 = vmatpush.bf16.msra.mxu0 0
    %359 = vmatpush.bf16.msra.mxu0 %v344
    %360 = vmatpush.bf16.msra.mxu0 %v343
    %361 = vmatpush.bf16.msra.mxu0 %v342
    %362 = vmatpush.bf16.msra.mxu0 %v341
    %363 = vmatmul.bf16.gmra.mxu0 %v350
    %v364 = vpop.f32.mrf.mxu0
    %v365 = vadd.f32 0.0, %v364
    %v366 = vpop.f32.mrf.mxu0
    %v367 = vadd.f32 0.0, %v366
    %368 = vmatmul.bf16.gmra.mxu0 %v353
    %v369 = vpop.f32.mrf.mxu0
    %v370 = vadd.f32 0.0, %v369
    %v371 = vpop.f32.mrf.mxu0
    %v372 = vadd.f32 0.0, %v371
    %373 = vdwg.mxu0
    %v374 = vadd.f32 %v306, %v365
    %v375 = vadd.f32 %v307, %v367
    %v376 = vadd.f32 %v308, %v370
    %v377 = vadd.f32 %v309, %v372
    %v378 = vld [vmem:[#allocation2 + $0x5] sm:$0xff]
    %v379 = vld [vmem:[#allocation2 + $0xd] sm:$0xff]
    %v380 = vld [vmem:[#allocation2 + $0x1d] sm:$0xff]
    %v381 = vld [vmem:[#allocation2 + $0x25] sm:$0xff]
    %v382 = vpack.c.bf16 %v379, %v378
    %v383 = vpack.c.bf16 %v381, %v380
    %s384 = scalar_lea.vmem [#allocation3], 160
    %v385 = vld [vmem:[%s384] sm:$0xf]
    %v386 = vld [vmem:[%s384 + $0x4] sm:$0xf]
    %v387 = vld [vmem:[%s384 + $0x8] sm:$0xf]
    %v388 = vld [vmem:[%s384 + $0xc] sm:$0xf]
    %v389 = vld [vmem:[%s384 + $0x10] sm:$0xf]
    %v390 = vld [vmem:[%s384 + $0x14] sm:$0xf]
    %v391 = vld [vmem:[%s384 + $0x18] sm:$0xf]
    %v392 = vld [vmem:[%s384 + $0x1c] sm:$0xf]
    %v401 = vunpack.c.l.b16 %v385
    %v402 = vunpack.c.l.b16 %v386
    %v403 = vunpack.c.l.b16 %v387
    %v404 = vunpack.c.l.b16 %v388
    %v405 = vunpack.c.l.b16 %v389
    %v406 = vunpack.c.l.b16 %v390
    %v407 = vunpack.c.l.b16 %v391
    %v408 = vunpack.c.l.b16 %v392
    %v409 = vpack.c.b16 %v402, %v401
    %v410 = vpack.c.b16 %v404, %v403
    %v411 = vpack.c.b16 %v406, %v405
    %v412 = vpack.c.b16 %v408, %v407
    %v418 = vsel %vm31, %v382, 0
    %v421 = vsel %vm31, %v383, 0
    %423 = vmatpush.bf16.msra.mxu0 0
    %424 = vmatpush.bf16.msra.mxu0 0
    %425 = vmatpush.bf16.msra.mxu0 0
    %426 = vmatpush.bf16.msra.mxu0 0
    %427 = vmatpush.bf16.msra.mxu0 %v412
    %428 = vmatpush.bf16.msra.mxu0 %v411
    %429 = vmatpush.bf16.msra.mxu0 %v410
    %430 = vmatpush.bf16.msra.mxu0 %v409
    %431 = vmatmul.bf16.gmra.mxu0 %v418
    %v432 = vpop.f32.mrf.mxu0
    %v433 = vadd.f32 0.0, %v432
    %v434 = vpop.f32.mrf.mxu0
    %v435 = vadd.f32 0.0, %v434
    %436 = vmatmul.bf16.gmra.mxu0 %v421
    %v437 = vpop.f32.mrf.mxu0
    %v438 = vadd.f32 0.0, %v437
    %v439 = vpop.f32.mrf.mxu0
    %v440 = vadd.f32 0.0, %v439
    %441 = vdwg.mxu0
    %v442 = vadd.f32 %v374, %v433
    %v443 = vadd.f32 %v375, %v435
    %v444 = vadd.f32 %v376, %v438
    %v445 = vadd.f32 %v377, %v440
    %v446 = vld [vmem:[#allocation2 + $0x6] sm:$0xff]
    %v447 = vld [vmem:[#allocation2 + $0xe] sm:$0xff]
    %v448 = vld [vmem:[#allocation2 + $0x1e] sm:$0xff]
    %v449 = vld [vmem:[#allocation2 + $0x26] sm:$0xff]
    %v450 = vpack.c.bf16 %v447, %v446
    %v451 = vpack.c.bf16 %v449, %v448
    %s452 = scalar_lea.vmem [#allocation3], 192
    %v453 = vld [vmem:[%s452] sm:$0xf]
    %v454 = vld [vmem:[%s452 + $0x4] sm:$0xf]
    %v455 = vld [vmem:[%s452 + $0x8] sm:$0xf]
    %v456 = vld [vmem:[%s452 + $0xc] sm:$0xf]
    %v457 = vld [vmem:[%s452 + $0x10] sm:$0xf]
    %v458 = vld [vmem:[%s452 + $0x14] sm:$0xf]
    %v459 = vld [vmem:[%s452 + $0x18] sm:$0xf]
    %v460 = vld [vmem:[%s452 + $0x1c] sm:$0xf]
    %v469 = vunpack.c.l.b16 %v453
    %v470 = vunpack.c.l.b16 %v454
    %v471 = vunpack.c.l.b16 %v455
    %v472 = vunpack.c.l.b16 %v456
    %v473 = vunpack.c.l.b16 %v457
    %v474 = vunpack.c.l.b16 %v458
    %v475 = vunpack.c.l.b16 %v459
    %v476 = vunpack.c.l.b16 %v460
    %v477 = vpack.c.b16 %v470, %v469
    %v478 = vpack.c.b16 %v472, %v471
    %v479 = vpack.c.b16 %v474, %v473
    %v480 = vpack.c.b16 %v476, %v475
    %v486 = vsel %vm31, %v450, 0
    %v489 = vsel %vm31, %v451, 0
    %491 = vmatpush.bf16.msra.mxu0 0
    %492 = vmatpush.bf16.msra.mxu0 0
    %493 = vmatpush.bf16.msra.mxu0 0
    %494 = vmatpush.bf16.msra.mxu0 0
    %495 = vmatpush.bf16.msra.mxu0 %v480
    %496 = vmatpush.bf16.msra.mxu0 %v479
    %497 = vmatpush.bf16.msra.mxu0 %v478
    %498 = vmatpush.bf16.msra.mxu0 %v477
    %499 = vmatmul.bf16.gmra.mxu0 %v486
    %v500 = vpop.f32.mrf.mxu0
    %v501 = vadd.f32 0.0, %v500
    %v502 = vpop.f32.mrf.mxu0
    %v503 = vadd.f32 0.0, %v502
    %504 = vmatmul.bf16.gmra.mxu0 %v489
    %v505 = vpop.f32.mrf.mxu0
    %v506 = vadd.f32 0.0, %v505
    %v507 = vpop.f32.mrf.mxu0
    %v508 = vadd.f32 0.0, %v507
    %509 = vdwg.mxu0
    %v510 = vadd.f32 %v442, %v501
    %v511 = vadd.f32 %v443, %v503
    %v512 = vadd.f32 %v444, %v506
    %v513 = vadd.f32 %v445, %v508
    %v514 = vld [vmem:[%s2] sm:$0x1]
    %v516 = vperm.slane %v514, 0
    %v518 = vadd.f32 %v510, %v516
    %v519 = vadd.f32 %v511, %v516
    %v520 = vadd.f32 %v512, %v516
    %v521 = vadd.f32 %v513, %v516
    %522 = vst.msk [vmem:[%s3] sm:$0xff] %vm31, %v518
    %523 = vst.msk [vmem:[%s3 + $0x8] sm:$0xff] %vm31, %v519
    %524 = vst.msk [vmem:[%s3 + $0x10] sm:$0xff] %vm31, %v520
    %525 = vst.msk [vmem:[%s3 + $0x18] sm:$0xff] %vm31, %v521
    // Predicated region
    $region18: #{_lambda_.23} parent=1 // pred_check
      _
    $region19: #{_lambda_.23} parent=1 // pred_check_branch
      %527 = sbr.rel (0) target = $region21
    $region20: #{_lambda_.23} parent=1 // pred_region
      _
    $region21: #{_lambda_.23} parent=1 // pred_fallthru
      _
    // Predicated region
    $region22: #{_lambda_.23} parent=1 // pred_check
      _
    $region23: #{_lambda_.23} parent=1 // pred_check_branch
      %529 = sbr.rel (0) target = $region25
    $region24: #{_lambda_.23} parent=1 // pred_region
      _
    $region25: #{_lambda_.23} parent=1 // pred_fallthru
      _
    %530 = vsyncpa [#allocation4], 1

// kernel: _lambda_.20
$region0: #{_lambda_.20}
  #allocation0 [shape = 'u32[]', space=smem, size = 0x4, offset = 0x4, fixed_abs, tag = 'smem constant byte address 0x4 - core index']
  #allocation1 [shape = 'u32[72,128]{1,0:T(1,128)}', space=vmem, size = 0x9000, scoped, tag = 'internal scratch']
  #allocation2 [shape = 'f32[2,18,256]{2,1,0:T(8,128)}', space=vmem, size = 0xc000, scoped, tag = 'scratch operand']
  #allocation3 [shape = 'f32[2,18,256]{2,1,0:T(8,128)}', space=vmem, size = 0xc000, scoped, tag = 'scratch operand']
  #allocation4 [shape = 'f32[2,18,128]{2,1,0:T(8,128)}', space=vmem, size = 0x6000, scoped, tag = 'scratch operand']
  %s0 = inlined_call_operand.vmem [shape: f32[2,16,256], index: 0, kind: input, shape index: {}]
  %s1 = inlined_call_operand.vmem [shape: f32[2,16,256], index: 1, kind: input, shape index: {}]
  %s2 = inlined_call_operand.hbm [shape: bf16[3,256,128], index: 2, kind: input, shape index: {}]
  %s3 = inlined_call_operand.hbm [shape: bf16[3,256,128], index: 3, kind: input, shape index: {}]
  %s4 = inlined_call_operand.hbm [shape: f32[1,128], index: 4, kind: input, shape index: {}]
  %s5 = inlined_call_operand.vmem [shape: f32[2,128], index: 5, kind: input, shape index: {}]
  %s6 = inlined_call_operand.hbm [shape: bf16[3,128,128], index: 6, kind: input, shape index: {}]
  %s7 = inlined_call_operand.hbm [shape: f32[1,128], index: 7, kind: input, shape index: {}]
  %s8 = inlined_call_operand.hbm [shape: bf16[256,128], index: 8, kind: input, shape index: {}]
  %s9 = inlined_call_operand.vmem [shape: bf16[256,128], index: 9, kind: input, shape index: {}]
  %s10 = inlined_call_operand.hbm [shape: f32[1,128], index: 10, kind: input, shape index: {}]
  %s11 = inlined_call_operand.vmem [shape: f32[2,16,128], index: 11, kind: output, shape index: {}]
  %s12 = sld [smem:[#allocation0]]
  $region82: #{_lambda_.20} parent=0
    _
  %s14 = ssub.s32 1, %s12
  %s15 = scalar_select 0, %s14, %s12
  $region1: #{_lambda_.20} parent=0
    #allocation5 [shape = 'u8[196608]{0}', space=vmem, size = 0x30000, scoped, tag = 'input window, operand 2, single buffered']
    #allocation6 [shape = 's32[1]{0}', space=sflag, size = 0x4, scoped, tag = 'scoped memory for _lambda_.20']
    #allocation7 [shape = 'u8[196608]{0}', space=vmem, size = 0x30000, scoped, tag = 'input window, operand 3, single buffered']
    #allocation8 [shape = 's32[1]{0}', space=sflag, size = 0x4, scoped, tag = 'scoped memory for _lambda_.20']
    #allocation9 [shape = 'u8[512]{0}', space=vmem, size = 0x400, scoped, tag = 'input window, operand 4, single buffered']
    #allocation10 [shape = 'u8[98304]{0}', space=vmem, size = 0x18000, scoped, tag = 'input window, operand 6, single buffered']
    #allocation11 [shape = 's32[1]{0}', space=sflag, size = 0x4, scoped, tag = 'scoped memory for _lambda_.20']
    #allocation12 [shape = 'u8[512]{0}', space=vmem, size = 0x400, scoped, tag = 'input window, operand 7, single buffered']
    #allocation13 [shape = 'u8[65536]{0}', space=vmem, size = 0x10000, scoped, tag = 'input window, operand 8, single buffered']
    #allocation14 [shape = 's32[1]{0}', space=sflag, size = 0x4, scoped, tag = 'scoped memory for _lambda_.20']
    #allocation15 [shape = 'u8[512]{0}', space=vmem, size = 0x400, scoped, tag = 'input window, operand 10, single buffered']
    %16 = vsyncpa [#allocation6], 0
    %17 = vsyncpa [#allocation8], 0
    %18 = vsyncpa [#allocation11], 0
    %19 = vsyncpa [#allocation14], 0
    // Predicated region
    $region2: #{_lambda_.20} parent=1 // pred_check
      _
    $region3: #{_lambda_.20} parent=1 // pred_check_branch
      %21 = sbr.rel (0) target = $region5
    $region4: #{_lambda_.20} parent=1 // pred_region
      _
    $region5: #{_lambda_.20} parent=1 // pred_fallthru
      _
    // Predicated region
    $region6: #{_lambda_.20} parent=1 // pred_check
      _
    $region7: #{_lambda_.20} parent=1 // pred_check_branch
      %23 = sbr.rel (0) target = $region9
    $region8: #{_lambda_.20} parent=1 // pred_region
      _
    $region9: #{_lambda_.20} parent=1 // pred_fallthru
      _
    // Predicated region
    $region10: #{_lambda_.20} parent=1 // pred_check
      _
    $region11: #{_lambda_.20} parent=1 // pred_check_branch
      %25 = sbr.rel (0) target = $region13
    $region12: #{_lambda_.20} parent=1 // pred_region
      %27 = vsyncadd [#allocation6], 0
      %s28 = sshll.u32 %s2, 4
      %s29 = int_to_ptr.hbm [resolvable:$true] %s28
      %s30 = sshll.u32 [#allocation5], 4
      %s31 = int_to_ptr.vmem [resolvable:$true] %s30
      %36 = dma.hbm_to_vmem [thread:$0]  %s29, 6144, %s31, [#allocation6], 64, 64, 4
    $region13: #{_lambda_.20} parent=1 // pred_fallthru
      _
    // Predicated region
    $region14: #{_lambda_.20} parent=1 // pred_check
      _
    $region15: #{_lambda_.20} parent=1 // pred_check_branch
      %38 = sbr.rel (0) target = $region17
    $region16: #{_lambda_.20} parent=1 // pred_region
      %40 = vsyncadd [#allocation8], 0
      %s41 = sshll.u32 %s3, 4
      %s42 = int_to_ptr.hbm [resolvable:$true] %s41
      %s43 = sshll.u32 [#allocation7], 4
      %s44 = int_to_ptr.vmem [resolvable:$true] %s43
      %49 = dma.hbm_to_vmem [thread:$0]  %s42, 6144, %s44, [#allocation8], 64, 64, 4
    $region17: #{_lambda_.20} parent=1 // pred_fallthru
      _
    // Predicated region
    $region18: #{_lambda_.20} parent=1 // pred_check
      _
    $region19: #{_lambda_.20} parent=1 // pred_check_branch
      %51 = sbr.rel (0) target = $region21
    $region20: #{_lambda_.20} parent=1 // pred_region
      %53 = vsyncadd [#allocation8], 0
      %s55 = sshll.u32 %s4, 4
      %s56 = int_to_ptr.hbm [resolvable:$true] %s55
      %s57 = sshll.u32 [#allocation9], 4
      %s58 = int_to_ptr.vmem [resolvable:$true] %s57
      %60 = dma.hbm_to_vmem [thread:$0]  %s56, 16, %s58, [#allocation8]
    $region21: #{_lambda_.20} parent=1 // pred_fallthru
      _
    // Predicated region
    $region22: #{_lambda_.20} parent=1 // pred_check
      _
    $region23: #{_lambda_.20} parent=1 // pred_check_branch
      %62 = sbr.rel (0) target = $region25
    $region24: #{_lambda_.20} parent=1 // pred_region
      _
    $region25: #{_lambda_.20} parent=1 // pred_fallthru
      _
    // Predicated region
    $region26: #{_lambda_.20} parent=1 // pred_check
      _
    $region27: #{_lambda_.20} parent=1 // pred_check_branch
      %64 = sbr.rel (0) target = $region29
    $region28: #{_lambda_.20} parent=1 // pred_region
      %66 = vsyncadd [#allocation11], 0
      %s67 = sshll.u32 %s6, 4
      %s68 = int_to_ptr.hbm [resolvable:$true] %s67
      %s69 = sshll.u32 [#allocation10], 4
      %s70 = int_to_ptr.vmem [resolvable:$true] %s69
      %75 = dma.hbm_to_vmem [thread:$0]  %s68, 3072, %s70, [#allocation11], 64, 64, 4
    $region29: #{_lambda_.20} parent=1 // pred_fallthru
      _
    // Predicated region
    $region30: #{_lambda_.20} parent=1 // pred_check
      _
    $region31: #{_lambda_.20} parent=1 // pred_check_branch
      %77 = sbr.rel (0) target = $region33
    $region32: #{_lambda_.20} parent=1 // pred_region
      %79 = vsyncadd [#allocation11], 0
      %s81 = sshll.u32 %s7, 4
      %s82 = int_to_ptr.hbm [resolvable:$true] %s81
      %s83 = sshll.u32 [#allocation12], 4
      %s84 = int_to_ptr.vmem [resolvable:$true] %s83
      %86 = dma.hbm_to_vmem [thread:$0]  %s82, 16, %s84, [#allocation11]
    $region33: #{_lambda_.20} parent=1 // pred_fallthru
      _
    // Predicated region
    $region34: #{_lambda_.20} parent=1 // pred_check
      _
    $region35: #{_lambda_.20} parent=1 // pred_check_branch
      %88 = sbr.rel (0) target = $region37
    $region36: #{_lambda_.20} parent=1 // pred_region
      %90 = vsyncadd [#allocation14], 0
      %s91 = sshll.u32 %s8, 4
      %s92 = int_to_ptr.hbm [resolvable:$true] %s91
      %s93 = sshll.u32 [#allocation13], 4
      %s94 = int_to_ptr.vmem [resolvable:$true] %s93
      %99 = dma.hbm_to_vmem [thread:$0]  %s92, 2048, %s94, [#allocation14], 64, 64, 4
    $region37: #{_lambda_.20} parent=1 // pred_fallthru
      _
    // Predicated region
    $region38: #{_lambda_.20} parent=1 // pred_check
      _
    $region39: #{_lambda_.20} parent=1 // pred_check_branch
      %101 = sbr.rel (0) target = $region41
    $region40: #{_lambda_.20} parent=1 // pred_region
      _
    $region41: #{_lambda_.20} parent=1 // pred_fallthru
      _
    // Predicated region
    $region42: #{_lambda_.20} parent=1 // pred_check
      _
    $region43: #{_lambda_.20} parent=1 // pred_check_branch
      %103 = sbr.rel (0) target = $region45
    $region44: #{_lambda_.20} parent=1 // pred_region
      %105 = vsyncadd [#allocation14], 0
      %s107 = sshll.u32 %s10, 4
      %s108 = int_to_ptr.hbm [resolvable:$true] %s107
      %s109 = sshll.u32 [#allocation15], 4
      %s110 = int_to_ptr.vmem [resolvable:$true] %s109
      %112 = dma.hbm_to_vmem [thread:$0]  %s108, 16, %s110, [#allocation14]
    $region45: #{_lambda_.20} parent=1 // pred_fallthru
      _
    // Predicated region
    $region46: #{_lambda_.20} parent=1 // pred_check
      _
    $region47: #{_lambda_.20} parent=1 // pred_check_branch
      %114 = sbr.rel (0) target = $region49
    $region48: #{_lambda_.20} parent=1 // pred_region
      %116 = dma.done [#allocation6], 6144
    $region49: #{_lambda_.20} parent=1 // pred_fallthru
      _
    // Predicated region
    $region50: #{_lambda_.20} parent=1 // pred_check
      _
    $region51: #{_lambda_.20} parent=1 // pred_check_branch
      %118 = sbr.rel (0) target = $region53
    $region52: #{_lambda_.20} parent=1 // pred_region
      %120 = dma.done [#allocation8], 6144
    $region53: #{_lambda_.20} parent=1 // pred_fallthru
      _
    // Predicated region
    $region54: #{_lambda_.20} parent=1 // pred_check
      _
    $region55: #{_lambda_.20} parent=1 // pred_check_branch
      %122 = sbr.rel (0) target = $region57
    $region56: #{_lambda_.20} parent=1 // pred_region
      %124 = dma.done [#allocation8], 16
    $region57: #{_lambda_.20} parent=1 // pred_fallthru
      _
    // Predicated region
    $region58: #{_lambda_.20} parent=1 // pred_check
      _
    $region59: #{_lambda_.20} parent=1 // pred_check_branch
      %126 = sbr.rel (0) target = $region61
    $region60: #{_lambda_.20} parent=1 // pred_region
      %128 = dma.done [#allocation11], 3072
    $region61: #{_lambda_.20} parent=1 // pred_fallthru
      _
    // Predicated region
    $region62: #{_lambda_.20} parent=1 // pred_check
      _
    $region63: #{_lambda_.20} parent=1 // pred_check_branch
      %130 = sbr.rel (0) target = $region65
    $region64: #{_lambda_.20} parent=1 // pred_region
      %132 = dma.done [#allocation11], 16
    $region65: #{_lambda_.20} parent=1 // pred_fallthru
      _
    // Predicated region
    $region66: #{_lambda_.20} parent=1 // pred_check
      _
    $region67: #{_lambda_.20} parent=1 // pred_check_branch
      %134 = sbr.rel (0) target = $region69
    $region68: #{_lambda_.20} parent=1 // pred_region
      %136 = dma.done [#allocation14], 2048
    $region69: #{_lambda_.20} parent=1 // pred_fallthru
      _
    // Predicated region
    $region70: #{_lambda_.20} parent=1 // pred_check
      _
    $region71: #{_lambda_.20} parent=1 // pred_check_branch
      %138 = sbr.rel (0) target = $region73
    $region72: #{_lambda_.20} parent=1 // pred_region
      %140 = dma.done [#allocation14], 16
    $region73: #{_lambda_.20} parent=1 // pred_fallthru
      _
    %141 = vst [vmem:[#allocation2] sm:$0xff] 0.0
    %142 = vst [vmem:[#allocation2 + $0x8] sm:$0xff] 0.0
    %143 = vst [vmem:[#allocation2 + $0x10] sm:$0xff] 0.0
    %144 = vst [vmem:[#allocation2 + $0x18] sm:$0xff] 0.0
    %145 = vst [vmem:[#allocation2 + $0x20] sm:$0x3] 0.0
    %146 = vst [vmem:[#allocation2 + $0x28] sm:$0x3] 0.0
    %147 = vst [vmem:[#allocation2 + $0x30] sm:$0xff] 0.0
    %148 = vst [vmem:[#allocation2 + $0x38] sm:$0xff] 0.0
    %149 = vst [vmem:[#allocation2 + $0x40] sm:$0xff] 0.0
    %150 = vst [vmem:[#allocation2 + $0x48] sm:$0xff] 0.0
    %151 = vst [vmem:[#allocation2 + $0x50] sm:$0x3] 0.0
    %152 = vst [vmem:[#allocation2 + $0x58] sm:$0x3] 0.0
    %v153 = vld [vmem:[%s0] sm:$0xff]
    %v154 = vld [vmem:[%s0 + $0x8] sm:$0xff]
    %v155 = vld [vmem:[%s0 + $0x10] sm:$0xff]
    %v156 = vld [vmem:[%s0 + $0x18] sm:$0xff]
    %v157 = vld [vmem:[%s0 + $0x20] sm:$0xff]
    %v158 = vld [vmem:[%s0 + $0x28] sm:$0xff]
    %v159 = vld [vmem:[%s0 + $0x30] sm:$0xff]
    %v160 = vld [vmem:[%s0 + $0x38] sm:$0xff]
    %vm169 = vcmask 1040384
    %v170 = vrot.slane %v153, 7
    %v171 = vrot.slane %v154, 7
    %v172 = vrot.slane %v155, 7
    %v173 = vsel %vm169, %v170, %v172
    %v174 = vrot.slane %v156, 7
    %v175 = vsel %vm169, %v171, %v174
    %v176 = vrot.slane %v157, 7
    %v177 = vrot.slane %v158, 7
    %v178 = vrot.slane %v159, 7
    %v179 = vsel %vm169, %v176, %v178
    %v180 = vrot.slane %v160, 7
    %v181 = vsel %vm169, %v177, %v180
    %194 = vst [vmem:[#allocation2] sm:$0xfe] %v170
    %195 = vst [vmem:[#allocation2 + $0x8] sm:$0xfe] %v171
    %196 = vst [vmem:[#allocation2 + $0x10] sm:$0xff] %v173
    %197 = vst [vmem:[#allocation2 + $0x18] sm:$0xff] %v175
    %198 = vst [vmem:[#allocation2 + $0x20] sm:$0x1] %v172
    %199 = vst [vmem:[#allocation2 + $0x28] sm:$0x1] %v174
    %200 = vst [vmem:[#allocation2 + $0x30] sm:$0xfe] %v176
    %201 = vst [vmem:[#allocation2 + $0x38] sm:$0xfe] %v177
    %202 = vst [vmem:[#allocation2 + $0x40] sm:$0xff] %v179
    %203 = vst [vmem:[#allocation2 + $0x48] sm:$0xff] %v181
    %204 = vst [vmem:[#allocation2 + $0x50] sm:$0x1] %v178
    %205 = vst [vmem:[#allocation2 + $0x58] sm:$0x1] %v180
    %206 = vst [vmem:[#allocation3] sm:$0xff] 0.0
    %207 = vst [vmem:[#allocation3 + $0x8] sm:$0xff] 0.0
    %208 = vst [vmem:[#allocation3 + $0x10] sm:$0xff] 0.0
    %209 = vst [vmem:[#allocation3 + $0x18] sm:$0xff] 0.0
    %210 = vst [vmem:[#allocation3 + $0x20] sm:$0x3] 0.0
    %211 = vst [vmem:[#allocation3 + $0x28] sm:$0x3] 0.0
    %212 = vst [vmem:[#allocation3 + $0x30] sm:$0xff] 0.0
    %213 = vst [vmem:[#allocation3 + $0x38] sm:$0xff] 0.0
    %214 = vst [vmem:[#allocation3 + $0x40] sm:$0xff] 0.0
    %215 = vst [vmem:[#allocation3 + $0x48] sm:$0xff] 0.0
    %216 = vst [vmem:[#allocation3 + $0x50] sm:$0x3] 0.0
    %217 = vst [vmem:[#allocation3 + $0x58] sm:$0x3] 0.0
    %v218 = vld [vmem:[%s1] sm:$0xff]
    %v219 = vld [vmem:[%s1 + $0x8] sm:$0xff]
    %v220 = vld [vmem:[%s1 + $0x10] sm:$0xff]
    %v221 = vld [vmem:[%s1 + $0x18] sm:$0xff]
    %v222 = vld [vmem:[%s1 + $0x20] sm:$0xff]
    %v223 = vld [vmem:[%s1 + $0x28] sm:$0xff]
    %v224 = vld [vmem:[%s1 + $0x30] sm:$0xff]
    %v225 = vld [vmem:[%s1 + $0x38] sm:$0xff]
    %v234 = vrot.slane %v218, 7
    %v235 = vrot.slane %v219, 7
    %v236 = vrot.slane %v220, 7
    %v237 = vsel %vm169, %v234, %v236
    %v238 = vrot.slane %v221, 7
    %v239 = vsel %vm169, %v235, %v238
    %v240 = vrot.slane %v222, 7
    %v241 = vrot.slane %v223, 7
    %v242 = vrot.slane %v224, 7
    %v243 = vsel %vm169, %v240, %v242
    %v244 = vrot.slane %v225, 7
    %v245 = vsel %vm169, %v241, %v244
    %258 = vst [vmem:[#allocation3] sm:$0xfe] %v234
    %259 = vst [vmem:[#allocation3 + $0x8] sm:$0xfe] %v235
    %260 = vst [vmem:[#allocation3 + $0x10] sm:$0xff] %v237
    %261 = vst [vmem:[#allocation3 + $0x18] sm:$0xff] %v239
    %262 = vst [vmem:[#allocation3 + $0x20] sm:$0x1] %v236
    %263 = vst [vmem:[#allocation3 + $0x28] sm:$0x1] %v238
    %264 = vst [vmem:[#allocation3 + $0x30] sm:$0xfe] %v240
    %265 = vst [vmem:[#allocation3 + $0x38] sm:$0xfe] %v241
    %266 = vst [vmem:[#allocation3 + $0x40] sm:$0xff] %v243
    %267 = vst [vmem:[#allocation3 + $0x48] sm:$0xff] %v245
    %268 = vst [vmem:[#allocation3 + $0x50] sm:$0x1] %v242
    %269 = vst [vmem:[#allocation3 + $0x58] sm:$0x1] %v244
    %v270 = vld [vmem:[#allocation2] sm:$0xff]
    %v271 = vld [vmem:[#allocation2 + $0x8] sm:$0xff]
    %v272 = vld [vmem:[#allocation2 + $0x10] sm:$0xff]
    %v273 = vld [vmem:[#allocation2 + $0x18] sm:$0xff]
    %v274 = vld [vmem:[#allocation2 + $0x30] sm:$0xff]
    %v275 = vld [vmem:[#allocation2 + $0x38] sm:$0xff]
    %v276 = vld [vmem:[#allocation2 + $0x40] sm:$0xff]
    %v277 = vld [vmem:[#allocation2 + $0x48] sm:$0xff]
    %v278 = vpack.c.bf16 %v272, %v270
    %v279 = vpack.c.bf16 %v273, %v271
    %v280 = vpack.c.bf16 %v276, %v274
    %v281 = vpack.c.bf16 %v277, %v275
    %v282 = vld [vmem:[#allocation5] sm:$0xf]
    %v283 = vld [vmem:[#allocation5 + $0x4] sm:$0xf]
    %v284 = vld [vmem:[#allocation5 + $0x8] sm:$0xf]
    %v285 = vld [vmem:[#allocation5 + $0xc] sm:$0xf]
    %v286 = vld [vmem:[#allocation5 + $0x10] sm:$0xf]
    %v287 = vld [vmem:[#allocation5 + $0x14] sm:$0xf]
    %v288 = vld [vmem:[#allocation5 + $0x18] sm:$0xf]
    %v289 = vld [vmem:[#allocation5 + $0x1c] sm:$0xf]
    %v290 = vld [vmem:[#allocation5 + $0x20] sm:$0xf]
    %v291 = vld [vmem:[#allocation5 + $0x24] sm:$0xf]
    %v292 = vld [vmem:[#allocation5 + $0x28] sm:$0xf]
    %v293 = vld [vmem:[#allocation5 + $0x2c] sm:$0xf]
    %v294 = vld [vmem:[#allocation5 + $0x30] sm:$0xf]
    %v295 = vld [vmem:[#allocation5 + $0x34] sm:$0xf]
    %v296 = vld [vmem:[#allocation5 + $0x38] sm:$0xf]
    %v297 = vld [vmem:[#allocation5 + $0x3c] sm:$0xf]
    %v298 = vld [vmem:[#allocation5 + $0x40] sm:$0xf]
    %v299 = vld [vmem:[#allocation5 + $0x44] sm:$0xf]
    %v300 = vld [vmem:[#allocation5 + $0x48] sm:$0xf]
    %v301 = vld [vmem:[#allocation5 + $0x4c] sm:$0xf]
    %v302 = vld [vmem:[#allocation5 + $0x50] sm:$0xf]
    %v303 = vld [vmem:[#allocation5 + $0x54] sm:$0xf]
    %v304 = vld [vmem:[#allocation5 + $0x58] sm:$0xf]
    %v305 = vld [vmem:[#allocation5 + $0x5c] sm:$0xf]
    %v306 = vld [vmem:[#allocation5 + $0x60] sm:$0xf]
    %v307 = vld [vmem:[#allocation5 + $0x64] sm:$0xf]
    %v308 = vld [vmem:[#allocation5 + $0x68] sm:$0xf]
    %v309 = vld [vmem:[#allocation5 + $0x6c] sm:$0xf]
    %v310 = vld [vmem:[#allocation5 + $0x70] sm:$0xf]
    %v311 = vld [vmem:[#allocation5 + $0x74] sm:$0xf]
    %v312 = vld [vmem:[#allocation5 + $0x78] sm:$0xf]
    %v313 = vld [vmem:[#allocation5 + $0x7c] sm:$0xf]
    %v314 = vld [vmem:[#allocation2] sm:$0xfe]
    %v315 = vld [vmem:[#allocation2 + $0x8] sm:$0xfe]
    %v316 = vld [vmem:[#allocation2 + $0x20] sm:$0x1]
    %v317 = vld [vmem:[#allocation2 + $0x28] sm:$0x1]
    %v318 = vld [vmem:[#allocation2 + $0x30] sm:$0xfe]
    %v319 = vld [vmem:[#allocation2 + $0x38] sm:$0xfe]
    %v320 = vld [vmem:[#allocation2 + $0x50] sm:$0x1]
    %v321 = vld [vmem:[#allocation2 + $0x58] sm:$0x1]
    %vm334 = vcmask 1046528
    %v335 = vrot.slane %v314, 1
    %v336 = vrot.slane %v272, 1
    %v337 = vsel %vm334, %v335, %v336
    %v338 = vrot.slane %v315, 1
    %v339 = vrot.slane %v273, 1
    %v340 = vsel %vm334, %v338, %v339
    %v341 = vrot.slane %v316, 1
    %v342 = vsel %vm334, %v336, %v341
    %v343 = vrot.slane %v317, 1
    %v344 = vsel %vm334, %v339, %v343
    %v345 = vrot.slane %v318, 1
    %v346 = vrot.slane %v276, 1
    %v347 = vsel %vm334, %v345, %v346
    %v348 = vrot.slane %v319, 1
    %v349 = vrot.slane %v277, 1
    %v350 = vsel %vm334, %v348, %v349
    %v351 = vrot.slane %v320, 1
    %v352 = vsel %vm334, %v346, %v351
    %v353 = vrot.slane %v321, 1
    %v354 = vsel %vm334, %v349, %v353
    %v363 = vpack.c.bf16 %v342, %v337
    %v364 = vpack.c.bf16 %v344, %v340
    %v365 = vpack.c.bf16 %v352, %v347
    %v366 = vpack.c.bf16 %v354, %v350
    %s367 = scalar_lea.vmem [#allocation5], 128
    %v368 = vld [vmem:[%s367] sm:$0xf]
    %v369 = vld [vmem:[%s367 + $0x4] sm:$0xf]
    %v370 = vld [vmem:[%s367 + $0x8] sm:$0xf]
    %v371 = vld [vmem:[%s367 + $0xc] sm:$0xf]
    %v372 = vld [vmem:[%s367 + $0x10] sm:$0xf]
    %v373 = vld [vmem:[%s367 + $0x14] sm:$0xf]
    %v374 = vld [vmem:[%s367 + $0x18] sm:$0xf]
    %v375 = vld [vmem:[%s367 + $0x1c] sm:$0xf]
    %v376 = vld [vmem:[%s367 + $0x20] sm:$0xf]
    %v377 = vld [vmem:[%s367 + $0x24] sm:$0xf]
    %v378 = vld [vmem:[%s367 + $0x28] sm:$0xf]
    %v379 = vld [vmem:[%s367 + $0x2c] sm:$0xf]
    %v380 = vld [vmem:[%s367 + $0x30] sm:$0xf]
    %v381 = vld [vmem:[%s367 + $0x34] sm:$0xf]
    %v382 = vld [vmem:[%s367 + $0x38] sm:$0xf]
    %v383 = vld [vmem:[%s367 + $0x3c] sm:$0xf]
    %v384 = vld [vmem:[%s367 + $0x40] sm:$0xf]
    %v385 = vld [vmem:[%s367 + $0x44] sm:$0xf]
    %v386 = vld [vmem:[%s367 + $0x48] sm:$0xf]
    %v387 = vld [vmem:[%s367 + $0x4c] sm:$0xf]
    %v388 = vld [vmem:[%s367 + $0x50] sm:$0xf]
    %v389 = vld [vmem:[%s367 + $0x54] sm:$0xf]
    %v390 = vld [vmem:[%s367 + $0x58] sm:$0xf]
    %v391 = vld [vmem:[%s367 + $0x5c] sm:$0xf]
    %v392 = vld [vmem:[%s367 + $0x60] sm:$0xf]
    %v393 = vld [vmem:[%s367 + $0x64] sm:$0xf]
    %v394 = vld [vmem:[%s367 + $0x68] sm:$0xf]
    %v395 = vld [vmem:[%s367 + $0x6c] sm:$0xf]
    %v396 = vld [vmem:[%s367 + $0x70] sm:$0xf]
    %v397 = vld [vmem:[%s367 + $0x74] sm:$0xf]
    %v398 = vld [vmem:[%s367 + $0x78] sm:$0xf]
    %v399 = vld [vmem:[%s367 + $0x7c] sm:$0xf]
    %v432 = vunpack.c.l.b16 %v368
    %v433 = vunpack.c.l.b16 %v369
    %v434 = vunpack.c.l.b16 %v370
    %v435 = vunpack.c.l.b16 %v371
    %v436 = vunpack.c.l.b16 %v372
    %v437 = vunpack.c.l.b16 %v373
    %v438 = vunpack.c.l.b16 %v374
    %v439 = vunpack.c.l.b16 %v375
    %v440 = vunpack.c.l.b16 %v376
    %v441 = vunpack.c.l.b16 %v377
    %v442 = vunpack.c.l.b16 %v378
    %v443 = vunpack.c.l.b16 %v379
    %v444 = vunpack.c.l.b16 %v380
    %v445 = vunpack.c.l.b16 %v381
    %v446 = vunpack.c.l.b16 %v382
    %v447 = vunpack.c.l.b16 %v383
    %v448 = vunpack.c.l.b16 %v384
    %v449 = vunpack.c.l.b16 %v385
    %v450 = vunpack.c.l.b16 %v386
    %v451 = vunpack.c.l.b16 %v387
    %v452 = vunpack.c.l.b16 %v388
    %v453 = vunpack.c.l.b16 %v389
    %v454 = vunpack.c.l.b16 %v390
    %v455 = vunpack.c.l.b16 %v391
    %v456 = vunpack.c.l.b16 %v392
    %v457 = vunpack.c.l.b16 %v393
    %v458 = vunpack.c.l.b16 %v394
    %v459 = vunpack.c.l.b16 %v395
    %v460 = vunpack.c.l.b16 %v396
    %v461 = vunpack.c.l.b16 %v397
    %v462 = vunpack.c.l.b16 %v398
    %v463 = vunpack.c.l.b16 %v399
    %v464 = vpack.c.b16 %v433, %v432
    %v465 = vpack.c.b16 %v435, %v434
    %v466 = vpack.c.b16 %v437, %v436
    %v467 = vpack.c.b16 %v439, %v438
    %v468 = vpack.c.b16 %v441, %v440
    %v469 = vpack.c.b16 %v443, %v442
    %v470 = vpack.c.b16 %v445, %v444
    %v471 = vpack.c.b16 %v447, %v446
    %v472 = vpack.c.b16 %v449, %v448
    %v473 = vpack.c.b16 %v451, %v450
    %v474 = vpack.c.b16 %v453, %v452
    %v475 = vpack.c.b16 %v455, %v454
    %v476 = vpack.c.b16 %v457, %v456
    %v477 = vpack.c.b16 %v459, %v458
    %v478 = vpack.c.b16 %v461, %v460
    %v479 = vpack.c.b16 %v463, %v462
    %496 = vmatpush.bf16.msra.mxu0 %v471
    %497 = vmatpush.bf16.msra.mxu0 %v470
    %498 = vmatpush.bf16.msra.mxu0 %v469
    %499 = vmatpush.bf16.msra.mxu0 %v468
    %500 = vmatpush.bf16.msra.mxu0 %v467
    %501 = vmatpush.bf16.msra.mxu0 %v466
    %502 = vmatpush.bf16.msra.mxu0 %v465
    %503 = vmatpush.bf16.msra.mxu0 %v464
    %504 = vmatmul.bf16.gmra.mxu0 %v363
    %v505 = vpop.f32.mrf.mxu0
    %v506 = vadd.f32 0.0, %v505
    %v507 = vpop.f32.mrf.mxu0
    %v508 = vadd.f32 0.0, %v507
    %509 = vmatmul.bf16.gmra.mxu0 %v365
    %v510 = vpop.f32.mrf.mxu0
    %v511 = vadd.f32 0.0, %v510
    %v512 = vpop.f32.mrf.mxu0
    %v513 = vadd.f32 0.0, %v512
    %514 = vdwg.mxu0
    %515 = vmatpush.bf16.msra.mxu0 %v479
    %516 = vmatpush.bf16.msra.mxu0 %v478
    %517 = vmatpush.bf16.msra.mxu0 %v477
    %518 = vmatpush.bf16.msra.mxu0 %v476
    %519 = vmatpush.bf16.msra.mxu0 %v475
    %520 = vmatpush.bf16.msra.mxu0 %v474
    %521 = vmatpush.bf16.msra.mxu0 %v473
    %522 = vmatpush.bf16.msra.mxu0 %v472
    %523 = vmatmul.bf16.gmra.mxu0 %v364
    %v524 = vpop.f32.mrf.mxu0
    %v525 = vadd.f32 %v506, %v524
    %v526 = vpop.f32.mrf.mxu0
    %v527 = vadd.f32 %v508, %v526
    %528 = vmatmul.bf16.gmra.mxu0 %v366
    %v529 = vpop.f32.mrf.mxu0
    %v530 = vadd.f32 %v511, %v529
    %v531 = vpop.f32.mrf.mxu0
    %v532 = vadd.f32 %v513, %v531
    %533 = vdwg.mxu0
    %v566 = vunpack.c.l.b16 %v282
    %v567 = vunpack.c.l.b16 %v283
    %v568 = vunpack.c.l.b16 %v284
    %v569 = vunpack.c.l.b16 %v285
    %v570 = vunpack.c.l.b16 %v286
    %v571 = vunpack.c.l.b16 %v287
    %v572 = vunpack.c.l.b16 %v288
    %v573 = vunpack.c.l.b16 %v289
    %v574 = vunpack.c.l.b16 %v290
    %v575 = vunpack.c.l.b16 %v291
    %v576 = vunpack.c.l.b16 %v292
    %v577 = vunpack.c.l.b16 %v293
    %v578 = vunpack.c.l.b16 %v294
    %v579 = vunpack.c.l.b16 %v295
    %v580 = vunpack.c.l.b16 %v296
    %v581 = vunpack.c.l.b16 %v297
    %v582 = vunpack.c.l.b16 %v298
    %v583 = vunpack.c.l.b16 %v299
    %v584 = vunpack.c.l.b16 %v300
    %v585 = vunpack.c.l.b16 %v301
    %v586 = vunpack.c.l.b16 %v302
    %v587 = vunpack.c.l.b16 %v303
    %v588 = vunpack.c.l.b16 %v304
    %v589 = vunpack.c.l.b16 %v305
    %v590 = vunpack.c.l.b16 %v306
    %v591 = vunpack.c.l.b16 %v307
    %v592 = vunpack.c.l.b16 %v308
    %v593 = vunpack.c.l.b16 %v309
    %v594 = vunpack.c.l.b16 %v310
    %v595 = vunpack.c.l.b16 %v311
    %v596 = vunpack.c.l.b16 %v312
    %v597 = vunpack.c.l.b16 %v313
    %v598 = vpack.c.b16 %v567, %v566
    %v599 = vpack.c.b16 %v569, %v568
    %v600 = vpack.c.b16 %v571, %v570
    %v601 = vpack.c.b16 %v573, %v572
    %v602 = vpack.c.b16 %v575, %v574
    %v603 = vpack.c.b16 %v577, %v576
    %v604 = vpack.c.b16 %v579, %v578
    %v605 = vpack.c.b16 %v581, %v580
    %v606 = vpack.c.b16 %v583, %v582
    %v607 = vpack.c.b16 %v585, %v584
    %v608 = vpack.c.b16 %v587, %v586
    %v609 = vpack.c.b16 %v589, %v588
    %v610 = vpack.c.b16 %v591, %v590
    %v611 = vpack.c.b16 %v593, %v592
    %v612 = vpack.c.b16 %v595, %v594
    %v613 = vpack.c.b16 %v597, %v596
    %630 = vmatpush.bf16.msra.mxu0 %v605
    %631 = vmatpush.bf16.msra.mxu0 %v604
    %632 = vmatpush.bf16.msra.mxu0 %v603
    %633 = vmatpush.bf16.msra.mxu0 %v602
    %634 = vmatpush.bf16.msra.mxu0 %v601
    %635 = vmatpush.bf16.msra.mxu0 %v600
    %636 = vmatpush.bf16.msra.mxu0 %v599
    %637 = vmatpush.bf16.msra.mxu0 %v598
    %638 = vmatmul.bf16.gmra.mxu0 %v278
    %v639 = vpop.f32.mrf.mxu0
    %v640 = vadd.f32 %v525, %v639
    %v641 = vpop.f32.mrf.mxu0
    %v642 = vadd.f32 %v527, %v641
    %643 = vmatmul.bf16.gmra.mxu0 %v280
    %v644 = vpop.f32.mrf.mxu0
    %v645 = vadd.f32 %v530, %v644
    %v646 = vpop.f32.mrf.mxu0
    %v647 = vadd.f32 %v532, %v646
    %648 = vdwg.mxu0
    %649 = vmatpush.bf16.msra.mxu0 %v613
    %650 = vmatpush.bf16.msra.mxu0 %v612
    %651 = vmatpush.bf16.msra.mxu0 %v611
    %652 = vmatpush.bf16.msra.mxu0 %v610
    %653 = vmatpush.bf16.msra.mxu0 %v609
    %654 = vmatpush.bf16.msra.mxu0 %v608
    %655 = vmatpush.bf16.msra.mxu0 %v607
    %656 = vmatpush.bf16.msra.mxu0 %v606
    %657 = vmatmul.bf16.gmra.mxu0 %v279
    %v658 = vpop.f32.mrf.mxu0
    %v659 = vadd.f32 %v640, %v658
    %v660 = vpop.f32.mrf.mxu0
    %v661 = vadd.f32 %v642, %v660
    %662 = vmatmul.bf16.gmra.mxu0 %v281
    %v663 = vpop.f32.mrf.mxu0
    %v664 = vadd.f32 %v645, %v663
    %v665 = vpop.f32.mrf.mxu0
    %v666 = vadd.f32 %v647, %v665
    %667 = vdwg.mxu0
    %v668 = vld [vmem:[#allocation2] sm:$0xfc]
    %v669 = vld [vmem:[#allocation2 + $0x8] sm:$0xfc]
    %v670 = vld [vmem:[#allocation2 + $0x20] sm:$0x3]
    %v671 = vld [vmem:[#allocation2 + $0x28] sm:$0x3]
    %v672 = vld [vmem:[#allocation2 + $0x30] sm:$0xfc]
    %v673 = vld [vmem:[#allocation2 + $0x38] sm:$0xfc]
    %v674 = vld [vmem:[#allocation2 + $0x50] sm:$0x3]
    %v675 = vld [vmem:[#allocation2 + $0x58] sm:$0x3]
    %vm684 = vcmask 1045504
    %v685 = vrot.slane %v668, 2
    %v686 = vrot.slane %v272, 2
    %v687 = vsel %vm684, %v685, %v686
    %v688 = vrot.slane %v669, 2
    %v689 = vrot.slane %v273, 2
    %v690 = vsel %vm684, %v688, %v689
    %v691 = vrot.slane %v670, 2
    %v692 = vsel %vm684, %v686, %v691
    %v693 = vrot.slane %v671, 2
    %v694 = vsel %vm684, %v689, %v693
    %v695 = vrot.slane %v672, 2
    %v696 = vrot.slane %v276, 2
    %v697 = vsel %vm684, %v695, %v696
    %v698 = vrot.slane %v673, 2
    %v699 = vrot.slane %v277, 2
    %v700 = vsel %vm684, %v698, %v699
    %v701 = vrot.slane %v674, 2
    %v702 = vsel %vm684, %v696, %v701
    %v703 = vrot.slane %v675, 2
    %v704 = vsel %vm684, %v699, %v703
    %v713 = vpack.c.bf16 %v692, %v687
    %v714 = vpack.c.bf16 %v694, %v690
    %v715 = vpack.c.bf16 %v702, %v697
    %v716 = vpack.c.bf16 %v704, %v700
    %s717 = scalar_lea.vmem [#allocation5], 256
    %v718 = vld [vmem:[%s717] sm:$0xf]
    %v719 = vld [vmem:[%s717 + $0x4] sm:$0xf]
    %v720 = vld [vmem:[%s717 + $0x8] sm:$0xf]
    %v721 = vld [vmem:[%s717 + $0xc] sm:$0xf]
    %v722 = vld [vmem:[%s717 + $0x10] sm:$0xf]
    %v723 = vld [vmem:[%s717 + $0x14] sm:$0xf]
    %v724 = vld [vmem:[%s717 + $0x18] sm:$0xf]
    %v725 = vld [vmem:[%s717 + $0x1c] sm:$0xf]
    %v726 = vld [vmem:[%s717 + $0x20] sm:$0xf]
    %v727 = vld [vmem:[%s717 + $0x24] sm:$0xf]
    %v728 = vld [vmem:[%s717 + $0x28] sm:$0xf]
    %v729 = vld [vmem:[%s717 + $0x2c] sm:$0xf]
    %v730 = vld [vmem:[%s717 + $0x30] sm:$0xf]
    %v731 = vld [vmem:[%s717 + $0x34] sm:$0xf]
    %v732 = vld [vmem:[%s717 + $0x38] sm:$0xf]
    %v733 = vld [vmem:[%s717 + $0x3c] sm:$0xf]
    %v734 = vld [vmem:[%s717 + $0x40] sm:$0xf]
    %v735 = vld [vmem:[%s717 + $0x44] sm:$0xf]
    %v736 = vld [vmem:[%s717 + $0x48] sm:$0xf]
    %v737 = vld [vmem:[%s717 + $0x4c] sm:$0xf]
    %v738 = vld [vmem:[%s717 + $0x50] sm:$0xf]
    %v739 = vld [vmem:[%s717 + $0x54] sm:$0xf]
    %v740 = vld [vmem:[%s717 + $0x58] sm:$0xf]
    %v741 = vld [vmem:[%s717 + $0x5c] sm:$0xf]
    %v742 = vld [vmem:[%s717 + $0x60] sm:$0xf]
    %v743 = vld [vmem:[%s717 + $0x64] sm:$0xf]
    %v744 = vld [vmem:[%s717 + $0x68] sm:$0xf]
    %v745 = vld [vmem:[%s717 + $0x6c] sm:$0xf]
    %v746 = vld [vmem:[%s717 + $0x70] sm:$0xf]
    %v747 = vld [vmem:[%s717 + $0x74] sm:$0xf]
    %v748 = vld [vmem:[%s717 + $0x78] sm:$0xf]
    %v749 = vld [vmem:[%s717 + $0x7c] sm:$0xf]
    %v782 = vunpack.c.l.b16 %v718
    %v783 = vunpack.c.l.b16 %v719
    %v784 = vunpack.c.l.b16 %v720
    %v785 = vunpack.c.l.b16 %v721
    %v786 = vunpack.c.l.b16 %v722
    %v787 = vunpack.c.l.b16 %v723
    %v788 = vunpack.c.l.b16 %v724
    %v789 = vunpack.c.l.b16 %v725
    %v790 = vunpack.c.l.b16 %v726
    %v791 = vunpack.c.l.b16 %v727
    %v792 = vunpack.c.l.b16 %v728
    %v793 = vunpack.c.l.b16 %v729
    %v794 = vunpack.c.l.b16 %v730
    %v795 = vunpack.c.l.b16 %v731
    %v796 = vunpack.c.l.b16 %v732
    %v797 = vunpack.c.l.b16 %v733
    %v798 = vunpack.c.l.b16 %v734
    %v799 = vunpack.c.l.b16 %v735
    %v800 = vunpack.c.l.b16 %v736
    %v801 = vunpack.c.l.b16 %v737
    %v802 = vunpack.c.l.b16 %v738
    %v803 = vunpack.c.l.b16 %v739
    %v804 = vunpack.c.l.b16 %v740
    %v805 = vunpack.c.l.b16 %v741
    %v806 = vunpack.c.l.b16 %v742
    %v807 = vunpack.c.l.b16 %v743
    %v808 = vunpack.c.l.b16 %v744
    %v809 = vunpack.c.l.b16 %v745
    %v810 = vunpack.c.l.b16 %v746
    %v811 = vunpack.c.l.b16 %v747
    %v812 = vunpack.c.l.b16 %v748
    %v813 = vunpack.c.l.b16 %v749
    %v814 = vpack.c.b16 %v783, %v782
    %v815 = vpack.c.b16 %v785, %v784
    %v816 = vpack.c.b16 %v787, %v786
    %v817 = vpack.c.b16 %v789, %v788
    %v818 = vpack.c.b16 %v791, %v790
    %v819 = vpack.c.b16 %v793, %v792
    %v820 = vpack.c.b16 %v795, %v794
    %v821 = vpack.c.b16 %v797, %v796
    %v822 = vpack.c.b16 %v799, %v798
    %v823 = vpack.c.b16 %v801, %v800
    %v824 = vpack.c.b16 %v803, %v802
    %v825 = vpack.c.b16 %v805, %v804
    %v826 = vpack.c.b16 %v807, %v806
    %v827 = vpack.c.b16 %v809, %v808
    %v828 = vpack.c.b16 %v811, %v810
    %v829 = vpack.c.b16 %v813, %v812
    %846 = vmatpush.bf16.msra.mxu0 %v821
    %847 = vmatpush.bf16.msra.mxu0 %v820
    %848 = vmatpush.bf16.msra.mxu0 %v819
    %849 = vmatpush.bf16.msra.mxu0 %v818
    %850 = vmatpush.bf16.msra.mxu0 %v817
    %851 = vmatpush.bf16.msra.mxu0 %v816
    %852 = vmatpush.bf16.msra.mxu0 %v815
    %853 = vmatpush.bf16.msra.mxu0 %v814
    %854 = vmatmul.bf16.gmra.mxu0 %v713
    %v855 = vpop.f32.mrf.mxu0
    %v856 = vadd.f32 0.0, %v855
    %v857 = vpop.f32.mrf.mxu0
    %v858 = vadd.f32 0.0, %v857
    %859 = vmatmul.bf16.gmra.mxu0 %v715
    %v860 = vpop.f32.mrf.mxu0
    %v861 = vadd.f32 0.0, %v860
    %v862 = vpop.f32.mrf.mxu0
    %v863 = vadd.f32 0.0, %v862
    %864 = vdwg.mxu0
    %865 = vmatpush.bf16.msra.mxu0 %v829
    %866 = vmatpush.bf16.msra.mxu0 %v828
    %867 = vmatpush.bf16.msra.mxu0 %v827
    %868 = vmatpush.bf16.msra.mxu0 %v826
    %869 = vmatpush.bf16.msra.mxu0 %v825
    %870 = vmatpush.bf16.msra.mxu0 %v824
    %871 = vmatpush.bf16.msra.mxu0 %v823
    %872 = vmatpush.bf16.msra.mxu0 %v822
    %873 = vmatmul.bf16.gmra.mxu0 %v714
    %v874 = vpop.f32.mrf.mxu0
    %v875 = vadd.f32 %v856, %v874
    %v876 = vpop.f32.mrf.mxu0
    %v877 = vadd.f32 %v858, %v876
    %878 = vmatmul.bf16.gmra.mxu0 %v716
    %v879 = vpop.f32.mrf.mxu0
    %v880 = vadd.f32 %v861, %v879
    %v881 = vpop.f32.mrf.mxu0
    %v882 = vadd.f32 %v863, %v881
    %883 = vdwg.mxu0
    %v884 = vadd.f32 %v659, %v875
    %v885 = vadd.f32 %v661, %v877
    %v886 = vadd.f32 %v664, %v880
    %v887 = vadd.f32 %v666, %v882
    %v888 = vld [vmem:[#allocation3] sm:$0xff]
    %v889 = vld [vmem:[#allocation3 + $0x8] sm:$0xff]
    %v890 = vld [vmem:[#allocation3 + $0x10] sm:$0xff]
    %v891 = vld [vmem:[#allocation3 + $0x18] sm:$0xff]
    %v892 = vld [vmem:[#allocation3 + $0x30] sm:$0xff]
    %v893 = vld [vmem:[#allocation3 + $0x38] sm:$0xff]
    %v894 = vld [vmem:[#allocation3 + $0x40] sm:$0xff]
    %v895 = vld [vmem:[#allocation3 + $0x48] sm:$0xff]
    %v896 = vpack.c.bf16 %v890, %v888
    %v897 = vpack.c.bf16 %v891, %v889
    %v898 = vpack.c.bf16 %v894, %v892
    %v899 = vpack.c.bf16 %v895, %v893
    %v900 = vld [vmem:[#allocation7] sm:$0xf]
    %v901 = vld [vmem:[#allocation7 + $0x4] sm:$0xf]
    %v902 = vld [vmem:[#allocation7 + $0x8] sm:$0xf]
    %v903 = vld [vmem:[#allocation7 + $0xc] sm:$0xf]
    %v904 = vld [vmem:[#allocation7 + $0x10] sm:$0xf]
    %v905 = vld [vmem:[#allocation7 + $0x14] sm:$0xf]
    %v906 = vld [vmem:[#allocation7 + $0x18] sm:$0xf]
    %v907 = vld [vmem:[#allocation7 + $0x1c] sm:$0xf]
    %v908 = vld [vmem:[#allocation7 + $0x20] sm:$0xf]
    %v909 = vld [vmem:[#allocation7 + $0x24] sm:$0xf]
    %v910 = vld [vmem:[#allocation7 + $0x28] sm:$0xf]
    %v911 = vld [vmem:[#allocation7 + $0x2c] sm:$0xf]
    %v912 = vld [vmem:[#allocation7 + $0x30] sm:$0xf]
    %v913 = vld [vmem:[#allocation7 + $0x34] sm:$0xf]
    %v914 = vld [vmem:[#allocation7 + $0x38] sm:$0xf]
    %v915 = vld [vmem:[#allocation7 + $0x3c] sm:$0xf]
    %v916 = vld [vmem:[#allocation7 + $0x40] sm:$0xf]
    %v917 = vld [vmem:[#allocation7 + $0x44] sm:$0xf]
    %v918 = vld [vmem:[#allocation7 + $0x48] sm:$0xf]
    %v919 = vld [vmem:[#allocation7 + $0x4c] sm:$0xf]
    %v920 = vld [vmem:[#allocation7 + $0x50] sm:$0xf]
    %v921 = vld [vmem:[#allocation7 + $0x54] sm:$0xf]
    %v922 = vld [vmem:[#allocation7 + $0x58] sm:$0xf]
    %v923 = vld [vmem:[#allocation7 + $0x5c] sm:$0xf]
    %v924 = vld [vmem:[#allocation7 + $0x60] sm:$0xf]
    %v925 = vld [vmem:[#allocation7 + $0x64] sm:$0xf]
    %v926 = vld [vmem:[#allocation7 + $0x68] sm:$0xf]
    %v927 = vld [vmem:[#allocation7 + $0x6c] sm:$0xf]
    %v928 = vld [vmem:[#allocation7 + $0x70] sm:$0xf]
    %v929 = vld [vmem:[#allocation7 + $0x74] sm:$0xf]
    %v930 = vld [vmem:[#allocation7 + $0x78] sm:$0xf]
    %v931 = vld [vmem:[#allocation7 + $0x7c] sm:$0xf]
    %v964 = vunpack.c.l.b16 %v900
    %v965 = vunpack.c.l.b16 %v901
    %v966 = vunpack.c.l.b16 %v902
    %v967 = vunpack.c.l.b16 %v903
    %v968 = vunpack.c.l.b16 %v904
    %v969 = vunpack.c.l.b16 %v905
    %v970 = vunpack.c.l.b16 %v906
    %v971 = vunpack.c.l.b16 %v907
    %v972 = vunpack.c.l.b16 %v908
    %v973 = vunpack.c.l.b16 %v909
    %v974 = vunpack.c.l.b16 %v910
    %v975 = vunpack.c.l.b16 %v911
    %v976 = vunpack.c.l.b16 %v912
    %v977 = vunpack.c.l.b16 %v913
    %v978 = vunpack.c.l.b16 %v914
    %v979 = vunpack.c.l.b16 %v915
    %v980 = vunpack.c.l.b16 %v916
    %v981 = vunpack.c.l.b16 %v917
    %v982 = vunpack.c.l.b16 %v918
    %v983 = vunpack.c.l.b16 %v919
    %v984 = vunpack.c.l.b16 %v920
    %v985 = vunpack.c.l.b16 %v921
    %v986 = vunpack.c.l.b16 %v922
    %v987 = vunpack.c.l.b16 %v923
    %v988 = vunpack.c.l.b16 %v924
    %v989 = vunpack.c.l.b16 %v925
    %v990 = vunpack.c.l.b16 %v926
    %v991 = vunpack.c.l.b16 %v927
    %v992 = vunpack.c.l.b16 %v928
    %v993 = vunpack.c.l.b16 %v929
    %v994 = vunpack.c.l.b16 %v930
    %v995 = vunpack.c.l.b16 %v931
    %v996 = vpack.c.b16 %v965, %v964
    %v997 = vpack.c.b16 %v967, %v966
    %v998 = vpack.c.b16 %v969, %v968
    %v999 = vpack.c.b16 %v971, %v970
    %v1000 = vpack.c.b16 %v973, %v972
    %v1001 = vpack.c.b16 %v975, %v974
    %v1002 = vpack.c.b16 %v977, %v976
    %v1003 = vpack.c.b16 %v979, %v978
    %v1004 = vpack.c.b16 %v981, %v980
    %v1005 = vpack.c.b16 %v983, %v982
    %v1006 = vpack.c.b16 %v985, %v984
    %v1007 = vpack.c.b16 %v987, %v986
    %v1008 = vpack.c.b16 %v989, %v988
    %v1009 = vpack.c.b16 %v991, %v990
    %v1010 = vpack.c.b16 %v993, %v992
    %v1011 = vpack.c.b16 %v995, %v994
    %1028 = vmatpush.bf16.msra.mxu0 %v1003
    %1029 = vmatpush.bf16.msra.mxu0 %v1002
    %1030 = vmatpush.bf16.msra.mxu0 %v1001
    %1031 = vmatpush.bf16.msra.mxu0 %v1000
    %1032 = vmatpush.bf16.msra.mxu0 %v999
    %1033 = vmatpush.bf16.msra.mxu0 %v998
    %1034 = vmatpush.bf16.msra.mxu0 %v997
    %1035 = vmatpush.bf16.msra.mxu0 %v996
    %1036 = vmatmul.bf16.gmra.mxu0 %v896
    %v1037 = vpop.f32.mrf.mxu0
    %v1038 = vadd.f32 0.0, %v1037
    %v1039 = vpop.f32.mrf.mxu0
    %v1040 = vadd.f32 0.0, %v1039
    %1041 = vmatmul.bf16.gmra.mxu0 %v898
    %v1042 = vpop.f32.mrf.mxu0
    %v1043 = vadd.f32 0.0, %v1042
    %v1044 = vpop.f32.mrf.mxu0
    %v1045 = vadd.f32 0.0, %v1044
    %1046 = vdwg.mxu0
    %1047 = vmatpush.bf16.msra.mxu0 %v1011
    %1048 = vmatpush.bf16.msra.mxu0 %v1010
    %1049 = vmatpush.bf16.msra.mxu0 %v1009
    %1050 = vmatpush.bf16.msra.mxu0 %v1008
    %1051 = vmatpush.bf16.msra.mxu0 %v1007
    %1052 = vmatpush.bf16.msra.mxu0 %v1006
    %1053 = vmatpush.bf16.msra.mxu0 %v1005
    %1054 = vmatpush.bf16.msra.mxu0 %v1004
    %1055 = vmatmul.bf16.gmra.mxu0 %v897
    %v1056 = vpop.f32.mrf.mxu0
    %v1057 = vadd.f32 %v1038, %v1056
    %v1058 = vpop.f32.mrf.mxu0
    %v1059 = vadd.f32 %v1040, %v1058
    %1060 = vmatmul.bf16.gmra.mxu0 %v899
    %v1061 = vpop.f32.mrf.mxu0
    %v1062 = vadd.f32 %v1043, %v1061
    %v1063 = vpop.f32.mrf.mxu0
    %v1064 = vadd.f32 %v1045, %v1063
    %1065 = vdwg.mxu0
    %v1066 = vadd.f32 %v884, %v1057
    %v1067 = vadd.f32 %v885, %v1059
    %v1068 = vadd.f32 %v886, %v1062
    %v1069 = vadd.f32 %v887, %v1064
    %v1070 = vld [vmem:[#allocation3] sm:$0xfe]
    %v1071 = vld [vmem:[#allocation3 + $0x8] sm:$0xfe]
    %v1072 = vld [vmem:[#allocation3 + $0x10] sm:$0xff]
    %v1073 = vld [vmem:[#allocation3 + $0x18] sm:$0xff]
    %v1074 = vld [vmem:[#allocation3 + $0x20] sm:$0x1]
    %v1075 = vld [vmem:[#allocation3 + $0x28] sm:$0x1]
    %v1076 = vld [vmem:[#allocation3 + $0x30] sm:$0xfe]
    %v1077 = vld [vmem:[#allocation3 + $0x38] sm:$0xfe]
    %v1078 = vld [vmem:[#allocation3 + $0x40] sm:$0xff]
    %v1079 = vld [vmem:[#allocation3 + $0x48] sm:$0xff]
    %v1080 = vld [vmem:[#allocation3 + $0x50] sm:$0x1]
    %v1081 = vld [vmem:[#allocation3 + $0x58] sm:$0x1]
    %v1094 = vrot.slane %v1070, 1
    %v1095 = vrot.slane %v1072, 1
    %v1096 = vsel %vm334, %v1094, %v1095
    %v1097 = vrot.slane %v1071, 1
    %v1098 = vrot.slane %v1073, 1
    %v1099 = vsel %vm334, %v1097, %v1098
    %v1100 = vrot.slane %v1074, 1
    %v1101 = vsel %vm334, %v1095, %v1100
    %v1102 = vrot.slane %v1075, 1
    %v1103 = vsel %vm334, %v1098, %v1102
    %v1104 = vrot.slane %v1076, 1
    %v1105 = vrot.slane %v1078, 1
    %v1106 = vsel %vm334, %v1104, %v1105
    %v1107 = vrot.slane %v1077, 1
    %v1108 = vrot.slane %v1079, 1
    %v1109 = vsel %vm334, %v1107, %v1108
    %v1110 = vrot.slane %v1080, 1
    %v1111 = vsel %vm334, %v1105, %v1110
    %v1112 = vrot.slane %v1081, 1
    %v1113 = vsel %vm334, %v1108, %v1112
    %v1122 = vpack.c.bf16 %v1101, %v1096
    %v1123 = vpack.c.bf16 %v1103, %v1099
    %v1124 = vpack.c.bf16 %v1111, %v1106
    %v1125 = vpack.c.bf16 %v1113, %v1109
    %s1126 = scalar_lea.vmem [#allocation7], 128
    %v1127 = vld [vmem:[%s1126] sm:$0xf]
    %v1128 = vld [vmem:[%s1126 + $0x4] sm:$0xf]
    %v1129 = vld [vmem:[%s1126 + $0x8] sm:$0xf]
    %v1130 = vld [vmem:[%s1126 + $0xc] sm:$0xf]
    %v1131 = vld [vmem:[%s1126 + $0x10] sm:$0xf]
    %v1132 = vld [vmem:[%s1126 + $0x14] sm:$0xf]
    %v1133 = vld [vmem:[%s1126 + $0x18] sm:$0xf]
    %v1134 = vld [vmem:[%s1126 + $0x1c] sm:$0xf]
    %v1135 = vld [vmem:[%s1126 + $0x20] sm:$0xf]
    %v1136 = vld [vmem:[%s1126 + $0x24] sm:$0xf]
    %v1137 = vld [vmem:[%s1126 + $0x28] sm:$0xf]
    %v1138 = vld [vmem:[%s1126 + $0x2c] sm:$0xf]
    %v1139 = vld [vmem:[%s1126 + $0x30] sm:$0xf]
    %v1140 = vld [vmem:[%s1126 + $0x34] sm:$0xf]
    %v1141 = vld [vmem:[%s1126 + $0x38] sm:$0xf]
    %v1142 = vld [vmem:[%s1126 + $0x3c] sm:$0xf]
    %v1143 = vld [vmem:[%s1126 + $0x40] sm:$0xf]
    %v1144 = vld [vmem:[%s1126 + $0x44] sm:$0xf]
    %v1145 = vld [vmem:[%s1126 + $0x48] sm:$0xf]
    %v1146 = vld [vmem:[%s1126 + $0x4c] sm:$0xf]
    %v1147 = vld [vmem:[%s1126 + $0x50] sm:$0xf]
    %v1148 = vld [vmem:[%s1126 + $0x54] sm:$0xf]
    %v1149 = vld [vmem:[%s1126 + $0x58] sm:$0xf]
    %v1150 = vld [vmem:[%s1126 + $0x5c] sm:$0xf]
    %v1151 = vld [vmem:[%s1126 + $0x60] sm:$0xf]
    %v1152 = vld [vmem:[%s1126 + $0x64] sm:$0xf]
    %v1153 = vld [vmem:[%s1126 + $0x68] sm:$0xf]
    %v1154 = vld [vmem:[%s1126 + $0x6c] sm:$0xf]
    %v1155 = vld [vmem:[%s1126 + $0x70] sm:$0xf]
    %v1156 = vld [vmem:[%s1126 + $0x74] sm:$0xf]
    %v1157 = vld [vmem:[%s1126 + $0x78] sm:$0xf]
    %v1158 = vld [vmem:[%s1126 + $0x7c] sm:$0xf]
    %v1191 = vunpack.c.l.b16 %v1127
    %v1192 = vunpack.c.l.b16 %v1128
    %v1193 = vunpack.c.l.b16 %v1129
    %v1194 = vunpack.c.l.b16 %v1130
    %v1195 = vunpack.c.l.b16 %v1131
    %v1196 = vunpack.c.l.b16 %v1132
    %v1197 = vunpack.c.l.b16 %v1133
    %v1198 = vunpack.c.l.b16 %v1134
    %v1199 = vunpack.c.l.b16 %v1135
    %v1200 = vunpack.c.l.b16 %v1136
    %v1201 = vunpack.c.l.b16 %v1137
    %v1202 = vunpack.c.l.b16 %v1138
    %v1203 = vunpack.c.l.b16 %v1139
    %v1204 = vunpack.c.l.b16 %v1140
    %v1205 = vunpack.c.l.b16 %v1141
    %v1206 = vunpack.c.l.b16 %v1142
    %v1207 = vunpack.c.l.b16 %v1143
    %v1208 = vunpack.c.l.b16 %v1144
    %v1209 = vunpack.c.l.b16 %v1145
    %v1210 = vunpack.c.l.b16 %v1146
    %v1211 = vunpack.c.l.b16 %v1147
    %v1212 = vunpack.c.l.b16 %v1148
    %v1213 = vunpack.c.l.b16 %v1149
    %v1214 = vunpack.c.l.b16 %v1150
    %v1215 = vunpack.c.l.b16 %v1151
    %v1216 = vunpack.c.l.b16 %v1152
    %v1217 = vunpack.c.l.b16 %v1153
    %v1218 = vunpack.c.l.b16 %v1154
    %v1219 = vunpack.c.l.b16 %v1155
    %v1220 = vunpack.c.l.b16 %v1156
    %v1221 = vunpack.c.l.b16 %v1157
    %v1222 = vunpack.c.l.b16 %v1158
    %v1223 = vpack.c.b16 %v1192, %v1191
    %v1224 = vpack.c.b16 %v1194, %v1193
    %v1225 = vpack.c.b16 %v1196, %v1195
    %v1226 = vpack.c.b16 %v1198, %v1197
    %v1227 = vpack.c.b16 %v1200, %v1199
    %v1228 = vpack.c.b16 %v1202, %v1201
    %v1229 = vpack.c.b16 %v1204, %v1203
    %v1230 = vpack.c.b16 %v1206, %v1205
    %v1231 = vpack.c.b16 %v1208, %v1207
    %v1232 = vpack.c.b16 %v1210, %v1209
    %v1233 = vpack.c.b16 %v1212, %v1211
    %v1234 = vpack.c.b16 %v1214, %v1213
    %v1235 = vpack.c.b16 %v1216, %v1215
    %v1236 = vpack.c.b16 %v1218, %v1217
    %v1237 = vpack.c.b16 %v1220, %v1219
    %v1238 = vpack.c.b16 %v1222, %v1221
    %1255 = vmatpush.bf16.msra.mxu0 %v1230
    %1256 = vmatpush.bf16.msra.mxu0 %v1229
    %1257 = vmatpush.bf16.msra.mxu0 %v1228
    %1258 = vmatpush.bf16.msra.mxu0 %v1227
    %1259 = vmatpush.bf16.msra.mxu0 %v1226
    %1260 = vmatpush.bf16.msra.mxu0 %v1225
    %1261 = vmatpush.bf16.msra.mxu0 %v1224
    %1262 = vmatpush.bf16.msra.mxu0 %v1223
    %1263 = vmatmul.bf16.gmra.mxu0 %v1122
    %v1264 = vpop.f32.mrf.mxu0
    %v1265 = vadd.f32 0.0, %v1264
    %v1266 = vpop.f32.mrf.mxu0
    %v1267 = vadd.f32 0.0, %v1266
    %1268 = vmatmul.bf16.gmra.mxu0 %v1124
    %v1269 = vpop.f32.mrf.mxu0
    %v1270 = vadd.f32 0.0, %v1269
    %v1271 = vpop.f32.mrf.mxu0
    %v1272 = vadd.f32 0.0, %v1271
    %1273 = vdwg.mxu0
    %1274 = vmatpush.bf16.msra.mxu0 %v1238
    %1275 = vmatpush.bf16.msra.mxu0 %v1237
    %1276 = vmatpush.bf16.msra.mxu0 %v1236
    %1277 = vmatpush.bf16.msra.mxu0 %v1235
    %1278 = vmatpush.bf16.msra.mxu0 %v1234
    %1279 = vmatpush.bf16.msra.mxu0 %v1233
    %1280 = vmatpush.bf16.msra.mxu0 %v1232
    %1281 = vmatpush.bf16.msra.mxu0 %v1231
    %1282 = vmatmul.bf16.gmra.mxu0 %v1123
    %v1283 = vpop.f32.mrf.mxu0
    %v1284 = vadd.f32 %v1265, %v1283
    %v1285 = vpop.f32.mrf.mxu0
    %v1286 = vadd.f32 %v1267, %v1285
    %1287 = vmatmul.bf16.gmra.mxu0 %v1125
    %v1288 = vpop.f32.mrf.mxu0
    %v1289 = vadd.f32 %v1270, %v1288
    %v1290 = vpop.f32.mrf.mxu0
    %v1291 = vadd.f32 %v1272, %v1290
    %1292 = vdwg.mxu0
    %v1293 = vadd.f32 %v1066, %v1284
    %v1294 = vadd.f32 %v1067, %v1286
    %v1295 = vadd.f32 %v1068, %v1289
    %v1296 = vadd.f32 %v1069, %v1291
    %v1297 = vld [vmem:[#allocation3] sm:$0xfc]
    %v1298 = vld [vmem:[#allocation3 + $0x8] sm:$0xfc]
    %v1299 = vld [vmem:[#allocation3 + $0x20] sm:$0x3]
    %v1300 = vld [vmem:[#allocation3 + $0x28] sm:$0x3]
    %v1301 = vld [vmem:[#allocation3 + $0x30] sm:$0xfc]
    %v1302 = vld [vmem:[#allocation3 + $0x38] sm:$0xfc]
    %v1303 = vld [vmem:[#allocation3 + $0x50] sm:$0x3]
    %v1304 = vld [vmem:[#allocation3 + $0x58] sm:$0x3]
    %v1313 = vrot.slane %v1297, 2
    %v1314 = vrot.slane %v1072, 2
    %v1315 = vsel %vm684, %v1313, %v1314
    %v1316 = vrot.slane %v1298, 2
    %v1317 = vrot.slane %v1073, 2
    %v1318 = vsel %vm684, %v1316, %v1317
    %v1319 = vrot.slane %v1299, 2
    %v1320 = vsel %vm684, %v1314, %v1319
    %v1321 = vrot.slane %v1300, 2
    %v1322 = vsel %vm684, %v1317, %v1321
    %v1323 = vrot.slane %v1301, 2
    %v1324 = vrot.slane %v1078, 2
    %v1325 = vsel %vm684, %v1323, %v1324
    %v1326 = vrot.slane %v1302, 2
    %v1327 = vrot.slane %v1079, 2
    %v1328 = vsel %vm684, %v1326, %v1327
    %v1329 = vrot.slane %v1303, 2
    %v1330 = vsel %vm684, %v1324, %v1329
    %v1331 = vrot.slane %v1304, 2
    %v1332 = vsel %vm684, %v1327, %v1331
    %v1341 = vpack.c.bf16 %v1320, %v1315
    %v1342 = vpack.c.bf16 %v1322, %v1318
    %v1343 = vpack.c.bf16 %v1330, %v1325
    %v1344 = vpack.c.bf16 %v1332, %v1328
    %s1345 = scalar_lea.vmem [#allocation7], 256
    %v1346 = vld [vmem:[%s1345] sm:$0xf]
    %v1347 = vld [vmem:[%s1345 + $0x4] sm:$0xf]
    %v1348 = vld [vmem:[%s1345 + $0x8] sm:$0xf]
    %v1349 = vld [vmem:[%s1345 + $0xc] sm:$0xf]
    %v1350 = vld [vmem:[%s1345 + $0x10] sm:$0xf]
    %v1351 = vld [vmem:[%s1345 + $0x14] sm:$0xf]
    %v1352 = vld [vmem:[%s1345 + $0x18] sm:$0xf]
    %v1353 = vld [vmem:[%s1345 + $0x1c] sm:$0xf]
    %v1354 = vld [vmem:[%s1345 + $0x20] sm:$0xf]
    %v1355 = vld [vmem:[%s1345 + $0x24] sm:$0xf]
    %v1356 = vld [vmem:[%s1345 + $0x28] sm:$0xf]
    %v1357 = vld [vmem:[%s1345 + $0x2c] sm:$0xf]
    %v1358 = vld [vmem:[%s1345 + $0x30] sm:$0xf]
    %v1359 = vld [vmem:[%s1345 + $0x34] sm:$0xf]
    %v1360 = vld [vmem:[%s1345 + $0x38] sm:$0xf]
    %v1361 = vld [vmem:[%s1345 + $0x3c] sm:$0xf]
    %v1362 = vld [vmem:[%s1345 + $0x40] sm:$0xf]
    %v1363 = vld [vmem:[%s1345 + $0x44] sm:$0xf]
    %v1364 = vld [vmem:[%s1345 + $0x48] sm:$0xf]
    %v1365 = vld [vmem:[%s1345 + $0x4c] sm:$0xf]
    %v1366 = vld [vmem:[%s1345 + $0x50] sm:$0xf]
    %v1367 = vld [vmem:[%s1345 + $0x54] sm:$0xf]
    %v1368 = vld [vmem:[%s1345 + $0x58] sm:$0xf]
    %v1369 = vld [vmem:[%s1345 + $0x5c] sm:$0xf]
    %v1370 = vld [vmem:[%s1345 + $0x60] sm:$0xf]
    %v1371 = vld [vmem:[%s1345 + $0x64] sm:$0xf]
    %v1372 = vld [vmem:[%s1345 + $0x68] sm:$0xf]
    %v1373 = vld [vmem:[%s1345 + $0x6c] sm:$0xf]
    %v1374 = vld [vmem:[%s1345 + $0x70] sm:$0xf]
    %v1375 = vld [vmem:[%s1345 + $0x74] sm:$0xf]
    %v1376 = vld [vmem:[%s1345 + $0x78] sm:$0xf]
    %v1377 = vld [vmem:[%s1345 + $0x7c] sm:$0xf]
    %v1410 = vunpack.c.l.b16 %v1346
    %v1411 = vunpack.c.l.b16 %v1347
    %v1412 = vunpack.c.l.b16 %v1348
    %v1413 = vunpack.c.l.b16 %v1349
    %v1414 = vunpack.c.l.b16 %v1350
    %v1415 = vunpack.c.l.b16 %v1351
    %v1416 = vunpack.c.l.b16 %v1352
    %v1417 = vunpack.c.l.b16 %v1353
    %v1418 = vunpack.c.l.b16 %v1354
    %v1419 = vunpack.c.l.b16 %v1355
    %v1420 = vunpack.c.l.b16 %v1356
    %v1421 = vunpack.c.l.b16 %v1357
    %v1422 = vunpack.c.l.b16 %v1358
    %v1423 = vunpack.c.l.b16 %v1359
    %v1424 = vunpack.c.l.b16 %v1360
    %v1425 = vunpack.c.l.b16 %v1361
    %v1426 = vunpack.c.l.b16 %v1362
    %v1427 = vunpack.c.l.b16 %v1363
    %v1428 = vunpack.c.l.b16 %v1364
    %v1429 = vunpack.c.l.b16 %v1365
    %v1430 = vunpack.c.l.b16 %v1366
    %v1431 = vunpack.c.l.b16 %v1367
    %v1432 = vunpack.c.l.b16 %v1368
    %v1433 = vunpack.c.l.b16 %v1369
    %v1434 = vunpack.c.l.b16 %v1370
    %v1435 = vunpack.c.l.b16 %v1371
    %v1436 = vunpack.c.l.b16 %v1372
    %v1437 = vunpack.c.l.b16 %v1373
    %v1438 = vunpack.c.l.b16 %v1374
    %v1439 = vunpack.c.l.b16 %v1375
    %v1440 = vunpack.c.l.b16 %v1376
    %v1441 = vunpack.c.l.b16 %v1377
    %v1442 = vpack.c.b16 %v1411, %v1410
    %v1443 = vpack.c.b16 %v1413, %v1412
    %v1444 = vpack.c.b16 %v1415, %v1414
    %v1445 = vpack.c.b16 %v1417, %v1416
    %v1446 = vpack.c.b16 %v1419, %v1418
    %v1447 = vpack.c.b16 %v1421, %v1420
    %v1448 = vpack.c.b16 %v1423, %v1422
    %v1449 = vpack.c.b16 %v1425, %v1424
    %v1450 = vpack.c.b16 %v1427, %v1426
    %v1451 = vpack.c.b16 %v1429, %v1428
    %v1452 = vpack.c.b16 %v1431, %v1430
    %v1453 = vpack.c.b16 %v1433, %v1432
    %v1454 = vpack.c.b16 %v1435, %v1434
    %v1455 = vpack.c.b16 %v1437, %v1436
    %v1456 = vpack.c.b16 %v1439, %v1438
    %v1457 = vpack.c.b16 %v1441, %v1440
    %1474 = vmatpush.bf16.msra.mxu0 %v1449
    %1475 = vmatpush.bf16.msra.mxu0 %v1448
    %1476 = vmatpush.bf16.msra.mxu0 %v1447
    %1477 = vmatpush.bf16.msra.mxu0 %v1446
    %1478 = vmatpush.bf16.msra.mxu0 %v1445
    %1479 = vmatpush.bf16.msra.mxu0 %v1444
    %1480 = vmatpush.bf16.msra.mxu0 %v1443
    %1481 = vmatpush.bf16.msra.mxu0 %v1442
    %1482 = vmatmul.bf16.gmra.mxu0 %v1341
    %v1483 = vpop.f32.mrf.mxu0
    %v1484 = vadd.f32 0.0, %v1483
    %v1485 = vpop.f32.mrf.mxu0
    %v1486 = vadd.f32 0.0, %v1485
    %1487 = vmatmul.bf16.gmra.mxu0 %v1343
    %v1488 = vpop.f32.mrf.mxu0
    %v1489 = vadd.f32 0.0, %v1488
    %v1490 = vpop.f32.mrf.mxu0
    %v1491 = vadd.f32 0.0, %v1490
    %1492 = vdwg.mxu0
    %1493 = vmatpush.bf16.msra.mxu0 %v1457
    %1494 = vmatpush.bf16.msra.mxu0 %v1456
    %1495 = vmatpush.bf16.msra.mxu0 %v1455
    %1496 = vmatpush.bf16.msra.mxu0 %v1454
    %1497 = vmatpush.bf16.msra.mxu0 %v1453
    %1498 = vmatpush.bf16.msra.mxu0 %v1452
    %1499 = vmatpush.bf16.msra.mxu0 %v1451
    %1500 = vmatpush.bf16.msra.mxu0 %v1450
    %1501 = vmatmul.bf16.gmra.mxu0 %v1342
    %v1502 = vpop.f32.mrf.mxu0
    %v1503 = vadd.f32 %v1484, %v1502
    %v1504 = vpop.f32.mrf.mxu0
    %v1505 = vadd.f32 %v1486, %v1504
    %1506 = vmatmul.bf16.gmra.mxu0 %v1344
    %v1507 = vpop.f32.mrf.mxu0
    %v1508 = vadd.f32 %v1489, %v1507
    %v1509 = vpop.f32.mrf.mxu0
    %v1510 = vadd.f32 %v1491, %v1509
    %1511 = vdwg.mxu0
    %v1512 = vadd.f32 %v1293, %v1503
    %v1513 = vadd.f32 %v1294, %v1505
    %v1514 = vadd.f32 %v1295, %v1508
    %v1515 = vadd.f32 %v1296, %v1510
    %v1516 = vld [vmem:[#allocation9] sm:$0x1]
    %v1518 = vperm.slane %v1516, 0
    %v1520 = vadd.f32 %v1512, %v1518
    %v1521 = vadd.f32 %v1513, %v1518
    %v1522 = vadd.f32 %v1514, %v1518
    %v1523 = vadd.f32 %v1515, %v1518
    %v1524 = vmul.f32 %v1520, 0.5
    %v1525 = vmul.f32 %v1521, 0.5
    %v1526 = vmul.f32 %v1522, 0.5
    %v1527 = vmul.f32 %v1523, 0.5
    %v1528 = vmul.f32 %v1520, 0.044715
    %v1529 = vmul.f32 %v1521, 0.044715
    %v1530 = vmul.f32 %v1522, 0.044715
    %v1531 = vmul.f32 %v1523, 0.044715
    %v1532 = vmul.f32 %v1528, %v1520
    %v1533 = vmul.f32 %v1529, %v1521
    %v1534 = vmul.f32 %v1530, %v1522
    %v1535 = vmul.f32 %v1531, %v1523
    %v1536 = vmul.f32 %v1532, %v1520
    %v1537 = vmul.f32 %v1533, %v1521
    %v1538 = vmul.f32 %v1534, %v1522
    %v1539 = vmul.f32 %v1535, %v1523
    %v1540 = vadd.f32 %v1520, %v1536
    %v1541 = vadd.f32 %v1521, %v1537
    %v1542 = vadd.f32 %v1522, %v1538
    %v1543 = vadd.f32 %v1523, %v1539
    %v1544 = vmul.f32 %v1540, 0.7978846
    %v1545 = vmul.f32 %v1541, 0.7978846
    %v1546 = vmul.f32 %v1542, 0.7978846
    %v1547 = vmul.f32 %v1543, 0.7978846
    %v1548 = vtanh.pop %v1544
    %v1549 = vtanh.pop %v1545
    %v1550 = vtanh.pop %v1546
    %v1551 = vtanh.pop %v1547
    %v1552 = vadd.f32 %v1548, 1.0
    %v1553 = vadd.f32 %v1549, 1.0
    %v1554 = vadd.f32 %v1550, 1.0
    %v1555 = vadd.f32 %v1551, 1.0
    %v1556 = vmul.f32 %v1524, %v1552
    %v1557 = vmul.f32 %v1525, %v1553
    %v1558 = vmul.f32 %v1526, %v1554
    %v1559 = vmul.f32 %v1527, %v1555
    %v1560 = vld [vmem:[%s5] sm:$0x3]
    %v1562 = vrot.slane %v1560, 1
    %v1563 = vperm.slane %v1560, 0
    %v1564 = vperm.slane %v1562, 0
    %v1567 = vadd.f32 %v1556, %v1563
    %v1568 = vadd.f32 %v1557, %v1563
    %v1569 = vadd.f32 %v1558, %v1564
    %v1570 = vadd.f32 %v1559, %v1564
    %1571 = vst [vmem:[#allocation4] sm:$0xff] 0.0
    %1572 = vst [vmem:[#allocation4 + $0x8] sm:$0xff] 0.0
    %1573 = vst [vmem:[#allocation4 + $0x10] sm:$0x3] 0.0
    %1574 = vst [vmem:[#allocation4 + $0x18] sm:$0xff] 0.0
    %1575 = vst [vmem:[#allocation4 + $0x20] sm:$0xff] 0.0
    %1576 = vst [vmem:[#allocation4 + $0x28] sm:$0x3] 0.0
    %1577 = vst [vmem:[#allocation4 + $0x1] sm:$0xff] %v1567
    %1578 = vst [vmem:[#allocation4 + $0x9] sm:$0xff] %v1568
    %1579 = vst [vmem:[#allocation4 + $0x19] sm:$0xff] %v1569
    %1580 = vst [vmem:[#allocation4 + $0x21] sm:$0xff] %v1570
    %v1581 = vld [vmem:[#allocation4] sm:$0xff]
    %v1582 = vld [vmem:[#allocation4 + $0x8] sm:$0xff]
    %v1583 = vld [vmem:[#allocation4 + $0x18] sm:$0xff]
    %v1584 = vld [vmem:[#allocation4 + $0x20] sm:$0xff]
    %v1585 = vpack.c.bf16 %v1582, %v1581
    %v1586 = vpack.c.bf16 %v1584, %v1583
    %v1587 = vld [vmem:[#allocation10] sm:$0xf]
    %v1588 = vld [vmem:[#allocation10 + $0x4] sm:$0xf]
    %v1589 = vld [vmem:[#allocation10 + $0x8] sm:$0xf]
    %v1590 = vld [vmem:[#allocation10 + $0xc] sm:$0xf]
    %v1591 = vld [vmem:[#allocation10 + $0x10] sm:$0xf]
    %v1592 = vld [vmem:[#allocation10 + $0x14] sm:$0xf]
    %v1593 = vld [vmem:[#allocation10 + $0x18] sm:$0xf]
    %v1594 = vld [vmem:[#allocation10 + $0x1c] sm:$0xf]
    %v1595 = vld [vmem:[#allocation10 + $0x20] sm:$0xf]
    %v1596 = vld [vmem:[#allocation10 + $0x24] sm:$0xf]
    %v1597 = vld [vmem:[#allocation10 + $0x28] sm:$0xf]
    %v1598 = vld [vmem:[#allocation10 + $0x2c] sm:$0xf]
    %v1599 = vld [vmem:[#allocation10 + $0x30] sm:$0xf]
    %v1600 = vld [vmem:[#allocation10 + $0x34] sm:$0xf]
    %v1601 = vld [vmem:[#allocation10 + $0x38] sm:$0xf]
    %v1602 = vld [vmem:[#allocation10 + $0x3c] sm:$0xf]
    %v1603 = vld [vmem:[#allocation4 + $0x1] sm:$0xff]
    %v1604 = vld [vmem:[#allocation4 + $0x9] sm:$0xff]
    %v1605 = vld [vmem:[#allocation4 + $0x19] sm:$0xff]
    %v1606 = vld [vmem:[#allocation4 + $0x21] sm:$0xff]
    %v1607 = vpack.c.bf16 %v1604, %v1603
    %v1608 = vpack.c.bf16 %v1606, %v1605
    %s1609 = scalar_lea.vmem [#allocation10], 64
    %v1610 = vld [vmem:[%s1609] sm:$0xf]
    %v1611 = vld [vmem:[%s1609 + $0x4] sm:$0xf]
    %v1612 = vld [vmem:[%s1609 + $0x8] sm:$0xf]
    %v1613 = vld [vmem:[%s1609 + $0xc] sm:$0xf]
    %v1614 = vld [vmem:[%s1609 + $0x10] sm:$0xf]
    %v1615 = vld [vmem:[%s1609 + $0x14] sm:$0xf]
    %v1616 = vld [vmem:[%s1609 + $0x18] sm:$0xf]
    %v1617 = vld [vmem:[%s1609 + $0x1c] sm:$0xf]
    %v1618 = vld [vmem:[%s1609 + $0x20] sm:$0xf]
    %v1619 = vld [vmem:[%s1609 + $0x24] sm:$0xf]
    %v1620 = vld [vmem:[%s1609 + $0x28] sm:$0xf]
    %v1621 = vld [vmem:[%s1609 + $0x2c] sm:$0xf]
    %v1622 = vld [vmem:[%s1609 + $0x30] sm:$0xf]
    %v1623 = vld [vmem:[%s1609 + $0x34] sm:$0xf]
    %v1624 = vld [vmem:[%s1609 + $0x38] sm:$0xf]
    %v1625 = vld [vmem:[%s1609 + $0x3c] sm:$0xf]
    %v1642 = vunpack.c.l.b16 %v1610
    %v1643 = vunpack.c.l.b16 %v1611
    %v1644 = vunpack.c.l.b16 %v1612
    %v1645 = vunpack.c.l.b16 %v1613
    %v1646 = vunpack.c.l.b16 %v1614
    %v1647 = vunpack.c.l.b16 %v1615
    %v1648 = vunpack.c.l.b16 %v1616
    %v1649 = vunpack.c.l.b16 %v1617
    %v1650 = vunpack.c.l.b16 %v1618
    %v1651 = vunpack.c.l.b16 %v1619
    %v1652 = vunpack.c.l.b16 %v1620
    %v1653 = vunpack.c.l.b16 %v1621
    %v1654 = vunpack.c.l.b16 %v1622
    %v1655 = vunpack.c.l.b16 %v1623
    %v1656 = vunpack.c.l.b16 %v1624
    %v1657 = vunpack.c.l.b16 %v1625
    %v1658 = vpack.c.b16 %v1643, %v1642
    %v1659 = vpack.c.b16 %v1645, %v1644
    %v1660 = vpack.c.b16 %v1647, %v1646
    %v1661 = vpack.c.b16 %v1649, %v1648
    %v1662 = vpack.c.b16 %v1651, %v1650
    %v1663 = vpack.c.b16 %v1653, %v1652
    %v1664 = vpack.c.b16 %v1655, %v1654
    %v1665 = vpack.c.b16 %v1657, %v1656
    %1674 = vmatpush.bf16.msra.mxu0 %v1665
    %1675 = vmatpush.bf16.msra.mxu0 %v1664
    %1676 = vmatpush.bf16.msra.mxu0 %v1663
    %1677 = vmatpush.bf16.msra.mxu0 %v1662
    %1678 = vmatpush.bf16.msra.mxu0 %v1661
    %1679 = vmatpush.bf16.msra.mxu0 %v1660
    %1680 = vmatpush.bf16.msra.mxu0 %v1659
    %1681 = vmatpush.bf16.msra.mxu0 %v1658
    %1682 = vmatmul.bf16.gmra.mxu0 %v1607
    %v1683 = vpop.f32.mrf.mxu0
    %v1684 = vadd.f32 0.0, %v1683
    %v1685 = vpop.f32.mrf.mxu0
    %v1686 = vadd.f32 0.0, %v1685
    %1687 = vmatmul.bf16.gmra.mxu0 %v1608
    %v1688 = vpop.f32.mrf.mxu0
    %v1689 = vadd.f32 0.0, %v1688
    %v1690 = vpop.f32.mrf.mxu0
    %v1691 = vadd.f32 0.0, %v1690
    %1692 = vdwg.mxu0
    %v1709 = vunpack.c.l.b16 %v1587
    %v1710 = vunpack.c.l.b16 %v1588
    %v1711 = vunpack.c.l.b16 %v1589
    %v1712 = vunpack.c.l.b16 %v1590
    %v1713 = vunpack.c.l.b16 %v1591
    %v1714 = vunpack.c.l.b16 %v1592
    %v1715 = vunpack.c.l.b16 %v1593
    %v1716 = vunpack.c.l.b16 %v1594
    %v1717 = vunpack.c.l.b16 %v1595
    %v1718 = vunpack.c.l.b16 %v1596
    %v1719 = vunpack.c.l.b16 %v1597
    %v1720 = vunpack.c.l.b16 %v1598
    %v1721 = vunpack.c.l.b16 %v1599
    %v1722 = vunpack.c.l.b16 %v1600
    %v1723 = vunpack.c.l.b16 %v1601
    %v1724 = vunpack.c.l.b16 %v1602
    %v1725 = vpack.c.b16 %v1710, %v1709
    %v1726 = vpack.c.b16 %v1712, %v1711
    %v1727 = vpack.c.b16 %v1714, %v1713
    %v1728 = vpack.c.b16 %v1716, %v1715
    %v1729 = vpack.c.b16 %v1718, %v1717
    %v1730 = vpack.c.b16 %v1720, %v1719
    %v1731 = vpack.c.b16 %v1722, %v1721
    %v1732 = vpack.c.b16 %v1724, %v1723
    %1741 = vmatpush.bf16.msra.mxu0 %v1732
    %1742 = vmatpush.bf16.msra.mxu0 %v1731
    %1743 = vmatpush.bf16.msra.mxu0 %v1730
    %1744 = vmatpush.bf16.msra.mxu0 %v1729
    %1745 = vmatpush.bf16.msra.mxu0 %v1728
    %1746 = vmatpush.bf16.msra.mxu0 %v1727
    %1747 = vmatpush.bf16.msra.mxu0 %v1726
    %1748 = vmatpush.bf16.msra.mxu0 %v1725
    %1749 = vmatmul.bf16.gmra.mxu0 %v1585
    %v1750 = vpop.f32.mrf.mxu0
    %v1751 = vadd.f32 %v1684, %v1750
    %v1752 = vpop.f32.mrf.mxu0
    %v1753 = vadd.f32 %v1686, %v1752
    %1754 = vmatmul.bf16.gmra.mxu0 %v1586
    %v1755 = vpop.f32.mrf.mxu0
    %v1756 = vadd.f32 %v1689, %v1755
    %v1757 = vpop.f32.mrf.mxu0
    %v1758 = vadd.f32 %v1691, %v1757
    %1759 = vdwg.mxu0
    %v1760 = vld [vmem:[#allocation4 + $0x2] sm:$0xff]
    %v1761 = vld [vmem:[#allocation4 + $0xa] sm:$0xff]
    %v1762 = vld [vmem:[#allocation4 + $0x1a] sm:$0xff]
    %v1763 = vld [vmem:[#allocation4 + $0x22] sm:$0xff]
    %v1764 = vpack.c.bf16 %v1761, %v1760
    %v1765 = vpack.c.bf16 %v1763, %v1762
    %s1766 = scalar_lea.vmem [#allocation10], 128
    %v1767 = vld [vmem:[%s1766] sm:$0xf]
    %v1768 = vld [vmem:[%s1766 + $0x4] sm:$0xf]
    %v1769 = vld [vmem:[%s1766 + $0x8] sm:$0xf]
    %v1770 = vld [vmem:[%s1766 + $0xc] sm:$0xf]
    %v1771 = vld [vmem:[%s1766 + $0x10] sm:$0xf]
    %v1772 = vld [vmem:[%s1766 + $0x14] sm:$0xf]
    %v1773 = vld [vmem:[%s1766 + $0x18] sm:$0xf]
    %v1774 = vld [vmem:[%s1766 + $0x1c] sm:$0xf]
    %v1775 = vld [vmem:[%s1766 + $0x20] sm:$0xf]
    %v1776 = vld [vmem:[%s1766 + $0x24] sm:$0xf]
    %v1777 = vld [vmem:[%s1766 + $0x28] sm:$0xf]
    %v1778 = vld [vmem:[%s1766 + $0x2c] sm:$0xf]
    %v1779 = vld [vmem:[%s1766 + $0x30] sm:$0xf]
    %v1780 = vld [vmem:[%s1766 + $0x34] sm:$0xf]
    %v1781 = vld [vmem:[%s1766 + $0x38] sm:$0xf]
    %v1782 = vld [vmem:[%s1766 + $0x3c] sm:$0xf]
    %v1799 = vunpack.c.l.b16 %v1767
    %v1800 = vunpack.c.l.b16 %v1768
    %v1801 = vunpack.c.l.b16 %v1769
    %v1802 = vunpack.c.l.b16 %v1770
    %v1803 = vunpack.c.l.b16 %v1771
    %v1804 = vunpack.c.l.b16 %v1772
    %v1805 = vunpack.c.l.b16 %v1773
    %v1806 = vunpack.c.l.b16 %v1774
    %v1807 = vunpack.c.l.b16 %v1775
    %v1808 = vunpack.c.l.b16 %v1776
    %v1809 = vunpack.c.l.b16 %v1777
    %v1810 = vunpack.c.l.b16 %v1778
    %v1811 = vunpack.c.l.b16 %v1779
    %v1812 = vunpack.c.l.b16 %v1780
    %v1813 = vunpack.c.l.b16 %v1781
    %v1814 = vunpack.c.l.b16 %v1782
    %v1815 = vpack.c.b16 %v1800, %v1799
    %v1816 = vpack.c.b16 %v1802, %v1801
    %v1817 = vpack.c.b16 %v1804, %v1803
    %v1818 = vpack.c.b16 %v1806, %v1805
    %v1819 = vpack.c.b16 %v1808, %v1807
    %v1820 = vpack.c.b16 %v1810, %v1809
    %v1821 = vpack.c.b16 %v1812, %v1811
    %v1822 = vpack.c.b16 %v1814, %v1813
    %1831 = vmatpush.bf16.msra.mxu0 %v1822
    %1832 = vmatpush.bf16.msra.mxu0 %v1821
    %1833 = vmatpush.bf16.msra.mxu0 %v1820
    %1834 = vmatpush.bf16.msra.mxu0 %v1819
    %1835 = vmatpush.bf16.msra.mxu0 %v1818
    %1836 = vmatpush.bf16.msra.mxu0 %v1817
    %1837 = vmatpush.bf16.msra.mxu0 %v1816
    %1838 = vmatpush.bf16.msra.mxu0 %v1815
    %1839 = vmatmul.bf16.gmra.mxu0 %v1764
    %v1840 = vpop.f32.mrf.mxu0
    %v1841 = vadd.f32 0.0, %v1840
    %v1842 = vpop.f32.mrf.mxu0
    %v1843 = vadd.f32 0.0, %v1842
    %1844 = vmatmul.bf16.gmra.mxu0 %v1765
    %v1845 = vpop.f32.mrf.mxu0
    %v1846 = vadd.f32 0.0, %v1845
    %v1847 = vpop.f32.mrf.mxu0
    %v1848 = vadd.f32 0.0, %v1847
    %1849 = vdwg.mxu0
    %v1850 = vadd.f32 %v1751, %v1841
    %v1851 = vadd.f32 %v1753, %v1843
    %v1852 = vadd.f32 %v1756, %v1846
    %v1853 = vadd.f32 %v1758, %v1848
    %v1854 = vld [vmem:[#allocation12] sm:$0x1]
    %v1856 = vperm.slane %v1854, 0
    %v1858 = vadd.f32 %v1850, %v1856
    %v1859 = vadd.f32 %v1851, %v1856
    %v1860 = vadd.f32 %v1852, %v1856
    %v1861 = vadd.f32 %v1853, %v1856
    %v1862 = vmul.f32 %v1858, 0.5
    %v1863 = vmul.f32 %v1859, 0.5
    %v1864 = vmul.f32 %v1860, 0.5
    %v1865 = vmul.f32 %v1861, 0.5
    %v1866 = vmul.f32 %v1858, 0.044715
    %v1867 = vmul.f32 %v1859, 0.044715
    %v1868 = vmul.f32 %v1860, 0.044715
    %v1869 = vmul.f32 %v1861, 0.044715
    %v1870 = vmul.f32 %v1866, %v1858
    %v1871 = vmul.f32 %v1867, %v1859
    %v1872 = vmul.f32 %v1868, %v1860
    %v1873 = vmul.f32 %v1869, %v1861
    %v1874 = vmul.f32 %v1870, %v1858
    %v1875 = vmul.f32 %v1871, %v1859
    %v1876 = vmul.f32 %v1872, %v1860
    %v1877 = vmul.f32 %v1873, %v1861
    %v1878 = vadd.f32 %v1858, %v1874
    %v1879 = vadd.f32 %v1859, %v1875
    %v1880 = vadd.f32 %v1860, %v1876
    %v1881 = vadd.f32 %v1861, %v1877
    %v1882 = vmul.f32 %v1878, 0.7978846
    %v1883 = vmul.f32 %v1879, 0.7978846
    %v1884 = vmul.f32 %v1880, 0.7978846
    %v1885 = vmul.f32 %v1881, 0.7978846
    %v1886 = vtanh.pop %v1882
    %v1887 = vtanh.pop %v1883
    %v1888 = vtanh.pop %v1884
    %v1889 = vtanh.pop %v1885
    %v1890 = vadd.f32 %v1886, 1.0
    %v1891 = vadd.f32 %v1887, 1.0
    %v1892 = vadd.f32 %v1888, 1.0
    %v1893 = vadd.f32 %v1889, 1.0
    %v1894 = vmul.f32 %v1862, %v1890
    %v1895 = vmul.f32 %v1863, %v1891
    %v1896 = vmul.f32 %v1864, %v1892
    %v1897 = vmul.f32 %v1865, %v1893
    %v1898 = vld [vmem:[#allocation15] sm:$0x1]
    %v1899 = vld [vmem:[%s0] sm:$0xff]
    %v1900 = vld [vmem:[%s0 + $0x8] sm:$0xff]
    %v1901 = vld [vmem:[%s0 + $0x10] sm:$0xff]
    %v1902 = vld [vmem:[%s0 + $0x18] sm:$0xff]
    %v1903 = vld [vmem:[%s0 + $0x20] sm:$0xff]
    %v1904 = vld [vmem:[%s0 + $0x28] sm:$0xff]
    %v1905 = vld [vmem:[%s0 + $0x30] sm:$0xff]
    %v1906 = vld [vmem:[%s0 + $0x38] sm:$0xff]
    %v1907 = vpack.c.bf16 %v1901, %v1899
    %v1908 = vpack.c.bf16 %v1902, %v1900
    %v1909 = vpack.c.bf16 %v1905, %v1903
    %v1910 = vpack.c.bf16 %v1906, %v1904
    %v1911 = vld [vmem:[#allocation13] sm:$0xf]
    %v1912 = vld [vmem:[#allocation13 + $0x4] sm:$0xf]
    %v1913 = vld [vmem:[#allocation13 + $0x8] sm:$0xf]
    %v1914 = vld [vmem:[#allocation13 + $0xc] sm:$0xf]
    %v1915 = vld [vmem:[#allocation13 + $0x10] sm:$0xf]
    %v1916 = vld [vmem:[#allocation13 + $0x14] sm:$0xf]
    %v1917 = vld [vmem:[#allocation13 + $0x18] sm:$0xf]
    %v1918 = vld [vmem:[#allocation13 + $0x1c] sm:$0xf]
    %v1919 = vld [vmem:[#allocation13 + $0x20] sm:$0xf]
    %v1920 = vld [vmem:[#allocation13 + $0x24] sm:$0xf]
    %v1921 = vld [vmem:[#allocation13 + $0x28] sm:$0xf]
    %v1922 = vld [vmem:[#allocation13 + $0x2c] sm:$0xf]
    %v1923 = vld [vmem:[#allocation13 + $0x30] sm:$0xf]
    %v1924 = vld [vmem:[#allocation13 + $0x34] sm:$0xf]
    %v1925 = vld [vmem:[#allocation13 + $0x38] sm:$0xf]
    %v1926 = vld [vmem:[#allocation13 + $0x3c] sm:$0xf]
    %v1927 = vld [vmem:[#allocation13 + $0x40] sm:$0xf]
    %v1928 = vld [vmem:[#allocation13 + $0x44] sm:$0xf]
    %v1929 = vld [vmem:[#allocation13 + $0x48] sm:$0xf]
    %v1930 = vld [vmem:[#allocation13 + $0x4c] sm:$0xf]
    %v1931 = vld [vmem:[#allocation13 + $0x50] sm:$0xf]
    %v1932 = vld [vmem:[#allocation13 + $0x54] sm:$0xf]
    %v1933 = vld [vmem:[#allocation13 + $0x58] sm:$0xf]
    %v1934 = vld [vmem:[#allocation13 + $0x5c] sm:$0xf]
    %v1935 = vld [vmem:[#allocation13 + $0x60] sm:$0xf]
    %v1936 = vld [vmem:[#allocation13 + $0x64] sm:$0xf]
    %v1937 = vld [vmem:[#allocation13 + $0x68] sm:$0xf]
    %v1938 = vld [vmem:[#allocation13 + $0x6c] sm:$0xf]
    %v1939 = vld [vmem:[#allocation13 + $0x70] sm:$0xf]
    %v1940 = vld [vmem:[#allocation13 + $0x74] sm:$0xf]
    %v1941 = vld [vmem:[#allocation13 + $0x78] sm:$0xf]
    %v1942 = vld [vmem:[#allocation13 + $0x7c] sm:$0xf]
    %v1975 = vunpack.c.l.b16 %v1911
    %v1976 = vunpack.c.l.b16 %v1912
    %v1977 = vunpack.c.l.b16 %v1913
    %v1978 = vunpack.c.l.b16 %v1914
    %v1979 = vunpack.c.l.b16 %v1915
    %v1980 = vunpack.c.l.b16 %v1916
    %v1981 = vunpack.c.l.b16 %v1917
    %v1982 = vunpack.c.l.b16 %v1918
    %v1983 = vunpack.c.l.b16 %v1919
    %v1984 = vunpack.c.l.b16 %v1920
    %v1985 = vunpack.c.l.b16 %v1921
    %v1986 = vunpack.c.l.b16 %v1922
    %v1987 = vunpack.c.l.b16 %v1923
    %v1988 = vunpack.c.l.b16 %v1924
    %v1989 = vunpack.c.l.b16 %v1925
    %v1990 = vunpack.c.l.b16 %v1926
    %v1991 = vunpack.c.l.b16 %v1927
    %v1992 = vunpack.c.l.b16 %v1928
    %v1993 = vunpack.c.l.b16 %v1929
    %v1994 = vunpack.c.l.b16 %v1930
    %v1995 = vunpack.c.l.b16 %v1931
    %v1996 = vunpack.c.l.b16 %v1932
    %v1997 = vunpack.c.l.b16 %v1933
    %v1998 = vunpack.c.l.b16 %v1934
    %v1999 = vunpack.c.l.b16 %v1935
    %v2000 = vunpack.c.l.b16 %v1936
    %v2001 = vunpack.c.l.b16 %v1937
    %v2002 = vunpack.c.l.b16 %v1938
    %v2003 = vunpack.c.l.b16 %v1939
    %v2004 = vunpack.c.l.b16 %v1940
    %v2005 = vunpack.c.l.b16 %v1941
    %v2006 = vunpack.c.l.b16 %v1942
    %v2007 = vpack.c.b16 %v1976, %v1975
    %v2008 = vpack.c.b16 %v1978, %v1977
    %v2009 = vpack.c.b16 %v1980, %v1979
    %v2010 = vpack.c.b16 %v1982, %v1981
    %v2011 = vpack.c.b16 %v1984, %v1983
    %v2012 = vpack.c.b16 %v1986, %v1985
    %v2013 = vpack.c.b16 %v1988, %v1987
    %v2014 = vpack.c.b16 %v1990, %v1989
    %v2015 = vpack.c.b16 %v1992, %v1991
    %v2016 = vpack.c.b16 %v1994, %v1993
    %v2017 = vpack.c.b16 %v1996, %v1995
    %v2018 = vpack.c.b16 %v1998, %v1997
    %v2019 = vpack.c.b16 %v2000, %v1999
    %v2020 = vpack.c.b16 %v2002, %v2001
    %v2021 = vpack.c.b16 %v2004, %v2003
    %v2022 = vpack.c.b16 %v2006, %v2005
    %2039 = vmatpush.bf16.msra.mxu0 %v2014
    %2040 = vmatpush.bf16.msra.mxu0 %v2013
    %2041 = vmatpush.bf16.msra.mxu0 %v2012
    %2042 = vmatpush.bf16.msra.mxu0 %v2011
    %2043 = vmatpush.bf16.msra.mxu0 %v2010
    %2044 = vmatpush.bf16.msra.mxu0 %v2009
    %2045 = vmatpush.bf16.msra.mxu0 %v2008
    %2046 = vmatpush.bf16.msra.mxu0 %v2007
    %2047 = vmatmul.bf16.gmra.mxu0 %v1907
    %v2048 = vpop.f32.mrf.mxu0
    %v2049 = vadd.f32 0.0, %v2048
    %v2050 = vpop.f32.mrf.mxu0
    %v2051 = vadd.f32 0.0, %v2050
    %2052 = vmatmul.bf16.gmra.mxu0 %v1909
    %v2053 = vpop.f32.mrf.mxu0
    %v2054 = vadd.f32 0.0, %v2053
    %v2055 = vpop.f32.mrf.mxu0
    %v2056 = vadd.f32 0.0, %v2055
    %2057 = vdwg.mxu0
    %2058 = vmatpush.bf16.msra.mxu0 %v2022
    %2059 = vmatpush.bf16.msra.mxu0 %v2021
    %2060 = vmatpush.bf16.msra.mxu0 %v2020
    %2061 = vmatpush.bf16.msra.mxu0 %v2019
    %2062 = vmatpush.bf16.msra.mxu0 %v2018
    %2063 = vmatpush.bf16.msra.mxu0 %v2017
    %2064 = vmatpush.bf16.msra.mxu0 %v2016
    %2065 = vmatpush.bf16.msra.mxu0 %v2015
    %2066 = vmatmul.bf16.gmra.mxu0 %v1908
    %v2067 = vpop.f32.mrf.mxu0
    %v2068 = vadd.f32 %v2049, %v2067
    %v2069 = vpop.f32.mrf.mxu0
    %v2070 = vadd.f32 %v2051, %v2069
    %2071 = vmatmul.bf16.gmra.mxu0 %v1910
    %v2072 = vpop.f32.mrf.mxu0
    %v2073 = vadd.f32 %v2054, %v2072
    %v2074 = vpop.f32.mrf.mxu0
    %v2075 = vadd.f32 %v2056, %v2074
    %2076 = vdwg.mxu0
    %v2078 = vperm.slane %v1898, 0
    %v2080 = vadd.f32 %v2078, %v2068
    %v2081 = vadd.f32 %v2078, %v2070
    %v2082 = vadd.f32 %v2078, %v2073
    %v2083 = vadd.f32 %v2078, %v2075
    %v2084 = vld [vmem:[%s1] sm:$0xff]
    %v2085 = vld [vmem:[%s1 + $0x8] sm:$0xff]
    %v2086 = vld [vmem:[%s1 + $0x10] sm:$0xff]
    %v2087 = vld [vmem:[%s1 + $0x18] sm:$0xff]
    %v2088 = vld [vmem:[%s1 + $0x20] sm:$0xff]
    %v2089 = vld [vmem:[%s1 + $0x28] sm:$0xff]
    %v2090 = vld [vmem:[%s1 + $0x30] sm:$0xff]
    %v2091 = vld [vmem:[%s1 + $0x38] sm:$0xff]
    %v2092 = vpack.c.bf16 %v2086, %v2084
    %v2093 = vpack.c.bf16 %v2087, %v2085
    %v2094 = vpack.c.bf16 %v2090, %v2088
    %v2095 = vpack.c.bf16 %v2091, %v2089
    %v2096 = vld [vmem:[%s9] sm:$0xf]
    %v2097 = vld [vmem:[%s9 + $0x4] sm:$0xf]
    %v2098 = vld [vmem:[%s9 + $0x8] sm:$0xf]
    %v2099 = vld [vmem:[%s9 + $0xc] sm:$0xf]
    %v2100 = vld [vmem:[%s9 + $0x10] sm:$0xf]
    %v2101 = vld [vmem:[%s9 + $0x14] sm:$0xf]
    %v2102 = vld [vmem:[%s9 + $0x18] sm:$0xf]
    %v2103 = vld [vmem:[%s9 + $0x1c] sm:$0xf]
    %v2104 = vld [vmem:[%s9 + $0x20] sm:$0xf]
    %v2105 = vld [vmem:[%s9 + $0x24] sm:$0xf]
    %v2106 = vld [vmem:[%s9 + $0x28] sm:$0xf]
    %v2107 = vld [vmem:[%s9 + $0x2c] sm:$0xf]
    %v2108 = vld [vmem:[%s9 + $0x30] sm:$0xf]
    %v2109 = vld [vmem:[%s9 + $0x34] sm:$0xf]
    %v2110 = vld [vmem:[%s9 + $0x38] sm:$0xf]
    %v2111 = vld [vmem:[%s9 + $0x3c] sm:$0xf]
    %v2112 = vld [vmem:[%s9 + $0x40] sm:$0xf]
    %v2113 = vld [vmem:[%s9 + $0x44] sm:$0xf]
    %v2114 = vld [vmem:[%s9 + $0x48] sm:$0xf]
    %v2115 = vld [vmem:[%s9 + $0x4c] sm:$0xf]
    %v2116 = vld [vmem:[%s9 + $0x50] sm:$0xf]
    %v2117 = vld [vmem:[%s9 + $0x54] sm:$0xf]
    %v2118 = vld [vmem:[%s9 + $0x58] sm:$0xf]
    %v2119 = vld [vmem:[%s9 + $0x5c] sm:$0xf]
    %v2120 = vld [vmem:[%s9 + $0x60] sm:$0xf]
    %v2121 = vld [vmem:[%s9 + $0x64] sm:$0xf]
    %v2122 = vld [vmem:[%s9 + $0x68] sm:$0xf]
    %v2123 = vld [vmem:[%s9 + $0x6c] sm:$0xf]
    %v2124 = vld [vmem:[%s9 + $0x70] sm:$0xf]
    %v2125 = vld [vmem:[%s9 + $0x74] sm:$0xf]
    %v2126 = vld [vmem:[%s9 + $0x78] sm:$0xf]
    %v2127 = vld [vmem:[%s9 + $0x7c] sm:$0xf]
    %v2160 = vunpack.c.l.b16 %v2096
    %v2161 = vunpack.c.l.b16 %v2097
    %v2162 = vunpack.c.l.b16 %v2098
    %v2163 = vunpack.c.l.b16 %v2099
    %v2164 = vunpack.c.l.b16 %v2100
    %v2165 = vunpack.c.l.b16 %v2101
    %v2166 = vunpack.c.l.b16 %v2102
    %v2167 = vunpack.c.l.b16 %v2103
    %v2168 = vunpack.c.l.b16 %v2104
    %v2169 = vunpack.c.l.b16 %v2105
    %v2170 = vunpack.c.l.b16 %v2106
    %v2171 = vunpack.c.l.b16 %v2107
    %v2172 = vunpack.c.l.b16 %v2108
    %v2173 = vunpack.c.l.b16 %v2109
    %v2174 = vunpack.c.l.b16 %v2110
    %v2175 = vunpack.c.l.b16 %v2111
    %v2176 = vunpack.c.l.b16 %v2112
    %v2177 = vunpack.c.l.b16 %v2113
    %v2178 = vunpack.c.l.b16 %v2114
    %v2179 = vunpack.c.l.b16 %v2115
    %v2180 = vunpack.c.l.b16 %v2116
    %v2181 = vunpack.c.l.b16 %v2117
    %v2182 = vunpack.c.l.b16 %v2118
    %v2183 = vunpack.c.l.b16 %v2119
    %v2184 = vunpack.c.l.b16 %v2120
    %v2185 = vunpack.c.l.b16 %v2121
    %v2186 = vunpack.c.l.b16 %v2122
    %v2187 = vunpack.c.l.b16 %v2123
    %v2188 = vunpack.c.l.b16 %v2124
    %v2189 = vunpack.c.l.b16 %v2125
    %v2190 = vunpack.c.l.b16 %v2126
    %v2191 = vunpack.c.l.b16 %v2127
    %v2192 = vpack.c.b16 %v2161, %v2160
    %v2193 = vpack.c.b16 %v2163, %v2162
    %v2194 = vpack.c.b16 %v2165, %v2164
    %v2195 = vpack.c.b16 %v2167, %v2166
    %v2196 = vpack.c.b16 %v2169, %v2168
    %v2197 = vpack.c.b16 %v2171, %v2170
    %v2198 = vpack.c.b16 %v2173, %v2172
    %v2199 = vpack.c.b16 %v2175, %v2174
    %v2200 = vpack.c.b16 %v2177, %v2176
    %v2201 = vpack.c.b16 %v2179, %v2178
    %v2202 = vpack.c.b16 %v2181, %v2180
    %v2203 = vpack.c.b16 %v2183, %v2182
    %v2204 = vpack.c.b16 %v2185, %v2184
    %v2205 = vpack.c.b16 %v2187, %v2186
    %v2206 = vpack.c.b16 %v2189, %v2188
    %v2207 = vpack.c.b16 %v2191, %v2190
    %2224 = vmatpush.bf16.msra.mxu0 %v2199
    %2225 = vmatpush.bf16.msra.mxu0 %v2198
    %2226 = vmatpush.bf16.msra.mxu0 %v2197
    %2227 = vmatpush.bf16.msra.mxu0 %v2196
    %2228 = vmatpush.bf16.msra.mxu0 %v2195
    %2229 = vmatpush.bf16.msra.mxu0 %v2194
    %2230 = vmatpush.bf16.msra.mxu0 %v2193
    %2231 = vmatpush.bf16.msra.mxu0 %v2192
    %2232 = vmatmul.bf16.gmra.mxu0 %v2092
    %v2233 = vpop.f32.mrf.mxu0
    %v2234 = vadd.f32 0.0, %v2233
    %v2235 = vpop.f32.mrf.mxu0
    %v2236 = vadd.f32 0.0, %v2235
    %2237 = vmatmul.bf16.gmra.mxu0 %v2094
    %v2238 = vpop.f32.mrf.mxu0
    %v2239 = vadd.f32 0.0, %v2238
    %v2240 = vpop.f32.mrf.mxu0
    %v2241 = vadd.f32 0.0, %v2240
    %2242 = vdwg.mxu0
    %2243 = vmatpush.bf16.msra.mxu0 %v2207
    %2244 = vmatpush.bf16.msra.mxu0 %v2206
    %2245 = vmatpush.bf16.msra.mxu0 %v2205
    %2246 = vmatpush.bf16.msra.mxu0 %v2204
    %2247 = vmatpush.bf16.msra.mxu0 %v2203
    %2248 = vmatpush.bf16.msra.mxu0 %v2202
    %2249 = vmatpush.bf16.msra.mxu0 %v2201
    %2250 = vmatpush.bf16.msra.mxu0 %v2200
    %2251 = vmatmul.bf16.gmra.mxu0 %v2093
    %v2252 = vpop.f32.mrf.mxu0
    %v2253 = vadd.f32 %v2234, %v2252
    %v2254 = vpop.f32.mrf.mxu0
    %v2255 = vadd.f32 %v2236, %v2254
    %2256 = vmatmul.bf16.gmra.mxu0 %v2095
    %v2257 = vpop.f32.mrf.mxu0
    %v2258 = vadd.f32 %v2239, %v2257
    %v2259 = vpop.f32.mrf.mxu0
    %v2260 = vadd.f32 %v2241, %v2259
    %2261 = vdwg.mxu0
    %v2262 = vadd.f32 %v2080, %v2253
    %v2263 = vadd.f32 %v2081, %v2255
    %v2264 = vadd.f32 %v2082, %v2258
    %v2265 = vadd.f32 %v2083, %v2260
    %v2266 = vadd.f32 %v1894, %v2262
    %v2267 = vadd.f32 %v1895, %v2263
    %v2268 = vadd.f32 %v1896, %v2264
    %v2269 = vadd.f32 %v1897, %v2265
    %2270 = vst [vmem:[%s11] sm:$0xff] %v2266
    %2271 = vst [vmem:[%s11 + $0x8] sm:$0xff] %v2267
    %2272 = vst [vmem:[%s11 + $0x10] sm:$0xff] %v2268
    %2273 = vst [vmem:[%s11 + $0x18] sm:$0xff] %v2269
    // Predicated region
    $region74: #{_lambda_.20} parent=1 // pred_check
      _
    $region75: #{_lambda_.20} parent=1 // pred_check_branch
      %2275 = sbr.rel (0) target = $region77
    $region76: #{_lambda_.20} parent=1 // pred_region
      _
    $region77: #{_lambda_.20} parent=1 // pred_fallthru
      _
    // Predicated region
    $region78: #{_lambda_.20} parent=1 // pred_check
      _
    $region79: #{_lambda_.20} parent=1 // pred_check_branch
      %2277 = sbr.rel (0) target = $region81
    $region80: #{_lambda_.20} parent=1 // pred_region
      _
    $region81: #{_lambda_.20} parent=1 // pred_fallthru
      _
    %2278 = vsyncpa [#allocation6], 1
    %2279 = vsyncpa [#allocation8], 1
    %2280 = vsyncpa [#allocation11], 1
    %2281 = vsyncpa [#allocation14], 1

</llo_original>
